<compile_context>
chip_gen: v7x
topology: tpu7x:2x2x1
jax: 0.10.0
libtpu: 0.0.40
codegen_flags: <defaults>
</compile_context>

<pallas_src>
import math
import functools

import jax
import jax.numpy as jnp
from jax.experimental import pallas as pl
from jax.experimental.pallas import tpu as pltpu

EPS = 1e-5          # PyTorch LayerNorm default
NEG_INF = -1e30     # finite masked value (avoids inf-inf -> NaN)


# --------------------------------------------------------------------------
# in-kernel helpers (traced inside the single fused Pallas kernel)
# --------------------------------------------------------------------------
def _mm(a, b):
    """MXU matmul: bf16 operands, f32 accumulation."""
    return jnp.dot(a.astype(jnp.bfloat16), b.astype(jnp.bfloat16),
                   preferred_element_type=jnp.float32)


def _bmm(eq, a, b):
    """Head-batched MXU matmul: bf16 operands, f32 accumulation."""
    return jnp.einsum(eq, a.astype(jnp.bfloat16), b.astype(jnp.bfloat16),
                      preferred_element_type=jnp.float32)


def _layernorm(x, g, b):
    mu = jnp.mean(x, axis=-1, keepdims=True)
    var = jnp.mean(jnp.square(x - mu), axis=-1, keepdims=True)
    return (x - mu) * jax.lax.rsqrt(var + EPS) * g + b


def _mha(q_in, kv_in, w_in, b_in, wo, bo, *, nheads, bias=None):
    """PyTorch nn.MultiheadAttention semantics (packed in_proj, out_proj),
    head-batched.  q_in: (S, E), kv_in: (T, E), w_in: (E, 3E) pre-transposed."""
    S, E = q_in.shape
    dh = E // nheads
    q = _mm(q_in, w_in[:, :E]) + b_in[:, :E]
    k = _mm(kv_in, w_in[:, E:2 * E]) + b_in[:, E:2 * E]
    v = _mm(kv_in, w_in[:, 2 * E:]) + b_in[:, 2 * E:]
    q = q * (1.0 / math.sqrt(dh))                       # scale q once
    qh = jnp.stack([q[:, h * dh:(h + 1) * dh] for h in range(nheads)], axis=0)
    kh = jnp.stack([k[:, h * dh:(h + 1) * dh] for h in range(nheads)], axis=0)
    vh = jnp.stack([v[:, h * dh:(h + 1) * dh] for h in range(nheads)], axis=0)
    s = _bmm('hsd,htd->hst', qh, kh)                    # (H, S, T) f32
    if bias is not None:
        s = s + bias                                    # (S, T) broadcast over H
    s = s - jnp.max(s, axis=-1, keepdims=True)
    p = jnp.exp(s)
    p = p * pl.reciprocal(jnp.sum(p, axis=-1, keepdims=True), approx=True)
    ctx = _bmm('hst,htd->hsd', p, vh)                   # (H, S, dh)
    ctx = jnp.concatenate([ctx[h] for h in range(nheads)], axis=-1)   # (S, E)
    return _mm(ctx, wo) + bo


def _encoder_layer(x, w_in, b_in, wo, bo, w1, b1, w2, b2,
                   g1, be1, g2, be2, *, nheads):
    attn = _mha(x, x, w_in, b_in, wo, bo, nheads=nheads)       # no src mask
    x = _layernorm(x + attn, g1, be1)
    h = jnp.maximum(_mm(x, w1) + b1, 0.0)
    return _layernorm(x + _mm(h, w2) + b2, g2, be2)


def _decoder_layer(y, mem, causal,
                   sa_w_in, sa_b_in, sa_wo, sa_bo,
                   ca_w_in, ca_b_in, ca_wo, ca_bo,
                   w1, b1, w2, b2, g1, be1, g2, be2, g3, be3, *, nheads):
    sa = _mha(y, y, sa_w_in, sa_b_in, sa_wo, sa_bo, nheads=nheads, bias=causal)
    y = _layernorm(y + sa, g1, be1)
    ca = _mha(y, mem, ca_w_in, ca_b_in, ca_wo, ca_bo, nheads=nheads)  # no mem mask
    y = _layernorm(y + ca, g2, be2)
    h = jnp.maximum(_mm(y, w1) + b1, 0.0)
    return _layernorm(y + _mm(h, w2) + b2, g3, be3)


# --------------------------------------------------------------------------
# single fused Pallas kernel: whole transformer forward for one batch element
# --------------------------------------------------------------------------
def _fused_transformer_kernel(src_ref, tgt_ref, *rest, nheads, n_enc, n_dec):
    (e_win, e_bin, e_wo, e_bo, e_w1, e_b1, e_w2, e_b2,
     e_g1, e_be1, e_g2, e_be2, enc_ng, enc_nb,
     d_sa_win, d_sa_bin, d_sa_wo, d_sa_bo,
     d_ca_win, d_ca_bin, d_ca_wo, d_ca_bo,
     d_w1, d_b1, d_w2, d_b2,
     d_g1, d_be1, d_g2, d_be2, d_g3, d_be3,
     dec_ng, dec_nb,
     w_proj, b_proj, out_ref) = rest

    # ----- encoder stack (statically unrolled over layers, weights resident) -----
    x = src_ref[...]
    for l in range(n_enc):
        x = _encoder_layer(x, e_win[l], e_bin[l], e_wo[l], e_bo[l],
                           e_w1[l], e_b1[l], e_w2[l], e_b2[l],
                           e_g1[l], e_be1[l], e_g2[l], e_be2[l], nheads=nheads)
    mem = _layernorm(x, enc_ng[...], enc_nb[...])      # encoder final norm

    # ----- causal mask built in-kernel (no HBM DMA of a mask array) -----
    T = tgt_ref.shape[0]
    row = jax.lax.broadcasted_iota(jnp.int32, (T, T), 0)
    col = jax.lax.broadcasted_iota(jnp.int32, (T, T), 1)
    causal = jnp.where(row >= col, 0.0, NEG_INF).astype(jnp.float32)

    # ----- decoder stack -----
    y = tgt_ref[...]
    for l in range(n_dec):
        y = _decoder_layer(y, mem, causal,
                           d_sa_win[l], d_sa_bin[l], d_sa_wo[l], d_sa_bo[l],
                           d_ca_win[l], d_ca_bin[l], d_ca_wo[l], d_ca_bo[l],
                           d_w1[l], d_b1[l], d_w2[l], d_b2[l],
                           d_g1[l], d_be1[l], d_g2[l], d_be2[l],
                           d_g3[l], d_be3[l], nheads=nheads)

    # ----- decoder final norm + tied vocab projection (lane-dense padded V) -----
    y = _layernorm(y, dec_ng[...], dec_nb[...])
    out_ref[...] = _mm(y, w_proj[...]) + b_proj[...]


# --------------------------------------------------------------------------
# parameters (deterministic, in-script).  Weights are stored pre-transposed
# (in_dim, out_dim) and stacked along a leading per-layer axis.
# --------------------------------------------------------------------------
def _sinusoidal_pe(max_len, d_model):
    position = jnp.arange(max_len, dtype=jnp.float32)[:, None]
    div_term = jnp.exp(jnp.arange(0, d_model, 2, dtype=jnp.float32)
                       * (-math.log(10000.0) / d_model))
    pe = jnp.zeros((max_len, d_model), jnp.float32)
    pe = pe.at[:, 0::2].set(jnp.sin(position * div_term))
    pe = pe.at[:, 1::2].set(jnp.cos(position * div_term))
    return pe


def init_params(key, vocab, d_model, dff, n_enc, n_dec, max_len):
    def u(k, shape, r=0.1):
        return jax.random.uniform(k, shape, jnp.float32, -r, r)

    def ones(shape):
        return jnp.ones(shape, jnp.float32)

    def zeros(shape):
        return jnp.zeros(shape, jnp.float32)

    keys = iter(jax.random.split(key, 16))
    E, F = d_model, dff

    params = {
        'emb': u(next(keys), (vocab, E)),          # tied embedding / output weight
        'out_bias': zeros((1, vocab)),             # decoder_embeddings.bias zero-init
        'pe': _sinusoidal_pe(max_len, E),
        'enc_norm_g': ones((1, E)), 'enc_norm_b': zeros((1, E)),
        'dec_norm_g': ones((1, E)), 'dec_norm_b': zeros((1, E)),
        'enc': {
            'w_in': u(next(keys), (n_enc, E, 3 * E)),
            'b_in': zeros((n_enc, 1, 3 * E)),
            'wo': u(next(keys), (n_enc, E, E)),
            'bo': zeros((n_enc, 1, E)),
            'w1': u(next(keys), (n_enc, E, F)),
            'b1': zeros((n_enc, 1, F)),
            'w2': u(next(keys), (n_enc, F, E)),
            'b2': zeros((n_enc, 1, E)),
            'g1': ones((n_enc, 1, E)), 'be1': zeros((n_enc, 1, E)),
            'g2': ones((n_enc, 1, E)), 'be2': zeros((n_enc, 1, E)),
        },
        'dec': {
            'sa_w_in': u(next(keys), (n_dec, E, 3 * E)),
            'sa_b_in': zeros((n_dec, 1, 3 * E)),
            'sa_wo': u(next(keys), (n_dec, E, E)),
            'sa_bo': zeros((n_dec, 1, E)),
            'ca_w_in': u(next(keys), (n_dec, E, 3 * E)),
            'ca_b_in': zeros((n_dec, 1, 3 * E)),
            'ca_wo': u(next(keys), (n_dec, E, E)),
            'ca_bo': zeros((n_dec, 1, E)),
            'w1': u(next(keys), (n_dec, E, F)),
            'b1': zeros((n_dec, 1, F)),
            'w2': u(next(keys), (n_dec, F, E)),
            'b2': zeros((n_dec, 1, E)),
            'g1': ones((n_dec, 1, E)), 'be1': zeros((n_dec, 1, E)),
            'g2': ones((n_dec, 1, E)), 'be2': zeros((n_dec, 1, E)),
            'g3': ones((n_dec, 1, E)), 'be3': zeros((n_dec, 1, E)),
        },
    }
    return params


# --------------------------------------------------------------------------
# forward pass (PyTorch-compatible layout at the boundary)
# --------------------------------------------------------------------------
def transformer_forward(params, src, tgt, *, d_model, nheads):
    # src: (S, N) int32 token ids;  tgt: (T, N) int32 token ids
    # TODO(synk): src/tgt key_padding_mask not wired into the kernel (example passes None).
    S, N = src.shape
    T, _ = tgt.shape
    emb = params['emb']
    pe = params['pe']
    V = emb.shape[0]
    VP = ((V + 127) // 128) * 128                       # lane-dense padded vocab

    # embedding gather + positional encoding (glue in plain JAX); dropout = identity
    src_x = emb[src] * math.sqrt(d_model) + pe[:S][:, None, :]     # (S, N, E)
    tgt_x = emb[tgt] * math.sqrt(d_model) + pe[:T][:, None, :]     # (T, N, E)
    src_x = jnp.transpose(src_x, (1, 0, 2)).astype(jnp.float32)    # (N, S, E)
    tgt_x = jnp.transpose(tgt_x, (1, 0, 2)).astype(jnp.float32)    # (N, T, E)

    # tied-weight projection, pre-transposed and vocab-padded to 128 lanes
    w_proj = jnp.zeros((d_model, VP), jnp.bfloat16).at[:, :V].set(
        emb.T.astype(jnp.bfloat16))
    b_proj = jnp.zeros((1, VP), jnp.float32).at[:, :V].set(params['out_bias'])

    enc, dec = params['enc'], params['dec']

    def bf16(a):                                        # MXU operand weights -> bf16
        return a.astype(jnp.bfloat16)

    weight_inputs = [
        bf16(enc['w_in']), enc['b_in'], bf16(enc['wo']), enc['bo'],
        bf16(enc['w1']), enc['b1'], bf16(enc['w2']), enc['b2'],
        enc['g1'], enc['be1'], enc['g2'], enc['be2'],
        params['enc_norm_g'], params['enc_norm_b'],
        bf16(dec['sa_w_in']), dec['sa_b_in'], bf16(dec['sa_wo']), dec['sa_bo'],
        bf16(dec['ca_w_in']), dec['ca_b_in'], bf16(dec['ca_wo']), dec['ca_bo'],
        bf16(dec['w1']), dec['b1'], bf16(dec['w2']), dec['b2'],
        dec['g1'], dec['be1'], dec['g2'], dec['be2'], dec['g3'], dec['be3'],
        params['dec_norm_g'], params['dec_norm_b'],
        w_proj, b_proj,
    ]

    n_enc = enc['w_in'].shape[0]
    n_dec = dec['sa_w_in'].shape[0]
    kernel = functools.partial(_fused_transformer_kernel,
                               nheads=nheads, n_enc=n_enc, n_dec=n_dec)

    # Whole model + weights (<1 MiB here) fit in VMEM on all generations.
    # TODO(synk): at realistic sizes (vocab ~50k, long S/T) tile the vocab
    #             projection over a "parallel" grid axis and pipeline layer
    #             weights (pl.Buffered) instead of keeping them resident.
    vmem_full = pl.BlockSpec(memory_space=pltpu.MemorySpace.VMEM)
    logits_pad = pl.pallas_call(
        kernel,
        grid=(N,),                                      # one batch element per grid step
        in_specs=[pl.BlockSpec((None, S, d_model), lambda n: (n, 0, 0)),
                  pl.BlockSpec((None, T, d_model), lambda n: (n, 0, 0))]
                 + [vmem_full] * len(weight_inputs),
        out_specs=pl.BlockSpec((None, T, VP), lambda n: (n, 0, 0)),
        out_shape=jax.ShapeDtypeStruct((N, T, VP), jnp.float32),
        compiler_params=pltpu.CompilerParams(
            dimension_semantics=("parallel",)),         # shard batch across TCs (v7x)
    )(src_x, tgt_x, *weight_inputs)

    logits = logits_pad[:, :, :V]                       # drop vocab padding
    return jnp.transpose(logits, (1, 0, 2))             # (T, N, V) like PyTorch


# --------------------------------------------------------------------------
if __name__ == "__main__":
    VOCAB = 50
    D_MODEL = 32
    NHEADS = 4
    N_ENC = 2
    N_DEC = 2
    DFF = 64
    MAX_LEN = 64
    S, T, BATCH = 8, 8, 2

    key = jax.random.PRNGKey(0)
    pkey, skey, tkey = jax.random.split(key, 3)
    params = init_params(pkey, VOCAB, D_MODEL, DFF, N_ENC, N_DEC, MAX_LEN)

    src = jax.random.randint(skey, (S, BATCH), 0, VOCAB, dtype=jnp.int32)
    tgt = jax.random.randint(tkey, (T, BATCH), 0, VOCAB, dtype=jnp.int32)

    out = transformer_forward(params, src, tgt, d_model=D_MODEL, nheads=NHEADS)
    out = jax.block_until_ready(out)

    assert out.shape == (T, BATCH, VOCAB), out.shape
    assert bool(jnp.all(jnp.isfinite(out)))
    print("KERNEL_OK")
</pallas_src>

<mosaic_0001>
module attributes {stable_mosaic.version = 11 : i64} {
  func.func @_fused_transformer_kernel(%arg0: i32, %arg1: memref<1x8x32xf32, #tpu.memory_space<vmem>>, %arg2: memref<1x8x32xf32, #tpu.memory_space<vmem>>, %arg3: memref<2x32x96xbf16, #tpu.memory_space<vmem>>, %arg4: memref<2x1x96xf32, #tpu.memory_space<vmem>>, %arg5: memref<2x32x32xbf16, #tpu.memory_space<vmem>>, %arg6: memref<2x1x32xf32, #tpu.memory_space<vmem>>, %arg7: memref<2x32x64xbf16, #tpu.memory_space<vmem>>, %arg8: memref<2x1x64xf32, #tpu.memory_space<vmem>>, %arg9: memref<2x64x32xbf16, #tpu.memory_space<vmem>>, %arg10: memref<2x1x32xf32, #tpu.memory_space<vmem>>, %arg11: memref<2x1x32xf32, #tpu.memory_space<vmem>>, %arg12: memref<2x1x32xf32, #tpu.memory_space<vmem>>, %arg13: memref<2x1x32xf32, #tpu.memory_space<vmem>>, %arg14: memref<2x1x32xf32, #tpu.memory_space<vmem>>, %arg15: memref<1x32xf32, #tpu.memory_space<vmem>>, %arg16: memref<1x32xf32, #tpu.memory_space<vmem>>, %arg17: memref<2x32x96xbf16, #tpu.memory_space<vmem>>, %arg18: memref<2x1x96xf32, #tpu.memory_space<vmem>>, %arg19: memref<2x32x32xbf16, #tpu.memory_space<vmem>>, %arg20: memref<2x1x32xf32, #tpu.memory_space<vmem>>, %arg21: memref<2x32x96xbf16, #tpu.memory_space<vmem>>, %arg22: memref<2x1x96xf32, #tpu.memory_space<vmem>>, %arg23: memref<2x32x32xbf16, #tpu.memory_space<vmem>>, %arg24: memref<2x1x32xf32, #tpu.memory_space<vmem>>, %arg25: memref<2x32x64xbf16, #tpu.memory_space<vmem>>, %arg26: memref<2x1x64xf32, #tpu.memory_space<vmem>>, %arg27: memref<2x64x32xbf16, #tpu.memory_space<vmem>>, %arg28: memref<2x1x32xf32, #tpu.memory_space<vmem>>, %arg29: memref<2x1x32xf32, #tpu.memory_space<vmem>>, %arg30: memref<2x1x32xf32, #tpu.memory_space<vmem>>, %arg31: memref<2x1x32xf32, #tpu.memory_space<vmem>>, %arg32: memref<2x1x32xf32, #tpu.memory_space<vmem>>, %arg33: memref<2x1x32xf32, #tpu.memory_space<vmem>>, %arg34: memref<2x1x32xf32, #tpu.memory_space<vmem>>, %arg35: memref<1x32xf32, #tpu.memory_space<vmem>>, %arg36: memref<1x32xf32, #tpu.memory_space<vmem>>, %arg37: memref<32x128xbf16, #tpu.memory_space<vmem>>, %arg38: memref<1x128xf32, #tpu.memory_space<vmem>>, %arg39: memref<1x8x128xf32, #tpu.memory_space<vmem>>) attributes {dimension_semantics = [#tpu.dimension_semantics<parallel>], iteration_bounds = array<i64: 2>, scalar_prefetch = 0 : i64, scratch_operands = 0 : i64, tpu.core_type = #tpu.core_type<tc>, window_params = [{transform_indices = @transform_0, window_bounds = array<i64: 1, 8, 32>}, {transform_indices = @transform_1, window_bounds = array<i64: 1, 8, 32>}, {pipeline_mode = #tpu.pipeline_mode<synchronous>, transform_indices = @transform_2, window_bounds = array<i64: 2, 32, 96>}, {pipeline_mode = #tpu.pipeline_mode<synchronous>, transform_indices = @transform_3, window_bounds = array<i64: 2, 1, 96>}, {pipeline_mode = #tpu.pipeline_mode<synchronous>, transform_indices = @transform_4, window_bounds = array<i64: 2, 32, 32>}, {pipeline_mode = #tpu.pipeline_mode<synchronous>, transform_indices = @transform_5, window_bounds = array<i64: 2, 1, 32>}, {pipeline_mode = #tpu.pipeline_mode<synchronous>, transform_indices = @transform_6, window_bounds = array<i64: 2, 32, 64>}, {pipeline_mode = #tpu.pipeline_mode<synchronous>, transform_indices = @transform_7, window_bounds = array<i64: 2, 1, 64>}, {pipeline_mode = #tpu.pipeline_mode<synchronous>, transform_indices = @transform_8, window_bounds = array<i64: 2, 64, 32>}, {pipeline_mode = #tpu.pipeline_mode<synchronous>, transform_indices = @transform_9, window_bounds = array<i64: 2, 1, 32>}, {pipeline_mode = #tpu.pipeline_mode<synchronous>, transform_indices = @transform_10, window_bounds = array<i64: 2, 1, 32>}, {pipeline_mode = #tpu.pipeline_mode<synchronous>, transform_indices = @transform_11, window_bounds = array<i64: 2, 1, 32>}, {pipeline_mode = #tpu.pipeline_mode<synchronous>, transform_indices = @transform_12, window_bounds = array<i64: 2, 1, 32>}, {pipeline_mode = #tpu.pipeline_mode<synchronous>, transform_indices = @transform_13, window_bounds = array<i64: 2, 1, 32>}, {pipeline_mode = #tpu.pipeline_mode<synchronous>, transform_indices = @transform_14, window_bounds = array<i64: 1, 32>}, {pipeline_mode = #tpu.pipeline_mode<synchronous>, transform_indices = @transform_15, window_bounds = array<i64: 1, 32>}, {pipeline_mode = #tpu.pipeline_mode<synchronous>, transform_indices = @transform_16, window_bounds = array<i64: 2, 32, 96>}, {pipeline_mode = #tpu.pipeline_mode<synchronous>, transform_indices = @transform_17, window_bounds = array<i64: 2, 1, 96>}, {pipeline_mode = #tpu.pipeline_mode<synchronous>, transform_indices = @transform_18, window_bounds = array<i64: 2, 32, 32>}, {pipeline_mode = #tpu.pipeline_mode<synchronous>, transform_indices = @transform_19, window_bounds = array<i64: 2, 1, 32>}, {pipeline_mode = #tpu.pipeline_mode<synchronous>, transform_indices = @transform_20, window_bounds = array<i64: 2, 32, 96>}, {pipeline_mode = #tpu.pipeline_mode<synchronous>, transform_indices = @transform_21, window_bounds = array<i64: 2, 1, 96>}, {pipeline_mode = #tpu.pipeline_mode<synchronous>, transform_indices = @transform_22, window_bounds = array<i64: 2, 32, 32>}, {pipeline_mode = #tpu.pipeline_mode<synchronous>, transform_indices = @transform_23, window_bounds = array<i64: 2, 1, 32>}, {pipeline_mode = #tpu.pipeline_mode<synchronous>, transform_indices = @transform_24, window_bounds = array<i64: 2, 32, 64>}, {pipeline_mode = #tpu.pipeline_mode<synchronous>, transform_indices = @transform_25, window_bounds = array<i64: 2, 1, 64>}, {pipeline_mode = #tpu.pipeline_mode<synchronous>, transform_indices = @transform_26, window_bounds = array<i64: 2, 64, 32>}, {pipeline_mode = #tpu.pipeline_mode<synchronous>, transform_indices = @transform_27, window_bounds = array<i64: 2, 1, 32>}, {pipeline_mode = #tpu.pipeline_mode<synchronous>, transform_indices = @transform_28, window_bounds = array<i64: 2, 1, 32>}, {pipeline_mode = #tpu.pipeline_mode<synchronous>, transform_indices = @transform_29, window_bounds = array<i64: 2, 1, 32>}, {pipeline_mode = #tpu.pipeline_mode<synchronous>, transform_indices = @transform_30, window_bounds = array<i64: 2, 1, 32>}, {pipeline_mode = #tpu.pipeline_mode<synchronous>, transform_indices = @transform_31, window_bounds = array<i64: 2, 1, 32>}, {pipeline_mode = #tpu.pipeline_mode<synchronous>, transform_indices = @transform_32, window_bounds = array<i64: 2, 1, 32>}, {pipeline_mode = #tpu.pipeline_mode<synchronous>, transform_indices = @transform_33, window_bounds = array<i64: 2, 1, 32>}, {pipeline_mode = #tpu.pipeline_mode<synchronous>, transform_indices = @transform_34, window_bounds = array<i64: 1, 32>}, {pipeline_mode = #tpu.pipeline_mode<synchronous>, transform_indices = @transform_35, window_bounds = array<i64: 1, 32>}, {pipeline_mode = #tpu.pipeline_mode<synchronous>, transform_indices = @transform_36, window_bounds = array<i64: 32, 128>}, {pipeline_mode = #tpu.pipeline_mode<synchronous>, transform_indices = @transform_37, window_bounds = array<i64: 1, 128>}, {transform_indices = @transform_38, window_bounds = array<i64: 1, 8, 128>}]} {
    %c0 = arith.constant 0 : index
    %c0_0 = arith.constant 0 : index
    %c0_1 = arith.constant 0 : index
    %0 = vector.load %arg1[%c0, %c0_0, %c0_1] : memref<1x8x32xf32, #tpu.memory_space<vmem>>, vector<1x8x32xf32>
    %1 = vector.shape_cast %0 : vector<1x8x32xf32> to vector<8x32xf32>
    %c0_2 = arith.constant 0 : index
    %c0_3 = arith.constant 0 : index
    %c0_4 = arith.constant 0 : index
    %2 = vector.load %arg3[%c0_2, %c0_3, %c0_4] : memref<2x32x96xbf16, #tpu.memory_space<vmem>>, vector<1x32x96xbf16>
    %3 = vector.shape_cast %2 : vector<1x32x96xbf16> to vector<32x96xbf16>
    %c0_5 = arith.constant 0 : index
    %c0_6 = arith.constant 0 : index
    %c0_7 = arith.constant 0 : index
    %4 = vector.load %arg4[%c0_5, %c0_6, %c0_7] : memref<2x1x96xf32, #tpu.memory_space<vmem>>, vector<1x1x96xf32>
    %5 = vector.shape_cast %4 : vector<1x1x96xf32> to vector<1x96xf32>
    %c0_8 = arith.constant 0 : index
    %c0_9 = arith.constant 0 : index
    %c0_10 = arith.constant 0 : index
    %6 = vector.load %arg5[%c0_8, %c0_9, %c0_10] : memref<2x32x32xbf16, #tpu.memory_space<vmem>>, vector<1x32x32xbf16>
    %7 = vector.shape_cast %6 : vector<1x32x32xbf16> to vector<32x32xbf16>
    %c0_11 = arith.constant 0 : index
    %c0_12 = arith.constant 0 : index
    %c0_13 = arith.constant 0 : index
    %8 = vector.load %arg6[%c0_11, %c0_12, %c0_13] : memref<2x1x32xf32, #tpu.memory_space<vmem>>, vector<1x1x32xf32>
    %9 = vector.shape_cast %8 : vector<1x1x32xf32> to vector<1x32xf32>
    %c0_14 = arith.constant 0 : index
    %c0_15 = arith.constant 0 : index
    %c0_16 = arith.constant 0 : index
    %10 = vector.load %arg7[%c0_14, %c0_15, %c0_16] : memref<2x32x64xbf16, #tpu.memory_space<vmem>>, vector<1x32x64xbf16>
    %11 = vector.shape_cast %10 : vector<1x32x64xbf16> to vector<32x64xbf16>
    %c0_17 = arith.constant 0 : index
    %c0_18 = arith.constant 0 : index
    %c0_19 = arith.constant 0 : index
    %12 = vector.load %arg8[%c0_17, %c0_18, %c0_19] : memref<2x1x64xf32, #tpu.memory_space<vmem>>, vector<1x1x64xf32>
    %13 = vector.shape_cast %12 : vector<1x1x64xf32> to vector<1x64xf32>
    %c0_20 = arith.constant 0 : index
    %c0_21 = arith.constant 0 : index
    %c0_22 = arith.constant 0 : index
    %14 = vector.load %arg9[%c0_20, %c0_21, %c0_22] : memref<2x64x32xbf16, #tpu.memory_space<vmem>>, vector<1x64x32xbf16>
    %15 = vector.shape_cast %14 : vector<1x64x32xbf16> to vector<64x32xbf16>
    %c0_23 = arith.constant 0 : index
    %c0_24 = arith.constant 0 : index
    %c0_25 = arith.constant 0 : index
    %16 = vector.load %arg10[%c0_23, %c0_24, %c0_25] : memref<2x1x32xf32, #tpu.memory_space<vmem>>, vector<1x1x32xf32>
    %17 = vector.shape_cast %16 : vector<1x1x32xf32> to vector<1x32xf32>
    %c0_26 = arith.constant 0 : index
    %c0_27 = arith.constant 0 : index
    %c0_28 = arith.constant 0 : index
    %18 = vector.load %arg11[%c0_26, %c0_27, %c0_28] : memref<2x1x32xf32, #tpu.memory_space<vmem>>, vector<1x1x32xf32>
    %19 = vector.shape_cast %18 : vector<1x1x32xf32> to vector<1x32xf32>
    %c0_29 = arith.constant 0 : index
    %c0_30 = arith.constant 0 : index
    %c0_31 = arith.constant 0 : index
    %20 = vector.load %arg12[%c0_29, %c0_30, %c0_31] : memref<2x1x32xf32, #tpu.memory_space<vmem>>, vector<1x1x32xf32>
    %21 = vector.shape_cast %20 : vector<1x1x32xf32> to vector<1x32xf32>
    %c0_32 = arith.constant 0 : index
    %c0_33 = arith.constant 0 : index
    %c0_34 = arith.constant 0 : index
    %22 = vector.load %arg13[%c0_32, %c0_33, %c0_34] : memref<2x1x32xf32, #tpu.memory_space<vmem>>, vector<1x1x32xf32>
    %23 = vector.shape_cast %22 : vector<1x1x32xf32> to vector<1x32xf32>
    %c0_35 = arith.constant 0 : index
    %c0_36 = arith.constant 0 : index
    %c0_37 = arith.constant 0 : index
    %24 = vector.load %arg14[%c0_35, %c0_36, %c0_37] : memref<2x1x32xf32, #tpu.memory_space<vmem>>, vector<1x1x32xf32>
    %25 = vector.shape_cast %24 : vector<1x1x32xf32> to vector<1x32xf32>
    %26 = vector.extract_strided_slice %3 {offsets = [0, 0], sizes = [32, 32], strides = [1, 1]} : vector<32x96xbf16> to vector<32x32xbf16>
    %27 = arith.truncf %1 : vector<8x32xf32> to vector<8x32xbf16>
    %cst = arith.constant dense<0.000000e+00> : vector<8x32xf32>
    %28 = tpu.matmul %27, %26, %cst {dimension_numbers = #tpu.dot_dimension_numbers<[1], [0], [0], [1], [0, 0, 1, 1], [], []>} : vector<8x32xbf16>, vector<32x32xbf16>, vector<8x32xf32> -> vector<8x32xf32>
    %29 = vector.extract_strided_slice %5 {offsets = [0, 0], sizes = [1, 32], strides = [1, 1]} : vector<1x96xf32> to vector<1x32xf32>
    %30 = vector.broadcast %29 : vector<1x32xf32> to vector<8x32xf32>
    %31 = arith.addf %28, %30 : vector<8x32xf32>
    %32 = vector.extract_strided_slice %3 {offsets = [0, 32], sizes = [32, 32], strides = [1, 1]} : vector<32x96xbf16> to vector<32x32xbf16>
    %33 = arith.truncf %1 : vector<8x32xf32> to vector<8x32xbf16>
    %cst_38 = arith.constant dense<0.000000e+00> : vector<8x32xf32>
    %34 = tpu.matmul %33, %32, %cst_38 {dimension_numbers = #tpu.dot_dimension_numbers<[1], [0], [0], [1], [0, 0, 1, 1], [], []>} : vector<8x32xbf16>, vector<32x32xbf16>, vector<8x32xf32> -> vector<8x32xf32>
    %35 = vector.extract_strided_slice %5 {offsets = [0, 32], sizes = [1, 32], strides = [1, 1]} : vector<1x96xf32> to vector<1x32xf32>
    %36 = vector.broadcast %35 : vector<1x32xf32> to vector<8x32xf32>
    %37 = arith.addf %34, %36 : vector<8x32xf32>
    %38 = vector.extract_strided_slice %3 {offsets = [0, 64], sizes = [32, 32], strides = [1, 1]} : vector<32x96xbf16> to vector<32x32xbf16>
    %39 = arith.truncf %1 : vector<8x32xf32> to vector<8x32xbf16>
    %cst_39 = arith.constant dense<0.000000e+00> : vector<8x32xf32>
    %40 = tpu.matmul %39, %38, %cst_39 {dimension_numbers = #tpu.dot_dimension_numbers<[1], [0], [0], [1], [0, 0, 1, 1], [], []>} : vector<8x32xbf16>, vector<32x32xbf16>, vector<8x32xf32> -> vector<8x32xf32>
    %41 = vector.extract_strided_slice %5 {offsets = [0, 64], sizes = [1, 32], strides = [1, 1]} : vector<1x96xf32> to vector<1x32xf32>
    %42 = vector.broadcast %41 : vector<1x32xf32> to vector<8x32xf32>
    %43 = arith.addf %40, %42 : vector<8x32xf32>
    %cst_40 = arith.constant 0.353553385 : f32
    %44 = vector.broadcast %cst_40 : f32 to vector<8x32xf32>
    %45 = arith.mulf %31, %44 : vector<8x32xf32>
    %46 = vector.extract_strided_slice %45 {offsets = [0, 0], sizes = [8, 8], strides = [1, 1]} : vector<8x32xf32> to vector<8x8xf32>
    %47 = vector.extract_strided_slice %45 {offsets = [0, 8], sizes = [8, 8], strides = [1, 1]} : vector<8x32xf32> to vector<8x8xf32>
    %48 = vector.extract_strided_slice %45 {offsets = [0, 16], sizes = [8, 8], strides = [1, 1]} : vector<8x32xf32> to vector<8x8xf32>
    %49 = vector.extract_strided_slice %45 {offsets = [0, 24], sizes = [8, 8], strides = [1, 1]} : vector<8x32xf32> to vector<8x8xf32>
    %50 = vector.shape_cast %46 : vector<8x8xf32> to vector<1x8x8xf32>
    %51 = vector.shape_cast %47 : vector<8x8xf32> to vector<1x8x8xf32>
    %52 = vector.shape_cast %48 : vector<8x8xf32> to vector<1x8x8xf32>
    %53 = vector.shape_cast %49 : vector<8x8xf32> to vector<1x8x8xf32>
    %54 = tpu.concatenate %50, %51, %52, %53 in 0 : vector<1x8x8xf32>, vector<1x8x8xf32>, vector<1x8x8xf32>, vector<1x8x8xf32> -> vector<4x8x8xf32>
    %55 = vector.extract_strided_slice %37 {offsets = [0, 0], sizes = [8, 8], strides = [1, 1]} : vector<8x32xf32> to vector<8x8xf32>
    %56 = vector.extract_strided_slice %37 {offsets = [0, 8], sizes = [8, 8], strides = [1, 1]} : vector<8x32xf32> to vector<8x8xf32>
    %57 = vector.extract_strided_slice %37 {offsets = [0, 16], sizes = [8, 8], strides = [1, 1]} : vector<8x32xf32> to vector<8x8xf32>
    %58 = vector.extract_strided_slice %37 {offsets = [0, 24], sizes = [8, 8], strides = [1, 1]} : vector<8x32xf32> to vector<8x8xf32>
    %59 = vector.shape_cast %55 : vector<8x8xf32> to vector<1x8x8xf32>
    %60 = vector.shape_cast %56 : vector<8x8xf32> to vector<1x8x8xf32>
    %61 = vector.shape_cast %57 : vector<8x8xf32> to vector<1x8x8xf32>
    %62 = vector.shape_cast %58 : vector<8x8xf32> to vector<1x8x8xf32>
    %63 = tpu.concatenate %59, %60, %61, %62 in 0 : vector<1x8x8xf32>, vector<1x8x8xf32>, vector<1x8x8xf32>, vector<1x8x8xf32> -> vector<4x8x8xf32>
    %64 = vector.extract_strided_slice %43 {offsets = [0, 0], sizes = [8, 8], strides = [1, 1]} : vector<8x32xf32> to vector<8x8xf32>
    %65 = vector.extract_strided_slice %43 {offsets = [0, 8], sizes = [8, 8], strides = [1, 1]} : vector<8x32xf32> to vector<8x8xf32>
    %66 = vector.extract_strided_slice %43 {offsets = [0, 16], sizes = [8, 8], strides = [1, 1]} : vector<8x32xf32> to vector<8x8xf32>
    %67 = vector.extract_strided_slice %43 {offsets = [0, 24], sizes = [8, 8], strides = [1, 1]} : vector<8x32xf32> to vector<8x8xf32>
    %68 = vector.shape_cast %64 : vector<8x8xf32> to vector<1x8x8xf32>
    %69 = vector.shape_cast %65 : vector<8x8xf32> to vector<1x8x8xf32>
    %70 = vector.shape_cast %66 : vector<8x8xf32> to vector<1x8x8xf32>
    %71 = vector.shape_cast %67 : vector<8x8xf32> to vector<1x8x8xf32>
    %72 = tpu.concatenate %68, %69, %70, %71 in 0 : vector<1x8x8xf32>, vector<1x8x8xf32>, vector<1x8x8xf32>, vector<1x8x8xf32> -> vector<4x8x8xf32>
    %73 = arith.truncf %54 : vector<4x8x8xf32> to vector<4x8x8xbf16>
    %74 = arith.truncf %63 : vector<4x8x8xf32> to vector<4x8x8xbf16>
    "tpu.trace_start"() <{level = 10 : i32, message = "hsd,htd->hst"}> : () -> ()
    %cst_41 = arith.constant dense<0.000000e+00> : vector<4x8x8xf32>
    %75 = tpu.matmul %73, %74, %cst_41 {dimension_numbers = #tpu.dot_dimension_numbers<[2], [2], [1], [1], [0, 0, 0, 1, 1, 1], [0], [0]>} : vector<4x8x8xbf16>, vector<4x8x8xbf16>, vector<4x8x8xf32> -> vector<4x8x8xf32>
    "tpu.trace_stop"() : () -> ()
    %cst_42 = arith.constant dense<0xFF800000> : vector<4x8xf32>
    %76 = vector.multi_reduction <maximumf>, %75, %cst_42 [2] : vector<4x8x8xf32> to vector<4x8xf32>
    %77 = vector.shape_cast %76 : vector<4x8xf32> to vector<4x8x1xf32>
    %78 = vector.broadcast %77 : vector<4x8x1xf32> to vector<4x8x8xf32>
    %79 = arith.subf %75, %78 : vector<4x8x8xf32>
    %80 = math.exp %79 : vector<4x8x8xf32>
    %cst_43 = arith.constant dense<0.000000e+00> : vector<4x8xf32>
    %81 = vector.multi_reduction <add>, %80, %cst_43 [2] : vector<4x8x8xf32> to vector<4x8xf32>
    %82 = vector.shape_cast %81 : vector<4x8xf32> to vector<4x8x1xf32>
    %83 = tpu.reciprocal %82 {approx = true} : vector<4x8x1xf32> -> vector<4x8x1xf32>
    %84 = vector.broadcast %83 : vector<4x8x1xf32> to vector<4x8x8xf32>
    %85 = arith.mulf %80, %84 : vector<4x8x8xf32>
    %86 = arith.truncf %85 : vector<4x8x8xf32> to vector<4x8x8xbf16>
    %87 = arith.truncf %72 : vector<4x8x8xf32> to vector<4x8x8xbf16>
    "tpu.trace_start"() <{level = 10 : i32, message = "hst,htd->hsd"}> : () -> ()
    %cst_44 = arith.constant dense<0.000000e+00> : vector<4x8x8xf32>
    %88 = tpu.matmul %86, %87, %cst_44 {dimension_numbers = #tpu.dot_dimension_numbers<[2], [1], [1], [2], [0, 0, 0, 1, 1, 2], [0], [0]>} : vector<4x8x8xbf16>, vector<4x8x8xbf16>, vector<4x8x8xf32> -> vector<4x8x8xf32>
    "tpu.trace_stop"() : () -> ()
    %89 = vector.extract_strided_slice %88 {offsets = [0, 0, 0], sizes = [1, 8, 8], strides = [1, 1, 1]} : vector<4x8x8xf32> to vector<1x8x8xf32>
    %90 = vector.shape_cast %89 : vector<1x8x8xf32> to vector<8x8xf32>
    %91 = vector.extract_strided_slice %88 {offsets = [1, 0, 0], sizes = [1, 8, 8], strides = [1, 1, 1]} : vector<4x8x8xf32> to vector<1x8x8xf32>
    %92 = vector.shape_cast %91 : vector<1x8x8xf32> to vector<8x8xf32>
    %93 = vector.extract_strided_slice %88 {offsets = [2, 0, 0], sizes = [1, 8, 8], strides = [1, 1, 1]} : vector<4x8x8xf32> to vector<1x8x8xf32>
    %94 = vector.shape_cast %93 : vector<1x8x8xf32> to vector<8x8xf32>
    %95 = vector.extract_strided_slice %88 {offsets = [3, 0, 0], sizes = [1, 8, 8], strides = [1, 1, 1]} : vector<4x8x8xf32> to vector<1x8x8xf32>
    %96 = vector.shape_cast %95 : vector<1x8x8xf32> to vector<8x8xf32>
    %97 = tpu.concatenate %90, %92, %94, %96 in 1 : vector<8x8xf32>, vector<8x8xf32>, vector<8x8xf32>, vector<8x8xf32> -> vector<8x32xf32>
    %98 = arith.truncf %97 : vector<8x32xf32> to vector<8x32xbf16>
    %cst_45 = arith.constant dense<0.000000e+00> : vector<8x32xf32>
    %99 = tpu.matmul %98, %7, %cst_45 {dimension_numbers = #tpu.dot_dimension_numbers<[1], [0], [0], [1], [0, 0, 1, 1], [], []>} : vector<8x32xbf16>, vector<32x32xbf16>, vector<8x32xf32> -> vector<8x32xf32>
    %100 = vector.broadcast %9 : vector<1x32xf32> to vector<8x32xf32>
    %101 = arith.addf %99, %100 : vector<8x32xf32>
    %102 = arith.addf %1, %101 : vector<8x32xf32>
    %cst_46 = arith.constant dense<0.000000e+00> : vector<8xf32>
    %103 = vector.multi_reduction <add>, %102, %cst_46 [1] : vector<8x32xf32> to vector<8xf32>
    %104 = vector.shape_cast %103 : vector<8xf32> to vector<8x1xf32>
    %cst_47 = arith.constant 3.200000e+01 : f32
    %105 = vector.broadcast %cst_47 : f32 to vector<8x1xf32>
    %106 = arith.divf %104, %105 : vector<8x1xf32>
    %107 = vector.broadcast %106 : vector<8x1xf32> to vector<8x32xf32>
    %108 = arith.subf %102, %107 : vector<8x32xf32>
    %109 = arith.mulf %108, %108 : vector<8x32xf32>
    %cst_48 = arith.constant dense<0.000000e+00> : vector<8xf32>
    %110 = vector.multi_reduction <add>, %109, %cst_48 [1] : vector<8x32xf32> to vector<8xf32>
    %111 = vector.shape_cast %110 : vector<8xf32> to vector<8x1xf32>
    %cst_49 = arith.constant 3.200000e+01 : f32
    %112 = vector.broadcast %cst_49 : f32 to vector<8x1xf32>
    %113 = arith.divf %111, %112 : vector<8x1xf32>
    %114 = vector.broadcast %106 : vector<8x1xf32> to vector<8x32xf32>
    %115 = arith.subf %102, %114 : vector<8x32xf32>
    %cst_50 = arith.constant 9.99999974E-6 : f32
    %116 = vector.broadcast %cst_50 : f32 to vector<8x1xf32>
    %117 = arith.addf %113, %116 : vector<8x1xf32>
    %118 = math.rsqrt %117 : vector<8x1xf32>
    %119 = vector.broadcast %118 : vector<8x1xf32> to vector<8x32xf32>
    %120 = arith.mulf %115, %119 : vector<8x32xf32>
    %121 = vector.broadcast %19 : vector<1x32xf32> to vector<8x32xf32>
    %122 = arith.mulf %120, %121 : vector<8x32xf32>
    %123 = vector.broadcast %21 : vector<1x32xf32> to vector<8x32xf32>
    %124 = arith.addf %122, %123 : vector<8x32xf32>
    %125 = arith.truncf %124 : vector<8x32xf32> to vector<8x32xbf16>
    %cst_51 = arith.constant dense<0.000000e+00> : vector<8x64xf32>
    %126 = tpu.matmul %125, %11, %cst_51 {dimension_numbers = #tpu.dot_dimension_numbers<[1], [0], [0], [1], [0, 0, 1, 1], [], []>} : vector<8x32xbf16>, vector<32x64xbf16>, vector<8x64xf32> -> vector<8x64xf32>
    %127 = vector.broadcast %13 : vector<1x64xf32> to vector<8x64xf32>
    %128 = arith.addf %126, %127 : vector<8x64xf32>
    %cst_52 = arith.constant 0.000000e+00 : f32
    %129 = vector.broadcast %cst_52 : f32 to vector<8x64xf32>
    %130 = arith.maximumf %128, %129 : vector<8x64xf32>
    %131 = arith.truncf %130 : vector<8x64xf32> to vector<8x64xbf16>
    %cst_53 = arith.constant dense<0.000000e+00> : vector<8x32xf32>
    %132 = tpu.matmul %131, %15, %cst_53 {dimension_numbers = #tpu.dot_dimension_numbers<[1], [0], [0], [1], [0, 0, 1, 1], [], []>} : vector<8x64xbf16>, vector<64x32xbf16>, vector<8x32xf32> -> vector<8x32xf32>
    %133 = arith.addf %124, %132 : vector<8x32xf32>
    %134 = vector.broadcast %17 : vector<1x32xf32> to vector<8x32xf32>
    %135 = arith.addf %133, %134 : vector<8x32xf32>
    %cst_54 = arith.constant dense<0.000000e+00> : vector<8xf32>
    %136 = vector.multi_reduction <add>, %135, %cst_54 [1] : vector<8x32xf32> to vector<8xf32>
    %137 = vector.shape_cast %136 : vector<8xf32> to vector<8x1xf32>
    %cst_55 = arith.constant 3.200000e+01 : f32
    %138 = vector.broadcast %cst_55 : f32 to vector<8x1xf32>
    %139 = arith.divf %137, %138 : vector<8x1xf32>
    %140 = vector.broadcast %139 : vector<8x1xf32> to vector<8x32xf32>
    %141 = arith.subf %135, %140 : vector<8x32xf32>
    %142 = arith.mulf %141, %141 : vector<8x32xf32>
    %cst_56 = arith.constant dense<0.000000e+00> : vector<8xf32>
    %143 = vector.multi_reduction <add>, %142, %cst_56 [1] : vector<8x32xf32> to vector<8xf32>
    %144 = vector.shape_cast %143 : vector<8xf32> to vector<8x1xf32>
    %cst_57 = arith.constant 3.200000e+01 : f32
    %145 = vector.broadcast %cst_57 : f32 to vector<8x1xf32>
    %146 = arith.divf %144, %145 : vector<8x1xf32>
    %147 = vector.broadcast %139 : vector<8x1xf32> to vector<8x32xf32>
    %148 = arith.subf %135, %147 : vector<8x32xf32>
    %cst_58 = arith.constant 9.99999974E-6 : f32
    %149 = vector.broadcast %cst_58 : f32 to vector<8x1xf32>
    %150 = arith.addf %146, %149 : vector<8x1xf32>
    %151 = math.rsqrt %150 : vector<8x1xf32>
    %152 = vector.broadcast %151 : vector<8x1xf32> to vector<8x32xf32>
    %153 = arith.mulf %148, %152 : vector<8x32xf32>
    %154 = vector.broadcast %23 : vector<1x32xf32> to vector<8x32xf32>
    %155 = arith.mulf %153, %154 : vector<8x32xf32>
    %156 = vector.broadcast %25 : vector<1x32xf32> to vector<8x32xf32>
    %157 = arith.addf %155, %156 : vector<8x32xf32>
    %c1 = arith.constant 1 : index
    %c0_59 = arith.constant 0 : index
    %c0_60 = arith.constant 0 : index
    %158 = vector.load %arg3[%c1, %c0_59, %c0_60] : memref<2x32x96xbf16, #tpu.memory_space<vmem>>, vector<1x32x96xbf16>
    %159 = vector.shape_cast %158 : vector<1x32x96xbf16> to vector<32x96xbf16>
    %c1_61 = arith.constant 1 : index
    %c0_62 = arith.constant 0 : index
    %c0_63 = arith.constant 0 : index
    %160 = vector.load %arg4[%c1_61, %c0_62, %c0_63] : memref<2x1x96xf32, #tpu.memory_space<vmem>>, vector<1x1x96xf32>
    %161 = vector.shape_cast %160 : vector<1x1x96xf32> to vector<1x96xf32>
    %c1_64 = arith.constant 1 : index
    %c0_65 = arith.constant 0 : index
    %c0_66 = arith.constant 0 : index
    %162 = vector.load %arg5[%c1_64, %c0_65, %c0_66] : memref<2x32x32xbf16, #tpu.memory_space<vmem>>, vector<1x32x32xbf16>
    %163 = vector.shape_cast %162 : vector<1x32x32xbf16> to vector<32x32xbf16>
    %c1_67 = arith.constant 1 : index
    %c0_68 = arith.constant 0 : index
    %c0_69 = arith.constant 0 : index
    %164 = vector.load %arg6[%c1_67, %c0_68, %c0_69] : memref<2x1x32xf32, #tpu.memory_space<vmem>>, vector<1x1x32xf32>
    %165 = vector.shape_cast %164 : vector<1x1x32xf32> to vector<1x32xf32>
    %c1_70 = arith.constant 1 : index
    %c0_71 = arith.constant 0 : index
    %c0_72 = arith.constant 0 : index
    %166 = vector.load %arg7[%c1_70, %c0_71, %c0_72] : memref<2x32x64xbf16, #tpu.memory_space<vmem>>, vector<1x32x64xbf16>
    %167 = vector.shape_cast %166 : vector<1x32x64xbf16> to vector<32x64xbf16>
    %c1_73 = arith.constant 1 : index
    %c0_74 = arith.constant 0 : index
    %c0_75 = arith.constant 0 : index
    %168 = vector.load %arg8[%c1_73, %c0_74, %c0_75] : memref<2x1x64xf32, #tpu.memory_space<vmem>>, vector<1x1x64xf32>
    %169 = vector.shape_cast %168 : vector<1x1x64xf32> to vector<1x64xf32>
    %c1_76 = arith.constant 1 : index
    %c0_77 = arith.constant 0 : index
    %c0_78 = arith.constant 0 : index
    %170 = vector.load %arg9[%c1_76, %c0_77, %c0_78] : memref<2x64x32xbf16, #tpu.memory_space<vmem>>, vector<1x64x32xbf16>
    %171 = vector.shape_cast %170 : vector<1x64x32xbf16> to vector<64x32xbf16>
    %c1_79 = arith.constant 1 : index
    %c0_80 = arith.constant 0 : index
    %c0_81 = arith.constant 0 : index
    %172 = vector.load %arg10[%c1_79, %c0_80, %c0_81] : memref<2x1x32xf32, #tpu.memory_space<vmem>>, vector<1x1x32xf32>
    %173 = vector.shape_cast %172 : vector<1x1x32xf32> to vector<1x32xf32>
    %c1_82 = arith.constant 1 : index
    %c0_83 = arith.constant 0 : index
    %c0_84 = arith.constant 0 : index
    %174 = vector.load %arg11[%c1_82, %c0_83, %c0_84] : memref<2x1x32xf32, #tpu.memory_space<vmem>>, vector<1x1x32xf32>
    %175 = vector.shape_cast %174 : vector<1x1x32xf32> to vector<1x32xf32>
    %c1_85 = arith.constant 1 : index
    %c0_86 = arith.constant 0 : index
    %c0_87 = arith.constant 0 : index
    %176 = vector.load %arg12[%c1_85, %c0_86, %c0_87] : memref<2x1x32xf32, #tpu.memory_space<vmem>>, vector<1x1x32xf32>
    %177 = vector.shape_cast %176 : vector<1x1x32xf32> to vector<1x32xf32>
    %c1_88 = arith.constant 1 : index
    %c0_89 = arith.constant 0 : index
    %c0_90 = arith.constant 0 : index
    %178 = vector.load %arg13[%c1_88, %c0_89, %c0_90] : memref<2x1x32xf32, #tpu.memory_space<vmem>>, vector<1x1x32xf32>
    %179 = vector.shape_cast %178 : vector<1x1x32xf32> to vector<1x32xf32>
    %c1_91 = arith.constant 1 : index
    %c0_92 = arith.constant 0 : index
    %c0_93 = arith.constant 0 : index
    %180 = vector.load %arg14[%c1_91, %c0_92, %c0_93] : memref<2x1x32xf32, #tpu.memory_space<vmem>>, vector<1x1x32xf32>
    %181 = vector.shape_cast %180 : vector<1x1x32xf32> to vector<1x32xf32>
    %182 = vector.extract_strided_slice %159 {offsets = [0, 0], sizes = [32, 32], strides = [1, 1]} : vector<32x96xbf16> to vector<32x32xbf16>
    %183 = arith.truncf %157 : vector<8x32xf32> to vector<8x32xbf16>
    %cst_94 = arith.constant dense<0.000000e+00> : vector<8x32xf32>
    %184 = tpu.matmul %183, %182, %cst_94 {dimension_numbers = #tpu.dot_dimension_numbers<[1], [0], [0], [1], [0, 0, 1, 1], [], []>} : vector<8x32xbf16>, vector<32x32xbf16>, vector<8x32xf32> -> vector<8x32xf32>
    %185 = vector.extract_strided_slice %161 {offsets = [0, 0], sizes = [1, 32], strides = [1, 1]} : vector<1x96xf32> to vector<1x32xf32>
    %186 = vector.broadcast %185 : vector<1x32xf32> to vector<8x32xf32>
    %187 = arith.addf %184, %186 : vector<8x32xf32>
    %188 = vector.extract_strided_slice %159 {offsets = [0, 32], sizes = [32, 32], strides = [1, 1]} : vector<32x96xbf16> to vector<32x32xbf16>
    %189 = arith.truncf %157 : vector<8x32xf32> to vector<8x32xbf16>
    %cst_95 = arith.constant dense<0.000000e+00> : vector<8x32xf32>
    %190 = tpu.matmul %189, %188, %cst_95 {dimension_numbers = #tpu.dot_dimension_numbers<[1], [0], [0], [1], [0, 0, 1, 1], [], []>} : vector<8x32xbf16>, vector<32x32xbf16>, vector<8x32xf32> -> vector<8x32xf32>
    %191 = vector.extract_strided_slice %161 {offsets = [0, 32], sizes = [1, 32], strides = [1, 1]} : vector<1x96xf32> to vector<1x32xf32>
    %192 = vector.broadcast %191 : vector<1x32xf32> to vector<8x32xf32>
    %193 = arith.addf %190, %192 : vector<8x32xf32>
    %194 = vector.extract_strided_slice %159 {offsets = [0, 64], sizes = [32, 32], strides = [1, 1]} : vector<32x96xbf16> to vector<32x32xbf16>
    %195 = arith.truncf %157 : vector<8x32xf32> to vector<8x32xbf16>
    %cst_96 = arith.constant dense<0.000000e+00> : vector<8x32xf32>
    %196 = tpu.matmul %195, %194, %cst_96 {dimension_numbers = #tpu.dot_dimension_numbers<[1], [0], [0], [1], [0, 0, 1, 1], [], []>} : vector<8x32xbf16>, vector<32x32xbf16>, vector<8x32xf32> -> vector<8x32xf32>
    %197 = vector.extract_strided_slice %161 {offsets = [0, 64], sizes = [1, 32], strides = [1, 1]} : vector<1x96xf32> to vector<1x32xf32>
    %198 = vector.broadcast %197 : vector<1x32xf32> to vector<8x32xf32>
    %199 = arith.addf %196, %198 : vector<8x32xf32>
    %cst_97 = arith.constant 0.353553385 : f32
    %200 = vector.broadcast %cst_97 : f32 to vector<8x32xf32>
    %201 = arith.mulf %187, %200 : vector<8x32xf32>
    %202 = vector.extract_strided_slice %201 {offsets = [0, 0], sizes = [8, 8], strides = [1, 1]} : vector<8x32xf32> to vector<8x8xf32>
    %203 = vector.extract_strided_slice %201 {offsets = [0, 8], sizes = [8, 8], strides = [1, 1]} : vector<8x32xf32> to vector<8x8xf32>
    %204 = vector.extract_strided_slice %201 {offsets = [0, 16], sizes = [8, 8], strides = [1, 1]} : vector<8x32xf32> to vector<8x8xf32>
    %205 = vector.extract_strided_slice %201 {offsets = [0, 24], sizes = [8, 8], strides = [1, 1]} : vector<8x32xf32> to vector<8x8xf32>
    %206 = vector.shape_cast %202 : vector<8x8xf32> to vector<1x8x8xf32>
    %207 = vector.shape_cast %203 : vector<8x8xf32> to vector<1x8x8xf32>
    %208 = vector.shape_cast %204 : vector<8x8xf32> to vector<1x8x8xf32>
    %209 = vector.shape_cast %205 : vector<8x8xf32> to vector<1x8x8xf32>
    %210 = tpu.concatenate %206, %207, %208, %209 in 0 : vector<1x8x8xf32>, vector<1x8x8xf32>, vector<1x8x8xf32>, vector<1x8x8xf32> -> vector<4x8x8xf32>
    %211 = vector.extract_strided_slice %193 {offsets = [0, 0], sizes = [8, 8], strides = [1, 1]} : vector<8x32xf32> to vector<8x8xf32>
    %212 = vector.extract_strided_slice %193 {offsets = [0, 8], sizes = [8, 8], strides = [1, 1]} : vector<8x32xf32> to vector<8x8xf32>
    %213 = vector.extract_strided_slice %193 {offsets = [0, 16], sizes = [8, 8], strides = [1, 1]} : vector<8x32xf32> to vector<8x8xf32>
    %214 = vector.extract_strided_slice %193 {offsets = [0, 24], sizes = [8, 8], strides = [1, 1]} : vector<8x32xf32> to vector<8x8xf32>
    %215 = vector.shape_cast %211 : vector<8x8xf32> to vector<1x8x8xf32>
    %216 = vector.shape_cast %212 : vector<8x8xf32> to vector<1x8x8xf32>
    %217 = vector.shape_cast %213 : vector<8x8xf32> to vector<1x8x8xf32>
    %218 = vector.shape_cast %214 : vector<8x8xf32> to vector<1x8x8xf32>
    %219 = tpu.concatenate %215, %216, %217, %218 in 0 : vector<1x8x8xf32>, vector<1x8x8xf32>, vector<1x8x8xf32>, vector<1x8x8xf32> -> vector<4x8x8xf32>
    %220 = vector.extract_strided_slice %199 {offsets = [0, 0], sizes = [8, 8], strides = [1, 1]} : vector<8x32xf32> to vector<8x8xf32>
    %221 = vector.extract_strided_slice %199 {offsets = [0, 8], sizes = [8, 8], strides = [1, 1]} : vector<8x32xf32> to vector<8x8xf32>
    %222 = vector.extract_strided_slice %199 {offsets = [0, 16], sizes = [8, 8], strides = [1, 1]} : vector<8x32xf32> to vector<8x8xf32>
    %223 = vector.extract_strided_slice %199 {offsets = [0, 24], sizes = [8, 8], strides = [1, 1]} : vector<8x32xf32> to vector<8x8xf32>
    %224 = vector.shape_cast %220 : vector<8x8xf32> to vector<1x8x8xf32>
    %225 = vector.shape_cast %221 : vector<8x8xf32> to vector<1x8x8xf32>
    %226 = vector.shape_cast %222 : vector<8x8xf32> to vector<1x8x8xf32>
    %227 = vector.shape_cast %223 : vector<8x8xf32> to vector<1x8x8xf32>
    %228 = tpu.concatenate %224, %225, %226, %227 in 0 : vector<1x8x8xf32>, vector<1x8x8xf32>, vector<1x8x8xf32>, vector<1x8x8xf32> -> vector<4x8x8xf32>
    %229 = arith.truncf %210 : vector<4x8x8xf32> to vector<4x8x8xbf16>
    %230 = arith.truncf %219 : vector<4x8x8xf32> to vector<4x8x8xbf16>
    "tpu.trace_start"() <{level = 10 : i32, message = "hsd,htd->hst"}> : () -> ()
    %cst_98 = arith.constant dense<0.000000e+00> : vector<4x8x8xf32>
    %231 = tpu.matmul %229, %230, %cst_98 {dimension_numbers = #tpu.dot_dimension_numbers<[2], [2], [1], [1], [0, 0, 0, 1, 1, 1], [0], [0]>} : vector<4x8x8xbf16>, vector<4x8x8xbf16>, vector<4x8x8xf32> -> vector<4x8x8xf32>
    "tpu.trace_stop"() : () -> ()
    %cst_99 = arith.constant dense<0xFF800000> : vector<4x8xf32>
    %232 = vector.multi_reduction <maximumf>, %231, %cst_99 [2] : vector<4x8x8xf32> to vector<4x8xf32>
    %233 = vector.shape_cast %232 : vector<4x8xf32> to vector<4x8x1xf32>
    %234 = vector.broadcast %233 : vector<4x8x1xf32> to vector<4x8x8xf32>
    %235 = arith.subf %231, %234 : vector<4x8x8xf32>
    %236 = math.exp %235 : vector<4x8x8xf32>
    %cst_100 = arith.constant dense<0.000000e+00> : vector<4x8xf32>
    %237 = vector.multi_reduction <add>, %236, %cst_100 [2] : vector<4x8x8xf32> to vector<4x8xf32>
    %238 = vector.shape_cast %237 : vector<4x8xf32> to vector<4x8x1xf32>
    %239 = tpu.reciprocal %238 {approx = true} : vector<4x8x1xf32> -> vector<4x8x1xf32>
    %240 = vector.broadcast %239 : vector<4x8x1xf32> to vector<4x8x8xf32>
    %241 = arith.mulf %236, %240 : vector<4x8x8xf32>
    %242 = arith.truncf %241 : vector<4x8x8xf32> to vector<4x8x8xbf16>
    %243 = arith.truncf %228 : vector<4x8x8xf32> to vector<4x8x8xbf16>
    "tpu.trace_start"() <{level = 10 : i32, message = "hst,htd->hsd"}> : () -> ()
    %cst_101 = arith.constant dense<0.000000e+00> : vector<4x8x8xf32>
    %244 = tpu.matmul %242, %243, %cst_101 {dimension_numbers = #tpu.dot_dimension_numbers<[2], [1], [1], [2], [0, 0, 0, 1, 1, 2], [0], [0]>} : vector<4x8x8xbf16>, vector<4x8x8xbf16>, vector<4x8x8xf32> -> vector<4x8x8xf32>
    "tpu.trace_stop"() : () -> ()
    %245 = vector.extract_strided_slice %244 {offsets = [0, 0, 0], sizes = [1, 8, 8], strides = [1, 1, 1]} : vector<4x8x8xf32> to vector<1x8x8xf32>
    %246 = vector.shape_cast %245 : vector<1x8x8xf32> to vector<8x8xf32>
    %247 = vector.extract_strided_slice %244 {offsets = [1, 0, 0], sizes = [1, 8, 8], strides = [1, 1, 1]} : vector<4x8x8xf32> to vector<1x8x8xf32>
    %248 = vector.shape_cast %247 : vector<1x8x8xf32> to vector<8x8xf32>
    %249 = vector.extract_strided_slice %244 {offsets = [2, 0, 0], sizes = [1, 8, 8], strides = [1, 1, 1]} : vector<4x8x8xf32> to vector<1x8x8xf32>
    %250 = vector.shape_cast %249 : vector<1x8x8xf32> to vector<8x8xf32>
    %251 = vector.extract_strided_slice %244 {offsets = [3, 0, 0], sizes = [1, 8, 8], strides = [1, 1, 1]} : vector<4x8x8xf32> to vector<1x8x8xf32>
    %252 = vector.shape_cast %251 : vector<1x8x8xf32> to vector<8x8xf32>
    %253 = tpu.concatenate %246, %248, %250, %252 in 1 : vector<8x8xf32>, vector<8x8xf32>, vector<8x8xf32>, vector<8x8xf32> -> vector<8x32xf32>
    %254 = arith.truncf %253 : vector<8x32xf32> to vector<8x32xbf16>
    %cst_102 = arith.constant dense<0.000000e+00> : vector<8x32xf32>
    %255 = tpu.matmul %254, %163, %cst_102 {dimension_numbers = #tpu.dot_dimension_numbers<[1], [0], [0], [1], [0, 0, 1, 1], [], []>} : vector<8x32xbf16>, vector<32x32xbf16>, vector<8x32xf32> -> vector<8x32xf32>
    %256 = vector.broadcast %165 : vector<1x32xf32> to vector<8x32xf32>
    %257 = arith.addf %255, %256 : vector<8x32xf32>
    %258 = arith.addf %157, %257 : vector<8x32xf32>
    %cst_103 = arith.constant dense<0.000000e+00> : vector<8xf32>
    %259 = vector.multi_reduction <add>, %258, %cst_103 [1] : vector<8x32xf32> to vector<8xf32>
    %260 = vector.shape_cast %259 : vector<8xf32> to vector<8x1xf32>
    %cst_104 = arith.constant 3.200000e+01 : f32
    %261 = vector.broadcast %cst_104 : f32 to vector<8x1xf32>
    %262 = arith.divf %260, %261 : vector<8x1xf32>
    %263 = vector.broadcast %262 : vector<8x1xf32> to vector<8x32xf32>
    %264 = arith.subf %258, %263 : vector<8x32xf32>
    %265 = arith.mulf %264, %264 : vector<8x32xf32>
    %cst_105 = arith.constant dense<0.000000e+00> : vector<8xf32>
    %266 = vector.multi_reduction <add>, %265, %cst_105 [1] : vector<8x32xf32> to vector<8xf32>
    %267 = vector.shape_cast %266 : vector<8xf32> to vector<8x1xf32>
    %cst_106 = arith.constant 3.200000e+01 : f32
    %268 = vector.broadcast %cst_106 : f32 to vector<8x1xf32>
    %269 = arith.divf %267, %268 : vector<8x1xf32>
    %270 = vector.broadcast %262 : vector<8x1xf32> to vector<8x32xf32>
    %271 = arith.subf %258, %270 : vector<8x32xf32>
    %cst_107 = arith.constant 9.99999974E-6 : f32
    %272 = vector.broadcast %cst_107 : f32 to vector<8x1xf32>
    %273 = arith.addf %269, %272 : vector<8x1xf32>
    %274 = math.rsqrt %273 : vector<8x1xf32>
    %275 = vector.broadcast %274 : vector<8x1xf32> to vector<8x32xf32>
    %276 = arith.mulf %271, %275 : vector<8x32xf32>
    %277 = vector.broadcast %175 : vector<1x32xf32> to vector<8x32xf32>
    %278 = arith.mulf %276, %277 : vector<8x32xf32>
    %279 = vector.broadcast %177 : vector<1x32xf32> to vector<8x32xf32>
    %280 = arith.addf %278, %279 : vector<8x32xf32>
    %281 = arith.truncf %280 : vector<8x32xf32> to vector<8x32xbf16>
    %cst_108 = arith.constant dense<0.000000e+00> : vector<8x64xf32>
    %282 = tpu.matmul %281, %167, %cst_108 {dimension_numbers = #tpu.dot_dimension_numbers<[1], [0], [0], [1], [0, 0, 1, 1], [], []>} : vector<8x32xbf16>, vector<32x64xbf16>, vector<8x64xf32> -> vector<8x64xf32>
    %283 = vector.broadcast %169 : vector<1x64xf32> to vector<8x64xf32>
    %284 = arith.addf %282, %283 : vector<8x64xf32>
    %cst_109 = arith.constant 0.000000e+00 : f32
    %285 = vector.broadcast %cst_109 : f32 to vector<8x64xf32>
    %286 = arith.maximumf %284, %285 : vector<8x64xf32>
    %287 = arith.truncf %286 : vector<8x64xf32> to vector<8x64xbf16>
    %cst_110 = arith.constant dense<0.000000e+00> : vector<8x32xf32>
    %288 = tpu.matmul %287, %171, %cst_110 {dimension_numbers = #tpu.dot_dimension_numbers<[1], [0], [0], [1], [0, 0, 1, 1], [], []>} : vector<8x64xbf16>, vector<64x32xbf16>, vector<8x32xf32> -> vector<8x32xf32>
    %289 = arith.addf %280, %288 : vector<8x32xf32>
    %290 = vector.broadcast %173 : vector<1x32xf32> to vector<8x32xf32>
    %291 = arith.addf %289, %290 : vector<8x32xf32>
    %cst_111 = arith.constant dense<0.000000e+00> : vector<8xf32>
    %292 = vector.multi_reduction <add>, %291, %cst_111 [1] : vector<8x32xf32> to vector<8xf32>
    %293 = vector.shape_cast %292 : vector<8xf32> to vector<8x1xf32>
    %cst_112 = arith.constant 3.200000e+01 : f32
    %294 = vector.broadcast %cst_112 : f32 to vector<8x1xf32>
    %295 = arith.divf %293, %294 : vector<8x1xf32>
    %296 = vector.broadcast %295 : vector<8x1xf32> to vector<8x32xf32>
    %297 = arith.subf %291, %296 : vector<8x32xf32>
    %298 = arith.mulf %297, %297 : vector<8x32xf32>
    %cst_113 = arith.constant dense<0.000000e+00> : vector<8xf32>
    %299 = vector.multi_reduction <add>, %298, %cst_113 [1] : vector<8x32xf32> to vector<8xf32>
    %300 = vector.shape_cast %299 : vector<8xf32> to vector<8x1xf32>
    %cst_114 = arith.constant 3.200000e+01 : f32
    %301 = vector.broadcast %cst_114 : f32 to vector<8x1xf32>
    %302 = arith.divf %300, %301 : vector<8x1xf32>
    %303 = vector.broadcast %295 : vector<8x1xf32> to vector<8x32xf32>
    %304 = arith.subf %291, %303 : vector<8x32xf32>
    %cst_115 = arith.constant 9.99999974E-6 : f32
    %305 = vector.broadcast %cst_115 : f32 to vector<8x1xf32>
    %306 = arith.addf %302, %305 : vector<8x1xf32>
    %307 = math.rsqrt %306 : vector<8x1xf32>
    %308 = vector.broadcast %307 : vector<8x1xf32> to vector<8x32xf32>
    %309 = arith.mulf %304, %308 : vector<8x32xf32>
    %310 = vector.broadcast %179 : vector<1x32xf32> to vector<8x32xf32>
    %311 = arith.mulf %309, %310 : vector<8x32xf32>
    %312 = vector.broadcast %181 : vector<1x32xf32> to vector<8x32xf32>
    %313 = arith.addf %311, %312 : vector<8x32xf32>
    %c0_116 = arith.constant 0 : index
    %c0_117 = arith.constant 0 : index
    %314 = vector.load %arg15[%c0_116, %c0_117] : memref<1x32xf32, #tpu.memory_space<vmem>>, vector<1x32xf32>
    %c0_118 = arith.constant 0 : index
    %c0_119 = arith.constant 0 : index
    %315 = vector.load %arg16[%c0_118, %c0_119] : memref<1x32xf32, #tpu.memory_space<vmem>>, vector<1x32xf32>
    %cst_120 = arith.constant dense<0.000000e+00> : vector<8xf32>
    %316 = vector.multi_reduction <add>, %313, %cst_120 [1] : vector<8x32xf32> to vector<8xf32>
    %317 = vector.shape_cast %316 : vector<8xf32> to vector<8x1xf32>
    %cst_121 = arith.constant 3.200000e+01 : f32
    %318 = vector.broadcast %cst_121 : f32 to vector<8x1xf32>
    %319 = arith.divf %317, %318 : vector<8x1xf32>
    %320 = vector.broadcast %319 : vector<8x1xf32> to vector<8x32xf32>
    %321 = arith.subf %313, %320 : vector<8x32xf32>
    %322 = arith.mulf %321, %321 : vector<8x32xf32>
    %cst_122 = arith.constant dense<0.000000e+00> : vector<8xf32>
    %323 = vector.multi_reduction <add>, %322, %cst_122 [1] : vector<8x32xf32> to vector<8xf32>
    %324 = vector.shape_cast %323 : vector<8xf32> to vector<8x1xf32>
    %cst_123 = arith.constant 3.200000e+01 : f32
    %325 = vector.broadcast %cst_123 : f32 to vector<8x1xf32>
    %326 = arith.divf %324, %325 : vector<8x1xf32>
    %327 = vector.broadcast %319 : vector<8x1xf32> to vector<8x32xf32>
    %328 = arith.subf %313, %327 : vector<8x32xf32>
    %cst_124 = arith.constant 9.99999974E-6 : f32
    %329 = vector.broadcast %cst_124 : f32 to vector<8x1xf32>
    %330 = arith.addf %326, %329 : vector<8x1xf32>
    %331 = math.rsqrt %330 : vector<8x1xf32>
    %332 = vector.broadcast %331 : vector<8x1xf32> to vector<8x32xf32>
    %333 = arith.mulf %328, %332 : vector<8x32xf32>
    %334 = vector.broadcast %314 : vector<1x32xf32> to vector<8x32xf32>
    %335 = arith.mulf %333, %334 : vector<8x32xf32>
    %336 = vector.broadcast %315 : vector<1x32xf32> to vector<8x32xf32>
    %337 = arith.addf %335, %336 : vector<8x32xf32>
    %338 = tpu.iota {dimensions = array<i32: 0>} : vector<8x8xi32>
    %339 = tpu.iota {dimensions = array<i32: 1>} : vector<8x8xi32>
    %340 = arith.cmpi sge, %338, %339 : vector<8x8xi32>
    %cst_125 = arith.constant 0.000000e+00 : f32
    %cst_126 = arith.constant -1.000000e+30 : f32
    %341 = vector.broadcast %cst_125 : f32 to vector<8x8xf32>
    %342 = vector.broadcast %cst_126 : f32 to vector<8x8xf32>
    %343 = arith.select %340, %341, %342 : vector<8x8xi1>, vector<8x8xf32>
    %c0_127 = arith.constant 0 : index
    %c0_128 = arith.constant 0 : index
    %c0_129 = arith.constant 0 : index
    %344 = vector.load %arg2[%c0_127, %c0_128, %c0_129] : memref<1x8x32xf32, #tpu.memory_space<vmem>>, vector<1x8x32xf32>
    %345 = vector.shape_cast %344 : vector<1x8x32xf32> to vector<8x32xf32>
    %c0_130 = arith.constant 0 : index
    %c0_131 = arith.constant 0 : index
    %c0_132 = arith.constant 0 : index
    %346 = vector.load %arg17[%c0_130, %c0_131, %c0_132] : memref<2x32x96xbf16, #tpu.memory_space<vmem>>, vector<1x32x96xbf16>
    %347 = vector.shape_cast %346 : vector<1x32x96xbf16> to vector<32x96xbf16>
    %c0_133 = arith.constant 0 : index
    %c0_134 = arith.constant 0 : index
    %c0_135 = arith.constant 0 : index
    %348 = vector.load %arg18[%c0_133, %c0_134, %c0_135] : memref<2x1x96xf32, #tpu.memory_space<vmem>>, vector<1x1x96xf32>
    %349 = vector.shape_cast %348 : vector<1x1x96xf32> to vector<1x96xf32>
    %c0_136 = arith.constant 0 : index
    %c0_137 = arith.constant 0 : index
    %c0_138 = arith.constant 0 : index
    %350 = vector.load %arg19[%c0_136, %c0_137, %c0_138] : memref<2x32x32xbf16, #tpu.memory_space<vmem>>, vector<1x32x32xbf16>
    %351 = vector.shape_cast %350 : vector<1x32x32xbf16> to vector<32x32xbf16>
    %c0_139 = arith.constant 0 : index
    %c0_140 = arith.constant 0 : index
    %c0_141 = arith.constant 0 : index
    %352 = vector.load %arg20[%c0_139, %c0_140, %c0_141] : memref<2x1x32xf32, #tpu.memory_space<vmem>>, vector<1x1x32xf32>
    %353 = vector.shape_cast %352 : vector<1x1x32xf32> to vector<1x32xf32>
    %c0_142 = arith.constant 0 : index
    %c0_143 = arith.constant 0 : index
    %c0_144 = arith.constant 0 : index
    %354 = vector.load %arg21[%c0_142, %c0_143, %c0_144] : memref<2x32x96xbf16, #tpu.memory_space<vmem>>, vector<1x32x96xbf16>
    %355 = vector.shape_cast %354 : vector<1x32x96xbf16> to vector<32x96xbf16>
    %c0_145 = arith.constant 0 : index
    %c0_146 = arith.constant 0 : index
    %c0_147 = arith.constant 0 : index
    %356 = vector.load %arg22[%c0_145, %c0_146, %c0_147] : memref<2x1x96xf32, #tpu.memory_space<vmem>>, vector<1x1x96xf32>
    %357 = vector.shape_cast %356 : vector<1x1x96xf32> to vector<1x96xf32>
    %c0_148 = arith.constant 0 : index
    %c0_149 = arith.constant 0 : index
    %c0_150 = arith.constant 0 : index
    %358 = vector.load %arg23[%c0_148, %c0_149, %c0_150] : memref<2x32x32xbf16, #tpu.memory_space<vmem>>, vector<1x32x32xbf16>
    %359 = vector.shape_cast %358 : vector<1x32x32xbf16> to vector<32x32xbf16>
    %c0_151 = arith.constant 0 : index
    %c0_152 = arith.constant 0 : index
    %c0_153 = arith.constant 0 : index
    %360 = vector.load %arg24[%c0_151, %c0_152, %c0_153] : memref<2x1x32xf32, #tpu.memory_space<vmem>>, vector<1x1x32xf32>
    %361 = vector.shape_cast %360 : vector<1x1x32xf32> to vector<1x32xf32>
    %c0_154 = arith.constant 0 : index
    %c0_155 = arith.constant 0 : index
    %c0_156 = arith.constant 0 : index
    %362 = vector.load %arg25[%c0_154, %c0_155, %c0_156] : memref<2x32x64xbf16, #tpu.memory_space<vmem>>, vector<1x32x64xbf16>
    %363 = vector.shape_cast %362 : vector<1x32x64xbf16> to vector<32x64xbf16>
    %c0_157 = arith.constant 0 : index
    %c0_158 = arith.constant 0 : index
    %c0_159 = arith.constant 0 : index
    %364 = vector.load %arg26[%c0_157, %c0_158, %c0_159] : memref<2x1x64xf32, #tpu.memory_space<vmem>>, vector<1x1x64xf32>
    %365 = vector.shape_cast %364 : vector<1x1x64xf32> to vector<1x64xf32>
    %c0_160 = arith.constant 0 : index
    %c0_161 = arith.constant 0 : index
    %c0_162 = arith.constant 0 : index
    %366 = vector.load %arg27[%c0_160, %c0_161, %c0_162] : memref<2x64x32xbf16, #tpu.memory_space<vmem>>, vector<1x64x32xbf16>
    %367 = vector.shape_cast %366 : vector<1x64x32xbf16> to vector<64x32xbf16>
    %c0_163 = arith.constant 0 : index
    %c0_164 = arith.constant 0 : index
    %c0_165 = arith.constant 0 : index
    %368 = vector.load %arg28[%c0_163, %c0_164, %c0_165] : memref<2x1x32xf32, #tpu.memory_space<vmem>>, vector<1x1x32xf32>
    %369 = vector.shape_cast %368 : vector<1x1x32xf32> to vector<1x32xf32>
    %c0_166 = arith.constant 0 : index
    %c0_167 = arith.constant 0 : index
    %c0_168 = arith.constant 0 : index
    %370 = vector.load %arg29[%c0_166, %c0_167, %c0_168] : memref<2x1x32xf32, #tpu.memory_space<vmem>>, vector<1x1x32xf32>
    %371 = vector.shape_cast %370 : vector<1x1x32xf32> to vector<1x32xf32>
    %c0_169 = arith.constant 0 : index
    %c0_170 = arith.constant 0 : index
    %c0_171 = arith.constant 0 : index
    %372 = vector.load %arg30[%c0_169, %c0_170, %c0_171] : memref<2x1x32xf32, #tpu.memory_space<vmem>>, vector<1x1x32xf32>
    %373 = vector.shape_cast %372 : vector<1x1x32xf32> to vector<1x32xf32>
    %c0_172 = arith.constant 0 : index
    %c0_173 = arith.constant 0 : index
    %c0_174 = arith.constant 0 : index
    %374 = vector.load %arg31[%c0_172, %c0_173, %c0_174] : memref<2x1x32xf32, #tpu.memory_space<vmem>>, vector<1x1x32xf32>
    %375 = vector.shape_cast %374 : vector<1x1x32xf32> to vector<1x32xf32>
    %c0_175 = arith.constant 0 : index
    %c0_176 = arith.constant 0 : index
    %c0_177 = arith.constant 0 : index
    %376 = vector.load %arg32[%c0_175, %c0_176, %c0_177] : memref<2x1x32xf32, #tpu.memory_space<vmem>>, vector<1x1x32xf32>
    %377 = vector.shape_cast %376 : vector<1x1x32xf32> to vector<1x32xf32>
    %c0_178 = arith.constant 0 : index
    %c0_179 = arith.constant 0 : index
    %c0_180 = arith.constant 0 : index
    %378 = vector.load %arg33[%c0_178, %c0_179, %c0_180] : memref<2x1x32xf32, #tpu.memory_space<vmem>>, vector<1x1x32xf32>
    %379 = vector.shape_cast %378 : vector<1x1x32xf32> to vector<1x32xf32>
    %c0_181 = arith.constant 0 : index
    %c0_182 = arith.constant 0 : index
    %c0_183 = arith.constant 0 : index
    %380 = vector.load %arg34[%c0_181, %c0_182, %c0_183] : memref<2x1x32xf32, #tpu.memory_space<vmem>>, vector<1x1x32xf32>
    %381 = vector.shape_cast %380 : vector<1x1x32xf32> to vector<1x32xf32>
    %382 = vector.extract_strided_slice %347 {offsets = [0, 0], sizes = [32, 32], strides = [1, 1]} : vector<32x96xbf16> to vector<32x32xbf16>
    %383 = arith.truncf %345 : vector<8x32xf32> to vector<8x32xbf16>
    %cst_184 = arith.constant dense<0.000000e+00> : vector<8x32xf32>
    %384 = tpu.matmul %383, %382, %cst_184 {dimension_numbers = #tpu.dot_dimension_numbers<[1], [0], [0], [1], [0, 0, 1, 1], [], []>} : vector<8x32xbf16>, vector<32x32xbf16>, vector<8x32xf32> -> vector<8x32xf32>
    %385 = vector.extract_strided_slice %349 {offsets = [0, 0], sizes = [1, 32], strides = [1, 1]} : vector<1x96xf32> to vector<1x32xf32>
    %386 = vector.broadcast %385 : vector<1x32xf32> to vector<8x32xf32>
    %387 = arith.addf %384, %386 : vector<8x32xf32>
    %388 = vector.extract_strided_slice %347 {offsets = [0, 32], sizes = [32, 32], strides = [1, 1]} : vector<32x96xbf16> to vector<32x32xbf16>
    %389 = arith.truncf %345 : vector<8x32xf32> to vector<8x32xbf16>
    %cst_185 = arith.constant dense<0.000000e+00> : vector<8x32xf32>
    %390 = tpu.matmul %389, %388, %cst_185 {dimension_numbers = #tpu.dot_dimension_numbers<[1], [0], [0], [1], [0, 0, 1, 1], [], []>} : vector<8x32xbf16>, vector<32x32xbf16>, vector<8x32xf32> -> vector<8x32xf32>
    %391 = vector.extract_strided_slice %349 {offsets = [0, 32], sizes = [1, 32], strides = [1, 1]} : vector<1x96xf32> to vector<1x32xf32>
    %392 = vector.broadcast %391 : vector<1x32xf32> to vector<8x32xf32>
    %393 = arith.addf %390, %392 : vector<8x32xf32>
    %394 = vector.extract_strided_slice %347 {offsets = [0, 64], sizes = [32, 32], strides = [1, 1]} : vector<32x96xbf16> to vector<32x32xbf16>
    %395 = arith.truncf %345 : vector<8x32xf32> to vector<8x32xbf16>
    %cst_186 = arith.constant dense<0.000000e+00> : vector<8x32xf32>
    %396 = tpu.matmul %395, %394, %cst_186 {dimension_numbers = #tpu.dot_dimension_numbers<[1], [0], [0], [1], [0, 0, 1, 1], [], []>} : vector<8x32xbf16>, vector<32x32xbf16>, vector<8x32xf32> -> vector<8x32xf32>
    %397 = vector.extract_strided_slice %349 {offsets = [0, 64], sizes = [1, 32], strides = [1, 1]} : vector<1x96xf32> to vector<1x32xf32>
    %398 = vector.broadcast %397 : vector<1x32xf32> to vector<8x32xf32>
    %399 = arith.addf %396, %398 : vector<8x32xf32>
    %cst_187 = arith.constant 0.353553385 : f32
    %400 = vector.broadcast %cst_187 : f32 to vector<8x32xf32>
    %401 = arith.mulf %387, %400 : vector<8x32xf32>
    %402 = vector.extract_strided_slice %401 {offsets = [0, 0], sizes = [8, 8], strides = [1, 1]} : vector<8x32xf32> to vector<8x8xf32>
    %403 = vector.extract_strided_slice %401 {offsets = [0, 8], sizes = [8, 8], strides = [1, 1]} : vector<8x32xf32> to vector<8x8xf32>
    %404 = vector.extract_strided_slice %401 {offsets = [0, 16], sizes = [8, 8], strides = [1, 1]} : vector<8x32xf32> to vector<8x8xf32>
    %405 = vector.extract_strided_slice %401 {offsets = [0, 24], sizes = [8, 8], strides = [1, 1]} : vector<8x32xf32> to vector<8x8xf32>
    %406 = vector.shape_cast %402 : vector<8x8xf32> to vector<1x8x8xf32>
    %407 = vector.shape_cast %403 : vector<8x8xf32> to vector<1x8x8xf32>
    %408 = vector.shape_cast %404 : vector<8x8xf32> to vector<1x8x8xf32>
    %409 = vector.shape_cast %405 : vector<8x8xf32> to vector<1x8x8xf32>
    %410 = tpu.concatenate %406, %407, %408, %409 in 0 : vector<1x8x8xf32>, vector<1x8x8xf32>, vector<1x8x8xf32>, vector<1x8x8xf32> -> vector<4x8x8xf32>
    %411 = vector.extract_strided_slice %393 {offsets = [0, 0], sizes = [8, 8], strides = [1, 1]} : vector<8x32xf32> to vector<8x8xf32>
    %412 = vector.extract_strided_slice %393 {offsets = [0, 8], sizes = [8, 8], strides = [1, 1]} : vector<8x32xf32> to vector<8x8xf32>
    %413 = vector.extract_strided_slice %393 {offsets = [0, 16], sizes = [8, 8], strides = [1, 1]} : vector<8x32xf32> to vector<8x8xf32>
    %414 = vector.extract_strided_slice %393 {offsets = [0, 24], sizes = [8, 8], strides = [1, 1]} : vector<8x32xf32> to vector<8x8xf32>
    %415 = vector.shape_cast %411 : vector<8x8xf32> to vector<1x8x8xf32>
    %416 = vector.shape_cast %412 : vector<8x8xf32> to vector<1x8x8xf32>
    %417 = vector.shape_cast %413 : vector<8x8xf32> to vector<1x8x8xf32>
    %418 = vector.shape_cast %414 : vector<8x8xf32> to vector<1x8x8xf32>
    %419 = tpu.concatenate %415, %416, %417, %418 in 0 : vector<1x8x8xf32>, vector<1x8x8xf32>, vector<1x8x8xf32>, vector<1x8x8xf32> -> vector<4x8x8xf32>
    %420 = vector.extract_strided_slice %399 {offsets = [0, 0], sizes = [8, 8], strides = [1, 1]} : vector<8x32xf32> to vector<8x8xf32>
    %421 = vector.extract_strided_slice %399 {offsets = [0, 8], sizes = [8, 8], strides = [1, 1]} : vector<8x32xf32> to vector<8x8xf32>
    %422 = vector.extract_strided_slice %399 {offsets = [0, 16], sizes = [8, 8], strides = [1, 1]} : vector<8x32xf32> to vector<8x8xf32>
    %423 = vector.extract_strided_slice %399 {offsets = [0, 24], sizes = [8, 8], strides = [1, 1]} : vector<8x32xf32> to vector<8x8xf32>
    %424 = vector.shape_cast %420 : vector<8x8xf32> to vector<1x8x8xf32>
    %425 = vector.shape_cast %421 : vector<8x8xf32> to vector<1x8x8xf32>
    %426 = vector.shape_cast %422 : vector<8x8xf32> to vector<1x8x8xf32>
    %427 = vector.shape_cast %423 : vector<8x8xf32> to vector<1x8x8xf32>
    %428 = tpu.concatenate %424, %425, %426, %427 in 0 : vector<1x8x8xf32>, vector<1x8x8xf32>, vector<1x8x8xf32>, vector<1x8x8xf32> -> vector<4x8x8xf32>
    %429 = arith.truncf %410 : vector<4x8x8xf32> to vector<4x8x8xbf16>
    %430 = arith.truncf %419 : vector<4x8x8xf32> to vector<4x8x8xbf16>
    "tpu.trace_start"() <{level = 10 : i32, message = "hsd,htd->hst"}> : () -> ()
    %cst_188 = arith.constant dense<0.000000e+00> : vector<4x8x8xf32>
    %431 = tpu.matmul %429, %430, %cst_188 {dimension_numbers = #tpu.dot_dimension_numbers<[2], [2], [1], [1], [0, 0, 0, 1, 1, 1], [0], [0]>} : vector<4x8x8xbf16>, vector<4x8x8xbf16>, vector<4x8x8xf32> -> vector<4x8x8xf32>
    "tpu.trace_stop"() : () -> ()
    %432 = vector.shape_cast %343 : vector<8x8xf32> to vector<1x8x8xf32>
    %433 = vector.broadcast %432 : vector<1x8x8xf32> to vector<4x8x8xf32>
    %434 = arith.addf %431, %433 : vector<4x8x8xf32>
    %cst_189 = arith.constant dense<0xFF800000> : vector<4x8xf32>
    %435 = vector.multi_reduction <maximumf>, %434, %cst_189 [2] : vector<4x8x8xf32> to vector<4x8xf32>
    %436 = vector.shape_cast %435 : vector<4x8xf32> to vector<4x8x1xf32>
    %437 = vector.broadcast %436 : vector<4x8x1xf32> to vector<4x8x8xf32>
    %438 = arith.subf %434, %437 : vector<4x8x8xf32>
    %439 = math.exp %438 : vector<4x8x8xf32>
    %cst_190 = arith.constant dense<0.000000e+00> : vector<4x8xf32>
    %440 = vector.multi_reduction <add>, %439, %cst_190 [2] : vector<4x8x8xf32> to vector<4x8xf32>
    %441 = vector.shape_cast %440 : vector<4x8xf32> to vector<4x8x1xf32>
    %442 = tpu.reciprocal %441 {approx = true} : vector<4x8x1xf32> -> vector<4x8x1xf32>
    %443 = vector.broadcast %442 : vector<4x8x1xf32> to vector<4x8x8xf32>
    %444 = arith.mulf %439, %443 : vector<4x8x8xf32>
    %445 = arith.truncf %444 : vector<4x8x8xf32> to vector<4x8x8xbf16>
    %446 = arith.truncf %428 : vector<4x8x8xf32> to vector<4x8x8xbf16>
    "tpu.trace_start"() <{level = 10 : i32, message = "hst,htd->hsd"}> : () -> ()
    %cst_191 = arith.constant dense<0.000000e+00> : vector<4x8x8xf32>
    %447 = tpu.matmul %445, %446, %cst_191 {dimension_numbers = #tpu.dot_dimension_numbers<[2], [1], [1], [2], [0, 0, 0, 1, 1, 2], [0], [0]>} : vector<4x8x8xbf16>, vector<4x8x8xbf16>, vector<4x8x8xf32> -> vector<4x8x8xf32>
    "tpu.trace_stop"() : () -> ()
    %448 = vector.extract_strided_slice %447 {offsets = [0, 0, 0], sizes = [1, 8, 8], strides = [1, 1, 1]} : vector<4x8x8xf32> to vector<1x8x8xf32>
    %449 = vector.shape_cast %448 : vector<1x8x8xf32> to vector<8x8xf32>
    %450 = vector.extract_strided_slice %447 {offsets = [1, 0, 0], sizes = [1, 8, 8], strides = [1, 1, 1]} : vector<4x8x8xf32> to vector<1x8x8xf32>
    %451 = vector.shape_cast %450 : vector<1x8x8xf32> to vector<8x8xf32>
    %452 = vector.extract_strided_slice %447 {offsets = [2, 0, 0], sizes = [1, 8, 8], strides = [1, 1, 1]} : vector<4x8x8xf32> to vector<1x8x8xf32>
    %453 = vector.shape_cast %452 : vector<1x8x8xf32> to vector<8x8xf32>
    %454 = vector.extract_strided_slice %447 {offsets = [3, 0, 0], sizes = [1, 8, 8], strides = [1, 1, 1]} : vector<4x8x8xf32> to vector<1x8x8xf32>
    %455 = vector.shape_cast %454 : vector<1x8x8xf32> to vector<8x8xf32>
    %456 = tpu.concatenate %449, %451, %453, %455 in 1 : vector<8x8xf32>, vector<8x8xf32>, vector<8x8xf32>, vector<8x8xf32> -> vector<8x32xf32>
    %457 = arith.truncf %456 : vector<8x32xf32> to vector<8x32xbf16>
    %cst_192 = arith.constant dense<0.000000e+00> : vector<8x32xf32>
    %458 = tpu.matmul %457, %351, %cst_192 {dimension_numbers = #tpu.dot_dimension_numbers<[1], [0], [0], [1], [0, 0, 1, 1], [], []>} : vector<8x32xbf16>, vector<32x32xbf16>, vector<8x32xf32> -> vector<8x32xf32>
    %459 = vector.broadcast %353 : vector<1x32xf32> to vector<8x32xf32>
    %460 = arith.addf %458, %459 : vector<8x32xf32>
    %461 = arith.addf %345, %460 : vector<8x32xf32>
    %cst_193 = arith.constant dense<0.000000e+00> : vector<8xf32>
    %462 = vector.multi_reduction <add>, %461, %cst_193 [1] : vector<8x32xf32> to vector<8xf32>
    %463 = vector.shape_cast %462 : vector<8xf32> to vector<8x1xf32>
    %cst_194 = arith.constant 3.200000e+01 : f32
    %464 = vector.broadcast %cst_194 : f32 to vector<8x1xf32>
    %465 = arith.divf %463, %464 : vector<8x1xf32>
    %466 = vector.broadcast %465 : vector<8x1xf32> to vector<8x32xf32>
    %467 = arith.subf %461, %466 : vector<8x32xf32>
    %468 = arith.mulf %467, %467 : vector<8x32xf32>
    %cst_195 = arith.constant dense<0.000000e+00> : vector<8xf32>
    %469 = vector.multi_reduction <add>, %468, %cst_195 [1] : vector<8x32xf32> to vector<8xf32>
    %470 = vector.shape_cast %469 : vector<8xf32> to vector<8x1xf32>
    %cst_196 = arith.constant 3.200000e+01 : f32
    %471 = vector.broadcast %cst_196 : f32 to vector<8x1xf32>
    %472 = arith.divf %470, %471 : vector<8x1xf32>
    %473 = vector.broadcast %465 : vector<8x1xf32> to vector<8x32xf32>
    %474 = arith.subf %461, %473 : vector<8x32xf32>
    %cst_197 = arith.constant 9.99999974E-6 : f32
    %475 = vector.broadcast %cst_197 : f32 to vector<8x1xf32>
    %476 = arith.addf %472, %475 : vector<8x1xf32>
    %477 = math.rsqrt %476 : vector<8x1xf32>
    %478 = vector.broadcast %477 : vector<8x1xf32> to vector<8x32xf32>
    %479 = arith.mulf %474, %478 : vector<8x32xf32>
    %480 = vector.broadcast %371 : vector<1x32xf32> to vector<8x32xf32>
    %481 = arith.mulf %479, %480 : vector<8x32xf32>
    %482 = vector.broadcast %373 : vector<1x32xf32> to vector<8x32xf32>
    %483 = arith.addf %481, %482 : vector<8x32xf32>
    %484 = vector.extract_strided_slice %355 {offsets = [0, 0], sizes = [32, 32], strides = [1, 1]} : vector<32x96xbf16> to vector<32x32xbf16>
    %485 = arith.truncf %483 : vector<8x32xf32> to vector<8x32xbf16>
    %cst_198 = arith.constant dense<0.000000e+00> : vector<8x32xf32>
    %486 = tpu.matmul %485, %484, %cst_198 {dimension_numbers = #tpu.dot_dimension_numbers<[1], [0], [0], [1], [0, 0, 1, 1], [], []>} : vector<8x32xbf16>, vector<32x32xbf16>, vector<8x32xf32> -> vector<8x32xf32>
    %487 = vector.extract_strided_slice %357 {offsets = [0, 0], sizes = [1, 32], strides = [1, 1]} : vector<1x96xf32> to vector<1x32xf32>
    %488 = vector.broadcast %487 : vector<1x32xf32> to vector<8x32xf32>
    %489 = arith.addf %486, %488 : vector<8x32xf32>
    %490 = vector.extract_strided_slice %355 {offsets = [0, 32], sizes = [32, 32], strides = [1, 1]} : vector<32x96xbf16> to vector<32x32xbf16>
    %491 = arith.truncf %337 : vector<8x32xf32> to vector<8x32xbf16>
    %cst_199 = arith.constant dense<0.000000e+00> : vector<8x32xf32>
    %492 = tpu.matmul %491, %490, %cst_199 {dimension_numbers = #tpu.dot_dimension_numbers<[1], [0], [0], [1], [0, 0, 1, 1], [], []>} : vector<8x32xbf16>, vector<32x32xbf16>, vector<8x32xf32> -> vector<8x32xf32>
    %493 = vector.extract_strided_slice %357 {offsets = [0, 32], sizes = [1, 32], strides = [1, 1]} : vector<1x96xf32> to vector<1x32xf32>
    %494 = vector.broadcast %493 : vector<1x32xf32> to vector<8x32xf32>
    %495 = arith.addf %492, %494 : vector<8x32xf32>
    %496 = vector.extract_strided_slice %355 {offsets = [0, 64], sizes = [32, 32], strides = [1, 1]} : vector<32x96xbf16> to vector<32x32xbf16>
    %497 = arith.truncf %337 : vector<8x32xf32> to vector<8x32xbf16>
    %cst_200 = arith.constant dense<0.000000e+00> : vector<8x32xf32>
    %498 = tpu.matmul %497, %496, %cst_200 {dimension_numbers = #tpu.dot_dimension_numbers<[1], [0], [0], [1], [0, 0, 1, 1], [], []>} : vector<8x32xbf16>, vector<32x32xbf16>, vector<8x32xf32> -> vector<8x32xf32>
    %499 = vector.extract_strided_slice %357 {offsets = [0, 64], sizes = [1, 32], strides = [1, 1]} : vector<1x96xf32> to vector<1x32xf32>
    %500 = vector.broadcast %499 : vector<1x32xf32> to vector<8x32xf32>
    %501 = arith.addf %498, %500 : vector<8x32xf32>
    %cst_201 = arith.constant 0.353553385 : f32
    %502 = vector.broadcast %cst_201 : f32 to vector<8x32xf32>
    %503 = arith.mulf %489, %502 : vector<8x32xf32>
    %504 = vector.extract_strided_slice %503 {offsets = [0, 0], sizes = [8, 8], strides = [1, 1]} : vector<8x32xf32> to vector<8x8xf32>
    %505 = vector.extract_strided_slice %503 {offsets = [0, 8], sizes = [8, 8], strides = [1, 1]} : vector<8x32xf32> to vector<8x8xf32>
    %506 = vector.extract_strided_slice %503 {offsets = [0, 16], sizes = [8, 8], strides = [1, 1]} : vector<8x32xf32> to vector<8x8xf32>
    %507 = vector.extract_strided_slice %503 {offsets = [0, 24], sizes = [8, 8], strides = [1, 1]} : vector<8x32xf32> to vector<8x8xf32>
    %508 = vector.shape_cast %504 : vector<8x8xf32> to vector<1x8x8xf32>
    %509 = vector.shape_cast %505 : vector<8x8xf32> to vector<1x8x8xf32>
    %510 = vector.shape_cast %506 : vector<8x8xf32> to vector<1x8x8xf32>
    %511 = vector.shape_cast %507 : vector<8x8xf32> to vector<1x8x8xf32>
    %512 = tpu.concatenate %508, %509, %510, %511 in 0 : vector<1x8x8xf32>, vector<1x8x8xf32>, vector<1x8x8xf32>, vector<1x8x8xf32> -> vector<4x8x8xf32>
    %513 = vector.extract_strided_slice %495 {offsets = [0, 0], sizes = [8, 8], strides = [1, 1]} : vector<8x32xf32> to vector<8x8xf32>
    %514 = vector.extract_strided_slice %495 {offsets = [0, 8], sizes = [8, 8], strides = [1, 1]} : vector<8x32xf32> to vector<8x8xf32>
    %515 = vector.extract_strided_slice %495 {offsets = [0, 16], sizes = [8, 8], strides = [1, 1]} : vector<8x32xf32> to vector<8x8xf32>
    %516 = vector.extract_strided_slice %495 {offsets = [0, 24], sizes = [8, 8], strides = [1, 1]} : vector<8x32xf32> to vector<8x8xf32>
    %517 = vector.shape_cast %513 : vector<8x8xf32> to vector<1x8x8xf32>
    %518 = vector.shape_cast %514 : vector<8x8xf32> to vector<1x8x8xf32>
    %519 = vector.shape_cast %515 : vector<8x8xf32> to vector<1x8x8xf32>
    %520 = vector.shape_cast %516 : vector<8x8xf32> to vector<1x8x8xf32>
    %521 = tpu.concatenate %517, %518, %519, %520 in 0 : vector<1x8x8xf32>, vector<1x8x8xf32>, vector<1x8x8xf32>, vector<1x8x8xf32> -> vector<4x8x8xf32>
    %522 = vector.extract_strided_slice %501 {offsets = [0, 0], sizes = [8, 8], strides = [1, 1]} : vector<8x32xf32> to vector<8x8xf32>
    %523 = vector.extract_strided_slice %501 {offsets = [0, 8], sizes = [8, 8], strides = [1, 1]} : vector<8x32xf32> to vector<8x8xf32>
    %524 = vector.extract_strided_slice %501 {offsets = [0, 16], sizes = [8, 8], strides = [1, 1]} : vector<8x32xf32> to vector<8x8xf32>
    %525 = vector.extract_strided_slice %501 {offsets = [0, 24], sizes = [8, 8], strides = [1, 1]} : vector<8x32xf32> to vector<8x8xf32>
    %526 = vector.shape_cast %522 : vector<8x8xf32> to vector<1x8x8xf32>
    %527 = vector.shape_cast %523 : vector<8x8xf32> to vector<1x8x8xf32>
    %528 = vector.shape_cast %524 : vector<8x8xf32> to vector<1x8x8xf32>
    %529 = vector.shape_cast %525 : vector<8x8xf32> to vector<1x8x8xf32>
    %530 = tpu.concatenate %526, %527, %528, %529 in 0 : vector<1x8x8xf32>, vector<1x8x8xf32>, vector<1x8x8xf32>, vector<1x8x8xf32> -> vector<4x8x8xf32>
    %531 = arith.truncf %512 : vector<4x8x8xf32> to vector<4x8x8xbf16>
    %532 = arith.truncf %521 : vector<4x8x8xf32> to vector<4x8x8xbf16>
    "tpu.trace_start"() <{level = 10 : i32, message = "hsd,htd->hst"}> : () -> ()
    %cst_202 = arith.constant dense<0.000000e+00> : vector<4x8x8xf32>
    %533 = tpu.matmul %531, %532, %cst_202 {dimension_numbers = #tpu.dot_dimension_numbers<[2], [2], [1], [1], [0, 0, 0, 1, 1, 1], [0], [0]>} : vector<4x8x8xbf16>, vector<4x8x8xbf16>, vector<4x8x8xf32> -> vector<4x8x8xf32>
    "tpu.trace_stop"() : () -> ()
    %cst_203 = arith.constant dense<0xFF800000> : vector<4x8xf32>
    %534 = vector.multi_reduction <maximumf>, %533, %cst_203 [2] : vector<4x8x8xf32> to vector<4x8xf32>
    %535 = vector.shape_cast %534 : vector<4x8xf32> to vector<4x8x1xf32>
    %536 = vector.broadcast %535 : vector<4x8x1xf32> to vector<4x8x8xf32>
    %537 = arith.subf %533, %536 : vector<4x8x8xf32>
    %538 = math.exp %537 : vector<4x8x8xf32>
    %cst_204 = arith.constant dense<0.000000e+00> : vector<4x8xf32>
    %539 = vector.multi_reduction <add>, %538, %cst_204 [2] : vector<4x8x8xf32> to vector<4x8xf32>
    %540 = vector.shape_cast %539 : vector<4x8xf32> to vector<4x8x1xf32>
    %541 = tpu.reciprocal %540 {approx = true} : vector<4x8x1xf32> -> vector<4x8x1xf32>
    %542 = vector.broadcast %541 : vector<4x8x1xf32> to vector<4x8x8xf32>
    %543 = arith.mulf %538, %542 : vector<4x8x8xf32>
    %544 = arith.truncf %543 : vector<4x8x8xf32> to vector<4x8x8xbf16>
    %545 = arith.truncf %530 : vector<4x8x8xf32> to vector<4x8x8xbf16>
    "tpu.trace_start"() <{level = 10 : i32, message = "hst,htd->hsd"}> : () -> ()
    %cst_205 = arith.constant dense<0.000000e+00> : vector<4x8x8xf32>
    %546 = tpu.matmul %544, %545, %cst_205 {dimension_numbers = #tpu.dot_dimension_numbers<[2], [1], [1], [2], [0, 0, 0, 1, 1, 2], [0], [0]>} : vector<4x8x8xbf16>, vector<4x8x8xbf16>, vector<4x8x8xf32> -> vector<4x8x8xf32>
    "tpu.trace_stop"() : () -> ()
    %547 = vector.extract_strided_slice %546 {offsets = [0, 0, 0], sizes = [1, 8, 8], strides = [1, 1, 1]} : vector<4x8x8xf32> to vector<1x8x8xf32>
    %548 = vector.shape_cast %547 : vector<1x8x8xf32> to vector<8x8xf32>
    %549 = vector.extract_strided_slice %546 {offsets = [1, 0, 0], sizes = [1, 8, 8], strides = [1, 1, 1]} : vector<4x8x8xf32> to vector<1x8x8xf32>
    %550 = vector.shape_cast %549 : vector<1x8x8xf32> to vector<8x8xf32>
    %551 = vector.extract_strided_slice %546 {offsets = [2, 0, 0], sizes = [1, 8, 8], strides = [1, 1, 1]} : vector<4x8x8xf32> to vector<1x8x8xf32>
    %552 = vector.shape_cast %551 : vector<1x8x8xf32> to vector<8x8xf32>
    %553 = vector.extract_strided_slice %546 {offsets = [3, 0, 0], sizes = [1, 8, 8], strides = [1, 1, 1]} : vector<4x8x8xf32> to vector<1x8x8xf32>
    %554 = vector.shape_cast %553 : vector<1x8x8xf32> to vector<8x8xf32>
    %555 = tpu.concatenate %548, %550, %552, %554 in 1 : vector<8x8xf32>, vector<8x8xf32>, vector<8x8xf32>, vector<8x8xf32> -> vector<8x32xf32>
    %556 = arith.truncf %555 : vector<8x32xf32> to vector<8x32xbf16>
    %cst_206 = arith.constant dense<0.000000e+00> : vector<8x32xf32>
    %557 = tpu.matmul %556, %359, %cst_206 {dimension_numbers = #tpu.dot_dimension_numbers<[1], [0], [0], [1], [0, 0, 1, 1], [], []>} : vector<8x32xbf16>, vector<32x32xbf16>, vector<8x32xf32> -> vector<8x32xf32>
    %558 = vector.broadcast %361 : vector<1x32xf32> to vector<8x32xf32>
    %559 = arith.addf %557, %558 : vector<8x32xf32>
    %560 = arith.addf %483, %559 : vector<8x32xf32>
    %cst_207 = arith.constant dense<0.000000e+00> : vector<8xf32>
    %561 = vector.multi_reduction <add>, %560, %cst_207 [1] : vector<8x32xf32> to vector<8xf32>
    %562 = vector.shape_cast %561 : vector<8xf32> to vector<8x1xf32>
    %cst_208 = arith.constant 3.200000e+01 : f32
    %563 = vector.broadcast %cst_208 : f32 to vector<8x1xf32>
    %564 = arith.divf %562, %563 : vector<8x1xf32>
    %565 = vector.broadcast %564 : vector<8x1xf32> to vector<8x32xf32>
    %566 = arith.subf %560, %565 : vector<8x32xf32>
    %567 = arith.mulf %566, %566 : vector<8x32xf32>
    %cst_209 = arith.constant dense<0.000000e+00> : vector<8xf32>
    %568 = vector.multi_reduction <add>, %567, %cst_209 [1] : vector<8x32xf32> to vector<8xf32>
    %569 = vector.shape_cast %568 : vector<8xf32> to vector<8x1xf32>
    %cst_210 = arith.constant 3.200000e+01 : f32
    %570 = vector.broadcast %cst_210 : f32 to vector<8x1xf32>
    %571 = arith.divf %569, %570 : vector<8x1xf32>
    %572 = vector.broadcast %564 : vector<8x1xf32> to vector<8x32xf32>
    %573 = arith.subf %560, %572 : vector<8x32xf32>
    %cst_211 = arith.constant 9.99999974E-6 : f32
    %574 = vector.broadcast %cst_211 : f32 to vector<8x1xf32>
    %575 = arith.addf %571, %574 : vector<8x1xf32>
    %576 = math.rsqrt %575 : vector<8x1xf32>
    %577 = vector.broadcast %576 : vector<8x1xf32> to vector<8x32xf32>
    %578 = arith.mulf %573, %577 : vector<8x32xf32>
    %579 = vector.broadcast %375 : vector<1x32xf32> to vector<8x32xf32>
    %580 = arith.mulf %578, %579 : vector<8x32xf32>
    %581 = vector.broadcast %377 : vector<1x32xf32> to vector<8x32xf32>
    %582 = arith.addf %580, %581 : vector<8x32xf32>
    %583 = arith.truncf %582 : vector<8x32xf32> to vector<8x32xbf16>
    %cst_212 = arith.constant dense<0.000000e+00> : vector<8x64xf32>
    %584 = tpu.matmul %583, %363, %cst_212 {dimension_numbers = #tpu.dot_dimension_numbers<[1], [0], [0], [1], [0, 0, 1, 1], [], []>} : vector<8x32xbf16>, vector<32x64xbf16>, vector<8x64xf32> -> vector<8x64xf32>
    %585 = vector.broadcast %365 : vector<1x64xf32> to vector<8x64xf32>
    %586 = arith.addf %584, %585 : vector<8x64xf32>
    %cst_213 = arith.constant 0.000000e+00 : f32
    %587 = vector.broadcast %cst_213 : f32 to vector<8x64xf32>
    %588 = arith.maximumf %586, %587 : vector<8x64xf32>
    %589 = arith.truncf %588 : vector<8x64xf32> to vector<8x64xbf16>
    %cst_214 = arith.constant dense<0.000000e+00> : vector<8x32xf32>
    %590 = tpu.matmul %589, %367, %cst_214 {dimension_numbers = #tpu.dot_dimension_numbers<[1], [0], [0], [1], [0, 0, 1, 1], [], []>} : vector<8x64xbf16>, vector<64x32xbf16>, vector<8x32xf32> -> vector<8x32xf32>
    %591 = arith.addf %582, %590 : vector<8x32xf32>
    %592 = vector.broadcast %369 : vector<1x32xf32> to vector<8x32xf32>
    %593 = arith.addf %591, %592 : vector<8x32xf32>
    %cst_215 = arith.constant dense<0.000000e+00> : vector<8xf32>
    %594 = vector.multi_reduction <add>, %593, %cst_215 [1] : vector<8x32xf32> to vector<8xf32>
    %595 = vector.shape_cast %594 : vector<8xf32> to vector<8x1xf32>
    %cst_216 = arith.constant 3.200000e+01 : f32
    %596 = vector.broadcast %cst_216 : f32 to vector<8x1xf32>
    %597 = arith.divf %595, %596 : vector<8x1xf32>
    %598 = vector.broadcast %597 : vector<8x1xf32> to vector<8x32xf32>
    %599 = arith.subf %593, %598 : vector<8x32xf32>
    %600 = arith.mulf %599, %599 : vector<8x32xf32>
    %cst_217 = arith.constant dense<0.000000e+00> : vector<8xf32>
    %601 = vector.multi_reduction <add>, %600, %cst_217 [1] : vector<8x32xf32> to vector<8xf32>
    %602 = vector.shape_cast %601 : vector<8xf32> to vector<8x1xf32>
    %cst_218 = arith.constant 3.200000e+01 : f32
    %603 = vector.broadcast %cst_218 : f32 to vector<8x1xf32>
    %604 = arith.divf %602, %603 : vector<8x1xf32>
    %605 = vector.broadcast %597 : vector<8x1xf32> to vector<8x32xf32>
    %606 = arith.subf %593, %605 : vector<8x32xf32>
    %cst_219 = arith.constant 9.99999974E-6 : f32
    %607 = vector.broadcast %cst_219 : f32 to vector<8x1xf32>
    %608 = arith.addf %604, %607 : vector<8x1xf32>
    %609 = math.rsqrt %608 : vector<8x1xf32>
    %610 = vector.broadcast %609 : vector<8x1xf32> to vector<8x32xf32>
    %611 = arith.mulf %606, %610 : vector<8x32xf32>
    %612 = vector.broadcast %379 : vector<1x32xf32> to vector<8x32xf32>
    %613 = arith.mulf %611, %612 : vector<8x32xf32>
    %614 = vector.broadcast %381 : vector<1x32xf32> to vector<8x32xf32>
    %615 = arith.addf %613, %614 : vector<8x32xf32>
    %c1_220 = arith.constant 1 : index
    %c0_221 = arith.constant 0 : index
    %c0_222 = arith.constant 0 : index
    %616 = vector.load %arg17[%c1_220, %c0_221, %c0_222] : memref<2x32x96xbf16, #tpu.memory_space<vmem>>, vector<1x32x96xbf16>
    %617 = vector.shape_cast %616 : vector<1x32x96xbf16> to vector<32x96xbf16>
    %c1_223 = arith.constant 1 : index
    %c0_224 = arith.constant 0 : index
    %c0_225 = arith.constant 0 : index
    %618 = vector.load %arg18[%c1_223, %c0_224, %c0_225] : memref<2x1x96xf32, #tpu.memory_space<vmem>>, vector<1x1x96xf32>
    %619 = vector.shape_cast %618 : vector<1x1x96xf32> to vector<1x96xf32>
    %c1_226 = arith.constant 1 : index
    %c0_227 = arith.constant 0 : index
    %c0_228 = arith.constant 0 : index
    %620 = vector.load %arg19[%c1_226, %c0_227, %c0_228] : memref<2x32x32xbf16, #tpu.memory_space<vmem>>, vector<1x32x32xbf16>
    %621 = vector.shape_cast %620 : vector<1x32x32xbf16> to vector<32x32xbf16>
    %c1_229 = arith.constant 1 : index
    %c0_230 = arith.constant 0 : index
    %c0_231 = arith.constant 0 : index
    %622 = vector.load %arg20[%c1_229, %c0_230, %c0_231] : memref<2x1x32xf32, #tpu.memory_space<vmem>>, vector<1x1x32xf32>
    %623 = vector.shape_cast %622 : vector<1x1x32xf32> to vector<1x32xf32>
    %c1_232 = arith.constant 1 : index
    %c0_233 = arith.constant 0 : index
    %c0_234 = arith.constant 0 : index
    %624 = vector.load %arg21[%c1_232, %c0_233, %c0_234] : memref<2x32x96xbf16, #tpu.memory_space<vmem>>, vector<1x32x96xbf16>
    %625 = vector.shape_cast %624 : vector<1x32x96xbf16> to vector<32x96xbf16>
    %c1_235 = arith.constant 1 : index
    %c0_236 = arith.constant 0 : index
    %c0_237 = arith.constant 0 : index
    %626 = vector.load %arg22[%c1_235, %c0_236, %c0_237] : memref<2x1x96xf32, #tpu.memory_space<vmem>>, vector<1x1x96xf32>
    %627 = vector.shape_cast %626 : vector<1x1x96xf32> to vector<1x96xf32>
    %c1_238 = arith.constant 1 : index
    %c0_239 = arith.constant 0 : index
    %c0_240 = arith.constant 0 : index
    %628 = vector.load %arg23[%c1_238, %c0_239, %c0_240] : memref<2x32x32xbf16, #tpu.memory_space<vmem>>, vector<1x32x32xbf16>
    %629 = vector.shape_cast %628 : vector<1x32x32xbf16> to vector<32x32xbf16>
    %c1_241 = arith.constant 1 : index
    %c0_242 = arith.constant 0 : index
    %c0_243 = arith.constant 0 : index
    %630 = vector.load %arg24[%c1_241, %c0_242, %c0_243] : memref<2x1x32xf32, #tpu.memory_space<vmem>>, vector<1x1x32xf32>
    %631 = vector.shape_cast %630 : vector<1x1x32xf32> to vector<1x32xf32>
    %c1_244 = arith.constant 1 : index
    %c0_245 = arith.constant 0 : index
    %c0_246 = arith.constant 0 : index
    %632 = vector.load %arg25[%c1_244, %c0_245, %c0_246] : memref<2x32x64xbf16, #tpu.memory_space<vmem>>, vector<1x32x64xbf16>
    %633 = vector.shape_cast %632 : vector<1x32x64xbf16> to vector<32x64xbf16>
    %c1_247 = arith.constant 1 : index
    %c0_248 = arith.constant 0 : index
    %c0_249 = arith.constant 0 : index
    %634 = vector.load %arg26[%c1_247, %c0_248, %c0_249] : memref<2x1x64xf32, #tpu.memory_space<vmem>>, vector<1x1x64xf32>
    %635 = vector.shape_cast %634 : vector<1x1x64xf32> to vector<1x64xf32>
    %c1_250 = arith.constant 1 : index
    %c0_251 = arith.constant 0 : index
    %c0_252 = arith.constant 0 : index
    %636 = vector.load %arg27[%c1_250, %c0_251, %c0_252] : memref<2x64x32xbf16, #tpu.memory_space<vmem>>, vector<1x64x32xbf16>
    %637 = vector.shape_cast %636 : vector<1x64x32xbf16> to vector<64x32xbf16>
    %c1_253 = arith.constant 1 : index
    %c0_254 = arith.constant 0 : index
    %c0_255 = arith.constant 0 : index
    %638 = vector.load %arg28[%c1_253, %c0_254, %c0_255] : memref<2x1x32xf32, #tpu.memory_space<vmem>>, vector<1x1x32xf32>
    %639 = vector.shape_cast %638 : vector<1x1x32xf32> to vector<1x32xf32>
    %c1_256 = arith.constant 1 : index
    %c0_257 = arith.constant 0 : index
    %c0_258 = arith.constant 0 : index
    %640 = vector.load %arg29[%c1_256, %c0_257, %c0_258] : memref<2x1x32xf32, #tpu.memory_space<vmem>>, vector<1x1x32xf32>
    %641 = vector.shape_cast %640 : vector<1x1x32xf32> to vector<1x32xf32>
    %c1_259 = arith.constant 1 : index
    %c0_260 = arith.constant 0 : index
    %c0_261 = arith.constant 0 : index
    %642 = vector.load %arg30[%c1_259, %c0_260, %c0_261] : memref<2x1x32xf32, #tpu.memory_space<vmem>>, vector<1x1x32xf32>
    %643 = vector.shape_cast %642 : vector<1x1x32xf32> to vector<1x32xf32>
    %c1_262 = arith.constant 1 : index
    %c0_263 = arith.constant 0 : index
    %c0_264 = arith.constant 0 : index
    %644 = vector.load %arg31[%c1_262, %c0_263, %c0_264] : memref<2x1x32xf32, #tpu.memory_space<vmem>>, vector<1x1x32xf32>
    %645 = vector.shape_cast %644 : vector<1x1x32xf32> to vector<1x32xf32>
    %c1_265 = arith.constant 1 : index
    %c0_266 = arith.constant 0 : index
    %c0_267 = arith.constant 0 : index
    %646 = vector.load %arg32[%c1_265, %c0_266, %c0_267] : memref<2x1x32xf32, #tpu.memory_space<vmem>>, vector<1x1x32xf32>
    %647 = vector.shape_cast %646 : vector<1x1x32xf32> to vector<1x32xf32>
    %c1_268 = arith.constant 1 : index
    %c0_269 = arith.constant 0 : index
    %c0_270 = arith.constant 0 : index
    %648 = vector.load %arg33[%c1_268, %c0_269, %c0_270] : memref<2x1x32xf32, #tpu.memory_space<vmem>>, vector<1x1x32xf32>
    %649 = vector.shape_cast %648 : vector<1x1x32xf32> to vector<1x32xf32>
    %c1_271 = arith.constant 1 : index
    %c0_272 = arith.constant 0 : index
    %c0_273 = arith.constant 0 : index
    %650 = vector.load %arg34[%c1_271, %c0_272, %c0_273] : memref<2x1x32xf32, #tpu.memory_space<vmem>>, vector<1x1x32xf32>
    %651 = vector.shape_cast %650 : vector<1x1x32xf32> to vector<1x32xf32>
    %652 = vector.extract_strided_slice %617 {offsets = [0, 0], sizes = [32, 32], strides = [1, 1]} : vector<32x96xbf16> to vector<32x32xbf16>
    %653 = arith.truncf %615 : vector<8x32xf32> to vector<8x32xbf16>
    %cst_274 = arith.constant dense<0.000000e+00> : vector<8x32xf32>
    %654 = tpu.matmul %653, %652, %cst_274 {dimension_numbers = #tpu.dot_dimension_numbers<[1], [0], [0], [1], [0, 0, 1, 1], [], []>} : vector<8x32xbf16>, vector<32x32xbf16>, vector<8x32xf32> -> vector<8x32xf32>
    %655 = vector.extract_strided_slice %619 {offsets = [0, 0], sizes = [1, 32], strides = [1, 1]} : vector<1x96xf32> to vector<1x32xf32>
    %656 = vector.broadcast %655 : vector<1x32xf32> to vector<8x32xf32>
    %657 = arith.addf %654, %656 : vector<8x32xf32>
    %658 = vector.extract_strided_slice %617 {offsets = [0, 32], sizes = [32, 32], strides = [1, 1]} : vector<32x96xbf16> to vector<32x32xbf16>
    %659 = arith.truncf %615 : vector<8x32xf32> to vector<8x32xbf16>
    %cst_275 = arith.constant dense<0.000000e+00> : vector<8x32xf32>
    %660 = tpu.matmul %659, %658, %cst_275 {dimension_numbers = #tpu.dot_dimension_numbers<[1], [0], [0], [1], [0, 0, 1, 1], [], []>} : vector<8x32xbf16>, vector<32x32xbf16>, vector<8x32xf32> -> vector<8x32xf32>
    %661 = vector.extract_strided_slice %619 {offsets = [0, 32], sizes = [1, 32], strides = [1, 1]} : vector<1x96xf32> to vector<1x32xf32>
    %662 = vector.broadcast %661 : vector<1x32xf32> to vector<8x32xf32>
    %663 = arith.addf %660, %662 : vector<8x32xf32>
    %664 = vector.extract_strided_slice %617 {offsets = [0, 64], sizes = [32, 32], strides = [1, 1]} : vector<32x96xbf16> to vector<32x32xbf16>
    %665 = arith.truncf %615 : vector<8x32xf32> to vector<8x32xbf16>
    %cst_276 = arith.constant dense<0.000000e+00> : vector<8x32xf32>
    %666 = tpu.matmul %665, %664, %cst_276 {dimension_numbers = #tpu.dot_dimension_numbers<[1], [0], [0], [1], [0, 0, 1, 1], [], []>} : vector<8x32xbf16>, vector<32x32xbf16>, vector<8x32xf32> -> vector<8x32xf32>
    %667 = vector.extract_strided_slice %619 {offsets = [0, 64], sizes = [1, 32], strides = [1, 1]} : vector<1x96xf32> to vector<1x32xf32>
    %668 = vector.broadcast %667 : vector<1x32xf32> to vector<8x32xf32>
    %669 = arith.addf %666, %668 : vector<8x32xf32>
    %cst_277 = arith.constant 0.353553385 : f32
    %670 = vector.broadcast %cst_277 : f32 to vector<8x32xf32>
    %671 = arith.mulf %657, %670 : vector<8x32xf32>
    %672 = vector.extract_strided_slice %671 {offsets = [0, 0], sizes = [8, 8], strides = [1, 1]} : vector<8x32xf32> to vector<8x8xf32>
    %673 = vector.extract_strided_slice %671 {offsets = [0, 8], sizes = [8, 8], strides = [1, 1]} : vector<8x32xf32> to vector<8x8xf32>
    %674 = vector.extract_strided_slice %671 {offsets = [0, 16], sizes = [8, 8], strides = [1, 1]} : vector<8x32xf32> to vector<8x8xf32>
    %675 = vector.extract_strided_slice %671 {offsets = [0, 24], sizes = [8, 8], strides = [1, 1]} : vector<8x32xf32> to vector<8x8xf32>
    %676 = vector.shape_cast %672 : vector<8x8xf32> to vector<1x8x8xf32>
    %677 = vector.shape_cast %673 : vector<8x8xf32> to vector<1x8x8xf32>
    %678 = vector.shape_cast %674 : vector<8x8xf32> to vector<1x8x8xf32>
    %679 = vector.shape_cast %675 : vector<8x8xf32> to vector<1x8x8xf32>
    %680 = tpu.concatenate %676, %677, %678, %679 in 0 : vector<1x8x8xf32>, vector<1x8x8xf32>, vector<1x8x8xf32>, vector<1x8x8xf32> -> vector<4x8x8xf32>
    %681 = vector.extract_strided_slice %663 {offsets = [0, 0], sizes = [8, 8], strides = [1, 1]} : vector<8x32xf32> to vector<8x8xf32>
    %682 = vector.extract_strided_slice %663 {offsets = [0, 8], sizes = [8, 8], strides = [1, 1]} : vector<8x32xf32> to vector<8x8xf32>
    %683 = vector.extract_strided_slice %663 {offsets = [0, 16], sizes = [8, 8], strides = [1, 1]} : vector<8x32xf32> to vector<8x8xf32>
    %684 = vector.extract_strided_slice %663 {offsets = [0, 24], sizes = [8, 8], strides = [1, 1]} : vector<8x32xf32> to vector<8x8xf32>
    %685 = vector.shape_cast %681 : vector<8x8xf32> to vector<1x8x8xf32>
    %686 = vector.shape_cast %682 : vector<8x8xf32> to vector<1x8x8xf32>
    %687 = vector.shape_cast %683 : vector<8x8xf32> to vector<1x8x8xf32>
    %688 = vector.shape_cast %684 : vector<8x8xf32> to vector<1x8x8xf32>
    %689 = tpu.concatenate %685, %686, %687, %688 in 0 : vector<1x8x8xf32>, vector<1x8x8xf32>, vector<1x8x8xf32>, vector<1x8x8xf32> -> vector<4x8x8xf32>
    %690 = vector.extract_strided_slice %669 {offsets = [0, 0], sizes = [8, 8], strides = [1, 1]} : vector<8x32xf32> to vector<8x8xf32>
    %691 = vector.extract_strided_slice %669 {offsets = [0, 8], sizes = [8, 8], strides = [1, 1]} : vector<8x32xf32> to vector<8x8xf32>
    %692 = vector.extract_strided_slice %669 {offsets = [0, 16], sizes = [8, 8], strides = [1, 1]} : vector<8x32xf32> to vector<8x8xf32>
    %693 = vector.extract_strided_slice %669 {offsets = [0, 24], sizes = [8, 8], strides = [1, 1]} : vector<8x32xf32> to vector<8x8xf32>
    %694 = vector.shape_cast %690 : vector<8x8xf32> to vector<1x8x8xf32>
    %695 = vector.shape_cast %691 : vector<8x8xf32> to vector<1x8x8xf32>
    %696 = vector.shape_cast %692 : vector<8x8xf32> to vector<1x8x8xf32>
    %697 = vector.shape_cast %693 : vector<8x8xf32> to vector<1x8x8xf32>
    %698 = tpu.concatenate %694, %695, %696, %697 in 0 : vector<1x8x8xf32>, vector<1x8x8xf32>, vector<1x8x8xf32>, vector<1x8x8xf32> -> vector<4x8x8xf32>
    %699 = arith.truncf %680 : vector<4x8x8xf32> to vector<4x8x8xbf16>
    %700 = arith.truncf %689 : vector<4x8x8xf32> to vector<4x8x8xbf16>
    "tpu.trace_start"() <{level = 10 : i32, message = "hsd,htd->hst"}> : () -> ()
    %cst_278 = arith.constant dense<0.000000e+00> : vector<4x8x8xf32>
    %701 = tpu.matmul %699, %700, %cst_278 {dimension_numbers = #tpu.dot_dimension_numbers<[2], [2], [1], [1], [0, 0, 0, 1, 1, 1], [0], [0]>} : vector<4x8x8xbf16>, vector<4x8x8xbf16>, vector<4x8x8xf32> -> vector<4x8x8xf32>
    "tpu.trace_stop"() : () -> ()
    %702 = vector.shape_cast %343 : vector<8x8xf32> to vector<1x8x8xf32>
    %703 = vector.broadcast %702 : vector<1x8x8xf32> to vector<4x8x8xf32>
    %704 = arith.addf %701, %703 : vector<4x8x8xf32>
    %cst_279 = arith.constant dense<0xFF800000> : vector<4x8xf32>
    %705 = vector.multi_reduction <maximumf>, %704, %cst_279 [2] : vector<4x8x8xf32> to vector<4x8xf32>
    %706 = vector.shape_cast %705 : vector<4x8xf32> to vector<4x8x1xf32>
    %707 = vector.broadcast %706 : vector<4x8x1xf32> to vector<4x8x8xf32>
    %708 = arith.subf %704, %707 : vector<4x8x8xf32>
    %709 = math.exp %708 : vector<4x8x8xf32>
    %cst_280 = arith.constant dense<0.000000e+00> : vector<4x8xf32>
    %710 = vector.multi_reduction <add>, %709, %cst_280 [2] : vector<4x8x8xf32> to vector<4x8xf32>
    %711 = vector.shape_cast %710 : vector<4x8xf32> to vector<4x8x1xf32>
    %712 = tpu.reciprocal %711 {approx = true} : vector<4x8x1xf32> -> vector<4x8x1xf32>
    %713 = vector.broadcast %712 : vector<4x8x1xf32> to vector<4x8x8xf32>
    %714 = arith.mulf %709, %713 : vector<4x8x8xf32>
    %715 = arith.truncf %714 : vector<4x8x8xf32> to vector<4x8x8xbf16>
    %716 = arith.truncf %698 : vector<4x8x8xf32> to vector<4x8x8xbf16>
    "tpu.trace_start"() <{level = 10 : i32, message = "hst,htd->hsd"}> : () -> ()
    %cst_281 = arith.constant dense<0.000000e+00> : vector<4x8x8xf32>
    %717 = tpu.matmul %715, %716, %cst_281 {dimension_numbers = #tpu.dot_dimension_numbers<[2], [1], [1], [2], [0, 0, 0, 1, 1, 2], [0], [0]>} : vector<4x8x8xbf16>, vector<4x8x8xbf16>, vector<4x8x8xf32> -> vector<4x8x8xf32>
    "tpu.trace_stop"() : () -> ()
    %718 = vector.extract_strided_slice %717 {offsets = [0, 0, 0], sizes = [1, 8, 8], strides = [1, 1, 1]} : vector<4x8x8xf32> to vector<1x8x8xf32>
    %719 = vector.shape_cast %718 : vector<1x8x8xf32> to vector<8x8xf32>
    %720 = vector.extract_strided_slice %717 {offsets = [1, 0, 0], sizes = [1, 8, 8], strides = [1, 1, 1]} : vector<4x8x8xf32> to vector<1x8x8xf32>
    %721 = vector.shape_cast %720 : vector<1x8x8xf32> to vector<8x8xf32>
    %722 = vector.extract_strided_slice %717 {offsets = [2, 0, 0], sizes = [1, 8, 8], strides = [1, 1, 1]} : vector<4x8x8xf32> to vector<1x8x8xf32>
    %723 = vector.shape_cast %722 : vector<1x8x8xf32> to vector<8x8xf32>
    %724 = vector.extract_strided_slice %717 {offsets = [3, 0, 0], sizes = [1, 8, 8], strides = [1, 1, 1]} : vector<4x8x8xf32> to vector<1x8x8xf32>
    %725 = vector.shape_cast %724 : vector<1x8x8xf32> to vector<8x8xf32>
    %726 = tpu.concatenate %719, %721, %723, %725 in 1 : vector<8x8xf32>, vector<8x8xf32>, vector<8x8xf32>, vector<8x8xf32> -> vector<8x32xf32>
    %727 = arith.truncf %726 : vector<8x32xf32> to vector<8x32xbf16>
    %cst_282 = arith.constant dense<0.000000e+00> : vector<8x32xf32>
    %728 = tpu.matmul %727, %621, %cst_282 {dimension_numbers = #tpu.dot_dimension_numbers<[1], [0], [0], [1], [0, 0, 1, 1], [], []>} : vector<8x32xbf16>, vector<32x32xbf16>, vector<8x32xf32> -> vector<8x32xf32>
    %729 = vector.broadcast %623 : vector<1x32xf32> to vector<8x32xf32>
    %730 = arith.addf %728, %729 : vector<8x32xf32>
    %731 = arith.addf %615, %730 : vector<8x32xf32>
    %cst_283 = arith.constant dense<0.000000e+00> : vector<8xf32>
    %732 = vector.multi_reduction <add>, %731, %cst_283 [1] : vector<8x32xf32> to vector<8xf32>
    %733 = vector.shape_cast %732 : vector<8xf32> to vector<8x1xf32>
    %cst_284 = arith.constant 3.200000e+01 : f32
    %734 = vector.broadcast %cst_284 : f32 to vector<8x1xf32>
    %735 = arith.divf %733, %734 : vector<8x1xf32>
    %736 = vector.broadcast %735 : vector<8x1xf32> to vector<8x32xf32>
    %737 = arith.subf %731, %736 : vector<8x32xf32>
    %738 = arith.mulf %737, %737 : vector<8x32xf32>
    %cst_285 = arith.constant dense<0.000000e+00> : vector<8xf32>
    %739 = vector.multi_reduction <add>, %738, %cst_285 [1] : vector<8x32xf32> to vector<8xf32>
    %740 = vector.shape_cast %739 : vector<8xf32> to vector<8x1xf32>
    %cst_286 = arith.constant 3.200000e+01 : f32
    %741 = vector.broadcast %cst_286 : f32 to vector<8x1xf32>
    %742 = arith.divf %740, %741 : vector<8x1xf32>
    %743 = vector.broadcast %735 : vector<8x1xf32> to vector<8x32xf32>
    %744 = arith.subf %731, %743 : vector<8x32xf32>
    %cst_287 = arith.constant 9.99999974E-6 : f32
    %745 = vector.broadcast %cst_287 : f32 to vector<8x1xf32>
    %746 = arith.addf %742, %745 : vector<8x1xf32>
    %747 = math.rsqrt %746 : vector<8x1xf32>
    %748 = vector.broadcast %747 : vector<8x1xf32> to vector<8x32xf32>
    %749 = arith.mulf %744, %748 : vector<8x32xf32>
    %750 = vector.broadcast %641 : vector<1x32xf32> to vector<8x32xf32>
    %751 = arith.mulf %749, %750 : vector<8x32xf32>
    %752 = vector.broadcast %643 : vector<1x32xf32> to vector<8x32xf32>
    %753 = arith.addf %751, %752 : vector<8x32xf32>
    %754 = vector.extract_strided_slice %625 {offsets = [0, 0], sizes = [32, 32], strides = [1, 1]} : vector<32x96xbf16> to vector<32x32xbf16>
    %755 = arith.truncf %753 : vector<8x32xf32> to vector<8x32xbf16>
    %cst_288 = arith.constant dense<0.000000e+00> : vector<8x32xf32>
    %756 = tpu.matmul %755, %754, %cst_288 {dimension_numbers = #tpu.dot_dimension_numbers<[1], [0], [0], [1], [0, 0, 1, 1], [], []>} : vector<8x32xbf16>, vector<32x32xbf16>, vector<8x32xf32> -> vector<8x32xf32>
    %757 = vector.extract_strided_slice %627 {offsets = [0, 0], sizes = [1, 32], strides = [1, 1]} : vector<1x96xf32> to vector<1x32xf32>
    %758 = vector.broadcast %757 : vector<1x32xf32> to vector<8x32xf32>
    %759 = arith.addf %756, %758 : vector<8x32xf32>
    %760 = vector.extract_strided_slice %625 {offsets = [0, 32], sizes = [32, 32], strides = [1, 1]} : vector<32x96xbf16> to vector<32x32xbf16>
    %761 = arith.truncf %337 : vector<8x32xf32> to vector<8x32xbf16>
    %cst_289 = arith.constant dense<0.000000e+00> : vector<8x32xf32>
    %762 = tpu.matmul %761, %760, %cst_289 {dimension_numbers = #tpu.dot_dimension_numbers<[1], [0], [0], [1], [0, 0, 1, 1], [], []>} : vector<8x32xbf16>, vector<32x32xbf16>, vector<8x32xf32> -> vector<8x32xf32>
    %763 = vector.extract_strided_slice %627 {offsets = [0, 32], sizes = [1, 32], strides = [1, 1]} : vector<1x96xf32> to vector<1x32xf32>
    %764 = vector.broadcast %763 : vector<1x32xf32> to vector<8x32xf32>
    %765 = arith.addf %762, %764 : vector<8x32xf32>
    %766 = vector.extract_strided_slice %625 {offsets = [0, 64], sizes = [32, 32], strides = [1, 1]} : vector<32x96xbf16> to vector<32x32xbf16>
    %767 = arith.truncf %337 : vector<8x32xf32> to vector<8x32xbf16>
    %cst_290 = arith.constant dense<0.000000e+00> : vector<8x32xf32>
    %768 = tpu.matmul %767, %766, %cst_290 {dimension_numbers = #tpu.dot_dimension_numbers<[1], [0], [0], [1], [0, 0, 1, 1], [], []>} : vector<8x32xbf16>, vector<32x32xbf16>, vector<8x32xf32> -> vector<8x32xf32>
    %769 = vector.extract_strided_slice %627 {offsets = [0, 64], sizes = [1, 32], strides = [1, 1]} : vector<1x96xf32> to vector<1x32xf32>
    %770 = vector.broadcast %769 : vector<1x32xf32> to vector<8x32xf32>
    %771 = arith.addf %768, %770 : vector<8x32xf32>
    %cst_291 = arith.constant 0.353553385 : f32
    %772 = vector.broadcast %cst_291 : f32 to vector<8x32xf32>
    %773 = arith.mulf %759, %772 : vector<8x32xf32>
    %774 = vector.extract_strided_slice %773 {offsets = [0, 0], sizes = [8, 8], strides = [1, 1]} : vector<8x32xf32> to vector<8x8xf32>
    %775 = vector.extract_strided_slice %773 {offsets = [0, 8], sizes = [8, 8], strides = [1, 1]} : vector<8x32xf32> to vector<8x8xf32>
    %776 = vector.extract_strided_slice %773 {offsets = [0, 16], sizes = [8, 8], strides = [1, 1]} : vector<8x32xf32> to vector<8x8xf32>
    %777 = vector.extract_strided_slice %773 {offsets = [0, 24], sizes = [8, 8], strides = [1, 1]} : vector<8x32xf32> to vector<8x8xf32>
    %778 = vector.shape_cast %774 : vector<8x8xf32> to vector<1x8x8xf32>
    %779 = vector.shape_cast %775 : vector<8x8xf32> to vector<1x8x8xf32>
    %780 = vector.shape_cast %776 : vector<8x8xf32> to vector<1x8x8xf32>
    %781 = vector.shape_cast %777 : vector<8x8xf32> to vector<1x8x8xf32>
    %782 = tpu.concatenate %778, %779, %780, %781 in 0 : vector<1x8x8xf32>, vector<1x8x8xf32>, vector<1x8x8xf32>, vector<1x8x8xf32> -> vector<4x8x8xf32>
    %783 = vector.extract_strided_slice %765 {offsets = [0, 0], sizes = [8, 8], strides = [1, 1]} : vector<8x32xf32> to vector<8x8xf32>
    %784 = vector.extract_strided_slice %765 {offsets = [0, 8], sizes = [8, 8], strides = [1, 1]} : vector<8x32xf32> to vector<8x8xf32>
    %785 = vector.extract_strided_slice %765 {offsets = [0, 16], sizes = [8, 8], strides = [1, 1]} : vector<8x32xf32> to vector<8x8xf32>
    %786 = vector.extract_strided_slice %765 {offsets = [0, 24], sizes = [8, 8], strides = [1, 1]} : vector<8x32xf32> to vector<8x8xf32>
    %787 = vector.shape_cast %783 : vector<8x8xf32> to vector<1x8x8xf32>
    %788 = vector.shape_cast %784 : vector<8x8xf32> to vector<1x8x8xf32>
    %789 = vector.shape_cast %785 : vector<8x8xf32> to vector<1x8x8xf32>
    %790 = vector.shape_cast %786 : vector<8x8xf32> to vector<1x8x8xf32>
    %791 = tpu.concatenate %787, %788, %789, %790 in 0 : vector<1x8x8xf32>, vector<1x8x8xf32>, vector<1x8x8xf32>, vector<1x8x8xf32> -> vector<4x8x8xf32>
    %792 = vector.extract_strided_slice %771 {offsets = [0, 0], sizes = [8, 8], strides = [1, 1]} : vector<8x32xf32> to vector<8x8xf32>
    %793 = vector.extract_strided_slice %771 {offsets = [0, 8], sizes = [8, 8], strides = [1, 1]} : vector<8x32xf32> to vector<8x8xf32>
    %794 = vector.extract_strided_slice %771 {offsets = [0, 16], sizes = [8, 8], strides = [1, 1]} : vector<8x32xf32> to vector<8x8xf32>
    %795 = vector.extract_strided_slice %771 {offsets = [0, 24], sizes = [8, 8], strides = [1, 1]} : vector<8x32xf32> to vector<8x8xf32>
    %796 = vector.shape_cast %792 : vector<8x8xf32> to vector<1x8x8xf32>
    %797 = vector.shape_cast %793 : vector<8x8xf32> to vector<1x8x8xf32>
    %798 = vector.shape_cast %794 : vector<8x8xf32> to vector<1x8x8xf32>
    %799 = vector.shape_cast %795 : vector<8x8xf32> to vector<1x8x8xf32>
    %800 = tpu.concatenate %796, %797, %798, %799 in 0 : vector<1x8x8xf32>, vector<1x8x8xf32>, vector<1x8x8xf32>, vector<1x8x8xf32> -> vector<4x8x8xf32>
    %801 = arith.truncf %782 : vector<4x8x8xf32> to vector<4x8x8xbf16>
    %802 = arith.truncf %791 : vector<4x8x8xf32> to vector<4x8x8xbf16>
    "tpu.trace_start"() <{level = 10 : i32, message = "hsd,htd->hst"}> : () -> ()
    %cst_292 = arith.constant dense<0.000000e+00> : vector<4x8x8xf32>
    %803 = tpu.matmul %801, %802, %cst_292 {dimension_numbers = #tpu.dot_dimension_numbers<[2], [2], [1], [1], [0, 0, 0, 1, 1, 1], [0], [0]>} : vector<4x8x8xbf16>, vector<4x8x8xbf16>, vector<4x8x8xf32> -> vector<4x8x8xf32>
    "tpu.trace_stop"() : () -> ()
    %cst_293 = arith.constant dense<0xFF800000> : vector<4x8xf32>
    %804 = vector.multi_reduction <maximumf>, %803, %cst_293 [2] : vector<4x8x8xf32> to vector<4x8xf32>
    %805 = vector.shape_cast %804 : vector<4x8xf32> to vector<4x8x1xf32>
    %806 = vector.broadcast %805 : vector<4x8x1xf32> to vector<4x8x8xf32>
    %807 = arith.subf %803, %806 : vector<4x8x8xf32>
    %808 = math.exp %807 : vector<4x8x8xf32>
    %cst_294 = arith.constant dense<0.000000e+00> : vector<4x8xf32>
    %809 = vector.multi_reduction <add>, %808, %cst_294 [2] : vector<4x8x8xf32> to vector<4x8xf32>
    %810 = vector.shape_cast %809 : vector<4x8xf32> to vector<4x8x1xf32>
    %811 = tpu.reciprocal %810 {approx = true} : vector<4x8x1xf32> -> vector<4x8x1xf32>
    %812 = vector.broadcast %811 : vector<4x8x1xf32> to vector<4x8x8xf32>
    %813 = arith.mulf %808, %812 : vector<4x8x8xf32>
    %814 = arith.truncf %813 : vector<4x8x8xf32> to vector<4x8x8xbf16>
    %815 = arith.truncf %800 : vector<4x8x8xf32> to vector<4x8x8xbf16>
    "tpu.trace_start"() <{level = 10 : i32, message = "hst,htd->hsd"}> : () -> ()
    %cst_295 = arith.constant dense<0.000000e+00> : vector<4x8x8xf32>
    %816 = tpu.matmul %814, %815, %cst_295 {dimension_numbers = #tpu.dot_dimension_numbers<[2], [1], [1], [2], [0, 0, 0, 1, 1, 2], [0], [0]>} : vector<4x8x8xbf16>, vector<4x8x8xbf16>, vector<4x8x8xf32> -> vector<4x8x8xf32>
    "tpu.trace_stop"() : () -> ()
    %817 = vector.extract_strided_slice %816 {offsets = [0, 0, 0], sizes = [1, 8, 8], strides = [1, 1, 1]} : vector<4x8x8xf32> to vector<1x8x8xf32>
    %818 = vector.shape_cast %817 : vector<1x8x8xf32> to vector<8x8xf32>
    %819 = vector.extract_strided_slice %816 {offsets = [1, 0, 0], sizes = [1, 8, 8], strides = [1, 1, 1]} : vector<4x8x8xf32> to vector<1x8x8xf32>
    %820 = vector.shape_cast %819 : vector<1x8x8xf32> to vector<8x8xf32>
    %821 = vector.extract_strided_slice %816 {offsets = [2, 0, 0], sizes = [1, 8, 8], strides = [1, 1, 1]} : vector<4x8x8xf32> to vector<1x8x8xf32>
    %822 = vector.shape_cast %821 : vector<1x8x8xf32> to vector<8x8xf32>
    %823 = vector.extract_strided_slice %816 {offsets = [3, 0, 0], sizes = [1, 8, 8], strides = [1, 1, 1]} : vector<4x8x8xf32> to vector<1x8x8xf32>
    %824 = vector.shape_cast %823 : vector<1x8x8xf32> to vector<8x8xf32>
    %825 = tpu.concatenate %818, %820, %822, %824 in 1 : vector<8x8xf32>, vector<8x8xf32>, vector<8x8xf32>, vector<8x8xf32> -> vector<8x32xf32>
    %826 = arith.truncf %825 : vector<8x32xf32> to vector<8x32xbf16>
    %cst_296 = arith.constant dense<0.000000e+00> : vector<8x32xf32>
    %827 = tpu.matmul %826, %629, %cst_296 {dimension_numbers = #tpu.dot_dimension_numbers<[1], [0], [0], [1], [0, 0, 1, 1], [], []>} : vector<8x32xbf16>, vector<32x32xbf16>, vector<8x32xf32> -> vector<8x32xf32>
    %828 = vector.broadcast %631 : vector<1x32xf32> to vector<8x32xf32>
    %829 = arith.addf %827, %828 : vector<8x32xf32>
    %830 = arith.addf %753, %829 : vector<8x32xf32>
    %cst_297 = arith.constant dense<0.000000e+00> : vector<8xf32>
    %831 = vector.multi_reduction <add>, %830, %cst_297 [1] : vector<8x32xf32> to vector<8xf32>
    %832 = vector.shape_cast %831 : vector<8xf32> to vector<8x1xf32>
    %cst_298 = arith.constant 3.200000e+01 : f32
    %833 = vector.broadcast %cst_298 : f32 to vector<8x1xf32>
    %834 = arith.divf %832, %833 : vector<8x1xf32>
    %835 = vector.broadcast %834 : vector<8x1xf32> to vector<8x32xf32>
    %836 = arith.subf %830, %835 : vector<8x32xf32>
    %837 = arith.mulf %836, %836 : vector<8x32xf32>
    %cst_299 = arith.constant dense<0.000000e+00> : vector<8xf32>
    %838 = vector.multi_reduction <add>, %837, %cst_299 [1] : vector<8x32xf32> to vector<8xf32>
    %839 = vector.shape_cast %838 : vector<8xf32> to vector<8x1xf32>
    %cst_300 = arith.constant 3.200000e+01 : f32
    %840 = vector.broadcast %cst_300 : f32 to vector<8x1xf32>
    %841 = arith.divf %839, %840 : vector<8x1xf32>
    %842 = vector.broadcast %834 : vector<8x1xf32> to vector<8x32xf32>
    %843 = arith.subf %830, %842 : vector<8x32xf32>
    %cst_301 = arith.constant 9.99999974E-6 : f32
    %844 = vector.broadcast %cst_301 : f32 to vector<8x1xf32>
    %845 = arith.addf %841, %844 : vector<8x1xf32>
    %846 = math.rsqrt %845 : vector<8x1xf32>
    %847 = vector.broadcast %846 : vector<8x1xf32> to vector<8x32xf32>
    %848 = arith.mulf %843, %847 : vector<8x32xf32>
    %849 = vector.broadcast %645 : vector<1x32xf32> to vector<8x32xf32>
    %850 = arith.mulf %848, %849 : vector<8x32xf32>
    %851 = vector.broadcast %647 : vector<1x32xf32> to vector<8x32xf32>
    %852 = arith.addf %850, %851 : vector<8x32xf32>
    %853 = arith.truncf %852 : vector<8x32xf32> to vector<8x32xbf16>
    %cst_302 = arith.constant dense<0.000000e+00> : vector<8x64xf32>
    %854 = tpu.matmul %853, %633, %cst_302 {dimension_numbers = #tpu.dot_dimension_numbers<[1], [0], [0], [1], [0, 0, 1, 1], [], []>} : vector<8x32xbf16>, vector<32x64xbf16>, vector<8x64xf32> -> vector<8x64xf32>
    %855 = vector.broadcast %635 : vector<1x64xf32> to vector<8x64xf32>
    %856 = arith.addf %854, %855 : vector<8x64xf32>
    %cst_303 = arith.constant 0.000000e+00 : f32
    %857 = vector.broadcast %cst_303 : f32 to vector<8x64xf32>
    %858 = arith.maximumf %856, %857 : vector<8x64xf32>
    %859 = arith.truncf %858 : vector<8x64xf32> to vector<8x64xbf16>
    %cst_304 = arith.constant dense<0.000000e+00> : vector<8x32xf32>
    %860 = tpu.matmul %859, %637, %cst_304 {dimension_numbers = #tpu.dot_dimension_numbers<[1], [0], [0], [1], [0, 0, 1, 1], [], []>} : vector<8x64xbf16>, vector<64x32xbf16>, vector<8x32xf32> -> vector<8x32xf32>
    %861 = arith.addf %852, %860 : vector<8x32xf32>
    %862 = vector.broadcast %639 : vector<1x32xf32> to vector<8x32xf32>
    %863 = arith.addf %861, %862 : vector<8x32xf32>
    %cst_305 = arith.constant dense<0.000000e+00> : vector<8xf32>
    %864 = vector.multi_reduction <add>, %863, %cst_305 [1] : vector<8x32xf32> to vector<8xf32>
    %865 = vector.shape_cast %864 : vector<8xf32> to vector<8x1xf32>
    %cst_306 = arith.constant 3.200000e+01 : f32
    %866 = vector.broadcast %cst_306 : f32 to vector<8x1xf32>
    %867 = arith.divf %865, %866 : vector<8x1xf32>
    %868 = vector.broadcast %867 : vector<8x1xf32> to vector<8x32xf32>
    %869 = arith.subf %863, %868 : vector<8x32xf32>
    %870 = arith.mulf %869, %869 : vector<8x32xf32>
    %cst_307 = arith.constant dense<0.000000e+00> : vector<8xf32>
    %871 = vector.multi_reduction <add>, %870, %cst_307 [1] : vector<8x32xf32> to vector<8xf32>
    %872 = vector.shape_cast %871 : vector<8xf32> to vector<8x1xf32>
    %cst_308 = arith.constant 3.200000e+01 : f32
    %873 = vector.broadcast %cst_308 : f32 to vector<8x1xf32>
    %874 = arith.divf %872, %873 : vector<8x1xf32>
    %875 = vector.broadcast %867 : vector<8x1xf32> to vector<8x32xf32>
    %876 = arith.subf %863, %875 : vector<8x32xf32>
    %cst_309 = arith.constant 9.99999974E-6 : f32
    %877 = vector.broadcast %cst_309 : f32 to vector<8x1xf32>
    %878 = arith.addf %874, %877 : vector<8x1xf32>
    %879 = math.rsqrt %878 : vector<8x1xf32>
    %880 = vector.broadcast %879 : vector<8x1xf32> to vector<8x32xf32>
    %881 = arith.mulf %876, %880 : vector<8x32xf32>
    %882 = vector.broadcast %649 : vector<1x32xf32> to vector<8x32xf32>
    %883 = arith.mulf %881, %882 : vector<8x32xf32>
    %884 = vector.broadcast %651 : vector<1x32xf32> to vector<8x32xf32>
    %885 = arith.addf %883, %884 : vector<8x32xf32>
    %c0_310 = arith.constant 0 : index
    %c0_311 = arith.constant 0 : index
    %886 = vector.load %arg35[%c0_310, %c0_311] : memref<1x32xf32, #tpu.memory_space<vmem>>, vector<1x32xf32>
    %c0_312 = arith.constant 0 : index
    %c0_313 = arith.constant 0 : index
    %887 = vector.load %arg36[%c0_312, %c0_313] : memref<1x32xf32, #tpu.memory_space<vmem>>, vector<1x32xf32>
    %cst_314 = arith.constant dense<0.000000e+00> : vector<8xf32>
    %888 = vector.multi_reduction <add>, %885, %cst_314 [1] : vector<8x32xf32> to vector<8xf32>
    %889 = vector.shape_cast %888 : vector<8xf32> to vector<8x1xf32>
    %cst_315 = arith.constant 3.200000e+01 : f32
    %890 = vector.broadcast %cst_315 : f32 to vector<8x1xf32>
    %891 = arith.divf %889, %890 : vector<8x1xf32>
    %892 = vector.broadcast %891 : vector<8x1xf32> to vector<8x32xf32>
    %893 = arith.subf %885, %892 : vector<8x32xf32>
    %894 = arith.mulf %893, %893 : vector<8x32xf32>
    %cst_316 = arith.constant dense<0.000000e+00> : vector<8xf32>
    %895 = vector.multi_reduction <add>, %894, %cst_316 [1] : vector<8x32xf32> to vector<8xf32>
    %896 = vector.shape_cast %895 : vector<8xf32> to vector<8x1xf32>
    %cst_317 = arith.constant 3.200000e+01 : f32
    %897 = vector.broadcast %cst_317 : f32 to vector<8x1xf32>
    %898 = arith.divf %896, %897 : vector<8x1xf32>
    %899 = vector.broadcast %891 : vector<8x1xf32> to vector<8x32xf32>
    %900 = arith.subf %885, %899 : vector<8x32xf32>
    %cst_318 = arith.constant 9.99999974E-6 : f32
    %901 = vector.broadcast %cst_318 : f32 to vector<8x1xf32>
    %902 = arith.addf %898, %901 : vector<8x1xf32>
    %903 = math.rsqrt %902 : vector<8x1xf32>
    %904 = vector.broadcast %903 : vector<8x1xf32> to vector<8x32xf32>
    %905 = arith.mulf %900, %904 : vector<8x32xf32>
    %906 = vector.broadcast %886 : vector<1x32xf32> to vector<8x32xf32>
    %907 = arith.mulf %905, %906 : vector<8x32xf32>
    %908 = vector.broadcast %887 : vector<1x32xf32> to vector<8x32xf32>
    %909 = arith.addf %907, %908 : vector<8x32xf32>
    %c0_319 = arith.constant 0 : index
    %c0_320 = arith.constant 0 : index
    %910 = vector.load %arg37[%c0_319, %c0_320] : memref<32x128xbf16, #tpu.memory_space<vmem>>, vector<32x128xbf16>
    %911 = arith.truncf %909 : vector<8x32xf32> to vector<8x32xbf16>
    %cst_321 = arith.constant dense<0.000000e+00> : vector<8x128xf32>
    %912 = tpu.matmul %911, %910, %cst_321 {dimension_numbers = #tpu.dot_dimension_numbers<[1], [0], [0], [1], [0, 0, 1, 1], [], []>} : vector<8x32xbf16>, vector<32x128xbf16>, vector<8x128xf32> -> vector<8x128xf32>
    %c0_322 = arith.constant 0 : index
    %c0_323 = arith.constant 0 : index
    %913 = vector.load %arg38[%c0_322, %c0_323] : memref<1x128xf32, #tpu.memory_space<vmem>>, vector<1x128xf32>
    %914 = vector.broadcast %913 : vector<1x128xf32> to vector<8x128xf32>
    %915 = arith.addf %912, %914 : vector<8x128xf32>
    %c0_324 = arith.constant 0 : index
    %c0_325 = arith.constant 0 : index
    %c0_326 = arith.constant 0 : index
    %916 = vector.load %arg39[%c0_324, %c0_325, %c0_326] : memref<1x8x128xf32, #tpu.memory_space<vmem>>, vector<1x8x128xf32>
    %917 = vector.shape_cast %916 : vector<1x8x128xf32> to vector<8x128xf32>
    %918 = vector.shape_cast %915 : vector<8x128xf32> to vector<1x8x128xf32>
    tpu.vector_store %arg39[%c0_324, %c0_325, %c0_326], %918 {strides = array<i32>} : memref<1x8x128xf32, #tpu.memory_space<vmem>>, vector<1x8x128xf32>,
    return
  }
  func.func @transform_0(%arg0: i32) -> (i32, i32, i32) {
    %c0_i32 = arith.constant 0 : i32
    %c0_i32_0 = arith.constant 0 : i32
    %c0_i32_1 = arith.constant 0 : i32
    return %arg0, %c0_i32, %c0_i32_0 : i32, i32, i32
  }
  func.func @transform_1(%arg0: i32) -> (i32, i32, i32) {
    %c0_i32 = arith.constant 0 : i32
    %c0_i32_0 = arith.constant 0 : i32
    %c0_i32_1 = arith.constant 0 : i32
    return %arg0, %c0_i32, %c0_i32_0 : i32, i32, i32
  }
  func.func @transform_2(%arg0: i32) -> (i32, i32, i32) {
    %c0_i32 = arith.constant 0 : i32
    %c0_i32_0 = arith.constant 0 : i32
    %c0_i32_1 = arith.constant 0 : i32
    %c0_i32_2 = arith.constant 0 : i32
    return %c0_i32, %c0_i32_0, %c0_i32_1 : i32, i32, i32
  }
  func.func @transform_3(%arg0: i32) -> (i32, i32, i32) {
    %c0_i32 = arith.constant 0 : i32
    %c0_i32_0 = arith.constant 0 : i32
    %c0_i32_1 = arith.constant 0 : i32
    %c0_i32_2 = arith.constant 0 : i32
    return %c0_i32, %c0_i32_0, %c0_i32_1 : i32, i32, i32
  }
  func.func @transform_4(%arg0: i32) -> (i32, i32, i32) {
    %c0_i32 = arith.constant 0 : i32
    %c0_i32_0 = arith.constant 0 : i32
    %c0_i32_1 = arith.constant 0 : i32
    %c0_i32_2 = arith.constant 0 : i32
    return %c0_i32, %c0_i32_0, %c0_i32_1 : i32, i32, i32
  }
  func.func @transform_5(%arg0: i32) -> (i32, i32, i32) {
    %c0_i32 = arith.constant 0 : i32
    %c0_i32_0 = arith.constant 0 : i32
    %c0_i32_1 = arith.constant 0 : i32
    %c0_i32_2 = arith.constant 0 : i32
    return %c0_i32, %c0_i32_0, %c0_i32_1 : i32, i32, i32
  }
  func.func @transform_6(%arg0: i32) -> (i32, i32, i32) {
    %c0_i32 = arith.constant 0 : i32
    %c0_i32_0 = arith.constant 0 : i32
    %c0_i32_1 = arith.constant 0 : i32
    %c0_i32_2 = arith.constant 0 : i32
    return %c0_i32, %c0_i32_0, %c0_i32_1 : i32, i32, i32
  }
  func.func @transform_7(%arg0: i32) -> (i32, i32, i32) {
    %c0_i32 = arith.constant 0 : i32
    %c0_i32_0 = arith.constant 0 : i32
    %c0_i32_1 = arith.constant 0 : i32
    %c0_i32_2 = arith.constant 0 : i32
    return %c0_i32, %c0_i32_0, %c0_i32_1 : i32, i32, i32
  }
  func.func @transform_8(%arg0: i32) -> (i32, i32, i32) {
    %c0_i32 = arith.constant 0 : i32
    %c0_i32_0 = arith.constant 0 : i32
    %c0_i32_1 = arith.constant 0 : i32
    %c0_i32_2 = arith.constant 0 : i32
    return %c0_i32, %c0_i32_0, %c0_i32_1 : i32, i32, i32
  }
  func.func @transform_9(%arg0: i32) -> (i32, i32, i32) {
    %c0_i32 = arith.constant 0 : i32
    %c0_i32_0 = arith.constant 0 : i32
    %c0_i32_1 = arith.constant 0 : i32
    %c0_i32_2 = arith.constant 0 : i32
    return %c0_i32, %c0_i32_0, %c0_i32_1 : i32, i32, i32
  }
  func.func @transform_10(%arg0: i32) -> (i32, i32, i32) {
    %c0_i32 = arith.constant 0 : i32
    %c0_i32_0 = arith.constant 0 : i32
    %c0_i32_1 = arith.constant 0 : i32
    %c0_i32_2 = arith.constant 0 : i32
    return %c0_i32, %c0_i32_0, %c0_i32_1 : i32, i32, i32
  }
  func.func @transform_11(%arg0: i32) -> (i32, i32, i32) {
    %c0_i32 = arith.constant 0 : i32
    %c0_i32_0 = arith.constant 0 : i32
    %c0_i32_1 = arith.constant 0 : i32
    %c0_i32_2 = arith.constant 0 : i32
    return %c0_i32, %c0_i32_0, %c0_i32_1 : i32, i32, i32
  }
  func.func @transform_12(%arg0: i32) -> (i32, i32, i32) {
    %c0_i32 = arith.constant 0 : i32
    %c0_i32_0 = arith.constant 0 : i32
    %c0_i32_1 = arith.constant 0 : i32
    %c0_i32_2 = arith.constant 0 : i32
    return %c0_i32, %c0_i32_0, %c0_i32_1 : i32, i32, i32
  }
  func.func @transform_13(%arg0: i32) -> (i32, i32, i32) {
    %c0_i32 = arith.constant 0 : i32
    %c0_i32_0 = arith.constant 0 : i32
    %c0_i32_1 = arith.constant 0 : i32
    %c0_i32_2 = arith.constant 0 : i32
    return %c0_i32, %c0_i32_0, %c0_i32_1 : i32, i32, i32
  }
  func.func @transform_14(%arg0: i32) -> (i32, i32) {
    %c0_i32 = arith.constant 0 : i32
    %c0_i32_0 = arith.constant 0 : i32
    %c0_i32_1 = arith.constant 0 : i32
    return %c0_i32, %c0_i32_0 : i32, i32
  }
  func.func @transform_15(%arg0: i32) -> (i32, i32) {
    %c0_i32 = arith.constant 0 : i32
    %c0_i32_0 = arith.constant 0 : i32
    %c0_i32_1 = arith.constant 0 : i32
    return %c0_i32, %c0_i32_0 : i32, i32
  }
  func.func @transform_16(%arg0: i32) -> (i32, i32, i32) {
    %c0_i32 = arith.constant 0 : i32
    %c0_i32_0 = arith.constant 0 : i32
    %c0_i32_1 = arith.constant 0 : i32
    %c0_i32_2 = arith.constant 0 : i32
    return %c0_i32, %c0_i32_0, %c0_i32_1 : i32, i32, i32
  }
  func.func @transform_17(%arg0: i32) -> (i32, i32, i32) {
    %c0_i32 = arith.constant 0 : i32
    %c0_i32_0 = arith.constant 0 : i32
    %c0_i32_1 = arith.constant 0 : i32
    %c0_i32_2 = arith.constant 0 : i32
    return %c0_i32, %c0_i32_0, %c0_i32_1 : i32, i32, i32
  }
  func.func @transform_18(%arg0: i32) -> (i32, i32, i32) {
    %c0_i32 = arith.constant 0 : i32
    %c0_i32_0 = arith.constant 0 : i32
    %c0_i32_1 = arith.constant 0 : i32
    %c0_i32_2 = arith.constant 0 : i32
    return %c0_i32, %c0_i32_0, %c0_i32_1 : i32, i32, i32
  }
  func.func @transform_19(%arg0: i32) -> (i32, i32, i32) {
    %c0_i32 = arith.constant 0 : i32
    %c0_i32_0 = arith.constant 0 : i32
    %c0_i32_1 = arith.constant 0 : i32
    %c0_i32_2 = arith.constant 0 : i32
    return %c0_i32, %c0_i32_0, %c0_i32_1 : i32, i32, i32
  }
  func.func @transform_20(%arg0: i32) -> (i32, i32, i32) {
    %c0_i32 = arith.constant 0 : i32
    %c0_i32_0 = arith.constant 0 : i32
    %c0_i32_1 = arith.constant 0 : i32
    %c0_i32_2 = arith.constant 0 : i32
    return %c0_i32, %c0_i32_0, %c0_i32_1 : i32, i32, i32
  }
  func.func @transform_21(%arg0: i32) -> (i32, i32, i32) {
    %c0_i32 = arith.constant 0 : i32
    %c0_i32_0 = arith.constant 0 : i32
    %c0_i32_1 = arith.constant 0 : i32
    %c0_i32_2 = arith.constant 0 : i32
    return %c0_i32, %c0_i32_0, %c0_i32_1 : i32, i32, i32
  }
  func.func @transform_22(%arg0: i32) -> (i32, i32, i32) {
    %c0_i32 = arith.constant 0 : i32
    %c0_i32_0 = arith.constant 0 : i32
    %c0_i32_1 = arith.constant 0 : i32
    %c0_i32_2 = arith.constant 0 : i32
    return %c0_i32, %c0_i32_0, %c0_i32_1 : i32, i32, i32
  }
  func.func @transform_23(%arg0: i32) -> (i32, i32, i32) {
    %c0_i32 = arith.constant 0 : i32
    %c0_i32_0 = arith.constant 0 : i32
    %c0_i32_1 = arith.constant 0 : i32
    %c0_i32_2 = arith.constant 0 : i32
    return %c0_i32, %c0_i32_0, %c0_i32_1 : i32, i32, i32
  }
  func.func @transform_24(%arg0: i32) -> (i32, i32, i32) {
    %c0_i32 = arith.constant 0 : i32
    %c0_i32_0 = arith.constant 0 : i32
    %c0_i32_1 = arith.constant 0 : i32
    %c0_i32_2 = arith.constant 0 : i32
    return %c0_i32, %c0_i32_0, %c0_i32_1 : i32, i32, i32
  }
  func.func @transform_25(%arg0: i32) -> (i32, i32, i32) {
    %c0_i32 = arith.constant 0 : i32
    %c0_i32_0 = arith.constant 0 : i32
    %c0_i32_1 = arith.constant 0 : i32
    %c0_i32_2 = arith.constant 0 : i32
    return %c0_i32, %c0_i32_0, %c0_i32_1 : i32, i32, i32
  }
  func.func @transform_26(%arg0: i32) -> (i32, i32, i32) {
    %c0_i32 = arith.constant 0 : i32
    %c0_i32_0 = arith.constant 0 : i32
    %c0_i32_1 = arith.constant 0 : i32
    %c0_i32_2 = arith.constant 0 : i32
    return %c0_i32, %c0_i32_0, %c0_i32_1 : i32, i32, i32
  }
  func.func @transform_27(%arg0: i32) -> (i32, i32, i32) {
    %c0_i32 = arith.constant 0 : i32
    %c0_i32_0 = arith.constant 0 : i32
    %c0_i32_1 = arith.constant 0 : i32
    %c0_i32_2 = arith.constant 0 : i32
    return %c0_i32, %c0_i32_0, %c0_i32_1 : i32, i32, i32
  }
  func.func @transform_28(%arg0: i32) -> (i32, i32, i32) {
    %c0_i32 = arith.constant 0 : i32
    %c0_i32_0 = arith.constant 0 : i32
    %c0_i32_1 = arith.constant 0 : i32
    %c0_i32_2 = arith.constant 0 : i32
    return %c0_i32, %c0_i32_0, %c0_i32_1 : i32, i32, i32
  }
  func.func @transform_29(%arg0: i32) -> (i32, i32, i32) {
    %c0_i32 = arith.constant 0 : i32
    %c0_i32_0 = arith.constant 0 : i32
    %c0_i32_1 = arith.constant 0 : i32
    %c0_i32_2 = arith.constant 0 : i32
    return %c0_i32, %c0_i32_0, %c0_i32_1 : i32, i32, i32
  }
  func.func @transform_30(%arg0: i32) -> (i32, i32, i32) {
    %c0_i32 = arith.constant 0 : i32
    %c0_i32_0 = arith.constant 0 : i32
    %c0_i32_1 = arith.constant 0 : i32
    %c0_i32_2 = arith.constant 0 : i32
    return %c0_i32, %c0_i32_0, %c0_i32_1 : i32, i32, i32
  }
  func.func @transform_31(%arg0: i32) -> (i32, i32, i32) {
    %c0_i32 = arith.constant 0 : i32
    %c0_i32_0 = arith.constant 0 : i32
    %c0_i32_1 = arith.constant 0 : i32
    %c0_i32_2 = arith.constant 0 : i32
    return %c0_i32, %c0_i32_0, %c0_i32_1 : i32, i32, i32
  }
  func.func @transform_32(%arg0: i32) -> (i32, i32, i32) {
    %c0_i32 = arith.constant 0 : i32
    %c0_i32_0 = arith.constant 0 : i32
    %c0_i32_1 = arith.constant 0 : i32
    %c0_i32_2 = arith.constant 0 : i32
    return %c0_i32, %c0_i32_0, %c0_i32_1 : i32, i32, i32
  }
  func.func @transform_33(%arg0: i32) -> (i32, i32, i32) {
    %c0_i32 = arith.constant 0 : i32
    %c0_i32_0 = arith.constant 0 : i32
    %c0_i32_1 = arith.constant 0 : i32
    %c0_i32_2 = arith.constant 0 : i32
    return %c0_i32, %c0_i32_0, %c0_i32_1 : i32, i32, i32
  }
  func.func @transform_34(%arg0: i32) -> (i32, i32) {
    %c0_i32 = arith.constant 0 : i32
    %c0_i32_0 = arith.constant 0 : i32
    %c0_i32_1 = arith.constant 0 : i32
    return %c0_i32, %c0_i32_0 : i32, i32
  }
  func.func @transform_35(%arg0: i32) -> (i32, i32) {
    %c0_i32 = arith.constant 0 : i32
    %c0_i32_0 = arith.constant 0 : i32
    %c0_i32_1 = arith.constant 0 : i32
    return %c0_i32, %c0_i32_0 : i32, i32
  }
  func.func @transform_36(%arg0: i32) -> (i32, i32) {
    %c0_i32 = arith.constant 0 : i32
    %c0_i32_0 = arith.constant 0 : i32
    %c0_i32_1 = arith.constant 0 : i32
    return %c0_i32, %c0_i32_0 : i32, i32
  }
  func.func @transform_37(%arg0: i32) -> (i32, i32) {
    %c0_i32 = arith.constant 0 : i32
    %c0_i32_0 = arith.constant 0 : i32
    %c0_i32_1 = arith.constant 0 : i32
    return %c0_i32, %c0_i32_0 : i32, i32
  }
  func.func @transform_38(%arg0: i32) -> (i32, i32, i32) {
    %c0_i32 = arith.constant 0 : i32
    %c0_i32_0 = arith.constant 0 : i32
    %c0_i32_1 = arith.constant 0 : i32
    return %arg0, %c0_i32, %c0_i32_0 : i32, i32, i32
  }
}

</mosaic_0001>

<llo_original>
// kernel: tpu_custom_call.1
$region0: #{tpu_custom_call.1}
  #allocation0 [shape = 'u32[]', space=smem, size = 0x4, offset = 0x4, fixed_abs, tag = 'smem constant byte address 0x4 - core index']
  #allocation1 [shape = 'u32[144,128]{1,0:T(1,128)}', space=vmem, size = 0x12000, scoped, tag = 'internal scratch']
  %s0 = inlined_call_operand.smem [shape: u32[39], index: -1, kind: input, shape index: {}]
  %s1 = sld [smem:[%s0]]
  %s2 = scalar_lea.smem %s0, 1
  %s3 = sld [smem:[%s2]]
  %s4 = scalar_lea.smem %s0, 2
  %s5 = sld [smem:[%s4]]
  %s6 = scalar_lea.smem %s0, 3
  %s7 = sld [smem:[%s6]]
  %s8 = scalar_lea.smem %s0, 4
  %s9 = sld [smem:[%s8]]
  %s10 = scalar_lea.smem %s0, 5
  %s11 = sld [smem:[%s10]]
  %s12 = scalar_lea.smem %s0, 6
  %s13 = sld [smem:[%s12]]
  %s14 = scalar_lea.smem %s0, 7
  %s15 = sld [smem:[%s14]]
  %s16 = scalar_lea.smem %s0, 8
  %s17 = sld [smem:[%s16]]
  %s18 = scalar_lea.smem %s0, 9
  %s19 = sld [smem:[%s18]]
  %s20 = scalar_lea.smem %s0, 10
  %s21 = sld [smem:[%s20]]
  %s22 = scalar_lea.smem %s0, 11
  %s23 = sld [smem:[%s22]]
  %s24 = scalar_lea.smem %s0, 12
  %s25 = sld [smem:[%s24]]
  %s26 = scalar_lea.smem %s0, 13
  %s27 = sld [smem:[%s26]]
  %s28 = scalar_lea.smem %s0, 14
  %s29 = sld [smem:[%s28]]
  %s30 = scalar_lea.smem %s0, 15
  %s31 = sld [smem:[%s30]]
  %s32 = scalar_lea.smem %s0, 16
  %s33 = sld [smem:[%s32]]
  %s34 = scalar_lea.smem %s0, 17
  %s35 = sld [smem:[%s34]]
  %s36 = scalar_lea.smem %s0, 18
  %s37 = sld [smem:[%s36]]
  %s38 = scalar_lea.smem %s0, 19
  %s39 = sld [smem:[%s38]]
  %s40 = scalar_lea.smem %s0, 20
  %s41 = sld [smem:[%s40]]
  %s42 = scalar_lea.smem %s0, 21
  %s43 = sld [smem:[%s42]]
  %s44 = scalar_lea.smem %s0, 22
  %s45 = sld [smem:[%s44]]
  %s46 = scalar_lea.smem %s0, 23
  %s47 = sld [smem:[%s46]]
  %s48 = scalar_lea.smem %s0, 24
  %s49 = sld [smem:[%s48]]
  %s50 = scalar_lea.smem %s0, 25
  %s51 = sld [smem:[%s50]]
  %s52 = scalar_lea.smem %s0, 26
  %s53 = sld [smem:[%s52]]
  %s54 = scalar_lea.smem %s0, 27
  %s55 = sld [smem:[%s54]]
  %s56 = scalar_lea.smem %s0, 28
  %s57 = sld [smem:[%s56]]
  %s58 = scalar_lea.smem %s0, 29
  %s59 = sld [smem:[%s58]]
  %s60 = scalar_lea.smem %s0, 30
  %s61 = sld [smem:[%s60]]
  %s62 = scalar_lea.smem %s0, 31
  %s63 = sld [smem:[%s62]]
  %s64 = scalar_lea.smem %s0, 32
  %s65 = sld [smem:[%s64]]
  %s66 = scalar_lea.smem %s0, 33
  %s67 = sld [smem:[%s66]]
  %s68 = scalar_lea.smem %s0, 34
  %s69 = sld [smem:[%s68]]
  %s70 = scalar_lea.smem %s0, 35
  %s71 = sld [smem:[%s70]]
  %s72 = scalar_lea.smem %s0, 36
  %s73 = sld [smem:[%s72]]
  %s74 = scalar_lea.smem %s0, 37
  %s75 = sld [smem:[%s74]]
  %s76 = scalar_lea.smem %s0, 38
  %s77 = sld [smem:[%s76]]
  %s78 = sld [smem:[#allocation0]]
  $region245: #{tpu_custom_call.1} parent=0
    _
  %s80 = ssub.s32 1, %s78
  %s81 = scalar_select 0, %s80, %s78
  $region1: #{tpu_custom_call.1} parent=0
    #allocation2 [shape = 'u8[8192]{0}', space=vmem, size = 0x2000, scoped, tag = 'input window, operand 0']
    #allocation3 [shape = 's32[2]{0}', space=sflag, size = 0x8, scoped, tag = 'scoped memory for tpu_custom_call.1']
    #allocation4 [shape = 's32[2]{0}', space=sflag, size = 0x8, scoped, tag = 'scoped memory for tpu_custom_call.1']
    #allocation5 [shape = 'u8[8192]{0}', space=vmem, size = 0x2000, scoped, tag = 'input window, operand 1']
    #allocation6 [shape = 's32[2]{0}', space=sflag, size = 0x8, scoped, tag = 'scoped memory for tpu_custom_call.1']
    #allocation7 [shape = 'u8[1024]{0}', space=vmem, size = 0x400, scoped, tag = 'input window, operand 3, single buffered']
    #allocation8 [shape = 'u8[1024]{0}', space=vmem, size = 0x400, scoped, tag = 'input window, operand 5, single buffered']
    #allocation9 [shape = 's32[1]{0}', space=sflag, size = 0x4, scoped, tag = 'scoped memory for tpu_custom_call.1']
    #allocation10 [shape = 'u8[1024]{0}', space=vmem, size = 0x400, scoped, tag = 'input window, operand 7, single buffered']
    #allocation11 [shape = 'u8[1024]{0}', space=vmem, size = 0x400, scoped, tag = 'input window, operand 9, single buffered']
    #allocation12 [shape = 's32[1]{0}', space=sflag, size = 0x4, scoped, tag = 'scoped memory for tpu_custom_call.1']
    #allocation13 [shape = 'u8[1024]{0}', space=vmem, size = 0x400, scoped, tag = 'input window, operand 10, single buffered']
    #allocation14 [shape = 'u8[1024]{0}', space=vmem, size = 0x400, scoped, tag = 'input window, operand 11, single buffered']
    #allocation15 [shape = 's32[1]{0}', space=sflag, size = 0x4, scoped, tag = 'scoped memory for tpu_custom_call.1']
    #allocation16 [shape = 'u8[1024]{0}', space=vmem, size = 0x400, scoped, tag = 'input window, operand 12, single buffered']
    #allocation17 [shape = 'u8[1024]{0}', space=vmem, size = 0x400, scoped, tag = 'input window, operand 13, single buffered']
    #allocation18 [shape = 's32[1]{0}', space=sflag, size = 0x4, scoped, tag = 'scoped memory for tpu_custom_call.1']
    #allocation19 [shape = 'u8[512]{0}', space=vmem, size = 0x400, scoped, tag = 'input window, operand 14, single buffered']
    #allocation20 [shape = 'u8[512]{0}', space=vmem, size = 0x400, scoped, tag = 'input window, operand 15, single buffered']
    #allocation21 [shape = 's32[1]{0}', space=sflag, size = 0x4, scoped, tag = 'scoped memory for tpu_custom_call.1']
    #allocation22 [shape = 'u8[1024]{0}', space=vmem, size = 0x400, scoped, tag = 'input window, operand 17, single buffered']
    #allocation23 [shape = 'u8[1024]{0}', space=vmem, size = 0x400, scoped, tag = 'input window, operand 21, single buffered']
    #allocation24 [shape = 's32[1]{0}', space=sflag, size = 0x4, scoped, tag = 'scoped memory for tpu_custom_call.1']
    #allocation25 [shape = 'u8[16384]{0}', space=vmem, size = 0x4000, scoped, tag = 'input window, operand 24, single buffered']
    #allocation26 [shape = 'u8[8192]{0}', space=vmem, size = 0x2000, scoped, tag = 'output window, operand 0']
    %82 = vsyncpa [#allocation3], 0
    %s83 = scalar_lea.sflag [#allocation3], 1
    %84 = vsyncpa %s83, 0
    %85 = vsyncpa [#allocation6], 0
    %s86 = scalar_lea.sflag [#allocation6], 1
    %87 = vsyncpa %s86, 0
    %88 = vsyncpa [#allocation9], 0
    %89 = vsyncpa [#allocation12], 0
    %90 = vsyncpa [#allocation15], 0
    %91 = vsyncpa [#allocation18], 0
    %92 = vsyncpa [#allocation21], 0
    %93 = vsyncpa [#allocation24], 0
    %94 = vsyncpa [#allocation4], 0
    %s95 = scalar_lea.sflag [#allocation4], 1
    %96 = vsyncpa %s95, 0
    loop: start=0, step=1, limit=4
    $region2: #{tpu_custom_call.1} parent=1 // loop_pre_header
      _
    $region3: #{tpu_custom_call.1} parent=1 // loop_header
      %s98 = sphi 0, %s102
      %p99 = scmp.ge.s32.totalorder %s98, 4
      %s108 = sphi 0, %s110
      %s111 = sphi 0, %s108
      %s112 = sphi 0, %s111
      %s128 = sphi 0, %s112
      %s134 = sphi 0, %s136
      %s137 = sphi 0, %s134
      %s138 = sphi 0, %s137
      %s154 = sphi 0, %s138
      %s158 = sphi 0, %s158
      %s160 = sphi 0, %s158
      %s161 = sphi 0, %s160
      %s175 = sphi 0, %s161
      %s179 = sphi 0, %s179
      %s181 = sphi 0, %s179
      %s182 = sphi 0, %s181
      %s196 = sphi 0, %s182
      %s200 = sphi 0, %s200
      %s202 = sphi 0, %s200
      %s203 = sphi 0, %s202
      %s217 = sphi 0, %s203
      %s221 = sphi 0, %s221
      %s223 = sphi 0, %s221
      %s224 = sphi 0, %s223
      %s238 = sphi 0, %s224
      %s242 = sphi 0, %s242
      %s244 = sphi 0, %s242
      %s245 = sphi 0, %s244
      %s259 = sphi 0, %s245
      %s263 = sphi 0, %s263
      %s265 = sphi 0, %s263
      %s266 = sphi 0, %s265
      %s280 = sphi 0, %s266
      %s284 = sphi 0, %s284
      %s286 = sphi 0, %s284
      %s287 = sphi 0, %s286
      %s301 = sphi 0, %s287
      %s305 = sphi 0, %s305
      %s307 = sphi 0, %s305
      %s308 = sphi 0, %s307
      %s322 = sphi 0, %s308
      %s326 = sphi 0, %s326
      %s328 = sphi 0, %s326
      %s329 = sphi 0, %s328
      %s343 = sphi 0, %s329
      %s347 = sphi 0, %s347
      %s349 = sphi 0, %s347
      %s350 = sphi 0, %s349
      %s364 = sphi 0, %s350
      %s368 = sphi 0, %s368
      %s370 = sphi 0, %s368
      %s371 = sphi 0, %s370
      %s385 = sphi 0, %s371
      %s389 = sphi 0, %s389
      %s391 = sphi 0, %s389
      %s392 = sphi 0, %s391
      %s406 = sphi 0, %s392
      %s410 = sphi 0, %s410
      %s412 = sphi 0, %s410
      %s413 = sphi 0, %s412
      %s427 = sphi 0, %s413
      %s431 = sphi 0, %s431
      %s433 = sphi 0, %s431
      %s434 = sphi 0, %s433
      %s448 = sphi 0, %s434
      %s452 = sphi 0, %s452
      %s454 = sphi 0, %s452
      %s455 = sphi 0, %s454
      %s469 = sphi 0, %s455
      %s473 = sphi 0, %s473
      %s475 = sphi 0, %s473
      %s476 = sphi 0, %s475
      %s490 = sphi 0, %s476
      %s494 = sphi 0, %s494
      %s496 = sphi 0, %s494
      %s497 = sphi 0, %s496
      %s511 = sphi 0, %s497
      %s515 = sphi 0, %s515
      %s517 = sphi 0, %s515
      %s518 = sphi 0, %s517
      %s532 = sphi 0, %s518
      %s536 = sphi 0, %s536
      %s538 = sphi 0, %s536
      %s539 = sphi 0, %s538
      %s553 = sphi 0, %s539
      %s557 = sphi 0, %s557
      %s559 = sphi 0, %s557
      %s560 = sphi 0, %s559
      %s574 = sphi 0, %s560
      %s578 = sphi 0, %s578
      %s580 = sphi 0, %s578
      %s581 = sphi 0, %s580
      %s595 = sphi 0, %s581
      %s599 = sphi 0, %s599
      %s601 = sphi 0, %s599
      %s602 = sphi 0, %s601
      %s616 = sphi 0, %s602
      %s620 = sphi 0, %s620
      %s622 = sphi 0, %s620
      %s623 = sphi 0, %s622
      %s637 = sphi 0, %s623
      %s641 = sphi 0, %s641
      %s643 = sphi 0, %s641
      %s644 = sphi 0, %s643
      %s658 = sphi 0, %s644
      %s662 = sphi 0, %s662
      %s664 = sphi 0, %s662
      %s665 = sphi 0, %s664
      %s679 = sphi 0, %s665
      %s683 = sphi 0, %s683
      %s685 = sphi 0, %s683
      %s686 = sphi 0, %s685
      %s700 = sphi 0, %s686
      %s704 = sphi 0, %s704
      %s706 = sphi 0, %s704
      %s707 = sphi 0, %s706
      %s721 = sphi 0, %s707
      %s725 = sphi 0, %s725
      %s727 = sphi 0, %s725
      %s728 = sphi 0, %s727
      %s742 = sphi 0, %s728
      %s746 = sphi 0, %s746
      %s748 = sphi 0, %s746
      %s749 = sphi 0, %s748
      %s763 = sphi 0, %s749
      %s767 = sphi 0, %s767
      %s769 = sphi 0, %s767
      %s770 = sphi 0, %s769
      %s784 = sphi 0, %s770
      %s788 = sphi 0, %s788
      %s790 = sphi 0, %s788
      %s791 = sphi 0, %s790
      %s805 = sphi 0, %s791
      %s809 = sphi 0, %s809
      %s811 = sphi 0, %s809
      %s812 = sphi 0, %s811
      %s826 = sphi 0, %s812
      %s830 = sphi 0, %s830
      %s832 = sphi 0, %s830
      %s833 = sphi 0, %s832
      %s847 = sphi 0, %s833
      %s851 = sphi 0, %s851
      %s853 = sphi 0, %s851
      %s854 = sphi 0, %s853
      %s868 = sphi 0, %s854
      %s872 = sphi 0, %s872
      %s874 = sphi 0, %s872
      %s875 = sphi 0, %s874
      %s889 = sphi 0, %s875
      %s893 = sphi 0, %s893
      %s895 = sphi 0, %s893
      %s896 = sphi 0, %s895
      %s910 = sphi 0, %s896
      %s916 = sphi 0, %s918
      %s919 = sphi 0, %s916
      %s920 = sphi 0, %s919
      %s936 = sphi 0, %s920
    $region4: #{tpu_custom_call.1} parent=1 // loop_header_branch
      %101 = sbr.rel (%p99) target = $region8
    $region5: #{tpu_custom_call.1} parent=1 // loop_body
      %s103 = ssub.s32 %s98, 1
      %s104 = ssub.s32 %s98, 2
      %s105 = sadd.s32 %s98, 1
      %s106 = ssub.s32 %s98, %s105
      %p107 = scmp.eq.s32.totalorder %s106, 0
      %s109 = sadd.s32 %s108, 1
      %s110 = scalar_select %p107, %s108, %s109
      %p113 = pneg %p107
      %p114 = scmp.eq.s32.totalorder %s98, 1
      %p115 = por %p113, %p114
      %p116 = scmp.ne.s32.totalorder %s108, %s111
      %p117 = scmp.eq.s32.totalorder %s98, 0
      %p118 = por %p116, %p117
      %p119 = scmp.ne.s32.totalorder %s108, %s111
      %p120 = scmp.eq.s32.totalorder %s103, 1
      %p121 = por %p119, %p120
      %p122 = scmp.ne.s32.totalorder %s111, %s112
      %p123 = scmp.eq.s32.totalorder %s103, 0
      %p124 = por %p122, %p123
      %p125 = scmp.ne.s32.totalorder %s111, %s112
      %p126 = scmp.eq.s32.totalorder %s104, 1
      %p127 = por %p125, %p126
      %p129 = scmp.ne.s32.totalorder %s112, %s128
      %p130 = scmp.eq.s32.totalorder %s104, 0
      %p131 = por %p129, %p130
      %s132 = ssub.s32 %s98, %s105
      %p133 = scmp.eq.s32.totalorder %s132, 0
      %s135 = sadd.s32 %s134, 1
      %s136 = scalar_select %p133, %s134, %s135
      %p139 = pneg %p133
      %p140 = scmp.eq.s32.totalorder %s98, 1
      %p141 = por %p139, %p140
      %p142 = scmp.ne.s32.totalorder %s134, %s137
      %p143 = scmp.eq.s32.totalorder %s98, 0
      %p144 = por %p142, %p143
      %p145 = scmp.ne.s32.totalorder %s134, %s137
      %p146 = scmp.eq.s32.totalorder %s103, 1
      %p147 = por %p145, %p146
      %p148 = scmp.ne.s32.totalorder %s137, %s138
      %p149 = scmp.eq.s32.totalorder %s103, 0
      %p150 = por %p148, %p149
      %p151 = scmp.ne.s32.totalorder %s137, %s138
      %p152 = scmp.eq.s32.totalorder %s104, 1
      %p153 = por %p151, %p152
      %p155 = scmp.ne.s32.totalorder %s138, %s154
      %p156 = scmp.eq.s32.totalorder %s104, 0
      %p157 = por %p155, %p156
      %s159 = sadd.s32 %s158, 1
      %p162 = scmp.eq.s32.totalorder %s98, 1
      %p163 = scmp.ne.s32.totalorder %s158, %s160
      %p164 = scmp.eq.s32.totalorder %s98, 0
      %p165 = por %p163, %p164
      %p166 = scmp.ne.s32.totalorder %s158, %s160
      %p167 = scmp.eq.s32.totalorder %s103, 1
      %p168 = por %p166, %p167
      %p169 = scmp.ne.s32.totalorder %s160, %s161
      %p170 = scmp.eq.s32.totalorder %s103, 0
      %p171 = por %p169, %p170
      %p172 = scmp.ne.s32.totalorder %s160, %s161
      %p173 = scmp.eq.s32.totalorder %s104, 1
      %p174 = por %p172, %p173
      %p176 = scmp.ne.s32.totalorder %s161, %s175
      %p177 = scmp.eq.s32.totalorder %s104, 0
      %p178 = por %p176, %p177
      %s180 = sadd.s32 %s179, 1
      %p183 = scmp.eq.s32.totalorder %s98, 1
      %p184 = scmp.ne.s32.totalorder %s179, %s181
      %p185 = scmp.eq.s32.totalorder %s98, 0
      %p186 = por %p184, %p185
      %p187 = scmp.ne.s32.totalorder %s179, %s181
      %p188 = scmp.eq.s32.totalorder %s103, 1
      %p189 = por %p187, %p188
      %p190 = scmp.ne.s32.totalorder %s181, %s182
      %p191 = scmp.eq.s32.totalorder %s103, 0
      %p192 = por %p190, %p191
      %p193 = scmp.ne.s32.totalorder %s181, %s182
      %p194 = scmp.eq.s32.totalorder %s104, 1
      %p195 = por %p193, %p194
      %p197 = scmp.ne.s32.totalorder %s182, %s196
      %p198 = scmp.eq.s32.totalorder %s104, 0
      %p199 = por %p197, %p198
      %s201 = sadd.s32 %s200, 1
      %p204 = scmp.eq.s32.totalorder %s98, 1
      %p205 = scmp.ne.s32.totalorder %s200, %s202
      %p206 = scmp.eq.s32.totalorder %s98, 0
      %p207 = por %p205, %p206
      %p208 = scmp.ne.s32.totalorder %s200, %s202
      %p209 = scmp.eq.s32.totalorder %s103, 1
      %p210 = por %p208, %p209
      %p211 = scmp.ne.s32.totalorder %s202, %s203
      %p212 = scmp.eq.s32.totalorder %s103, 0
      %p213 = por %p211, %p212
      %p214 = scmp.ne.s32.totalorder %s202, %s203
      %p215 = scmp.eq.s32.totalorder %s104, 1
      %p216 = por %p214, %p215
      %p218 = scmp.ne.s32.totalorder %s203, %s217
      %p219 = scmp.eq.s32.totalorder %s104, 0
      %p220 = por %p218, %p219
      %s222 = sadd.s32 %s221, 1
      %p225 = scmp.eq.s32.totalorder %s98, 1
      %p226 = scmp.ne.s32.totalorder %s221, %s223
      %p227 = scmp.eq.s32.totalorder %s98, 0
      %p228 = por %p226, %p227
      %p229 = scmp.ne.s32.totalorder %s221, %s223
      %p230 = scmp.eq.s32.totalorder %s103, 1
      %p231 = por %p229, %p230
      %p232 = scmp.ne.s32.totalorder %s223, %s224
      %p233 = scmp.eq.s32.totalorder %s103, 0
      %p234 = por %p232, %p233
      %p235 = scmp.ne.s32.totalorder %s223, %s224
      %p236 = scmp.eq.s32.totalorder %s104, 1
      %p237 = por %p235, %p236
      %p239 = scmp.ne.s32.totalorder %s224, %s238
      %p240 = scmp.eq.s32.totalorder %s104, 0
      %p241 = por %p239, %p240
      %s243 = sadd.s32 %s242, 1
      %p246 = scmp.eq.s32.totalorder %s98, 1
      %p247 = scmp.ne.s32.totalorder %s242, %s244
      %p248 = scmp.eq.s32.totalorder %s98, 0
      %p249 = por %p247, %p248
      %p250 = scmp.ne.s32.totalorder %s242, %s244
      %p251 = scmp.eq.s32.totalorder %s103, 1
      %p252 = por %p250, %p251
      %p253 = scmp.ne.s32.totalorder %s244, %s245
      %p254 = scmp.eq.s32.totalorder %s103, 0
      %p255 = por %p253, %p254
      %p256 = scmp.ne.s32.totalorder %s244, %s245
      %p257 = scmp.eq.s32.totalorder %s104, 1
      %p258 = por %p256, %p257
      %p260 = scmp.ne.s32.totalorder %s245, %s259
      %p261 = scmp.eq.s32.totalorder %s104, 0
      %p262 = por %p260, %p261
      %s264 = sadd.s32 %s263, 1
      %p267 = scmp.eq.s32.totalorder %s98, 1
      %p268 = scmp.ne.s32.totalorder %s263, %s265
      %p269 = scmp.eq.s32.totalorder %s98, 0
      %p270 = por %p268, %p269
      %p271 = scmp.ne.s32.totalorder %s263, %s265
      %p272 = scmp.eq.s32.totalorder %s103, 1
      %p273 = por %p271, %p272
      %p274 = scmp.ne.s32.totalorder %s265, %s266
      %p275 = scmp.eq.s32.totalorder %s103, 0
      %p276 = por %p274, %p275
      %p277 = scmp.ne.s32.totalorder %s265, %s266
      %p278 = scmp.eq.s32.totalorder %s104, 1
      %p279 = por %p277, %p278
      %p281 = scmp.ne.s32.totalorder %s266, %s280
      %p282 = scmp.eq.s32.totalorder %s104, 0
      %p283 = por %p281, %p282
      %s285 = sadd.s32 %s284, 1
      %p288 = scmp.eq.s32.totalorder %s98, 1
      %p289 = scmp.ne.s32.totalorder %s284, %s286
      %p290 = scmp.eq.s32.totalorder %s98, 0
      %p291 = por %p289, %p290
      %p292 = scmp.ne.s32.totalorder %s284, %s286
      %p293 = scmp.eq.s32.totalorder %s103, 1
      %p294 = por %p292, %p293
      %p295 = scmp.ne.s32.totalorder %s286, %s287
      %p296 = scmp.eq.s32.totalorder %s103, 0
      %p297 = por %p295, %p296
      %p298 = scmp.ne.s32.totalorder %s286, %s287
      %p299 = scmp.eq.s32.totalorder %s104, 1
      %p300 = por %p298, %p299
      %p302 = scmp.ne.s32.totalorder %s287, %s301
      %p303 = scmp.eq.s32.totalorder %s104, 0
      %p304 = por %p302, %p303
      %s306 = sadd.s32 %s305, 1
      %p309 = scmp.eq.s32.totalorder %s98, 1
      %p310 = scmp.ne.s32.totalorder %s305, %s307
      %p311 = scmp.eq.s32.totalorder %s98, 0
      %p312 = por %p310, %p311
      %p313 = scmp.ne.s32.totalorder %s305, %s307
      %p314 = scmp.eq.s32.totalorder %s103, 1
      %p315 = por %p313, %p314
      %p316 = scmp.ne.s32.totalorder %s307, %s308
      %p317 = scmp.eq.s32.totalorder %s103, 0
      %p318 = por %p316, %p317
      %p319 = scmp.ne.s32.totalorder %s307, %s308
      %p320 = scmp.eq.s32.totalorder %s104, 1
      %p321 = por %p319, %p320
      %p323 = scmp.ne.s32.totalorder %s308, %s322
      %p324 = scmp.eq.s32.totalorder %s104, 0
      %p325 = por %p323, %p324
      %s327 = sadd.s32 %s326, 1
      %p330 = scmp.eq.s32.totalorder %s98, 1
      %p331 = scmp.ne.s32.totalorder %s326, %s328
      %p332 = scmp.eq.s32.totalorder %s98, 0
      %p333 = por %p331, %p332
      %p334 = scmp.ne.s32.totalorder %s326, %s328
      %p335 = scmp.eq.s32.totalorder %s103, 1
      %p336 = por %p334, %p335
      %p337 = scmp.ne.s32.totalorder %s328, %s329
      %p338 = scmp.eq.s32.totalorder %s103, 0
      %p339 = por %p337, %p338
      %p340 = scmp.ne.s32.totalorder %s328, %s329
      %p341 = scmp.eq.s32.totalorder %s104, 1
      %p342 = por %p340, %p341
      %p344 = scmp.ne.s32.totalorder %s329, %s343
      %p345 = scmp.eq.s32.totalorder %s104, 0
      %p346 = por %p344, %p345
      %s348 = sadd.s32 %s347, 1
      %p351 = scmp.eq.s32.totalorder %s98, 1
      %p352 = scmp.ne.s32.totalorder %s347, %s349
      %p353 = scmp.eq.s32.totalorder %s98, 0
      %p354 = por %p352, %p353
      %p355 = scmp.ne.s32.totalorder %s347, %s349
      %p356 = scmp.eq.s32.totalorder %s103, 1
      %p357 = por %p355, %p356
      %p358 = scmp.ne.s32.totalorder %s349, %s350
      %p359 = scmp.eq.s32.totalorder %s103, 0
      %p360 = por %p358, %p359
      %p361 = scmp.ne.s32.totalorder %s349, %s350
      %p362 = scmp.eq.s32.totalorder %s104, 1
      %p363 = por %p361, %p362
      %p365 = scmp.ne.s32.totalorder %s350, %s364
      %p366 = scmp.eq.s32.totalorder %s104, 0
      %p367 = por %p365, %p366
      %s369 = sadd.s32 %s368, 1
      %p372 = scmp.eq.s32.totalorder %s98, 1
      %p373 = scmp.ne.s32.totalorder %s368, %s370
      %p374 = scmp.eq.s32.totalorder %s98, 0
      %p375 = por %p373, %p374
      %p376 = scmp.ne.s32.totalorder %s368, %s370
      %p377 = scmp.eq.s32.totalorder %s103, 1
      %p378 = por %p376, %p377
      %p379 = scmp.ne.s32.totalorder %s370, %s371
      %p380 = scmp.eq.s32.totalorder %s103, 0
      %p381 = por %p379, %p380
      %p382 = scmp.ne.s32.totalorder %s370, %s371
      %p383 = scmp.eq.s32.totalorder %s104, 1
      %p384 = por %p382, %p383
      %p386 = scmp.ne.s32.totalorder %s371, %s385
      %p387 = scmp.eq.s32.totalorder %s104, 0
      %p388 = por %p386, %p387
      %s390 = sadd.s32 %s389, 1
      %p393 = scmp.eq.s32.totalorder %s98, 1
      %p394 = scmp.ne.s32.totalorder %s389, %s391
      %p395 = scmp.eq.s32.totalorder %s98, 0
      %p396 = por %p394, %p395
      %p397 = scmp.ne.s32.totalorder %s389, %s391
      %p398 = scmp.eq.s32.totalorder %s103, 1
      %p399 = por %p397, %p398
      %p400 = scmp.ne.s32.totalorder %s391, %s392
      %p401 = scmp.eq.s32.totalorder %s103, 0
      %p402 = por %p400, %p401
      %p403 = scmp.ne.s32.totalorder %s391, %s392
      %p404 = scmp.eq.s32.totalorder %s104, 1
      %p405 = por %p403, %p404
      %p407 = scmp.ne.s32.totalorder %s392, %s406
      %p408 = scmp.eq.s32.totalorder %s104, 0
      %p409 = por %p407, %p408
      %s411 = sadd.s32 %s410, 1
      %p414 = scmp.eq.s32.totalorder %s98, 1
      %p415 = scmp.ne.s32.totalorder %s410, %s412
      %p416 = scmp.eq.s32.totalorder %s98, 0
      %p417 = por %p415, %p416
      %p418 = scmp.ne.s32.totalorder %s410, %s412
      %p419 = scmp.eq.s32.totalorder %s103, 1
      %p420 = por %p418, %p419
      %p421 = scmp.ne.s32.totalorder %s412, %s413
      %p422 = scmp.eq.s32.totalorder %s103, 0
      %p423 = por %p421, %p422
      %p424 = scmp.ne.s32.totalorder %s412, %s413
      %p425 = scmp.eq.s32.totalorder %s104, 1
      %p426 = por %p424, %p425
      %p428 = scmp.ne.s32.totalorder %s413, %s427
      %p429 = scmp.eq.s32.totalorder %s104, 0
      %p430 = por %p428, %p429
      %s432 = sadd.s32 %s431, 1
      %p435 = scmp.eq.s32.totalorder %s98, 1
      %p436 = scmp.ne.s32.totalorder %s431, %s433
      %p437 = scmp.eq.s32.totalorder %s98, 0
      %p438 = por %p436, %p437
      %p439 = scmp.ne.s32.totalorder %s431, %s433
      %p440 = scmp.eq.s32.totalorder %s103, 1
      %p441 = por %p439, %p440
      %p442 = scmp.ne.s32.totalorder %s433, %s434
      %p443 = scmp.eq.s32.totalorder %s103, 0
      %p444 = por %p442, %p443
      %p445 = scmp.ne.s32.totalorder %s433, %s434
      %p446 = scmp.eq.s32.totalorder %s104, 1
      %p447 = por %p445, %p446
      %p449 = scmp.ne.s32.totalorder %s434, %s448
      %p450 = scmp.eq.s32.totalorder %s104, 0
      %p451 = por %p449, %p450
      %s453 = sadd.s32 %s452, 1
      %p456 = scmp.eq.s32.totalorder %s98, 1
      %p457 = scmp.ne.s32.totalorder %s452, %s454
      %p458 = scmp.eq.s32.totalorder %s98, 0
      %p459 = por %p457, %p458
      %p460 = scmp.ne.s32.totalorder %s452, %s454
      %p461 = scmp.eq.s32.totalorder %s103, 1
      %p462 = por %p460, %p461
      %p463 = scmp.ne.s32.totalorder %s454, %s455
      %p464 = scmp.eq.s32.totalorder %s103, 0
      %p465 = por %p463, %p464
      %p466 = scmp.ne.s32.totalorder %s454, %s455
      %p467 = scmp.eq.s32.totalorder %s104, 1
      %p468 = por %p466, %p467
      %p470 = scmp.ne.s32.totalorder %s455, %s469
      %p471 = scmp.eq.s32.totalorder %s104, 0
      %p472 = por %p470, %p471
      %s474 = sadd.s32 %s473, 1
      %p477 = scmp.eq.s32.totalorder %s98, 1
      %p478 = scmp.ne.s32.totalorder %s473, %s475
      %p479 = scmp.eq.s32.totalorder %s98, 0
      %p480 = por %p478, %p479
      %p481 = scmp.ne.s32.totalorder %s473, %s475
      %p482 = scmp.eq.s32.totalorder %s103, 1
      %p483 = por %p481, %p482
      %p484 = scmp.ne.s32.totalorder %s475, %s476
      %p485 = scmp.eq.s32.totalorder %s103, 0
      %p486 = por %p484, %p485
      %p487 = scmp.ne.s32.totalorder %s475, %s476
      %p488 = scmp.eq.s32.totalorder %s104, 1
      %p489 = por %p487, %p488
      %p491 = scmp.ne.s32.totalorder %s476, %s490
      %p492 = scmp.eq.s32.totalorder %s104, 0
      %p493 = por %p491, %p492
      %s495 = sadd.s32 %s494, 1
      %p498 = scmp.eq.s32.totalorder %s98, 1
      %p499 = scmp.ne.s32.totalorder %s494, %s496
      %p500 = scmp.eq.s32.totalorder %s98, 0
      %p501 = por %p499, %p500
      %p502 = scmp.ne.s32.totalorder %s494, %s496
      %p503 = scmp.eq.s32.totalorder %s103, 1
      %p504 = por %p502, %p503
      %p505 = scmp.ne.s32.totalorder %s496, %s497
      %p506 = scmp.eq.s32.totalorder %s103, 0
      %p507 = por %p505, %p506
      %p508 = scmp.ne.s32.totalorder %s496, %s497
      %p509 = scmp.eq.s32.totalorder %s104, 1
      %p510 = por %p508, %p509
      %p512 = scmp.ne.s32.totalorder %s497, %s511
      %p513 = scmp.eq.s32.totalorder %s104, 0
      %p514 = por %p512, %p513
      %s516 = sadd.s32 %s515, 1
      %p519 = scmp.eq.s32.totalorder %s98, 1
      %p520 = scmp.ne.s32.totalorder %s515, %s517
      %p521 = scmp.eq.s32.totalorder %s98, 0
      %p522 = por %p520, %p521
      %p523 = scmp.ne.s32.totalorder %s515, %s517
      %p524 = scmp.eq.s32.totalorder %s103, 1
      %p525 = por %p523, %p524
      %p526 = scmp.ne.s32.totalorder %s517, %s518
      %p527 = scmp.eq.s32.totalorder %s103, 0
      %p528 = por %p526, %p527
      %p529 = scmp.ne.s32.totalorder %s517, %s518
      %p530 = scmp.eq.s32.totalorder %s104, 1
      %p531 = por %p529, %p530
      %p533 = scmp.ne.s32.totalorder %s518, %s532
      %p534 = scmp.eq.s32.totalorder %s104, 0
      %p535 = por %p533, %p534
      %s537 = sadd.s32 %s536, 1
      %p540 = scmp.eq.s32.totalorder %s98, 1
      %p541 = scmp.ne.s32.totalorder %s536, %s538
      %p542 = scmp.eq.s32.totalorder %s98, 0
      %p543 = por %p541, %p542
      %p544 = scmp.ne.s32.totalorder %s536, %s538
      %p545 = scmp.eq.s32.totalorder %s103, 1
      %p546 = por %p544, %p545
      %p547 = scmp.ne.s32.totalorder %s538, %s539
      %p548 = scmp.eq.s32.totalorder %s103, 0
      %p549 = por %p547, %p548
      %p550 = scmp.ne.s32.totalorder %s538, %s539
      %p551 = scmp.eq.s32.totalorder %s104, 1
      %p552 = por %p550, %p551
      %p554 = scmp.ne.s32.totalorder %s539, %s553
      %p555 = scmp.eq.s32.totalorder %s104, 0
      %p556 = por %p554, %p555
      %s558 = sadd.s32 %s557, 1
      %p561 = scmp.eq.s32.totalorder %s98, 1
      %p562 = scmp.ne.s32.totalorder %s557, %s559
      %p563 = scmp.eq.s32.totalorder %s98, 0
      %p564 = por %p562, %p563
      %p565 = scmp.ne.s32.totalorder %s557, %s559
      %p566 = scmp.eq.s32.totalorder %s103, 1
      %p567 = por %p565, %p566
      %p568 = scmp.ne.s32.totalorder %s559, %s560
      %p569 = scmp.eq.s32.totalorder %s103, 0
      %p570 = por %p568, %p569
      %p571 = scmp.ne.s32.totalorder %s559, %s560
      %p572 = scmp.eq.s32.totalorder %s104, 1
      %p573 = por %p571, %p572
      %p575 = scmp.ne.s32.totalorder %s560, %s574
      %p576 = scmp.eq.s32.totalorder %s104, 0
      %p577 = por %p575, %p576
      %s579 = sadd.s32 %s578, 1
      %p582 = scmp.eq.s32.totalorder %s98, 1
      %p583 = scmp.ne.s32.totalorder %s578, %s580
      %p584 = scmp.eq.s32.totalorder %s98, 0
      %p585 = por %p583, %p584
      %p586 = scmp.ne.s32.totalorder %s578, %s580
      %p587 = scmp.eq.s32.totalorder %s103, 1
      %p588 = por %p586, %p587
      %p589 = scmp.ne.s32.totalorder %s580, %s581
      %p590 = scmp.eq.s32.totalorder %s103, 0
      %p591 = por %p589, %p590
      %p592 = scmp.ne.s32.totalorder %s580, %s581
      %p593 = scmp.eq.s32.totalorder %s104, 1
      %p594 = por %p592, %p593
      %p596 = scmp.ne.s32.totalorder %s581, %s595
      %p597 = scmp.eq.s32.totalorder %s104, 0
      %p598 = por %p596, %p597
      %s600 = sadd.s32 %s599, 1
      %p603 = scmp.eq.s32.totalorder %s98, 1
      %p604 = scmp.ne.s32.totalorder %s599, %s601
      %p605 = scmp.eq.s32.totalorder %s98, 0
      %p606 = por %p604, %p605
      %p607 = scmp.ne.s32.totalorder %s599, %s601
      %p608 = scmp.eq.s32.totalorder %s103, 1
      %p609 = por %p607, %p608
      %p610 = scmp.ne.s32.totalorder %s601, %s602
      %p611 = scmp.eq.s32.totalorder %s103, 0
      %p612 = por %p610, %p611
      %p613 = scmp.ne.s32.totalorder %s601, %s602
      %p614 = scmp.eq.s32.totalorder %s104, 1
      %p615 = por %p613, %p614
      %p617 = scmp.ne.s32.totalorder %s602, %s616
      %p618 = scmp.eq.s32.totalorder %s104, 0
      %p619 = por %p617, %p618
      %s621 = sadd.s32 %s620, 1
      %p624 = scmp.eq.s32.totalorder %s98, 1
      %p625 = scmp.ne.s32.totalorder %s620, %s622
      %p626 = scmp.eq.s32.totalorder %s98, 0
      %p627 = por %p625, %p626
      %p628 = scmp.ne.s32.totalorder %s620, %s622
      %p629 = scmp.eq.s32.totalorder %s103, 1
      %p630 = por %p628, %p629
      %p631 = scmp.ne.s32.totalorder %s622, %s623
      %p632 = scmp.eq.s32.totalorder %s103, 0
      %p633 = por %p631, %p632
      %p634 = scmp.ne.s32.totalorder %s622, %s623
      %p635 = scmp.eq.s32.totalorder %s104, 1
      %p636 = por %p634, %p635
      %p638 = scmp.ne.s32.totalorder %s623, %s637
      %p639 = scmp.eq.s32.totalorder %s104, 0
      %p640 = por %p638, %p639
      %s642 = sadd.s32 %s641, 1
      %p645 = scmp.eq.s32.totalorder %s98, 1
      %p646 = scmp.ne.s32.totalorder %s641, %s643
      %p647 = scmp.eq.s32.totalorder %s98, 0
      %p648 = por %p646, %p647
      %p649 = scmp.ne.s32.totalorder %s641, %s643
      %p650 = scmp.eq.s32.totalorder %s103, 1
      %p651 = por %p649, %p650
      %p652 = scmp.ne.s32.totalorder %s643, %s644
      %p653 = scmp.eq.s32.totalorder %s103, 0
      %p654 = por %p652, %p653
      %p655 = scmp.ne.s32.totalorder %s643, %s644
      %p656 = scmp.eq.s32.totalorder %s104, 1
      %p657 = por %p655, %p656
      %p659 = scmp.ne.s32.totalorder %s644, %s658
      %p660 = scmp.eq.s32.totalorder %s104, 0
      %p661 = por %p659, %p660
      %s663 = sadd.s32 %s662, 1
      %p666 = scmp.eq.s32.totalorder %s98, 1
      %p667 = scmp.ne.s32.totalorder %s662, %s664
      %p668 = scmp.eq.s32.totalorder %s98, 0
      %p669 = por %p667, %p668
      %p670 = scmp.ne.s32.totalorder %s662, %s664
      %p671 = scmp.eq.s32.totalorder %s103, 1
      %p672 = por %p670, %p671
      %p673 = scmp.ne.s32.totalorder %s664, %s665
      %p674 = scmp.eq.s32.totalorder %s103, 0
      %p675 = por %p673, %p674
      %p676 = scmp.ne.s32.totalorder %s664, %s665
      %p677 = scmp.eq.s32.totalorder %s104, 1
      %p678 = por %p676, %p677
      %p680 = scmp.ne.s32.totalorder %s665, %s679
      %p681 = scmp.eq.s32.totalorder %s104, 0
      %p682 = por %p680, %p681
      %s684 = sadd.s32 %s683, 1
      %p687 = scmp.eq.s32.totalorder %s98, 1
      %p688 = scmp.ne.s32.totalorder %s683, %s685
      %p689 = scmp.eq.s32.totalorder %s98, 0
      %p690 = por %p688, %p689
      %p691 = scmp.ne.s32.totalorder %s683, %s685
      %p692 = scmp.eq.s32.totalorder %s103, 1
      %p693 = por %p691, %p692
      %p694 = scmp.ne.s32.totalorder %s685, %s686
      %p695 = scmp.eq.s32.totalorder %s103, 0
      %p696 = por %p694, %p695
      %p697 = scmp.ne.s32.totalorder %s685, %s686
      %p698 = scmp.eq.s32.totalorder %s104, 1
      %p699 = por %p697, %p698
      %p701 = scmp.ne.s32.totalorder %s686, %s700
      %p702 = scmp.eq.s32.totalorder %s104, 0
      %p703 = por %p701, %p702
      %s705 = sadd.s32 %s704, 1
      %p708 = scmp.eq.s32.totalorder %s98, 1
      %p709 = scmp.ne.s32.totalorder %s704, %s706
      %p710 = scmp.eq.s32.totalorder %s98, 0
      %p711 = por %p709, %p710
      %p712 = scmp.ne.s32.totalorder %s704, %s706
      %p713 = scmp.eq.s32.totalorder %s103, 1
      %p714 = por %p712, %p713
      %p715 = scmp.ne.s32.totalorder %s706, %s707
      %p716 = scmp.eq.s32.totalorder %s103, 0
      %p717 = por %p715, %p716
      %p718 = scmp.ne.s32.totalorder %s706, %s707
      %p719 = scmp.eq.s32.totalorder %s104, 1
      %p720 = por %p718, %p719
      %p722 = scmp.ne.s32.totalorder %s707, %s721
      %p723 = scmp.eq.s32.totalorder %s104, 0
      %p724 = por %p722, %p723
      %s726 = sadd.s32 %s725, 1
      %p729 = scmp.eq.s32.totalorder %s98, 1
      %p730 = scmp.ne.s32.totalorder %s725, %s727
      %p731 = scmp.eq.s32.totalorder %s98, 0
      %p732 = por %p730, %p731
      %p733 = scmp.ne.s32.totalorder %s725, %s727
      %p734 = scmp.eq.s32.totalorder %s103, 1
      %p735 = por %p733, %p734
      %p736 = scmp.ne.s32.totalorder %s727, %s728
      %p737 = scmp.eq.s32.totalorder %s103, 0
      %p738 = por %p736, %p737
      %p739 = scmp.ne.s32.totalorder %s727, %s728
      %p740 = scmp.eq.s32.totalorder %s104, 1
      %p741 = por %p739, %p740
      %p743 = scmp.ne.s32.totalorder %s728, %s742
      %p744 = scmp.eq.s32.totalorder %s104, 0
      %p745 = por %p743, %p744
      %s747 = sadd.s32 %s746, 1
      %p750 = scmp.eq.s32.totalorder %s98, 1
      %p751 = scmp.ne.s32.totalorder %s746, %s748
      %p752 = scmp.eq.s32.totalorder %s98, 0
      %p753 = por %p751, %p752
      %p754 = scmp.ne.s32.totalorder %s746, %s748
      %p755 = scmp.eq.s32.totalorder %s103, 1
      %p756 = por %p754, %p755
      %p757 = scmp.ne.s32.totalorder %s748, %s749
      %p758 = scmp.eq.s32.totalorder %s103, 0
      %p759 = por %p757, %p758
      %p760 = scmp.ne.s32.totalorder %s748, %s749
      %p761 = scmp.eq.s32.totalorder %s104, 1
      %p762 = por %p760, %p761
      %p764 = scmp.ne.s32.totalorder %s749, %s763
      %p765 = scmp.eq.s32.totalorder %s104, 0
      %p766 = por %p764, %p765
      %s768 = sadd.s32 %s767, 1
      %p771 = scmp.eq.s32.totalorder %s98, 1
      %p772 = scmp.ne.s32.totalorder %s767, %s769
      %p773 = scmp.eq.s32.totalorder %s98, 0
      %p774 = por %p772, %p773
      %p775 = scmp.ne.s32.totalorder %s767, %s769
      %p776 = scmp.eq.s32.totalorder %s103, 1
      %p777 = por %p775, %p776
      %p778 = scmp.ne.s32.totalorder %s769, %s770
      %p779 = scmp.eq.s32.totalorder %s103, 0
      %p780 = por %p778, %p779
      %p781 = scmp.ne.s32.totalorder %s769, %s770
      %p782 = scmp.eq.s32.totalorder %s104, 1
      %p783 = por %p781, %p782
      %p785 = scmp.ne.s32.totalorder %s770, %s784
      %p786 = scmp.eq.s32.totalorder %s104, 0
      %p787 = por %p785, %p786
      %s789 = sadd.s32 %s788, 1
      %p792 = scmp.eq.s32.totalorder %s98, 1
      %p793 = scmp.ne.s32.totalorder %s788, %s790
      %p794 = scmp.eq.s32.totalorder %s98, 0
      %p795 = por %p793, %p794
      %p796 = scmp.ne.s32.totalorder %s788, %s790
      %p797 = scmp.eq.s32.totalorder %s103, 1
      %p798 = por %p796, %p797
      %p799 = scmp.ne.s32.totalorder %s790, %s791
      %p800 = scmp.eq.s32.totalorder %s103, 0
      %p801 = por %p799, %p800
      %p802 = scmp.ne.s32.totalorder %s790, %s791
      %p803 = scmp.eq.s32.totalorder %s104, 1
      %p804 = por %p802, %p803
      %p806 = scmp.ne.s32.totalorder %s791, %s805
      %p807 = scmp.eq.s32.totalorder %s104, 0
      %p808 = por %p806, %p807
      %s810 = sadd.s32 %s809, 1
      %p813 = scmp.eq.s32.totalorder %s98, 1
      %p814 = scmp.ne.s32.totalorder %s809, %s811
      %p815 = scmp.eq.s32.totalorder %s98, 0
      %p816 = por %p814, %p815
      %p817 = scmp.ne.s32.totalorder %s809, %s811
      %p818 = scmp.eq.s32.totalorder %s103, 1
      %p819 = por %p817, %p818
      %p820 = scmp.ne.s32.totalorder %s811, %s812
      %p821 = scmp.eq.s32.totalorder %s103, 0
      %p822 = por %p820, %p821
      %p823 = scmp.ne.s32.totalorder %s811, %s812
      %p824 = scmp.eq.s32.totalorder %s104, 1
      %p825 = por %p823, %p824
      %p827 = scmp.ne.s32.totalorder %s812, %s826
      %p828 = scmp.eq.s32.totalorder %s104, 0
      %p829 = por %p827, %p828
      %s831 = sadd.s32 %s830, 1
      %p834 = scmp.eq.s32.totalorder %s98, 1
      %p835 = scmp.ne.s32.totalorder %s830, %s832
      %p836 = scmp.eq.s32.totalorder %s98, 0
      %p837 = por %p835, %p836
      %p838 = scmp.ne.s32.totalorder %s830, %s832
      %p839 = scmp.eq.s32.totalorder %s103, 1
      %p840 = por %p838, %p839
      %p841 = scmp.ne.s32.totalorder %s832, %s833
      %p842 = scmp.eq.s32.totalorder %s103, 0
      %p843 = por %p841, %p842
      %p844 = scmp.ne.s32.totalorder %s832, %s833
      %p845 = scmp.eq.s32.totalorder %s104, 1
      %p846 = por %p844, %p845
      %p848 = scmp.ne.s32.totalorder %s833, %s847
      %p849 = scmp.eq.s32.totalorder %s104, 0
      %p850 = por %p848, %p849
      %s852 = sadd.s32 %s851, 1
      %p855 = scmp.eq.s32.totalorder %s98, 1
      %p856 = scmp.ne.s32.totalorder %s851, %s853
      %p857 = scmp.eq.s32.totalorder %s98, 0
      %p858 = por %p856, %p857
      %p859 = scmp.ne.s32.totalorder %s851, %s853
      %p860 = scmp.eq.s32.totalorder %s103, 1
      %p861 = por %p859, %p860
      %p862 = scmp.ne.s32.totalorder %s853, %s854
      %p863 = scmp.eq.s32.totalorder %s103, 0
      %p864 = por %p862, %p863
      %p865 = scmp.ne.s32.totalorder %s853, %s854
      %p866 = scmp.eq.s32.totalorder %s104, 1
      %p867 = por %p865, %p866
      %p869 = scmp.ne.s32.totalorder %s854, %s868
      %p870 = scmp.eq.s32.totalorder %s104, 0
      %p871 = por %p869, %p870
      %s873 = sadd.s32 %s872, 1
      %p876 = scmp.eq.s32.totalorder %s98, 1
      %p877 = scmp.ne.s32.totalorder %s872, %s874
      %p878 = scmp.eq.s32.totalorder %s98, 0
      %p879 = por %p877, %p878
      %p880 = scmp.ne.s32.totalorder %s872, %s874
      %p881 = scmp.eq.s32.totalorder %s103, 1
      %p882 = por %p880, %p881
      %p883 = scmp.ne.s32.totalorder %s874, %s875
      %p884 = scmp.eq.s32.totalorder %s103, 0
      %p885 = por %p883, %p884
      %p886 = scmp.ne.s32.totalorder %s874, %s875
      %p887 = scmp.eq.s32.totalorder %s104, 1
      %p888 = por %p886, %p887
      %p890 = scmp.ne.s32.totalorder %s875, %s889
      %p891 = scmp.eq.s32.totalorder %s104, 0
      %p892 = por %p890, %p891
      %s894 = sadd.s32 %s893, 1
      %p897 = scmp.eq.s32.totalorder %s98, 1
      %p898 = scmp.ne.s32.totalorder %s893, %s895
      %p899 = scmp.eq.s32.totalorder %s98, 0
      %p900 = por %p898, %p899
      %p901 = scmp.ne.s32.totalorder %s893, %s895
      %p902 = scmp.eq.s32.totalorder %s103, 1
      %p903 = por %p901, %p902
      %p904 = scmp.ne.s32.totalorder %s895, %s896
      %p905 = scmp.eq.s32.totalorder %s103, 0
      %p906 = por %p904, %p905
      %p907 = scmp.ne.s32.totalorder %s895, %s896
      %p908 = scmp.eq.s32.totalorder %s104, 1
      %p909 = por %p907, %p908
      %p911 = scmp.ne.s32.totalorder %s896, %s910
      %p912 = scmp.eq.s32.totalorder %s104, 0
      %p913 = por %p911, %p912
      %s914 = ssub.s32 %s98, %s105
      %p915 = scmp.eq.s32.totalorder %s914, 0
      %s917 = sadd.s32 %s916, 1
      %s918 = scalar_select %p915, %s916, %s917
      %p921 = pneg %p915
      %p922 = scmp.eq.s32.totalorder %s98, 1
      %p923 = por %p921, %p922
      %p924 = scmp.ne.s32.totalorder %s916, %s919
      %p925 = scmp.eq.s32.totalorder %s98, 0
      %p926 = por %p924, %p925
      %p927 = scmp.ne.s32.totalorder %s916, %s919
      %p928 = scmp.eq.s32.totalorder %s103, 1
      %p929 = por %p927, %p928
      %p930 = scmp.ne.s32.totalorder %s919, %s920
      %p931 = scmp.eq.s32.totalorder %s103, 0
      %p932 = por %p930, %p931
      %p933 = scmp.ne.s32.totalorder %s919, %s920
      %p934 = scmp.eq.s32.totalorder %s104, 1
      %p935 = por %p933, %p934
      %p937 = scmp.ne.s32.totalorder %s920, %s936
      %p938 = scmp.eq.s32.totalorder %s104, 0
      %p939 = por %p937, %p938
      %p940 = scmp.le.s32.totalorder 1, %s98
      %p941 = scmp.lt.s32.totalorder %s98, 3
      %p942 = pnand %p940, %p941
      %p943 = pneg %p942
      // Predicated region
      $region9: #{tpu_custom_call.1} parent=5 // pred_check
        _
      $region10: #{tpu_custom_call.1} parent=5 // pred_check_branch
        %945 = sbr.rel (%p942) target = $region12
      $region11: #{tpu_custom_call.1} parent=5 // pred_region
        %s946 = ssub.s32 %s98, 1
        // Predicated region
        $region13: #{tpu_custom_call.1} parent=11 // pred_check
          %p947 = pneg %p171
        $region14: #{tpu_custom_call.1} parent=11 // pred_check_branch
          %949 = sbr.rel (%p947) target = $region16
        $region15: #{tpu_custom_call.1} parent=11 // pred_region
          _
        $region16: #{tpu_custom_call.1} parent=11 // pred_fallthru
          _
        // Predicated region
        $region17: #{tpu_custom_call.1} parent=11 // pred_check
          %p950 = pneg %p192
        $region18: #{tpu_custom_call.1} parent=11 // pred_check_branch
          %952 = sbr.rel (%p950) target = $region20
        $region19: #{tpu_custom_call.1} parent=11 // pred_region
          %s954 = ssub.s32 32, 32
          %955 = vsyncadd [#allocation6], %s954
          %s956 = sshll.u32 [#allocation7], 4
          %s957 = int_to_ptr.vmem [resolvable:$true] %s956
          %962 = dma.hbm_to_vmem [thread:$0]  %s7, 32, %s957, [#allocation6], 16, 16, 1
        $region20: #{tpu_custom_call.1} parent=11 // pred_fallthru
          _
        // Predicated region
        $region21: #{tpu_custom_call.1} parent=11 // pred_check
          %p963 = pneg %p213
        $region22: #{tpu_custom_call.1} parent=11 // pred_check_branch
          %965 = sbr.rel (%p963) target = $region24
        $region23: #{tpu_custom_call.1} parent=11 // pred_region
          _
        $region24: #{tpu_custom_call.1} parent=11 // pred_fallthru
          _
        // Predicated region
        $region25: #{tpu_custom_call.1} parent=11 // pred_check
          %p966 = pneg %p234
        $region26: #{tpu_custom_call.1} parent=11 // pred_check_branch
          %968 = sbr.rel (%p966) target = $region28
        $region27: #{tpu_custom_call.1} parent=11 // pred_region
          %s970 = ssub.s32 32, 32
          %971 = vsyncadd [#allocation9], %s970
          %s972 = sshll.u32 [#allocation8], 4
          %s973 = int_to_ptr.vmem [resolvable:$true] %s972
          %978 = dma.hbm_to_vmem [thread:$0]  %s11, 32, %s973, [#allocation9], 16, 16, 1
        $region28: #{tpu_custom_call.1} parent=11 // pred_fallthru
          _
        // Predicated region
        $region29: #{tpu_custom_call.1} parent=11 // pred_check
          %p979 = pneg %p255
        $region30: #{tpu_custom_call.1} parent=11 // pred_check_branch
          %981 = sbr.rel (%p979) target = $region32
        $region31: #{tpu_custom_call.1} parent=11 // pred_region
          _
        $region32: #{tpu_custom_call.1} parent=11 // pred_fallthru
          _
        // Predicated region
        $region33: #{tpu_custom_call.1} parent=11 // pred_check
          %p982 = pneg %p276
        $region34: #{tpu_custom_call.1} parent=11 // pred_check_branch
          %984 = sbr.rel (%p982) target = $region36
        $region35: #{tpu_custom_call.1} parent=11 // pred_region
          %s986 = ssub.s32 32, 32
          %987 = vsyncadd [#allocation9], %s986
          %s988 = sshll.u32 [#allocation10], 4
          %s989 = int_to_ptr.vmem [resolvable:$true] %s988
          %994 = dma.hbm_to_vmem [thread:$0]  %s15, 32, %s989, [#allocation9], 16, 16, 1
        $region36: #{tpu_custom_call.1} parent=11 // pred_fallthru
          _
        // Predicated region
        $region37: #{tpu_custom_call.1} parent=11 // pred_check
          %p995 = pneg %p297
        $region38: #{tpu_custom_call.1} parent=11 // pred_check_branch
          %997 = sbr.rel (%p995) target = $region40
        $region39: #{tpu_custom_call.1} parent=11 // pred_region
          _
        $region40: #{tpu_custom_call.1} parent=11 // pred_fallthru
          _
        // Predicated region
        $region41: #{tpu_custom_call.1} parent=11 // pred_check
          %p998 = pneg %p318
        $region42: #{tpu_custom_call.1} parent=11 // pred_check_branch
          %1000 = sbr.rel (%p998) target = $region44
        $region43: #{tpu_custom_call.1} parent=11 // pred_region
          %s1002 = ssub.s32 32, 32
          %1003 = vsyncadd [#allocation12], %s1002
          %s1004 = sshll.u32 [#allocation11], 4
          %s1005 = int_to_ptr.vmem [resolvable:$true] %s1004
          %1010 = dma.hbm_to_vmem [thread:$0]  %s19, 32, %s1005, [#allocation12], 16, 16, 1
        $region44: #{tpu_custom_call.1} parent=11 // pred_fallthru
          _
        // Predicated region
        $region45: #{tpu_custom_call.1} parent=11 // pred_check
          %p1011 = pneg %p339
        $region46: #{tpu_custom_call.1} parent=11 // pred_check_branch
          %1013 = sbr.rel (%p1011) target = $region48
        $region47: #{tpu_custom_call.1} parent=11 // pred_region
          %s1015 = ssub.s32 32, 32
          %1016 = vsyncadd [#allocation12], %s1015
          %s1017 = sshll.u32 [#allocation13], 4
          %s1018 = int_to_ptr.vmem [resolvable:$true] %s1017
          %1023 = dma.hbm_to_vmem [thread:$0]  %s21, 32, %s1018, [#allocation12], 16, 16, 1
        $region48: #{tpu_custom_call.1} parent=11 // pred_fallthru
          _
        // Predicated region
        $region49: #{tpu_custom_call.1} parent=11 // pred_check
          %p1024 = pneg %p360
        $region50: #{tpu_custom_call.1} parent=11 // pred_check_branch
          %1026 = sbr.rel (%p1024) target = $region52
        $region51: #{tpu_custom_call.1} parent=11 // pred_region
          %s1028 = ssub.s32 32, 32
          %1029 = vsyncadd [#allocation15], %s1028
          %s1030 = sshll.u32 [#allocation14], 4
          %s1031 = int_to_ptr.vmem [resolvable:$true] %s1030
          %1036 = dma.hbm_to_vmem [thread:$0]  %s23, 32, %s1031, [#allocation15], 16, 16, 1
        $region52: #{tpu_custom_call.1} parent=11 // pred_fallthru
          _
        // Predicated region
        $region53: #{tpu_custom_call.1} parent=11 // pred_check
          %p1037 = pneg %p381
        $region54: #{tpu_custom_call.1} parent=11 // pred_check_branch
          %1039 = sbr.rel (%p1037) target = $region56
        $region55: #{tpu_custom_call.1} parent=11 // pred_region
          %s1041 = ssub.s32 32, 32
          %1042 = vsyncadd [#allocation15], %s1041
          %s1043 = sshll.u32 [#allocation16], 4
          %s1044 = int_to_ptr.vmem [resolvable:$true] %s1043
          %1049 = dma.hbm_to_vmem [thread:$0]  %s25, 32, %s1044, [#allocation15], 16, 16, 1
        $region56: #{tpu_custom_call.1} parent=11 // pred_fallthru
          _
        // Predicated region
        $region57: #{tpu_custom_call.1} parent=11 // pred_check
          %p1050 = pneg %p402
        $region58: #{tpu_custom_call.1} parent=11 // pred_check_branch
          %1052 = sbr.rel (%p1050) target = $region60
        $region59: #{tpu_custom_call.1} parent=11 // pred_region
          %s1054 = ssub.s32 32, 32
          %1055 = vsyncadd [#allocation18], %s1054
          %s1056 = sshll.u32 [#allocation17], 4
          %s1057 = int_to_ptr.vmem [resolvable:$true] %s1056
          %1062 = dma.hbm_to_vmem [thread:$0]  %s27, 32, %s1057, [#allocation18], 16, 16, 1
        $region60: #{tpu_custom_call.1} parent=11 // pred_fallthru
          _
        // Predicated region
        $region61: #{tpu_custom_call.1} parent=11 // pred_check
          %p1063 = pneg %p423
        $region62: #{tpu_custom_call.1} parent=11 // pred_check_branch
          %1065 = sbr.rel (%p1063) target = $region64
        $region63: #{tpu_custom_call.1} parent=11 // pred_region
          %s1067 = ssub.s32 16, 16
          %1068 = vsyncadd [#allocation18], %s1067
          %s1070 = sshll.u32 [#allocation19], 4
          %s1071 = int_to_ptr.vmem [resolvable:$true] %s1070
          %1073 = dma.hbm_to_vmem [thread:$0]  %s29, 16, %s1071, [#allocation18]
        $region64: #{tpu_custom_call.1} parent=11 // pred_fallthru
          _
        // Predicated region
        $region65: #{tpu_custom_call.1} parent=11 // pred_check
          %p1074 = pneg %p444
        $region66: #{tpu_custom_call.1} parent=11 // pred_check_branch
          %1076 = sbr.rel (%p1074) target = $region68
        $region67: #{tpu_custom_call.1} parent=11 // pred_region
          %s1078 = ssub.s32 16, 16
          %1079 = vsyncadd [#allocation21], %s1078
          %s1081 = sshll.u32 [#allocation20], 4
          %s1082 = int_to_ptr.vmem [resolvable:$true] %s1081
          %1084 = dma.hbm_to_vmem [thread:$0]  %s31, 16, %s1082, [#allocation21]
        $region68: #{tpu_custom_call.1} parent=11 // pred_fallthru
          _
        // Predicated region
        $region69: #{tpu_custom_call.1} parent=11 // pred_check
          %p1085 = pneg %p465
        $region70: #{tpu_custom_call.1} parent=11 // pred_check_branch
          %1087 = sbr.rel (%p1085) target = $region72
        $region71: #{tpu_custom_call.1} parent=11 // pred_region
          _
        $region72: #{tpu_custom_call.1} parent=11 // pred_fallthru
          _
        // Predicated region
        $region73: #{tpu_custom_call.1} parent=11 // pred_check
          %p1088 = pneg %p486
        $region74: #{tpu_custom_call.1} parent=11 // pred_check_branch
          %1090 = sbr.rel (%p1088) target = $region76
        $region75: #{tpu_custom_call.1} parent=11 // pred_region
          %s1092 = ssub.s32 32, 32
          %1093 = vsyncadd [#allocation21], %s1092
          %s1094 = sshll.u32 [#allocation22], 4
          %s1095 = int_to_ptr.vmem [resolvable:$true] %s1094
          %1100 = dma.hbm_to_vmem [thread:$0]  %s35, 32, %s1095, [#allocation21], 16, 16, 1
        $region76: #{tpu_custom_call.1} parent=11 // pred_fallthru
          _
        // Predicated region
        $region77: #{tpu_custom_call.1} parent=11 // pred_check
          %p1101 = pneg %p507
        $region78: #{tpu_custom_call.1} parent=11 // pred_check_branch
          %1103 = sbr.rel (%p1101) target = $region80
        $region79: #{tpu_custom_call.1} parent=11 // pred_region
          _
        $region80: #{tpu_custom_call.1} parent=11 // pred_fallthru
          _
        // Predicated region
        $region81: #{tpu_custom_call.1} parent=11 // pred_check
          %p1104 = pneg %p528
        $region82: #{tpu_custom_call.1} parent=11 // pred_check_branch
          %1106 = sbr.rel (%p1104) target = $region84
        $region83: #{tpu_custom_call.1} parent=11 // pred_region
          _
        $region84: #{tpu_custom_call.1} parent=11 // pred_fallthru
          _
        // Predicated region
        $region85: #{tpu_custom_call.1} parent=11 // pred_check
          %p1107 = pneg %p549
        $region86: #{tpu_custom_call.1} parent=11 // pred_check_branch
          %1109 = sbr.rel (%p1107) target = $region88
        $region87: #{tpu_custom_call.1} parent=11 // pred_region
          _
        $region88: #{tpu_custom_call.1} parent=11 // pred_fallthru
          _
        // Predicated region
        $region89: #{tpu_custom_call.1} parent=11 // pred_check
          %p1110 = pneg %p570
        $region90: #{tpu_custom_call.1} parent=11 // pred_check_branch
          %1112 = sbr.rel (%p1110) target = $region92
        $region91: #{tpu_custom_call.1} parent=11 // pred_region
          %s1114 = ssub.s32 32, 32
          %1115 = vsyncadd [#allocation24], %s1114
          %s1116 = sshll.u32 [#allocation23], 4
          %s1117 = int_to_ptr.vmem [resolvable:$true] %s1116
          %1122 = dma.hbm_to_vmem [thread:$0]  %s43, 32, %s1117, [#allocation24], 16, 16, 1
        $region92: #{tpu_custom_call.1} parent=11 // pred_fallthru
          _
        // Predicated region
        $region93: #{tpu_custom_call.1} parent=11 // pred_check
          %p1123 = pneg %p591
        $region94: #{tpu_custom_call.1} parent=11 // pred_check_branch
          %1125 = sbr.rel (%p1123) target = $region96
        $region95: #{tpu_custom_call.1} parent=11 // pred_region
          _
        $region96: #{tpu_custom_call.1} parent=11 // pred_fallthru
          _
        // Predicated region
        $region97: #{tpu_custom_call.1} parent=11 // pred_check
          %p1126 = pneg %p612
        $region98: #{tpu_custom_call.1} parent=11 // pred_check_branch
          %1128 = sbr.rel (%p1126) target = $region100
        $region99: #{tpu_custom_call.1} parent=11 // pred_region
          _
        $region100: #{tpu_custom_call.1} parent=11 // pred_fallthru
          _
        // Predicated region
        $region101: #{tpu_custom_call.1} parent=11 // pred_check
          %p1129 = pneg %p633
        $region102: #{tpu_custom_call.1} parent=11 // pred_check_branch
          %1131 = sbr.rel (%p1129) target = $region104
        $region103: #{tpu_custom_call.1} parent=11 // pred_region
          %s1133 = ssub.s32 512, 512
          %1134 = vsyncadd [#allocation24], %s1133
          %s1135 = sshll.u32 [#allocation25], 4
          %s1136 = int_to_ptr.vmem [resolvable:$true] %s1135
          %1141 = dma.hbm_to_vmem [thread:$0]  %s49, 512, %s1136, [#allocation24], 64, 64, 4
        $region104: #{tpu_custom_call.1} parent=11 // pred_fallthru
          _
        // Predicated region
        $region105: #{tpu_custom_call.1} parent=11 // pred_check
          %p1142 = pneg %p654
        $region106: #{tpu_custom_call.1} parent=11 // pred_check_branch
          %1144 = sbr.rel (%p1142) target = $region108
        $region107: #{tpu_custom_call.1} parent=11 // pred_region
          _
        $region108: #{tpu_custom_call.1} parent=11 // pred_fallthru
          _
        // Predicated region
        $region109: #{tpu_custom_call.1} parent=11 // pred_check
          %p1145 = pneg %p675
        $region110: #{tpu_custom_call.1} parent=11 // pred_check_branch
          %1147 = sbr.rel (%p1145) target = $region112
        $region111: #{tpu_custom_call.1} parent=11 // pred_region
          _
        $region112: #{tpu_custom_call.1} parent=11 // pred_fallthru
          _
        // Predicated region
        $region113: #{tpu_custom_call.1} parent=11 // pred_check
          %p1148 = pneg %p696
        $region114: #{tpu_custom_call.1} parent=11 // pred_check_branch
          %1150 = sbr.rel (%p1148) target = $region116
        $region115: #{tpu_custom_call.1} parent=11 // pred_region
          _
        $region116: #{tpu_custom_call.1} parent=11 // pred_fallthru
          _
        // Predicated region
        $region117: #{tpu_custom_call.1} parent=11 // pred_check
          %p1151 = pneg %p717
        $region118: #{tpu_custom_call.1} parent=11 // pred_check_branch
          %1153 = sbr.rel (%p1151) target = $region120
        $region119: #{tpu_custom_call.1} parent=11 // pred_region
          _
        $region120: #{tpu_custom_call.1} parent=11 // pred_fallthru
          _
        // Predicated region
        $region121: #{tpu_custom_call.1} parent=11 // pred_check
          %p1154 = pneg %p738
        $region122: #{tpu_custom_call.1} parent=11 // pred_check_branch
          %1156 = sbr.rel (%p1154) target = $region124
        $region123: #{tpu_custom_call.1} parent=11 // pred_region
          _
        $region124: #{tpu_custom_call.1} parent=11 // pred_fallthru
          _
        // Predicated region
        $region125: #{tpu_custom_call.1} parent=11 // pred_check
          %p1157 = pneg %p759
        $region126: #{tpu_custom_call.1} parent=11 // pred_check_branch
          %1159 = sbr.rel (%p1157) target = $region128
        $region127: #{tpu_custom_call.1} parent=11 // pred_region
          _
        $region128: #{tpu_custom_call.1} parent=11 // pred_fallthru
          _
        // Predicated region
        $region129: #{tpu_custom_call.1} parent=11 // pred_check
          %p1160 = pneg %p780
        $region130: #{tpu_custom_call.1} parent=11 // pred_check_branch
          %1162 = sbr.rel (%p1160) target = $region132
        $region131: #{tpu_custom_call.1} parent=11 // pred_region
          _
        $region132: #{tpu_custom_call.1} parent=11 // pred_fallthru
          _
        // Predicated region
        $region133: #{tpu_custom_call.1} parent=11 // pred_check
          %p1163 = pneg %p801
        $region134: #{tpu_custom_call.1} parent=11 // pred_check_branch
          %1165 = sbr.rel (%p1163) target = $region136
        $region135: #{tpu_custom_call.1} parent=11 // pred_region
          _
        $region136: #{tpu_custom_call.1} parent=11 // pred_fallthru
          _
        // Predicated region
        $region137: #{tpu_custom_call.1} parent=11 // pred_check
          %p1166 = pneg %p822
        $region138: #{tpu_custom_call.1} parent=11 // pred_check_branch
          %1168 = sbr.rel (%p1166) target = $region140
        $region139: #{tpu_custom_call.1} parent=11 // pred_region
          _
        $region140: #{tpu_custom_call.1} parent=11 // pred_fallthru
          _
        // Predicated region
        $region141: #{tpu_custom_call.1} parent=11 // pred_check
          %p1169 = pneg %p843
        $region142: #{tpu_custom_call.1} parent=11 // pred_check_branch
          %1171 = sbr.rel (%p1169) target = $region144
        $region143: #{tpu_custom_call.1} parent=11 // pred_region
          _
        $region144: #{tpu_custom_call.1} parent=11 // pred_fallthru
          _
        // Predicated region
        $region145: #{tpu_custom_call.1} parent=11 // pred_check
          %p1172 = pneg %p864
        $region146: #{tpu_custom_call.1} parent=11 // pred_check_branch
          %1174 = sbr.rel (%p1172) target = $region148
        $region147: #{tpu_custom_call.1} parent=11 // pred_region
          _
        $region148: #{tpu_custom_call.1} parent=11 // pred_fallthru
          _
        // Predicated region
        $region149: #{tpu_custom_call.1} parent=11 // pred_check
          %p1175 = pneg %p885
        $region150: #{tpu_custom_call.1} parent=11 // pred_check_branch
          %1177 = sbr.rel (%p1175) target = $region152
        $region151: #{tpu_custom_call.1} parent=11 // pred_region
          _
        $region152: #{tpu_custom_call.1} parent=11 // pred_fallthru
          _
        // Predicated region
        $region153: #{tpu_custom_call.1} parent=11 // pred_check
          %p1178 = pneg %p906
        $region154: #{tpu_custom_call.1} parent=11 // pred_check_branch
          %1180 = sbr.rel (%p1178) target = $region156
        $region155: #{tpu_custom_call.1} parent=11 // pred_region
          _
        $region156: #{tpu_custom_call.1} parent=11 // pred_fallthru
          _
      $region12: #{tpu_custom_call.1} parent=5 // pred_fallthru
        _
      %p1181 = scmp.lt.s32.totalorder %s98, 2
      // Predicated region
      $region157: #{tpu_custom_call.1} parent=5 // pred_check
        %p1182 = pneg %p1181
      $region158: #{tpu_custom_call.1} parent=5 // pred_check_branch
        %1184 = sbr.rel (%p1182) target = $region160
      $region159: #{tpu_custom_call.1} parent=5 // pred_region
        // Predicated region
        $region161: #{tpu_custom_call.1} parent=159 // pred_check
          %p1185 = pneg %p118
        $region162: #{tpu_custom_call.1} parent=159 // pred_check_branch
          %1187 = sbr.rel (%p1185) target = $region164
        $region163: #{tpu_custom_call.1} parent=159 // pred_region
          %s1188 = sand.u32 %s108, 1
          %s1189 = scalar_lea.sflag [#allocation3], %s1188
          %s1190 = sand.u32 %s108, 1
          %s1191 = smul.addr %s1190, 8
          %s1192 = scalar_lea.vmem [#allocation2], %s1191
          %s1194 = ssub.s32 128, 128
          %1195 = vsyncadd %s1189, %s1194
          %s1196 = smul.addr %s98, 128
          %s1197 = scalar_lea.hbm %s1, %s1196
          %s1199 = sshll.u32 %s1192, 4
          %s1200 = int_to_ptr.vmem [resolvable:$true] %s1199
          %1202 = dma.hbm_to_vmem [thread:$0]  %s1197, 128, %s1200, %s1189
        $region164: #{tpu_custom_call.1} parent=159 // pred_fallthru
          _
        // Predicated region
        $region165: #{tpu_custom_call.1} parent=159 // pred_check
          %p1203 = pneg %p144
        $region166: #{tpu_custom_call.1} parent=159 // pred_check_branch
          %1205 = sbr.rel (%p1203) target = $region168
        $region167: #{tpu_custom_call.1} parent=159 // pred_region
          %s1206 = sand.u32 %s98, 1
          %s1207 = scalar_lea.sflag [#allocation6], %s1206
          %s1208 = sand.u32 %s134, 1
          %s1209 = smul.addr %s1208, 8
          %s1210 = scalar_lea.vmem [#allocation5], %s1209
          %s1212 = ssub.s32 128, 128
          %1213 = vsyncadd %s1207, %s1212
          %s1214 = smul.addr %s98, 128
          %s1215 = scalar_lea.hbm %s3, %s1214
          %s1217 = sshll.u32 %s1210, 4
          %s1218 = int_to_ptr.vmem [resolvable:$true] %s1217
          %1220 = dma.hbm_to_vmem [thread:$0]  %s1215, 128, %s1218, %s1207
        $region168: #{tpu_custom_call.1} parent=159 // pred_fallthru
          _
      $region160: #{tpu_custom_call.1} parent=5 // pred_fallthru
        _
      %p1221 = scmp.le.s32.totalorder 1, %s98
      %p1222 = scmp.lt.s32.totalorder %s98, 3
      %p1223 = pnand %p1221, %p1222
      %p1224 = pneg %p1223
      // Predicated region
      $region169: #{tpu_custom_call.1} parent=5 // pred_check
        _
      $region170: #{tpu_custom_call.1} parent=5 // pred_check_branch
        %1226 = sbr.rel (%p1223) target = $region172
      $region171: #{tpu_custom_call.1} parent=5 // pred_region
        %s1227 = ssub.s32 %s98, 1
        %s1228 = sand.u32 %s111, 1
        %s1229 = scalar_lea.sflag [#allocation3], %s1228
        %s1230 = sand.u32 %s111, 1
        %s1231 = smul.addr %s1230, 8
        %s1232 = scalar_lea.vmem [#allocation2], %s1231
        // Predicated region
        $region173: #{tpu_custom_call.1} parent=171 // pred_check
          %p1233 = pneg %p124
        $region174: #{tpu_custom_call.1} parent=171 // pred_check_branch
          %1235 = sbr.rel (%p1233) target = $region176
        $region175: #{tpu_custom_call.1} parent=171 // pred_region
          %1236 = dma.done %s1229, 128
        $region176: #{tpu_custom_call.1} parent=171 // pred_fallthru
          _
        %s1237 = sand.u32 %s103, 1
        %s1238 = scalar_lea.sflag [#allocation6], %s1237
        %s1239 = sand.u32 %s137, 1
        %s1240 = smul.addr %s1239, 8
        %s1241 = scalar_lea.vmem [#allocation5], %s1240
        // Predicated region
        $region177: #{tpu_custom_call.1} parent=171 // pred_check
          %p1242 = pneg %p150
        $region178: #{tpu_custom_call.1} parent=171 // pred_check_branch
          %1244 = sbr.rel (%p1242) target = $region180
        $region179: #{tpu_custom_call.1} parent=171 // pred_region
          %1245 = dma.done %s1238, 128
        $region180: #{tpu_custom_call.1} parent=171 // pred_fallthru
          _
        // Predicated region
        $region181: #{tpu_custom_call.1} parent=171 // pred_check
          %p1246 = pneg %p192
        $region182: #{tpu_custom_call.1} parent=171 // pred_check_branch
          %1248 = sbr.rel (%p1246) target = $region184
        $region183: #{tpu_custom_call.1} parent=171 // pred_region
          %1249 = dma.done [#allocation6], 32
        $region184: #{tpu_custom_call.1} parent=171 // pred_fallthru
          _
        // Predicated region
        $region185: #{tpu_custom_call.1} parent=171 // pred_check
          %p1250 = pneg %p234
        $region186: #{tpu_custom_call.1} parent=171 // pred_check_branch
          %1252 = sbr.rel (%p1250) target = $region188
        $region187: #{tpu_custom_call.1} parent=171 // pred_region
          %1253 = dma.done [#allocation9], 32
        $region188: #{tpu_custom_call.1} parent=171 // pred_fallthru
          _
        // Predicated region
        $region189: #{tpu_custom_call.1} parent=171 // pred_check
          %p1254 = pneg %p276
        $region190: #{tpu_custom_call.1} parent=171 // pred_check_branch
          %1256 = sbr.rel (%p1254) target = $region192
        $region191: #{tpu_custom_call.1} parent=171 // pred_region
          %1257 = dma.done [#allocation9], 32
        $region192: #{tpu_custom_call.1} parent=171 // pred_fallthru
          _
        // Predicated region
        $region193: #{tpu_custom_call.1} parent=171 // pred_check
          %p1258 = pneg %p318
        $region194: #{tpu_custom_call.1} parent=171 // pred_check_branch
          %1260 = sbr.rel (%p1258) target = $region196
        $region195: #{tpu_custom_call.1} parent=171 // pred_region
          %1261 = dma.done [#allocation12], 32
        $region196: #{tpu_custom_call.1} parent=171 // pred_fallthru
          _
        // Predicated region
        $region197: #{tpu_custom_call.1} parent=171 // pred_check
          %p1262 = pneg %p339
        $region198: #{tpu_custom_call.1} parent=171 // pred_check_branch
          %1264 = sbr.rel (%p1262) target = $region200
        $region199: #{tpu_custom_call.1} parent=171 // pred_region
          %1265 = dma.done [#allocation12], 32
        $region200: #{tpu_custom_call.1} parent=171 // pred_fallthru
          _
        // Predicated region
        $region201: #{tpu_custom_call.1} parent=171 // pred_check
          %p1266 = pneg %p360
        $region202: #{tpu_custom_call.1} parent=171 // pred_check_branch
          %1268 = sbr.rel (%p1266) target = $region204
        $region203: #{tpu_custom_call.1} parent=171 // pred_region
          %1269 = dma.done [#allocation15], 32
        $region204: #{tpu_custom_call.1} parent=171 // pred_fallthru
          _
        // Predicated region
        $region205: #{tpu_custom_call.1} parent=171 // pred_check
          %p1270 = pneg %p381
        $region206: #{tpu_custom_call.1} parent=171 // pred_check_branch
          %1272 = sbr.rel (%p1270) target = $region208
        $region207: #{tpu_custom_call.1} parent=171 // pred_region
          %1273 = dma.done [#allocation15], 32
        $region208: #{tpu_custom_call.1} parent=171 // pred_fallthru
          _
        // Predicated region
        $region209: #{tpu_custom_call.1} parent=171 // pred_check
          %p1274 = pneg %p402
        $region210: #{tpu_custom_call.1} parent=171 // pred_check_branch
          %1276 = sbr.rel (%p1274) target = $region212
        $region211: #{tpu_custom_call.1} parent=171 // pred_region
          %1277 = dma.done [#allocation18], 32
        $region212: #{tpu_custom_call.1} parent=171 // pred_fallthru
          _
        // Predicated region
        $region213: #{tpu_custom_call.1} parent=171 // pred_check
          %p1278 = pneg %p423
        $region214: #{tpu_custom_call.1} parent=171 // pred_check_branch
          %1280 = sbr.rel (%p1278) target = $region216
        $region215: #{tpu_custom_call.1} parent=171 // pred_region
          %1281 = dma.done [#allocation18], 16
        $region216: #{tpu_custom_call.1} parent=171 // pred_fallthru
          _
        // Predicated region
        $region217: #{tpu_custom_call.1} parent=171 // pred_check
          %p1282 = pneg %p444
        $region218: #{tpu_custom_call.1} parent=171 // pred_check_branch
          %1284 = sbr.rel (%p1282) target = $region220
        $region219: #{tpu_custom_call.1} parent=171 // pred_region
          %1285 = dma.done [#allocation21], 16
        $region220: #{tpu_custom_call.1} parent=171 // pred_fallthru
          _
        // Predicated region
        $region221: #{tpu_custom_call.1} parent=171 // pred_check
          %p1286 = pneg %p486
        $region222: #{tpu_custom_call.1} parent=171 // pred_check_branch
          %1288 = sbr.rel (%p1286) target = $region224
        $region223: #{tpu_custom_call.1} parent=171 // pred_region
          %1289 = dma.done [#allocation21], 32
        $region224: #{tpu_custom_call.1} parent=171 // pred_fallthru
          _
        // Predicated region
        $region225: #{tpu_custom_call.1} parent=171 // pred_check
          %p1290 = pneg %p570
        $region226: #{tpu_custom_call.1} parent=171 // pred_check_branch
          %1292 = sbr.rel (%p1290) target = $region228
        $region227: #{tpu_custom_call.1} parent=171 // pred_region
          %1293 = dma.done [#allocation24], 32
        $region228: #{tpu_custom_call.1} parent=171 // pred_fallthru
          _
        // Predicated region
        $region229: #{tpu_custom_call.1} parent=171 // pred_check
          %p1294 = pneg %p633
        $region230: #{tpu_custom_call.1} parent=171 // pred_check_branch
          %1296 = sbr.rel (%p1294) target = $region232
        $region231: #{tpu_custom_call.1} parent=171 // pred_region
          %1297 = dma.done [#allocation24], 512
        $region232: #{tpu_custom_call.1} parent=171 // pred_fallthru
          _
        %s1298 = sand.u32 %s111, 1
        %s1299 = scalar_lea.sflag [#allocation3], %s1298
        %s1300 = sand.u32 %s111, 1
        %s1301 = smul.addr %s1300, 8
        %s1302 = scalar_lea.vmem [#allocation2], %s1301
        %p1303 = pneg %p124
        %p1304 = pneg %p121
        %s1305 = sand.u32 %s103, 1
        %s1306 = scalar_lea.sflag [#allocation6], %s1305
        %s1307 = sand.u32 %s137, 1
        %s1308 = smul.addr %s1307, 8
        %s1309 = scalar_lea.vmem [#allocation5], %s1308
        %p1310 = pneg %p150
        %p1311 = pneg %p147
        %p1312 = pneg %p171
        %p1313 = pneg %p168
        %p1314 = pneg %p192
        %p1315 = pneg %p189
        %p1316 = pneg %p213
        %p1317 = pneg %p210
        %p1318 = pneg %p234
        %p1319 = pneg %p231
        %p1320 = pneg %p255
        %p1321 = pneg %p252
        %p1322 = pneg %p276
        %p1323 = pneg %p273
        %p1324 = pneg %p297
        %p1325 = pneg %p294
        %p1326 = pneg %p318
        %p1327 = pneg %p315
        %p1328 = pneg %p339
        %p1329 = pneg %p336
        %p1330 = pneg %p360
        %p1331 = pneg %p357
        %p1332 = pneg %p381
        %p1333 = pneg %p378
        %p1334 = pneg %p402
        %p1335 = pneg %p399
        %p1336 = pneg %p423
        %p1337 = pneg %p420
        %p1338 = pneg %p444
        %p1339 = pneg %p441
        %p1340 = pneg %p465
        %p1341 = pneg %p462
        %p1342 = pneg %p486
        %p1343 = pneg %p483
        %p1344 = pneg %p507
        %p1345 = pneg %p504
        %p1346 = pneg %p528
        %p1347 = pneg %p525
        %p1348 = pneg %p549
        %p1349 = pneg %p546
        %p1350 = pneg %p570
        %p1351 = pneg %p567
        %p1352 = pneg %p591
        %p1353 = pneg %p588
        %p1354 = pneg %p612
        %p1355 = pneg %p609
        %p1356 = pneg %p633
        %p1357 = pneg %p630
        %p1358 = pneg %p654
        %p1359 = pneg %p651
        %p1360 = pneg %p675
        %p1361 = pneg %p672
        %p1362 = pneg %p696
        %p1363 = pneg %p693
        %p1364 = pneg %p717
        %p1365 = pneg %p714
        %p1366 = pneg %p738
        %p1367 = pneg %p735
        %p1368 = pneg %p759
        %p1369 = pneg %p756
        %p1370 = pneg %p780
        %p1371 = pneg %p777
        %p1372 = pneg %p801
        %p1373 = pneg %p798
        %p1374 = pneg %p822
        %p1375 = pneg %p819
        %p1376 = pneg %p843
        %p1377 = pneg %p840
        %p1378 = pneg %p864
        %p1379 = pneg %p861
        %p1380 = pneg %p885
        %p1381 = pneg %p882
        %p1382 = pneg %p906
        %p1383 = pneg %p903
        %p1384 = pneg %p932
        %p1385 = pneg %p929
        %s1386 = sand.u32 %s919, 1
        %s1387 = scalar_lea.sflag [#allocation4], %s1386
        %s1388 = sand.u32 %s919, 1
        %s1389 = smul.addr %s1388, 8
        %s1390 = scalar_lea.vmem [#allocation26], %s1389
        %v1392 = vld [vmem:[%s1232] sm:$0xff]
        %v1393 = vld [vmem:[%s5] sm:$0xf]
        %v1394 = vld [vmem:[%s5 + $0x4] sm:$0xf]
        %v1395 = vld [vmem:[%s5 + $0x8] sm:$0xf]
        %v1396 = vld [vmem:[%s5 + $0xc] sm:$0xf]
        %v1397 = vld [vmem:[#allocation7] sm:$0x1]
        %v1398 = vld [vmem:[%s9] sm:$0xf]
        %v1399 = vld [vmem:[%s9 + $0x4] sm:$0xf]
        %v1400 = vld [vmem:[%s9 + $0x8] sm:$0xf]
        %v1401 = vld [vmem:[%s9 + $0xc] sm:$0xf]
        %v1402 = vld [vmem:[#allocation8] sm:$0x1]
        %v1403 = vld [vmem:[%s13] sm:$0xf]
        %v1404 = vld [vmem:[%s13 + $0x4] sm:$0xf]
        %v1405 = vld [vmem:[%s13 + $0x8] sm:$0xf]
        %v1406 = vld [vmem:[%s13 + $0xc] sm:$0xf]
        %v1407 = vld [vmem:[#allocation10] sm:$0x1]
        %v1408 = vld [vmem:[%s17] sm:$0xf]
        %v1409 = vld [vmem:[%s17 + $0x4] sm:$0xf]
        %v1410 = vld [vmem:[%s17 + $0x8] sm:$0xf]
        %v1411 = vld [vmem:[%s17 + $0xc] sm:$0xf]
        %v1412 = vld [vmem:[%s17 + $0x10] sm:$0xf]
        %v1413 = vld [vmem:[%s17 + $0x14] sm:$0xf]
        %v1414 = vld [vmem:[%s17 + $0x18] sm:$0xf]
        %v1415 = vld [vmem:[%s17 + $0x1c] sm:$0xf]
        %v1416 = vld [vmem:[#allocation11] sm:$0x1]
        %v1417 = vld [vmem:[#allocation13] sm:$0x1]
        %v1418 = vld [vmem:[#allocation14] sm:$0x1]
        %v1419 = vld [vmem:[#allocation16] sm:$0x1]
        %v1420 = vld [vmem:[#allocation17] sm:$0x1]
        %v1421 = vpack.c.bf16 %v1392, %v1392
        %v1423 = vlaneseq
        %v1424 = vshrl.u32 %v1423, 7
        %v1425 = vsub.s32 0, %v1424
        %v1426 = vrot.slane %v1397, %v1425
        %v1432 = vunpack.c.l.b16 %v1393
        %v1433 = vunpack.c.l.b16 %v1394
        %v1434 = vunpack.c.l.b16 %v1395
        %v1435 = vunpack.c.l.b16 %v1396
        %v1436 = vpack.c.b16 %v1433, %v1432
        %v1437 = vpack.c.b16 %v1435, %v1434
        %vm1440 = vcmask 261120
        %v1442 = vsel %vm1440, %v1421, 0
        %1444 = vmatprep.subr.bf16.mxu0 0
        %1445 = vmatpush1.bf16.msra.mxu0 %v1436
        %1446 = vmatprep.subr.bf16.mxu0 0
        %1447 = vmatpush1.bf16.msra.mxu0 %v1437
        %1448 = vmatprep.subr.bf16.mxu0 0
        %1449 = vmatpush1.bf16.msra.mxu0 0
        %1450 = vmatprep.subr.bf16.mxu0 0
        %1451 = vmatpush1.bf16.msra.mxu0 0
        %1452 = vmatprep.subr.bf16.mxu0 0
        %1453 = vmatpush1.bf16.msra.mxu0 0
        %1454 = vmatprep.subr.bf16.mxu0 0
        %1455 = vmatpush1.bf16.msra.mxu0 0
        %1456 = vmatprep.subr.bf16.mxu0 0
        %1457 = vmatpush1.bf16.msra.mxu0 0
        %1458 = vmatprep.subr.bf16.mxu0 0
        %1459 = vmatpush1.bf16.msra.mxu0 0
        %1460 = vmatprep.subr.bf16.mxu0 0
        %1461 = vmatpush1.bf16.msra.mxu0 0
        %1462 = vmatprep.subr.bf16.mxu0 0
        %1463 = vmatpush1.bf16.msra.mxu0 0
        %1464 = vmatprep.subr.bf16.mxu0 0
        %1465 = vmatpush1.bf16.msra.mxu0 0
        %1466 = vmatprep.subr.bf16.mxu0 0
        %1467 = vmatpush1.bf16.msra.mxu0 0
        %1468 = vmatprep.subr.bf16.mxu0 0
        %1469 = vmatpush1.bf16.msra.mxu0 0
        %1470 = vmatprep.subr.bf16.mxu0 0
        %1471 = vmatpush1.bf16.msra.mxu0 0
        %1472 = vmatprep.subr.bf16.mxu0 0
        %1473 = vmatpush1.bf16.msra.mxu0 0
        %1474 = vmatprep.subr.bf16.mxu0 0
        %1475 = vmatpush1.bf16.msra.mxu0 0
        %1476 = vmatprep.mubr.bf16.mxu0 0
        %1477 = vmatmul.mubr.bf16.gmra.mrb[0].mxu0 %v1442
        %v1478 = vpop.f32.mrb[0].mxu0
        %v1479 = vadd.f32 %v1426, %v1478
        %v1480 = vpop.f32.mrb[0].mxu0
        %v1481 = vpop.f32.mrb[0].mxu0
        %v1482 = vpop.f32.mrb[0].mxu0
        %1483 = vdwg.mxu0
        %1484 = vrot.lane.b32.xlu0 %v1436, 96
        %v1485 = vpop.permute.xlu0 %1484
        %1486 = vrot.lane.b32.xlu0 %v1437, 96
        %v1487 = vpop.permute.xlu0 %1486
        %1490 = vrot.lane.b32.xlu0 %v1426, 96
        %v1491 = vpop.permute.xlu0 %1490
        %1493 = vmatprep.subr.bf16.mxu0 0
        %1494 = vmatpush1.bf16.msra.mxu0 %v1485
        %1495 = vmatprep.subr.bf16.mxu0 0
        %1496 = vmatpush1.bf16.msra.mxu0 %v1487
        %1497 = vmatprep.subr.bf16.mxu0 0
        %1498 = vmatpush1.bf16.msra.mxu0 0
        %1499 = vmatprep.subr.bf16.mxu0 0
        %1500 = vmatpush1.bf16.msra.mxu0 0
        %1501 = vmatprep.subr.bf16.mxu0 0
        %1502 = vmatpush1.bf16.msra.mxu0 0
        %1503 = vmatprep.subr.bf16.mxu0 0
        %1504 = vmatpush1.bf16.msra.mxu0 0
        %1505 = vmatprep.subr.bf16.mxu0 0
        %1506 = vmatpush1.bf16.msra.mxu0 0
        %1507 = vmatprep.subr.bf16.mxu0 0
        %1508 = vmatpush1.bf16.msra.mxu0 0
        %1509 = vmatprep.subr.bf16.mxu0 0
        %1510 = vmatpush1.bf16.msra.mxu0 0
        %1511 = vmatprep.subr.bf16.mxu0 0
        %1512 = vmatpush1.bf16.msra.mxu0 0
        %1513 = vmatprep.subr.bf16.mxu0 0
        %1514 = vmatpush1.bf16.msra.mxu0 0
        %1515 = vmatprep.subr.bf16.mxu0 0
        %1516 = vmatpush1.bf16.msra.mxu0 0
        %1517 = vmatprep.subr.bf16.mxu0 0
        %1518 = vmatpush1.bf16.msra.mxu0 0
        %1519 = vmatprep.subr.bf16.mxu0 0
        %1520 = vmatpush1.bf16.msra.mxu0 0
        %1521 = vmatprep.subr.bf16.mxu0 0
        %1522 = vmatpush1.bf16.msra.mxu0 0
        %1523 = vmatprep.subr.bf16.mxu0 0
        %1524 = vmatpush1.bf16.msra.mxu0 0
        %1525 = vmatprep.mubr.bf16.mxu0 0
        %1526 = vmatmul.mubr.bf16.gmra.mrb[0].mxu0 %v1442
        %v1527 = vpop.f32.mrb[0].mxu0
        %v1528 = vadd.f32 %v1491, %v1527
        %v1529 = vpop.f32.mrb[0].mxu0
        %v1530 = vpop.f32.mrb[0].mxu0
        %v1531 = vpop.f32.mrb[0].mxu0
        %1532 = vdwg.mxu0
        %1533 = vrot.lane.b32.xlu0 %v1436, 64
        %v1534 = vpop.permute.xlu0 %1533
        %1535 = vrot.lane.b32.xlu0 %v1437, 64
        %v1536 = vpop.permute.xlu0 %1535
        %1539 = vrot.lane.b32.xlu0 %v1426, 64
        %v1540 = vpop.permute.xlu0 %1539
        %1542 = vmatprep.subr.bf16.mxu0 0
        %1543 = vmatpush1.bf16.msra.mxu0 %v1534
        %1544 = vmatprep.subr.bf16.mxu0 0
        %1545 = vmatpush1.bf16.msra.mxu0 %v1536
        %1546 = vmatprep.subr.bf16.mxu0 0
        %1547 = vmatpush1.bf16.msra.mxu0 0
        %1548 = vmatprep.subr.bf16.mxu0 0
        %1549 = vmatpush1.bf16.msra.mxu0 0
        %1550 = vmatprep.subr.bf16.mxu0 0
        %1551 = vmatpush1.bf16.msra.mxu0 0
        %1552 = vmatprep.subr.bf16.mxu0 0
        %1553 = vmatpush1.bf16.msra.mxu0 0
        %1554 = vmatprep.subr.bf16.mxu0 0
        %1555 = vmatpush1.bf16.msra.mxu0 0
        %1556 = vmatprep.subr.bf16.mxu0 0
        %1557 = vmatpush1.bf16.msra.mxu0 0
        %1558 = vmatprep.subr.bf16.mxu0 0
        %1559 = vmatpush1.bf16.msra.mxu0 0
        %1560 = vmatprep.subr.bf16.mxu0 0
        %1561 = vmatpush1.bf16.msra.mxu0 0
        %1562 = vmatprep.subr.bf16.mxu0 0
        %1563 = vmatpush1.bf16.msra.mxu0 0
        %1564 = vmatprep.subr.bf16.mxu0 0
        %1565 = vmatpush1.bf16.msra.mxu0 0
        %1566 = vmatprep.subr.bf16.mxu0 0
        %1567 = vmatpush1.bf16.msra.mxu0 0
        %1568 = vmatprep.subr.bf16.mxu0 0
        %1569 = vmatpush1.bf16.msra.mxu0 0
        %1570 = vmatprep.subr.bf16.mxu0 0
        %1571 = vmatpush1.bf16.msra.mxu0 0
        %1572 = vmatprep.subr.bf16.mxu0 0
        %1573 = vmatpush1.bf16.msra.mxu0 0
        %1574 = vmatprep.mubr.bf16.mxu0 0
        %1575 = vmatmul.mubr.bf16.gmra.mrb[0].mxu0 %v1442
        %v1576 = vpop.f32.mrb[0].mxu0
        %v1577 = vadd.f32 %v1540, %v1576
        %v1578 = vpop.f32.mrb[0].mxu0
        %v1579 = vpop.f32.mrb[0].mxu0
        %v1580 = vpop.f32.mrb[0].mxu0
        %1581 = vdwg.mxu0
        %v1582 = vmul.f32 %v1479, 0.35355338
        %1584 = vrot.lane.b32.xlu0 %v1582, 120
        %v1585 = vpop.permute.xlu0 %1584
        %1587 = vrot.lane.b32.xlu0 %v1582, 112
        %v1588 = vpop.permute.xlu0 %1587
        %1590 = vrot.lane.b32.xlu0 %v1582, 104
        %v1591 = vpop.permute.xlu0 %1590
        %1594 = vrot.lane.b32.xlu0 %v1528, 120
        %v1595 = vpop.permute.xlu0 %1594
        %1597 = vrot.lane.b32.xlu0 %v1528, 112
        %v1598 = vpop.permute.xlu0 %1597
        %1600 = vrot.lane.b32.xlu0 %v1528, 104
        %v1601 = vpop.permute.xlu0 %1600
        %1604 = vrot.lane.b32.xlu0 %v1577, 120
        %v1605 = vpop.permute.xlu0 %1604
        %1607 = vrot.lane.b32.xlu0 %v1577, 112
        %v1608 = vpop.permute.xlu0 %1607
        %1610 = vrot.lane.b32.xlu0 %v1577, 104
        %v1611 = vpop.permute.xlu0 %1610
        %v1613 = vpack.c.bf16 %v1582, %v1582
        %v1614 = vpack.c.bf16 %v1585, %v1585
        %v1615 = vpack.c.bf16 %v1588, %v1588
        %v1616 = vpack.c.bf16 %v1591, %v1591
        %v1617 = vpack.c.bf16 %v1528, %v1528
        %v1618 = vpack.c.bf16 %v1595, %v1595
        %v1619 = vpack.c.bf16 %v1598, %v1598
        %v1620 = vpack.c.bf16 %v1601, %v1601
        %vm1621 = vcmask 64512
        %v1623 = vsel %vm1621, %v1613, 0
        %v1626 = vsel %vm1621, %v1617, 0
        %1628 = vmatprep.subr.bf16.mxu0 0
        %1629 = vmatpush1.bf16.xpose.msra.mxu0 %v1626
        %1630 = vmatprep.subr.bf16.mxu0 0
        %1631 = vmatpush1.bf16.xpose.msra.mxu0 0
        %1632 = vmatprep.subr.bf16.mxu0 0
        %1633 = vmatpush1.bf16.xpose.msra.mxu0 0
        %1634 = vmatprep.subr.bf16.mxu0 0
        %1635 = vmatpush1.bf16.xpose.msra.mxu0 0
        %1636 = vmatprep.subr.bf16.mxu0 0
        %1637 = vmatpush1.bf16.xpose.msra.mxu0 0
        %1638 = vmatprep.subr.bf16.mxu0 0
        %1639 = vmatpush1.bf16.xpose.msra.mxu0 0
        %1640 = vmatprep.subr.bf16.mxu0 0
        %1641 = vmatpush1.bf16.xpose.msra.mxu0 0
        %1642 = vmatprep.subr.bf16.mxu0 0
        %1643 = vmatpush1.bf16.xpose.msra.mxu0 0
        %1644 = vmatprep.subr.bf16.mxu0 0
        %1645 = vmatpush1.bf16.xpose.msra.mxu0 0
        %1646 = vmatprep.subr.bf16.mxu0 0
        %1647 = vmatpush1.bf16.xpose.msra.mxu0 0
        %1648 = vmatprep.subr.bf16.mxu0 0
        %1649 = vmatpush1.bf16.xpose.msra.mxu0 0
        %1650 = vmatprep.subr.bf16.mxu0 0
        %1651 = vmatpush1.bf16.xpose.msra.mxu0 0
        %1652 = vmatprep.subr.bf16.mxu0 0
        %1653 = vmatpush1.bf16.xpose.msra.mxu0 0
        %1654 = vmatprep.subr.bf16.mxu0 0
        %1655 = vmatpush1.bf16.xpose.msra.mxu0 0
        %1656 = vmatprep.subr.bf16.mxu0 0
        %1657 = vmatpush1.bf16.xpose.msra.mxu0 0
        %1658 = vmatprep.subr.bf16.mxu0 0
        %1659 = vmatpush1.bf16.xpose.msra.mxu0 0
        %1660 = vmatprep.mubr.bf16.mxu0 0
        %1661 = vmatmul.mubr.bf16.gmra.mrb[0].mxu0 %v1623
        %v1662 = vpop.f32.mrb[0].mxu0
        %v1663 = vadd.f32 0.0, %v1662
        %v1664 = vpop.f32.mrb[0].mxu0
        %v1665 = vpop.f32.mrb[0].mxu0
        %v1666 = vpop.f32.mrb[0].mxu0
        %1667 = vdwg.mxu0
        %v1669 = vsel %vm1621, %v1614, 0
        %v1672 = vsel %vm1621, %v1618, 0
        %1674 = vmatprep.subr.bf16.mxu0 0
        %1675 = vmatpush1.bf16.xpose.msra.mxu0 %v1672
        %1676 = vmatprep.subr.bf16.mxu0 0
        %1677 = vmatpush1.bf16.xpose.msra.mxu0 0
        %1678 = vmatprep.subr.bf16.mxu0 0
        %1679 = vmatpush1.bf16.xpose.msra.mxu0 0
        %1680 = vmatprep.subr.bf16.mxu0 0
        %1681 = vmatpush1.bf16.xpose.msra.mxu0 0
        %1682 = vmatprep.subr.bf16.mxu0 0
        %1683 = vmatpush1.bf16.xpose.msra.mxu0 0
        %1684 = vmatprep.subr.bf16.mxu0 0
        %1685 = vmatpush1.bf16.xpose.msra.mxu0 0
        %1686 = vmatprep.subr.bf16.mxu0 0
        %1687 = vmatpush1.bf16.xpose.msra.mxu0 0
        %1688 = vmatprep.subr.bf16.mxu0 0
        %1689 = vmatpush1.bf16.xpose.msra.mxu0 0
        %1690 = vmatprep.subr.bf16.mxu0 0
        %1691 = vmatpush1.bf16.xpose.msra.mxu0 0
        %1692 = vmatprep.subr.bf16.mxu0 0
        %1693 = vmatpush1.bf16.xpose.msra.mxu0 0
        %1694 = vmatprep.subr.bf16.mxu0 0
        %1695 = vmatpush1.bf16.xpose.msra.mxu0 0
        %1696 = vmatprep.subr.bf16.mxu0 0
        %1697 = vmatpush1.bf16.xpose.msra.mxu0 0
        %1698 = vmatprep.subr.bf16.mxu0 0
        %1699 = vmatpush1.bf16.xpose.msra.mxu0 0
        %1700 = vmatprep.subr.bf16.mxu0 0
        %1701 = vmatpush1.bf16.xpose.msra.mxu0 0
        %1702 = vmatprep.subr.bf16.mxu0 0
        %1703 = vmatpush1.bf16.xpose.msra.mxu0 0
        %1704 = vmatprep.subr.bf16.mxu0 0
        %1705 = vmatpush1.bf16.xpose.msra.mxu0 0
        %1706 = vmatprep.mubr.bf16.mxu0 0
        %1707 = vmatmul.mubr.bf16.gmra.mrb[0].mxu0 %v1669
        %v1708 = vpop.f32.mrb[0].mxu0
        %v1709 = vadd.f32 0.0, %v1708
        %v1710 = vpop.f32.mrb[0].mxu0
        %v1711 = vpop.f32.mrb[0].mxu0
        %v1712 = vpop.f32.mrb[0].mxu0
        %1713 = vdwg.mxu0
        %v1715 = vsel %vm1621, %v1615, 0
        %v1718 = vsel %vm1621, %v1619, 0
        %1720 = vmatprep.subr.bf16.mxu0 0
        %1721 = vmatpush1.bf16.xpose.msra.mxu0 %v1718
        %1722 = vmatprep.subr.bf16.mxu0 0
        %1723 = vmatpush1.bf16.xpose.msra.mxu0 0
        %1724 = vmatprep.subr.bf16.mxu0 0
        %1725 = vmatpush1.bf16.xpose.msra.mxu0 0
        %1726 = vmatprep.subr.bf16.mxu0 0
        %1727 = vmatpush1.bf16.xpose.msra.mxu0 0
        %1728 = vmatprep.subr.bf16.mxu0 0
        %1729 = vmatpush1.bf16.xpose.msra.mxu0 0
        %1730 = vmatprep.subr.bf16.mxu0 0
        %1731 = vmatpush1.bf16.xpose.msra.mxu0 0
        %1732 = vmatprep.subr.bf16.mxu0 0
        %1733 = vmatpush1.bf16.xpose.msra.mxu0 0
        %1734 = vmatprep.subr.bf16.mxu0 0
        %1735 = vmatpush1.bf16.xpose.msra.mxu0 0
        %1736 = vmatprep.subr.bf16.mxu0 0
        %1737 = vmatpush1.bf16.xpose.msra.mxu0 0
        %1738 = vmatprep.subr.bf16.mxu0 0
        %1739 = vmatpush1.bf16.xpose.msra.mxu0 0
        %1740 = vmatprep.subr.bf16.mxu0 0
        %1741 = vmatpush1.bf16.xpose.msra.mxu0 0
        %1742 = vmatprep.subr.bf16.mxu0 0
        %1743 = vmatpush1.bf16.xpose.msra.mxu0 0
        %1744 = vmatprep.subr.bf16.mxu0 0
        %1745 = vmatpush1.bf16.xpose.msra.mxu0 0
        %1746 = vmatprep.subr.bf16.mxu0 0
        %1747 = vmatpush1.bf16.xpose.msra.mxu0 0
        %1748 = vmatprep.subr.bf16.mxu0 0
        %1749 = vmatpush1.bf16.xpose.msra.mxu0 0
        %1750 = vmatprep.subr.bf16.mxu0 0
        %1751 = vmatpush1.bf16.xpose.msra.mxu0 0
        %1752 = vmatprep.mubr.bf16.mxu0 0
        %1753 = vmatmul.mubr.bf16.gmra.mrb[0].mxu0 %v1715
        %v1754 = vpop.f32.mrb[0].mxu0
        %v1755 = vadd.f32 0.0, %v1754
        %v1756 = vpop.f32.mrb[0].mxu0
        %v1757 = vpop.f32.mrb[0].mxu0
        %v1758 = vpop.f32.mrb[0].mxu0
        %1759 = vdwg.mxu0
        %v1761 = vsel %vm1621, %v1616, 0
        %v1764 = vsel %vm1621, %v1620, 0
        %1766 = vmatprep.subr.bf16.mxu0 0
        %1767 = vmatpush1.bf16.xpose.msra.mxu0 %v1764
        %1768 = vmatprep.subr.bf16.mxu0 0
        %1769 = vmatpush1.bf16.xpose.msra.mxu0 0
        %1770 = vmatprep.subr.bf16.mxu0 0
        %1771 = vmatpush1.bf16.xpose.msra.mxu0 0
        %1772 = vmatprep.subr.bf16.mxu0 0
        %1773 = vmatpush1.bf16.xpose.msra.mxu0 0
        %1774 = vmatprep.subr.bf16.mxu0 0
        %1775 = vmatpush1.bf16.xpose.msra.mxu0 0
        %1776 = vmatprep.subr.bf16.mxu0 0
        %1777 = vmatpush1.bf16.xpose.msra.mxu0 0
        %1778 = vmatprep.subr.bf16.mxu0 0
        %1779 = vmatpush1.bf16.xpose.msra.mxu0 0
        %1780 = vmatprep.subr.bf16.mxu0 0
        %1781 = vmatpush1.bf16.xpose.msra.mxu0 0
        %1782 = vmatprep.subr.bf16.mxu0 0
        %1783 = vmatpush1.bf16.xpose.msra.mxu0 0
        %1784 = vmatprep.subr.bf16.mxu0 0
        %1785 = vmatpush1.bf16.xpose.msra.mxu0 0
        %1786 = vmatprep.subr.bf16.mxu0 0
        %1787 = vmatpush1.bf16.xpose.msra.mxu0 0
        %1788 = vmatprep.subr.bf16.mxu0 0
        %1789 = vmatpush1.bf16.xpose.msra.mxu0 0
        %1790 = vmatprep.subr.bf16.mxu0 0
        %1791 = vmatpush1.bf16.xpose.msra.mxu0 0
        %1792 = vmatprep.subr.bf16.mxu0 0
        %1793 = vmatpush1.bf16.xpose.msra.mxu0 0
        %1794 = vmatprep.subr.bf16.mxu0 0
        %1795 = vmatpush1.bf16.xpose.msra.mxu0 0
        %1796 = vmatprep.subr.bf16.mxu0 0
        %1797 = vmatpush1.bf16.xpose.msra.mxu0 0
        %1798 = vmatprep.mubr.bf16.mxu0 0
        %1799 = vmatmul.mubr.bf16.gmra.mrb[0].mxu0 %v1761
        %v1800 = vpop.f32.mrb[0].mxu0
        %v1801 = vadd.f32 0.0, %v1800
        %v1802 = vpop.f32.mrb[0].mxu0
        %v1803 = vpop.f32.mrb[0].mxu0
        %v1804 = vpop.f32.mrb[0].mxu0
        %1805 = vdwg.mxu0
        %v1806 = vsel %vm1621, %v1663, -inf
        %1807 = vmax.xlane.f32.xlu0 %v1806
        %v1808 = vpop.xlane.xlu0 %1807
        %v1809 = vsel %vm1621, %v1709, -inf
        %1810 = vmax.xlane.f32.xlu0 %v1809
        %v1811 = vpop.xlane.xlu0 %1810
        %v1812 = vsel %vm1621, %v1755, -inf
        %1813 = vmax.xlane.f32.xlu0 %v1812
        %v1814 = vpop.xlane.xlu0 %1813
        %v1815 = vsel %vm1621, %v1801, -inf
        %1816 = vmax.xlane.f32.xlu0 %v1815
        %v1817 = vpop.xlane.xlu0 %1816
        %v1818 = vsub.f32 %v1663, %v1808
        %v1819 = vsub.f32 %v1709, %v1811
        %v1820 = vsub.f32 %v1755, %v1814
        %v1821 = vsub.f32 %v1801, %v1817
        %v1822 = vmul.f32 %v1818, 1.442695
        %v1823 = vpow.pop %v1822
        %v1824 = vmul.f32 %v1819, 1.442695
        %v1825 = vpow.pop %v1824
        %v1826 = vmul.f32 %v1820, 1.442695
        %v1827 = vpow.pop %v1826
        %v1828 = vmul.f32 %v1821, 1.442695
        %v1829 = vpow.pop %v1828
        %v1830 = vsel %vm1621, %v1823, 0.0
        %1831 = vadd.xlane.f32.xlu0 %v1830
        %v1832 = vpop.xlane.xlu0 %1831
        %v1833 = vsel %vm1621, %v1825, 0.0
        %1834 = vadd.xlane.f32.xlu0 %v1833
        %v1835 = vpop.xlane.xlu0 %1834
        %v1836 = vsel %vm1621, %v1827, 0.0
        %1837 = vadd.xlane.f32.xlu0 %v1836
        %v1838 = vpop.xlane.xlu0 %1837
        %v1839 = vsel %vm1621, %v1829, 0.0
        %1840 = vadd.xlane.f32.xlu0 %v1839
        %v1841 = vpop.xlane.xlu0 %1840
        %v1842 = vrcp.pop %v1832
        %v1843 = vrcp.pop %v1835
        %v1844 = vrcp.pop %v1838
        %v1845 = vrcp.pop %v1841
        %v1846 = vmul.f32 %v1823, %v1842
        %v1847 = vmul.f32 %v1825, %v1843
        %v1848 = vmul.f32 %v1827, %v1844
        %v1849 = vmul.f32 %v1829, %v1845
        %v1850 = vpack.c.bf16 %v1846, %v1846
        %v1851 = vpack.c.bf16 %v1847, %v1847
        %v1852 = vpack.c.bf16 %v1848, %v1848
        %v1853 = vpack.c.bf16 %v1849, %v1849
        %v1854 = vpack.c.bf16 %v1577, %v1577
        %v1855 = vpack.c.bf16 %v1605, %v1605
        %v1856 = vpack.c.bf16 %v1608, %v1608
        %v1857 = vpack.c.bf16 %v1611, %v1611
        %v1859 = vsel %vm1621, %v1850, 0
        %vm1861 = vcmask 1043456
        %v1863 = vsel %vm1861, %v1854, 0
        %1865 = vmatprep.subr.bf16.mxu0 0
        %1866 = vmatpush1.bf16.msra.mxu0 %v1863
        %1867 = vmatprep.subr.bf16.mxu0 0
        %1868 = vmatpush1.bf16.msra.mxu0 0
        %1869 = vmatprep.subr.bf16.mxu0 0
        %1870 = vmatpush1.bf16.msra.mxu0 0
        %1871 = vmatprep.subr.bf16.mxu0 0
        %1872 = vmatpush1.bf16.msra.mxu0 0
        %1873 = vmatprep.subr.bf16.mxu0 0
        %1874 = vmatpush1.bf16.msra.mxu0 0
        %1875 = vmatprep.subr.bf16.mxu0 0
        %1876 = vmatpush1.bf16.msra.mxu0 0
        %1877 = vmatprep.subr.bf16.mxu0 0
        %1878 = vmatpush1.bf16.msra.mxu0 0
        %1879 = vmatprep.subr.bf16.mxu0 0
        %1880 = vmatpush1.bf16.msra.mxu0 0
        %1881 = vmatprep.subr.bf16.mxu0 0
        %1882 = vmatpush1.bf16.msra.mxu0 0
        %1883 = vmatprep.subr.bf16.mxu0 0
        %1884 = vmatpush1.bf16.msra.mxu0 0
        %1885 = vmatprep.subr.bf16.mxu0 0
        %1886 = vmatpush1.bf16.msra.mxu0 0
        %1887 = vmatprep.subr.bf16.mxu0 0
        %1888 = vmatpush1.bf16.msra.mxu0 0
        %1889 = vmatprep.subr.bf16.mxu0 0
        %1890 = vmatpush1.bf16.msra.mxu0 0
        %1891 = vmatprep.subr.bf16.mxu0 0
        %1892 = vmatpush1.bf16.msra.mxu0 0
        %1893 = vmatprep.subr.bf16.mxu0 0
        %1894 = vmatpush1.bf16.msra.mxu0 0
        %1895 = vmatprep.subr.bf16.mxu0 0
        %1896 = vmatpush1.bf16.msra.mxu0 0
        %1897 = vmatprep.mubr.bf16.mxu0 0
        %1898 = vmatmul.mubr.bf16.gmra.mrb[0].mxu0 %v1859
        %v1899 = vpop.f32.mrb[0].mxu0
        %v1900 = vadd.f32 0.0, %v1899
        %v1901 = vpop.f32.mrb[0].mxu0
        %v1902 = vpop.f32.mrb[0].mxu0
        %v1903 = vpop.f32.mrb[0].mxu0
        %1904 = vdwg.mxu0
        %v1906 = vsel %vm1621, %v1851, 0
        %v1909 = vsel %vm1861, %v1855, 0
        %1911 = vmatprep.subr.bf16.mxu0 0
        %1912 = vmatpush1.bf16.msra.mxu0 %v1909
        %1913 = vmatprep.subr.bf16.mxu0 0
        %1914 = vmatpush1.bf16.msra.mxu0 0
        %1915 = vmatprep.subr.bf16.mxu0 0
        %1916 = vmatpush1.bf16.msra.mxu0 0
        %1917 = vmatprep.subr.bf16.mxu0 0
        %1918 = vmatpush1.bf16.msra.mxu0 0
        %1919 = vmatprep.subr.bf16.mxu0 0
        %1920 = vmatpush1.bf16.msra.mxu0 0
        %1921 = vmatprep.subr.bf16.mxu0 0
        %1922 = vmatpush1.bf16.msra.mxu0 0
        %1923 = vmatprep.subr.bf16.mxu0 0
        %1924 = vmatpush1.bf16.msra.mxu0 0
        %1925 = vmatprep.subr.bf16.mxu0 0
        %1926 = vmatpush1.bf16.msra.mxu0 0
        %1927 = vmatprep.subr.bf16.mxu0 0
        %1928 = vmatpush1.bf16.msra.mxu0 0
        %1929 = vmatprep.subr.bf16.mxu0 0
        %1930 = vmatpush1.bf16.msra.mxu0 0
        %1931 = vmatprep.subr.bf16.mxu0 0
        %1932 = vmatpush1.bf16.msra.mxu0 0
        %1933 = vmatprep.subr.bf16.mxu0 0
        %1934 = vmatpush1.bf16.msra.mxu0 0
        %1935 = vmatprep.subr.bf16.mxu0 0
        %1936 = vmatpush1.bf16.msra.mxu0 0
        %1937 = vmatprep.subr.bf16.mxu0 0
        %1938 = vmatpush1.bf16.msra.mxu0 0
        %1939 = vmatprep.subr.bf16.mxu0 0
        %1940 = vmatpush1.bf16.msra.mxu0 0
        %1941 = vmatprep.subr.bf16.mxu0 0
        %1942 = vmatpush1.bf16.msra.mxu0 0
        %1943 = vmatprep.mubr.bf16.mxu0 0
        %1944 = vmatmul.mubr.bf16.gmra.mrb[0].mxu0 %v1906
        %v1945 = vpop.f32.mrb[0].mxu0
        %v1946 = vadd.f32 0.0, %v1945
        %v1947 = vpop.f32.mrb[0].mxu0
        %v1948 = vpop.f32.mrb[0].mxu0
        %v1949 = vpop.f32.mrb[0].mxu0
        %1950 = vdwg.mxu0
        %v1952 = vsel %vm1621, %v1852, 0
        %v1955 = vsel %vm1861, %v1856, 0
        %1957 = vmatprep.subr.bf16.mxu0 0
        %1958 = vmatpush1.bf16.msra.mxu0 %v1955
        %1959 = vmatprep.subr.bf16.mxu0 0
        %1960 = vmatpush1.bf16.msra.mxu0 0
        %1961 = vmatprep.subr.bf16.mxu0 0
        %1962 = vmatpush1.bf16.msra.mxu0 0
        %1963 = vmatprep.subr.bf16.mxu0 0
        %1964 = vmatpush1.bf16.msra.mxu0 0
        %1965 = vmatprep.subr.bf16.mxu0 0
        %1966 = vmatpush1.bf16.msra.mxu0 0
        %1967 = vmatprep.subr.bf16.mxu0 0
        %1968 = vmatpush1.bf16.msra.mxu0 0
        %1969 = vmatprep.subr.bf16.mxu0 0
        %1970 = vmatpush1.bf16.msra.mxu0 0
        %1971 = vmatprep.subr.bf16.mxu0 0
        %1972 = vmatpush1.bf16.msra.mxu0 0
        %1973 = vmatprep.subr.bf16.mxu0 0
        %1974 = vmatpush1.bf16.msra.mxu0 0
        %1975 = vmatprep.subr.bf16.mxu0 0
        %1976 = vmatpush1.bf16.msra.mxu0 0
        %1977 = vmatprep.subr.bf16.mxu0 0
        %1978 = vmatpush1.bf16.msra.mxu0 0
        %1979 = vmatprep.subr.bf16.mxu0 0
        %1980 = vmatpush1.bf16.msra.mxu0 0
        %1981 = vmatprep.subr.bf16.mxu0 0
        %1982 = vmatpush1.bf16.msra.mxu0 0
        %1983 = vmatprep.subr.bf16.mxu0 0
        %1984 = vmatpush1.bf16.msra.mxu0 0
        %1985 = vmatprep.subr.bf16.mxu0 0
        %1986 = vmatpush1.bf16.msra.mxu0 0
        %1987 = vmatprep.subr.bf16.mxu0 0
        %1988 = vmatpush1.bf16.msra.mxu0 0
        %1989 = vmatprep.mubr.bf16.mxu0 0
        %1990 = vmatmul.mubr.bf16.gmra.mrb[0].mxu0 %v1952
        %v1991 = vpop.f32.mrb[0].mxu0
        %v1992 = vadd.f32 0.0, %v1991
        %v1993 = vpop.f32.mrb[0].mxu0
        %v1994 = vpop.f32.mrb[0].mxu0
        %v1995 = vpop.f32.mrb[0].mxu0
        %1996 = vdwg.mxu0
        %v1998 = vsel %vm1621, %v1853, 0
        %v2001 = vsel %vm1861, %v1857, 0
        %2003 = vmatprep.subr.bf16.mxu0 0
        %2004 = vmatpush1.bf16.msra.mxu0 %v2001
        %2005 = vmatprep.subr.bf16.mxu0 0
        %2006 = vmatpush1.bf16.msra.mxu0 0
        %2007 = vmatprep.subr.bf16.mxu0 0
        %2008 = vmatpush1.bf16.msra.mxu0 0
        %2009 = vmatprep.subr.bf16.mxu0 0
        %2010 = vmatpush1.bf16.msra.mxu0 0
        %2011 = vmatprep.subr.bf16.mxu0 0
        %2012 = vmatpush1.bf16.msra.mxu0 0
        %2013 = vmatprep.subr.bf16.mxu0 0
        %2014 = vmatpush1.bf16.msra.mxu0 0
        %2015 = vmatprep.subr.bf16.mxu0 0
        %2016 = vmatpush1.bf16.msra.mxu0 0
        %2017 = vmatprep.subr.bf16.mxu0 0
        %2018 = vmatpush1.bf16.msra.mxu0 0
        %2019 = vmatprep.subr.bf16.mxu0 0
        %2020 = vmatpush1.bf16.msra.mxu0 0
        %2021 = vmatprep.subr.bf16.mxu0 0
        %2022 = vmatpush1.bf16.msra.mxu0 0
        %2023 = vmatprep.subr.bf16.mxu0 0
        %2024 = vmatpush1.bf16.msra.mxu0 0
        %2025 = vmatprep.subr.bf16.mxu0 0
        %2026 = vmatpush1.bf16.msra.mxu0 0
        %2027 = vmatprep.subr.bf16.mxu0 0
        %2028 = vmatpush1.bf16.msra.mxu0 0
        %2029 = vmatprep.subr.bf16.mxu0 0
        %2030 = vmatpush1.bf16.msra.mxu0 0
        %2031 = vmatprep.subr.bf16.mxu0 0
        %2032 = vmatpush1.bf16.msra.mxu0 0
        %2033 = vmatprep.subr.bf16.mxu0 0
        %2034 = vmatpush1.bf16.msra.mxu0 0
        %2035 = vmatprep.mubr.bf16.mxu0 0
        %2036 = vmatmul.mubr.bf16.gmra.mrb[0].mxu0 %v1998
        %v2037 = vpop.f32.mrb[0].mxu0
        %v2038 = vadd.f32 0.0, %v2037
        %v2039 = vpop.f32.mrb[0].mxu0
        %v2040 = vpop.f32.mrb[0].mxu0
        %v2041 = vpop.f32.mrb[0].mxu0
        %2042 = vdwg.mxu0
        %2044 = vrot.lane.b32.xlu0 %v1946, 8
        %v2045 = vpop.permute.xlu0 %2044
        %2048 = vrot.lane.b32.xlu0 %v1992, 16
        %v2049 = vpop.permute.xlu0 %2048
        %2052 = vrot.lane.b32.xlu0 %v2038, 24
        %v2053 = vpop.permute.xlu0 %2052
        %v2055 = vsel %vm1621, %v1900, %v2045
        %vm2056 = vcmask 130048
        %v2057 = vsel %vm2056, %v2055, %v2049
        %vm2058 = vcmask 195584
        %v2059 = vsel %vm2058, %v2057, %v2053
        %v2060 = vpack.c.bf16 %v2059, %v2059
        %v2062 = vlaneseq
        %v2063 = vshrl.u32 %v2062, 7
        %v2064 = vsub.s32 0, %v2063
        %v2065 = vrot.slane %v1402, %v2064
        %v2071 = vunpack.c.l.b16 %v1398
        %v2072 = vunpack.c.l.b16 %v1399
        %v2073 = vunpack.c.l.b16 %v1400
        %v2074 = vunpack.c.l.b16 %v1401
        %v2075 = vpack.c.b16 %v2072, %v2071
        %v2076 = vpack.c.b16 %v2074, %v2073
        %v2080 = vsel %vm1440, %v2060, 0
        %2082 = vmatprep.subr.bf16.mxu0 0
        %2083 = vmatpush1.bf16.msra.mxu0 %v2075
        %2084 = vmatprep.subr.bf16.mxu0 0
        %2085 = vmatpush1.bf16.msra.mxu0 %v2076
        %2086 = vmatprep.subr.bf16.mxu0 0
        %2087 = vmatpush1.bf16.msra.mxu0 0
        %2088 = vmatprep.subr.bf16.mxu0 0
        %2089 = vmatpush1.bf16.msra.mxu0 0
        %2090 = vmatprep.subr.bf16.mxu0 0
        %2091 = vmatpush1.bf16.msra.mxu0 0
        %2092 = vmatprep.subr.bf16.mxu0 0
        %2093 = vmatpush1.bf16.msra.mxu0 0
        %2094 = vmatprep.subr.bf16.mxu0 0
        %2095 = vmatpush1.bf16.msra.mxu0 0
        %2096 = vmatprep.subr.bf16.mxu0 0
        %2097 = vmatpush1.bf16.msra.mxu0 0
        %2098 = vmatprep.subr.bf16.mxu0 0
        %2099 = vmatpush1.bf16.msra.mxu0 0
        %2100 = vmatprep.subr.bf16.mxu0 0
        %2101 = vmatpush1.bf16.msra.mxu0 0
        %2102 = vmatprep.subr.bf16.mxu0 0
        %2103 = vmatpush1.bf16.msra.mxu0 0
        %2104 = vmatprep.subr.bf16.mxu0 0
        %2105 = vmatpush1.bf16.msra.mxu0 0
        %2106 = vmatprep.subr.bf16.mxu0 0
        %2107 = vmatpush1.bf16.msra.mxu0 0
        %2108 = vmatprep.subr.bf16.mxu0 0
        %2109 = vmatpush1.bf16.msra.mxu0 0
        %2110 = vmatprep.subr.bf16.mxu0 0
        %2111 = vmatpush1.bf16.msra.mxu0 0
        %2112 = vmatprep.subr.bf16.mxu0 0
        %2113 = vmatpush1.bf16.msra.mxu0 0
        %2114 = vmatprep.mubr.bf16.mxu0 0
        %2115 = vmatmul.mubr.bf16.gmra.mrb[0].mxu0 %v2080
        %v2116 = vpop.f32.mrb[0].mxu0
        %v2117 = vadd.f32 %v2065, %v2116
        %v2118 = vpop.f32.mrb[0].mxu0
        %v2119 = vpop.f32.mrb[0].mxu0
        %v2120 = vpop.f32.mrb[0].mxu0
        %2121 = vdwg.mxu0
        %v2122 = vadd.f32 %v1392, %v2117
        %v2123 = vsel %vm1440, %v2122, 0.0
        %2124 = vadd.xlane.f32.xlu0 %v2123
        %v2125 = vpop.xlane.xlu0 %2124
        %v2126 = vrcp.pop 32.0
        %v2127 = vmul.f32 %v2125, %v2126
        %v2128 = vsub.f32 %v2122, %v2127
        %v2129 = vmul.f32 %v2128, %v2128
        %v2130 = vsel %vm1440, %v2129, 0.0
        %2131 = vadd.xlane.f32.xlu0 %v2130
        %v2132 = vpop.xlane.xlu0 %2131
        %v2133 = vmul.f32 %v2132, %v2126
        %v2134 = vadd.f32 %v2133, 1e-05
        %v2135 = vrsqrt.pop %v2134
        %v2136 = vmul.f32 %v2128, %v2135
        %v2138 = vlaneseq
        %v2139 = vshrl.u32 %v2138, 7
        %v2140 = vsub.s32 0, %v2139
        %v2141 = vrot.slane %v1417, %v2140
        %v2143 = vmul.f32 %v2136, %v2141
        %v2145 = vlaneseq
        %v2146 = vshrl.u32 %v2145, 7
        %v2147 = vsub.s32 0, %v2146
        %v2148 = vrot.slane %v1418, %v2147
        %v2150 = vadd.f32 %v2143, %v2148
        %v2151 = vpack.c.bf16 %v2150, %v2150
        %v2153 = vlaneseq
        %v2154 = vshrl.u32 %v2153, 7
        %v2155 = vsub.s32 0, %v2154
        %v2156 = vrot.slane %v1407, %v2155
        %v2162 = vunpack.c.l.b16 %v1403
        %v2163 = vunpack.c.l.b16 %v1404
        %v2164 = vunpack.c.l.b16 %v1405
        %v2165 = vunpack.c.l.b16 %v1406
        %v2166 = vpack.c.b16 %v2163, %v2162
        %v2167 = vpack.c.b16 %v2165, %v2164
        %v2171 = vsel %vm1440, %v2151, 0
        %2173 = vmatprep.subr.bf16.mxu0 0
        %2174 = vmatpush1.bf16.msra.mxu0 %v2166
        %2175 = vmatprep.subr.bf16.mxu0 0
        %2176 = vmatpush1.bf16.msra.mxu0 %v2167
        %2177 = vmatprep.subr.bf16.mxu0 0
        %2178 = vmatpush1.bf16.msra.mxu0 0
        %2179 = vmatprep.subr.bf16.mxu0 0
        %2180 = vmatpush1.bf16.msra.mxu0 0
        %2181 = vmatprep.subr.bf16.mxu0 0
        %2182 = vmatpush1.bf16.msra.mxu0 0
        %2183 = vmatprep.subr.bf16.mxu0 0
        %2184 = vmatpush1.bf16.msra.mxu0 0
        %2185 = vmatprep.subr.bf16.mxu0 0
        %2186 = vmatpush1.bf16.msra.mxu0 0
        %2187 = vmatprep.subr.bf16.mxu0 0
        %2188 = vmatpush1.bf16.msra.mxu0 0
        %2189 = vmatprep.subr.bf16.mxu0 0
        %2190 = vmatpush1.bf16.msra.mxu0 0
        %2191 = vmatprep.subr.bf16.mxu0 0
        %2192 = vmatpush1.bf16.msra.mxu0 0
        %2193 = vmatprep.subr.bf16.mxu0 0
        %2194 = vmatpush1.bf16.msra.mxu0 0
        %2195 = vmatprep.subr.bf16.mxu0 0
        %2196 = vmatpush1.bf16.msra.mxu0 0
        %2197 = vmatprep.subr.bf16.mxu0 0
        %2198 = vmatpush1.bf16.msra.mxu0 0
        %2199 = vmatprep.subr.bf16.mxu0 0
        %2200 = vmatpush1.bf16.msra.mxu0 0
        %2201 = vmatprep.subr.bf16.mxu0 0
        %2202 = vmatpush1.bf16.msra.mxu0 0
        %2203 = vmatprep.subr.bf16.mxu0 0
        %2204 = vmatpush1.bf16.msra.mxu0 0
        %2205 = vmatprep.mubr.bf16.mxu0 0
        %2206 = vmatmul.mubr.bf16.gmra.mrb[0].mxu0 %v2171
        %v2207 = vpop.f32.mrb[0].mxu0
        %v2208 = vadd.f32 %v2156, %v2207
        %v2209 = vpop.f32.mrb[0].mxu0
        %v2210 = vpop.f32.mrb[0].mxu0
        %v2211 = vpop.f32.mrb[0].mxu0
        %2212 = vdwg.mxu0
        %v2213 = vmax.f32 %v2208, 0.0
        %v2214 = vpack.c.bf16 %v2213, %v2213
        %v2223 = vunpack.c.l.b16 %v1408
        %v2224 = vunpack.c.l.b16 %v1409
        %v2225 = vunpack.c.l.b16 %v1410
        %v2226 = vunpack.c.l.b16 %v1411
        %v2227 = vunpack.c.l.b16 %v1412
        %v2228 = vunpack.c.l.b16 %v1413
        %v2229 = vunpack.c.l.b16 %v1414
        %v2230 = vunpack.c.l.b16 %v1415
        %v2231 = vpack.c.b16 %v2224, %v2223
        %v2232 = vpack.c.b16 %v2226, %v2225
        %v2233 = vpack.c.b16 %v2228, %v2227
        %v2234 = vpack.c.b16 %v2230, %v2229
        %vm2239 = vcmask 523264
        %v2241 = vsel %vm2239, %v2214, 0
        %2243 = vmatprep.subr.bf16.mxu0 0
        %2244 = vmatpush1.bf16.msra.mxu0 %v2231
        %2245 = vmatprep.subr.bf16.mxu0 0
        %2246 = vmatpush1.bf16.msra.mxu0 %v2232
        %2247 = vmatprep.subr.bf16.mxu0 0
        %2248 = vmatpush1.bf16.msra.mxu0 %v2233
        %2249 = vmatprep.subr.bf16.mxu0 0
        %2250 = vmatpush1.bf16.msra.mxu0 %v2234
        %2251 = vmatprep.subr.bf16.mxu0 0
        %2252 = vmatpush1.bf16.msra.mxu0 0
        %2253 = vmatprep.subr.bf16.mxu0 0
        %2254 = vmatpush1.bf16.msra.mxu0 0
        %2255 = vmatprep.subr.bf16.mxu0 0
        %2256 = vmatpush1.bf16.msra.mxu0 0
        %2257 = vmatprep.subr.bf16.mxu0 0
        %2258 = vmatpush1.bf16.msra.mxu0 0
        %2259 = vmatprep.subr.bf16.mxu0 0
        %2260 = vmatpush1.bf16.msra.mxu0 0
        %2261 = vmatprep.subr.bf16.mxu0 0
        %2262 = vmatpush1.bf16.msra.mxu0 0
        %2263 = vmatprep.subr.bf16.mxu0 0
        %2264 = vmatpush1.bf16.msra.mxu0 0
        %2265 = vmatprep.subr.bf16.mxu0 0
        %2266 = vmatpush1.bf16.msra.mxu0 0
        %2267 = vmatprep.subr.bf16.mxu0 0
        %2268 = vmatpush1.bf16.msra.mxu0 0
        %2269 = vmatprep.subr.bf16.mxu0 0
        %2270 = vmatpush1.bf16.msra.mxu0 0
        %2271 = vmatprep.subr.bf16.mxu0 0
        %2272 = vmatpush1.bf16.msra.mxu0 0
        %2273 = vmatprep.subr.bf16.mxu0 0
        %2274 = vmatpush1.bf16.msra.mxu0 0
        %2275 = vmatprep.mubr.bf16.mxu0 0
        %2276 = vmatmul.mubr.bf16.gmra.mrb[0].mxu0 %v2241
        %v2277 = vpop.f32.mrb[0].mxu0
        %v2278 = vadd.f32 0.0, %v2277
        %v2279 = vpop.f32.mrb[0].mxu0
        %v2280 = vpop.f32.mrb[0].mxu0
        %v2281 = vpop.f32.mrb[0].mxu0
        %2282 = vdwg.mxu0
        %v2283 = vadd.f32 %v2150, %v2278
        %v2285 = vlaneseq
        %v2286 = vshrl.u32 %v2285, 7
        %v2287 = vsub.s32 0, %v2286
        %v2288 = vrot.slane %v1416, %v2287
        %v2290 = vadd.f32 %v2283, %v2288
        %v2291 = vsel %vm1440, %v2290, 0.0
        %2292 = vadd.xlane.f32.xlu0 %v2291
        %v2293 = vpop.xlane.xlu0 %2292
        %v2294 = vmul.f32 %v2293, %v2126
        %v2295 = vsub.f32 %v2290, %v2294
        %v2296 = vmul.f32 %v2295, %v2295
        %v2297 = vsel %vm1440, %v2296, 0.0
        %2298 = vadd.xlane.f32.xlu0 %v2297
        %v2299 = vpop.xlane.xlu0 %2298
        %v2300 = vmul.f32 %v2299, %v2126
        %v2301 = vadd.f32 %v2300, 1e-05
        %v2302 = vrsqrt.pop %v2301
        %v2303 = vmul.f32 %v2295, %v2302
        %v2305 = vlaneseq
        %v2306 = vshrl.u32 %v2305, 7
        %v2307 = vsub.s32 0, %v2306
        %v2308 = vrot.slane %v1419, %v2307
        %v2310 = vmul.f32 %v2303, %v2308
        %v2312 = vlaneseq
        %v2313 = vshrl.u32 %v2312, 7
        %v2314 = vsub.s32 0, %v2313
        %v2315 = vrot.slane %v1420, %v2314
        %v2317 = vadd.f32 %v2310, %v2315
        %s2318 = scalar_lea.vmem %s5, 16
        %v2319 = vld [vmem:[%s2318] sm:$0xf]
        %v2320 = vld [vmem:[%s2318 + $0x4] sm:$0xf]
        %v2321 = vld [vmem:[%s2318 + $0x8] sm:$0xf]
        %v2322 = vld [vmem:[%s2318 + $0xc] sm:$0xf]
        %s2323 = scalar_lea.vmem [#allocation7], 1
        %v2324 = vld [vmem:[%s2323] sm:$0x1]
        %s2325 = scalar_lea.vmem %s9, 16
        %v2326 = vld [vmem:[%s2325] sm:$0xf]
        %v2327 = vld [vmem:[%s2325 + $0x4] sm:$0xf]
        %v2328 = vld [vmem:[%s2325 + $0x8] sm:$0xf]
        %v2329 = vld [vmem:[%s2325 + $0xc] sm:$0xf]
        %s2330 = scalar_lea.vmem [#allocation8], 1
        %v2331 = vld [vmem:[%s2330] sm:$0x1]
        %s2332 = scalar_lea.vmem %s13, 16
        %v2333 = vld [vmem:[%s2332] sm:$0xf]
        %v2334 = vld [vmem:[%s2332 + $0x4] sm:$0xf]
        %v2335 = vld [vmem:[%s2332 + $0x8] sm:$0xf]
        %v2336 = vld [vmem:[%s2332 + $0xc] sm:$0xf]
        %s2337 = scalar_lea.vmem [#allocation10], 1
        %v2338 = vld [vmem:[%s2337] sm:$0x1]
        %s2339 = scalar_lea.vmem %s17, 32
        %v2340 = vld [vmem:[%s2339] sm:$0xf]
        %v2341 = vld [vmem:[%s2339 + $0x4] sm:$0xf]
        %v2342 = vld [vmem:[%s2339 + $0x8] sm:$0xf]
        %v2343 = vld [vmem:[%s2339 + $0xc] sm:$0xf]
        %v2344 = vld [vmem:[%s2339 + $0x10] sm:$0xf]
        %v2345 = vld [vmem:[%s2339 + $0x14] sm:$0xf]
        %v2346 = vld [vmem:[%s2339 + $0x18] sm:$0xf]
        %v2347 = vld [vmem:[%s2339 + $0x1c] sm:$0xf]
        %s2348 = scalar_lea.vmem [#allocation11], 1
        %v2349 = vld [vmem:[%s2348] sm:$0x1]
        %s2350 = scalar_lea.vmem [#allocation13], 1
        %v2351 = vld [vmem:[%s2350] sm:$0x1]
        %s2352 = scalar_lea.vmem [#allocation14], 1
        %v2353 = vld [vmem:[%s2352] sm:$0x1]
        %s2354 = scalar_lea.vmem [#allocation16], 1
        %v2355 = vld [vmem:[%s2354] sm:$0x1]
        %s2356 = scalar_lea.vmem [#allocation17], 1
        %v2357 = vld [vmem:[%s2356] sm:$0x1]
        %v2358 = vpack.c.bf16 %v2317, %v2317
        %v2360 = vlaneseq
        %v2361 = vshrl.u32 %v2360, 7
        %v2362 = vsub.s32 0, %v2361
        %v2363 = vrot.slane %v2324, %v2362
        %v2369 = vunpack.c.l.b16 %v2319
        %v2370 = vunpack.c.l.b16 %v2320
        %v2371 = vunpack.c.l.b16 %v2321
        %v2372 = vunpack.c.l.b16 %v2322
        %v2373 = vpack.c.b16 %v2370, %v2369
        %v2374 = vpack.c.b16 %v2372, %v2371
        %v2378 = vsel %vm1440, %v2358, 0
        %2380 = vmatprep.subr.bf16.mxu0 0
        %2381 = vmatpush1.bf16.msra.mxu0 %v2373
        %2382 = vmatprep.subr.bf16.mxu0 0
        %2383 = vmatpush1.bf16.msra.mxu0 %v2374
        %2384 = vmatprep.subr.bf16.mxu0 0
        %2385 = vmatpush1.bf16.msra.mxu0 0
        %2386 = vmatprep.subr.bf16.mxu0 0
        %2387 = vmatpush1.bf16.msra.mxu0 0
        %2388 = vmatprep.subr.bf16.mxu0 0
        %2389 = vmatpush1.bf16.msra.mxu0 0
        %2390 = vmatprep.subr.bf16.mxu0 0
        %2391 = vmatpush1.bf16.msra.mxu0 0
        %2392 = vmatprep.subr.bf16.mxu0 0
        %2393 = vmatpush1.bf16.msra.mxu0 0
        %2394 = vmatprep.subr.bf16.mxu0 0
        %2395 = vmatpush1.bf16.msra.mxu0 0
        %2396 = vmatprep.subr.bf16.mxu0 0
        %2397 = vmatpush1.bf16.msra.mxu0 0
        %2398 = vmatprep.subr.bf16.mxu0 0
        %2399 = vmatpush1.bf16.msra.mxu0 0
        %2400 = vmatprep.subr.bf16.mxu0 0
        %2401 = vmatpush1.bf16.msra.mxu0 0
        %2402 = vmatprep.subr.bf16.mxu0 0
        %2403 = vmatpush1.bf16.msra.mxu0 0
        %2404 = vmatprep.subr.bf16.mxu0 0
        %2405 = vmatpush1.bf16.msra.mxu0 0
        %2406 = vmatprep.subr.bf16.mxu0 0
        %2407 = vmatpush1.bf16.msra.mxu0 0
        %2408 = vmatprep.subr.bf16.mxu0 0
        %2409 = vmatpush1.bf16.msra.mxu0 0
        %2410 = vmatprep.subr.bf16.mxu0 0
        %2411 = vmatpush1.bf16.msra.mxu0 0
        %2412 = vmatprep.mubr.bf16.mxu0 0
        %2413 = vmatmul.mubr.bf16.gmra.mrb[0].mxu0 %v2378
        %v2414 = vpop.f32.mrb[0].mxu0
        %v2415 = vadd.f32 %v2363, %v2414
        %v2416 = vpop.f32.mrb[0].mxu0
        %v2417 = vpop.f32.mrb[0].mxu0
        %v2418 = vpop.f32.mrb[0].mxu0
        %2419 = vdwg.mxu0
        %2420 = vrot.lane.b32.xlu0 %v2373, 96
        %v2421 = vpop.permute.xlu0 %2420
        %2422 = vrot.lane.b32.xlu0 %v2374, 96
        %v2423 = vpop.permute.xlu0 %2422
        %2426 = vrot.lane.b32.xlu0 %v2363, 96
        %v2427 = vpop.permute.xlu0 %2426
        %2429 = vmatprep.subr.bf16.mxu0 0
        %2430 = vmatpush1.bf16.msra.mxu0 %v2421
        %2431 = vmatprep.subr.bf16.mxu0 0
        %2432 = vmatpush1.bf16.msra.mxu0 %v2423
        %2433 = vmatprep.subr.bf16.mxu0 0
        %2434 = vmatpush1.bf16.msra.mxu0 0
        %2435 = vmatprep.subr.bf16.mxu0 0
        %2436 = vmatpush1.bf16.msra.mxu0 0
        %2437 = vmatprep.subr.bf16.mxu0 0
        %2438 = vmatpush1.bf16.msra.mxu0 0
        %2439 = vmatprep.subr.bf16.mxu0 0
        %2440 = vmatpush1.bf16.msra.mxu0 0
        %2441 = vmatprep.subr.bf16.mxu0 0
        %2442 = vmatpush1.bf16.msra.mxu0 0
        %2443 = vmatprep.subr.bf16.mxu0 0
        %2444 = vmatpush1.bf16.msra.mxu0 0
        %2445 = vmatprep.subr.bf16.mxu0 0
        %2446 = vmatpush1.bf16.msra.mxu0 0
        %2447 = vmatprep.subr.bf16.mxu0 0
        %2448 = vmatpush1.bf16.msra.mxu0 0
        %2449 = vmatprep.subr.bf16.mxu0 0
        %2450 = vmatpush1.bf16.msra.mxu0 0
        %2451 = vmatprep.subr.bf16.mxu0 0
        %2452 = vmatpush1.bf16.msra.mxu0 0
        %2453 = vmatprep.subr.bf16.mxu0 0
        %2454 = vmatpush1.bf16.msra.mxu0 0
        %2455 = vmatprep.subr.bf16.mxu0 0
        %2456 = vmatpush1.bf16.msra.mxu0 0
        %2457 = vmatprep.subr.bf16.mxu0 0
        %2458 = vmatpush1.bf16.msra.mxu0 0
        %2459 = vmatprep.subr.bf16.mxu0 0
        %2460 = vmatpush1.bf16.msra.mxu0 0
        %2461 = vmatprep.mubr.bf16.mxu0 0
        %2462 = vmatmul.mubr.bf16.gmra.mrb[0].mxu0 %v2378
        %v2463 = vpop.f32.mrb[0].mxu0
        %v2464 = vadd.f32 %v2427, %v2463
        %v2465 = vpop.f32.mrb[0].mxu0
        %v2466 = vpop.f32.mrb[0].mxu0
        %v2467 = vpop.f32.mrb[0].mxu0
        %2468 = vdwg.mxu0
        %2469 = vrot.lane.b32.xlu0 %v2373, 64
        %v2470 = vpop.permute.xlu0 %2469
        %2471 = vrot.lane.b32.xlu0 %v2374, 64
        %v2472 = vpop.permute.xlu0 %2471
        %2475 = vrot.lane.b32.xlu0 %v2363, 64
        %v2476 = vpop.permute.xlu0 %2475
        %2478 = vmatprep.subr.bf16.mxu0 0
        %2479 = vmatpush1.bf16.msra.mxu0 %v2470
        %2480 = vmatprep.subr.bf16.mxu0 0
        %2481 = vmatpush1.bf16.msra.mxu0 %v2472
        %2482 = vmatprep.subr.bf16.mxu0 0
        %2483 = vmatpush1.bf16.msra.mxu0 0
        %2484 = vmatprep.subr.bf16.mxu0 0
        %2485 = vmatpush1.bf16.msra.mxu0 0
        %2486 = vmatprep.subr.bf16.mxu0 0
        %2487 = vmatpush1.bf16.msra.mxu0 0
        %2488 = vmatprep.subr.bf16.mxu0 0
        %2489 = vmatpush1.bf16.msra.mxu0 0
        %2490 = vmatprep.subr.bf16.mxu0 0
        %2491 = vmatpush1.bf16.msra.mxu0 0
        %2492 = vmatprep.subr.bf16.mxu0 0
        %2493 = vmatpush1.bf16.msra.mxu0 0
        %2494 = vmatprep.subr.bf16.mxu0 0
        %2495 = vmatpush1.bf16.msra.mxu0 0
        %2496 = vmatprep.subr.bf16.mxu0 0
        %2497 = vmatpush1.bf16.msra.mxu0 0
        %2498 = vmatprep.subr.bf16.mxu0 0
        %2499 = vmatpush1.bf16.msra.mxu0 0
        %2500 = vmatprep.subr.bf16.mxu0 0
        %2501 = vmatpush1.bf16.msra.mxu0 0
        %2502 = vmatprep.subr.bf16.mxu0 0
        %2503 = vmatpush1.bf16.msra.mxu0 0
        %2504 = vmatprep.subr.bf16.mxu0 0
        %2505 = vmatpush1.bf16.msra.mxu0 0
        %2506 = vmatprep.subr.bf16.mxu0 0
        %2507 = vmatpush1.bf16.msra.mxu0 0
        %2508 = vmatprep.subr.bf16.mxu0 0
        %2509 = vmatpush1.bf16.msra.mxu0 0
        %2510 = vmatprep.mubr.bf16.mxu0 0
        %2511 = vmatmul.mubr.bf16.gmra.mrb[0].mxu0 %v2378
        %v2512 = vpop.f32.mrb[0].mxu0
        %v2513 = vadd.f32 %v2476, %v2512
        %v2514 = vpop.f32.mrb[0].mxu0
        %v2515 = vpop.f32.mrb[0].mxu0
        %v2516 = vpop.f32.mrb[0].mxu0
        %2517 = vdwg.mxu0
        %v2518 = vmul.f32 %v2415, 0.35355338
        %2520 = vrot.lane.b32.xlu0 %v2518, 120
        %v2521 = vpop.permute.xlu0 %2520
        %2523 = vrot.lane.b32.xlu0 %v2518, 112
        %v2524 = vpop.permute.xlu0 %2523
        %2526 = vrot.lane.b32.xlu0 %v2518, 104
        %v2527 = vpop.permute.xlu0 %2526
        %2530 = vrot.lane.b32.xlu0 %v2464, 120
        %v2531 = vpop.permute.xlu0 %2530
        %2533 = vrot.lane.b32.xlu0 %v2464, 112
        %v2534 = vpop.permute.xlu0 %2533
        %2536 = vrot.lane.b32.xlu0 %v2464, 104
        %v2537 = vpop.permute.xlu0 %2536
        %2540 = vrot.lane.b32.xlu0 %v2513, 120
        %v2541 = vpop.permute.xlu0 %2540
        %2543 = vrot.lane.b32.xlu0 %v2513, 112
        %v2544 = vpop.permute.xlu0 %2543
        %2546 = vrot.lane.b32.xlu0 %v2513, 104
        %v2547 = vpop.permute.xlu0 %2546
        %v2549 = vpack.c.bf16 %v2518, %v2518
        %v2550 = vpack.c.bf16 %v2521, %v2521
        %v2551 = vpack.c.bf16 %v2524, %v2524
        %v2552 = vpack.c.bf16 %v2527, %v2527
        %v2553 = vpack.c.bf16 %v2464, %v2464
        %v2554 = vpack.c.bf16 %v2531, %v2531
        %v2555 = vpack.c.bf16 %v2534, %v2534
        %v2556 = vpack.c.bf16 %v2537, %v2537
        %v2558 = vsel %vm1621, %v2549, 0
        %v2561 = vsel %vm1621, %v2553, 0
        %2563 = vmatprep.subr.bf16.mxu0 0
        %2564 = vmatpush1.bf16.xpose.msra.mxu0 %v2561
        %2565 = vmatprep.subr.bf16.mxu0 0
        %2566 = vmatpush1.bf16.xpose.msra.mxu0 0
        %2567 = vmatprep.subr.bf16.mxu0 0
        %2568 = vmatpush1.bf16.xpose.msra.mxu0 0
        %2569 = vmatprep.subr.bf16.mxu0 0
        %2570 = vmatpush1.bf16.xpose.msra.mxu0 0
        %2571 = vmatprep.subr.bf16.mxu0 0
        %2572 = vmatpush1.bf16.xpose.msra.mxu0 0
        %2573 = vmatprep.subr.bf16.mxu0 0
        %2574 = vmatpush1.bf16.xpose.msra.mxu0 0
        %2575 = vmatprep.subr.bf16.mxu0 0
        %2576 = vmatpush1.bf16.xpose.msra.mxu0 0
        %2577 = vmatprep.subr.bf16.mxu0 0
        %2578 = vmatpush1.bf16.xpose.msra.mxu0 0
        %2579 = vmatprep.subr.bf16.mxu0 0
        %2580 = vmatpush1.bf16.xpose.msra.mxu0 0
        %2581 = vmatprep.subr.bf16.mxu0 0
        %2582 = vmatpush1.bf16.xpose.msra.mxu0 0
        %2583 = vmatprep.subr.bf16.mxu0 0
        %2584 = vmatpush1.bf16.xpose.msra.mxu0 0
        %2585 = vmatprep.subr.bf16.mxu0 0
        %2586 = vmatpush1.bf16.xpose.msra.mxu0 0
        %2587 = vmatprep.subr.bf16.mxu0 0
        %2588 = vmatpush1.bf16.xpose.msra.mxu0 0
        %2589 = vmatprep.subr.bf16.mxu0 0
        %2590 = vmatpush1.bf16.xpose.msra.mxu0 0
        %2591 = vmatprep.subr.bf16.mxu0 0
        %2592 = vmatpush1.bf16.xpose.msra.mxu0 0
        %2593 = vmatprep.subr.bf16.mxu0 0
        %2594 = vmatpush1.bf16.xpose.msra.mxu0 0
        %2595 = vmatprep.mubr.bf16.mxu0 0
        %2596 = vmatmul.mubr.bf16.gmra.mrb[0].mxu0 %v2558
        %v2597 = vpop.f32.mrb[0].mxu0
        %v2598 = vadd.f32 0.0, %v2597
        %v2599 = vpop.f32.mrb[0].mxu0
        %v2600 = vpop.f32.mrb[0].mxu0
        %v2601 = vpop.f32.mrb[0].mxu0
        %2602 = vdwg.mxu0
        %v2604 = vsel %vm1621, %v2550, 0
        %v2607 = vsel %vm1621, %v2554, 0
        %2609 = vmatprep.subr.bf16.mxu0 0
        %2610 = vmatpush1.bf16.xpose.msra.mxu0 %v2607
        %2611 = vmatprep.subr.bf16.mxu0 0
        %2612 = vmatpush1.bf16.xpose.msra.mxu0 0
        %2613 = vmatprep.subr.bf16.mxu0 0
        %2614 = vmatpush1.bf16.xpose.msra.mxu0 0
        %2615 = vmatprep.subr.bf16.mxu0 0
        %2616 = vmatpush1.bf16.xpose.msra.mxu0 0
        %2617 = vmatprep.subr.bf16.mxu0 0
        %2618 = vmatpush1.bf16.xpose.msra.mxu0 0
        %2619 = vmatprep.subr.bf16.mxu0 0
        %2620 = vmatpush1.bf16.xpose.msra.mxu0 0
        %2621 = vmatprep.subr.bf16.mxu0 0
        %2622 = vmatpush1.bf16.xpose.msra.mxu0 0
        %2623 = vmatprep.subr.bf16.mxu0 0
        %2624 = vmatpush1.bf16.xpose.msra.mxu0 0
        %2625 = vmatprep.subr.bf16.mxu0 0
        %2626 = vmatpush1.bf16.xpose.msra.mxu0 0
        %2627 = vmatprep.subr.bf16.mxu0 0
        %2628 = vmatpush1.bf16.xpose.msra.mxu0 0
        %2629 = vmatprep.subr.bf16.mxu0 0
        %2630 = vmatpush1.bf16.xpose.msra.mxu0 0
        %2631 = vmatprep.subr.bf16.mxu0 0
        %2632 = vmatpush1.bf16.xpose.msra.mxu0 0
        %2633 = vmatprep.subr.bf16.mxu0 0
        %2634 = vmatpush1.bf16.xpose.msra.mxu0 0
        %2635 = vmatprep.subr.bf16.mxu0 0
        %2636 = vmatpush1.bf16.xpose.msra.mxu0 0
        %2637 = vmatprep.subr.bf16.mxu0 0
        %2638 = vmatpush1.bf16.xpose.msra.mxu0 0
        %2639 = vmatprep.subr.bf16.mxu0 0
        %2640 = vmatpush1.bf16.xpose.msra.mxu0 0
        %2641 = vmatprep.mubr.bf16.mxu0 0
        %2642 = vmatmul.mubr.bf16.gmra.mrb[0].mxu0 %v2604
        %v2643 = vpop.f32.mrb[0].mxu0
        %v2644 = vadd.f32 0.0, %v2643
        %v2645 = vpop.f32.mrb[0].mxu0
        %v2646 = vpop.f32.mrb[0].mxu0
        %v2647 = vpop.f32.mrb[0].mxu0
        %2648 = vdwg.mxu0
        %v2650 = vsel %vm1621, %v2551, 0
        %v2653 = vsel %vm1621, %v2555, 0
        %2655 = vmatprep.subr.bf16.mxu0 0
        %2656 = vmatpush1.bf16.xpose.msra.mxu0 %v2653
        %2657 = vmatprep.subr.bf16.mxu0 0
        %2658 = vmatpush1.bf16.xpose.msra.mxu0 0
        %2659 = vmatprep.subr.bf16.mxu0 0
        %2660 = vmatpush1.bf16.xpose.msra.mxu0 0
        %2661 = vmatprep.subr.bf16.mxu0 0
        %2662 = vmatpush1.bf16.xpose.msra.mxu0 0
        %2663 = vmatprep.subr.bf16.mxu0 0
        %2664 = vmatpush1.bf16.xpose.msra.mxu0 0
        %2665 = vmatprep.subr.bf16.mxu0 0
        %2666 = vmatpush1.bf16.xpose.msra.mxu0 0
        %2667 = vmatprep.subr.bf16.mxu0 0
        %2668 = vmatpush1.bf16.xpose.msra.mxu0 0
        %2669 = vmatprep.subr.bf16.mxu0 0
        %2670 = vmatpush1.bf16.xpose.msra.mxu0 0
        %2671 = vmatprep.subr.bf16.mxu0 0
        %2672 = vmatpush1.bf16.xpose.msra.mxu0 0
        %2673 = vmatprep.subr.bf16.mxu0 0
        %2674 = vmatpush1.bf16.xpose.msra.mxu0 0
        %2675 = vmatprep.subr.bf16.mxu0 0
        %2676 = vmatpush1.bf16.xpose.msra.mxu0 0
        %2677 = vmatprep.subr.bf16.mxu0 0
        %2678 = vmatpush1.bf16.xpose.msra.mxu0 0
        %2679 = vmatprep.subr.bf16.mxu0 0
        %2680 = vmatpush1.bf16.xpose.msra.mxu0 0
        %2681 = vmatprep.subr.bf16.mxu0 0
        %2682 = vmatpush1.bf16.xpose.msra.mxu0 0
        %2683 = vmatprep.subr.bf16.mxu0 0
        %2684 = vmatpush1.bf16.xpose.msra.mxu0 0
        %2685 = vmatprep.subr.bf16.mxu0 0
        %2686 = vmatpush1.bf16.xpose.msra.mxu0 0
        %2687 = vmatprep.mubr.bf16.mxu0 0
        %2688 = vmatmul.mubr.bf16.gmra.mrb[0].mxu0 %v2650
        %v2689 = vpop.f32.mrb[0].mxu0
        %v2690 = vadd.f32 0.0, %v2689
        %v2691 = vpop.f32.mrb[0].mxu0
        %v2692 = vpop.f32.mrb[0].mxu0
        %v2693 = vpop.f32.mrb[0].mxu0
        %2694 = vdwg.mxu0
        %v2696 = vsel %vm1621, %v2552, 0
        %v2699 = vsel %vm1621, %v2556, 0
        %2701 = vmatprep.subr.bf16.mxu0 0
        %2702 = vmatpush1.bf16.xpose.msra.mxu0 %v2699
        %2703 = vmatprep.subr.bf16.mxu0 0
        %2704 = vmatpush1.bf16.xpose.msra.mxu0 0
        %2705 = vmatprep.subr.bf16.mxu0 0
        %2706 = vmatpush1.bf16.xpose.msra.mxu0 0
        %2707 = vmatprep.subr.bf16.mxu0 0
        %2708 = vmatpush1.bf16.xpose.msra.mxu0 0
        %2709 = vmatprep.subr.bf16.mxu0 0
        %2710 = vmatpush1.bf16.xpose.msra.mxu0 0
        %2711 = vmatprep.subr.bf16.mxu0 0
        %2712 = vmatpush1.bf16.xpose.msra.mxu0 0
        %2713 = vmatprep.subr.bf16.mxu0 0
        %2714 = vmatpush1.bf16.xpose.msra.mxu0 0
        %2715 = vmatprep.subr.bf16.mxu0 0
        %2716 = vmatpush1.bf16.xpose.msra.mxu0 0
        %2717 = vmatprep.subr.bf16.mxu0 0
        %2718 = vmatpush1.bf16.xpose.msra.mxu0 0
        %2719 = vmatprep.subr.bf16.mxu0 0
        %2720 = vmatpush1.bf16.xpose.msra.mxu0 0
        %2721 = vmatprep.subr.bf16.mxu0 0
        %2722 = vmatpush1.bf16.xpose.msra.mxu0 0
        %2723 = vmatprep.subr.bf16.mxu0 0
        %2724 = vmatpush1.bf16.xpose.msra.mxu0 0
        %2725 = vmatprep.subr.bf16.mxu0 0
        %2726 = vmatpush1.bf16.xpose.msra.mxu0 0
        %2727 = vmatprep.subr.bf16.mxu0 0
        %2728 = vmatpush1.bf16.xpose.msra.mxu0 0
        %2729 = vmatprep.subr.bf16.mxu0 0
        %2730 = vmatpush1.bf16.xpose.msra.mxu0 0
        %2731 = vmatprep.subr.bf16.mxu0 0
        %2732 = vmatpush1.bf16.xpose.msra.mxu0 0
        %2733 = vmatprep.mubr.bf16.mxu0 0
        %2734 = vmatmul.mubr.bf16.gmra.mrb[0].mxu0 %v2696
        %v2735 = vpop.f32.mrb[0].mxu0
        %v2736 = vadd.f32 0.0, %v2735
        %v2737 = vpop.f32.mrb[0].mxu0
        %v2738 = vpop.f32.mrb[0].mxu0
        %v2739 = vpop.f32.mrb[0].mxu0
        %2740 = vdwg.mxu0
        %v2741 = vsel %vm1621, %v2598, -inf
        %2742 = vmax.xlane.f32.xlu0 %v2741
        %v2743 = vpop.xlane.xlu0 %2742
        %v2744 = vsel %vm1621, %v2644, -inf
        %2745 = vmax.xlane.f32.xlu0 %v2744
        %v2746 = vpop.xlane.xlu0 %2745
        %v2747 = vsel %vm1621, %v2690, -inf
        %2748 = vmax.xlane.f32.xlu0 %v2747
        %v2749 = vpop.xlane.xlu0 %2748
        %v2750 = vsel %vm1621, %v2736, -inf
        %2751 = vmax.xlane.f32.xlu0 %v2750
        %v2752 = vpop.xlane.xlu0 %2751
        %v2753 = vsub.f32 %v2598, %v2743
        %v2754 = vsub.f32 %v2644, %v2746
        %v2755 = vsub.f32 %v2690, %v2749
        %v2756 = vsub.f32 %v2736, %v2752
        %v2757 = vmul.f32 %v2753, 1.442695
        %v2758 = vpow.pop %v2757
        %v2759 = vmul.f32 %v2754, 1.442695
        %v2760 = vpow.pop %v2759
        %v2761 = vmul.f32 %v2755, 1.442695
        %v2762 = vpow.pop %v2761
        %v2763 = vmul.f32 %v2756, 1.442695
        %v2764 = vpow.pop %v2763
        %v2765 = vsel %vm1621, %v2758, 0.0
        %2766 = vadd.xlane.f32.xlu0 %v2765
        %v2767 = vpop.xlane.xlu0 %2766
        %v2768 = vsel %vm1621, %v2760, 0.0
        %2769 = vadd.xlane.f32.xlu0 %v2768
        %v2770 = vpop.xlane.xlu0 %2769
        %v2771 = vsel %vm1621, %v2762, 0.0
        %2772 = vadd.xlane.f32.xlu0 %v2771
        %v2773 = vpop.xlane.xlu0 %2772
        %v2774 = vsel %vm1621, %v2764, 0.0
        %2775 = vadd.xlane.f32.xlu0 %v2774
        %v2776 = vpop.xlane.xlu0 %2775
        %v2777 = vrcp.pop %v2767
        %v2778 = vrcp.pop %v2770
        %v2779 = vrcp.pop %v2773
        %v2780 = vrcp.pop %v2776
        %v2781 = vmul.f32 %v2758, %v2777
        %v2782 = vmul.f32 %v2760, %v2778
        %v2783 = vmul.f32 %v2762, %v2779
        %v2784 = vmul.f32 %v2764, %v2780
        %v2785 = vpack.c.bf16 %v2781, %v2781
        %v2786 = vpack.c.bf16 %v2782, %v2782
        %v2787 = vpack.c.bf16 %v2783, %v2783
        %v2788 = vpack.c.bf16 %v2784, %v2784
        %v2789 = vpack.c.bf16 %v2513, %v2513
        %v2790 = vpack.c.bf16 %v2541, %v2541
        %v2791 = vpack.c.bf16 %v2544, %v2544
        %v2792 = vpack.c.bf16 %v2547, %v2547
        %v2794 = vsel %vm1621, %v2785, 0
        %v2797 = vsel %vm1861, %v2789, 0
        %2799 = vmatprep.subr.bf16.mxu0 0
        %2800 = vmatpush1.bf16.msra.mxu0 %v2797
        %2801 = vmatprep.subr.bf16.mxu0 0
        %2802 = vmatpush1.bf16.msra.mxu0 0
        %2803 = vmatprep.subr.bf16.mxu0 0
        %2804 = vmatpush1.bf16.msra.mxu0 0
        %2805 = vmatprep.subr.bf16.mxu0 0
        %2806 = vmatpush1.bf16.msra.mxu0 0
        %2807 = vmatprep.subr.bf16.mxu0 0
        %2808 = vmatpush1.bf16.msra.mxu0 0
        %2809 = vmatprep.subr.bf16.mxu0 0
        %2810 = vmatpush1.bf16.msra.mxu0 0
        %2811 = vmatprep.subr.bf16.mxu0 0
        %2812 = vmatpush1.bf16.msra.mxu0 0
        %2813 = vmatprep.subr.bf16.mxu0 0
        %2814 = vmatpush1.bf16.msra.mxu0 0
        %2815 = vmatprep.subr.bf16.mxu0 0
        %2816 = vmatpush1.bf16.msra.mxu0 0
        %2817 = vmatprep.subr.bf16.mxu0 0
        %2818 = vmatpush1.bf16.msra.mxu0 0
        %2819 = vmatprep.subr.bf16.mxu0 0
        %2820 = vmatpush1.bf16.msra.mxu0 0
        %2821 = vmatprep.subr.bf16.mxu0 0
        %2822 = vmatpush1.bf16.msra.mxu0 0
        %2823 = vmatprep.subr.bf16.mxu0 0
        %2824 = vmatpush1.bf16.msra.mxu0 0
        %2825 = vmatprep.subr.bf16.mxu0 0
        %2826 = vmatpush1.bf16.msra.mxu0 0
        %2827 = vmatprep.subr.bf16.mxu0 0
        %2828 = vmatpush1.bf16.msra.mxu0 0
        %2829 = vmatprep.subr.bf16.mxu0 0
        %2830 = vmatpush1.bf16.msra.mxu0 0
        %2831 = vmatprep.mubr.bf16.mxu0 0
        %2832 = vmatmul.mubr.bf16.gmra.mrb[0].mxu0 %v2794
        %v2833 = vpop.f32.mrb[0].mxu0
        %v2834 = vadd.f32 0.0, %v2833
        %v2835 = vpop.f32.mrb[0].mxu0
        %v2836 = vpop.f32.mrb[0].mxu0
        %v2837 = vpop.f32.mrb[0].mxu0
        %2838 = vdwg.mxu0
        %v2840 = vsel %vm1621, %v2786, 0
        %v2843 = vsel %vm1861, %v2790, 0
        %2845 = vmatprep.subr.bf16.mxu0 0
        %2846 = vmatpush1.bf16.msra.mxu0 %v2843
        %2847 = vmatprep.subr.bf16.mxu0 0
        %2848 = vmatpush1.bf16.msra.mxu0 0
        %2849 = vmatprep.subr.bf16.mxu0 0
        %2850 = vmatpush1.bf16.msra.mxu0 0
        %2851 = vmatprep.subr.bf16.mxu0 0
        %2852 = vmatpush1.bf16.msra.mxu0 0
        %2853 = vmatprep.subr.bf16.mxu0 0
        %2854 = vmatpush1.bf16.msra.mxu0 0
        %2855 = vmatprep.subr.bf16.mxu0 0
        %2856 = vmatpush1.bf16.msra.mxu0 0
        %2857 = vmatprep.subr.bf16.mxu0 0
        %2858 = vmatpush1.bf16.msra.mxu0 0
        %2859 = vmatprep.subr.bf16.mxu0 0
        %2860 = vmatpush1.bf16.msra.mxu0 0
        %2861 = vmatprep.subr.bf16.mxu0 0
        %2862 = vmatpush1.bf16.msra.mxu0 0
        %2863 = vmatprep.subr.bf16.mxu0 0
        %2864 = vmatpush1.bf16.msra.mxu0 0
        %2865 = vmatprep.subr.bf16.mxu0 0
        %2866 = vmatpush1.bf16.msra.mxu0 0
        %2867 = vmatprep.subr.bf16.mxu0 0
        %2868 = vmatpush1.bf16.msra.mxu0 0
        %2869 = vmatprep.subr.bf16.mxu0 0
        %2870 = vmatpush1.bf16.msra.mxu0 0
        %2871 = vmatprep.subr.bf16.mxu0 0
        %2872 = vmatpush1.bf16.msra.mxu0 0
        %2873 = vmatprep.subr.bf16.mxu0 0
        %2874 = vmatpush1.bf16.msra.mxu0 0
        %2875 = vmatprep.subr.bf16.mxu0 0
        %2876 = vmatpush1.bf16.msra.mxu0 0
        %2877 = vmatprep.mubr.bf16.mxu0 0
        %2878 = vmatmul.mubr.bf16.gmra.mrb[0].mxu0 %v2840
        %v2879 = vpop.f32.mrb[0].mxu0
        %v2880 = vadd.f32 0.0, %v2879
        %v2881 = vpop.f32.mrb[0].mxu0
        %v2882 = vpop.f32.mrb[0].mxu0
        %v2883 = vpop.f32.mrb[0].mxu0
        %2884 = vdwg.mxu0
        %v2886 = vsel %vm1621, %v2787, 0
        %v2889 = vsel %vm1861, %v2791, 0
        %2891 = vmatprep.subr.bf16.mxu0 0
        %2892 = vmatpush1.bf16.msra.mxu0 %v2889
        %2893 = vmatprep.subr.bf16.mxu0 0
        %2894 = vmatpush1.bf16.msra.mxu0 0
        %2895 = vmatprep.subr.bf16.mxu0 0
        %2896 = vmatpush1.bf16.msra.mxu0 0
        %2897 = vmatprep.subr.bf16.mxu0 0
        %2898 = vmatpush1.bf16.msra.mxu0 0
        %2899 = vmatprep.subr.bf16.mxu0 0
        %2900 = vmatpush1.bf16.msra.mxu0 0
        %2901 = vmatprep.subr.bf16.mxu0 0
        %2902 = vmatpush1.bf16.msra.mxu0 0
        %2903 = vmatprep.subr.bf16.mxu0 0
        %2904 = vmatpush1.bf16.msra.mxu0 0
        %2905 = vmatprep.subr.bf16.mxu0 0
        %2906 = vmatpush1.bf16.msra.mxu0 0
        %2907 = vmatprep.subr.bf16.mxu0 0
        %2908 = vmatpush1.bf16.msra.mxu0 0
        %2909 = vmatprep.subr.bf16.mxu0 0
        %2910 = vmatpush1.bf16.msra.mxu0 0
        %2911 = vmatprep.subr.bf16.mxu0 0
        %2912 = vmatpush1.bf16.msra.mxu0 0
        %2913 = vmatprep.subr.bf16.mxu0 0
        %2914 = vmatpush1.bf16.msra.mxu0 0
        %2915 = vmatprep.subr.bf16.mxu0 0
        %2916 = vmatpush1.bf16.msra.mxu0 0
        %2917 = vmatprep.subr.bf16.mxu0 0
        %2918 = vmatpush1.bf16.msra.mxu0 0
        %2919 = vmatprep.subr.bf16.mxu0 0
        %2920 = vmatpush1.bf16.msra.mxu0 0
        %2921 = vmatprep.subr.bf16.mxu0 0
        %2922 = vmatpush1.bf16.msra.mxu0 0
        %2923 = vmatprep.mubr.bf16.mxu0 0
        %2924 = vmatmul.mubr.bf16.gmra.mrb[0].mxu0 %v2886
        %v2925 = vpop.f32.mrb[0].mxu0
        %v2926 = vadd.f32 0.0, %v2925
        %v2927 = vpop.f32.mrb[0].mxu0
        %v2928 = vpop.f32.mrb[0].mxu0
        %v2929 = vpop.f32.mrb[0].mxu0
        %2930 = vdwg.mxu0
        %v2932 = vsel %vm1621, %v2788, 0
        %v2935 = vsel %vm1861, %v2792, 0
        %2937 = vmatprep.subr.bf16.mxu0 0
        %2938 = vmatpush1.bf16.msra.mxu0 %v2935
        %2939 = vmatprep.subr.bf16.mxu0 0
        %2940 = vmatpush1.bf16.msra.mxu0 0
        %2941 = vmatprep.subr.bf16.mxu0 0
        %2942 = vmatpush1.bf16.msra.mxu0 0
        %2943 = vmatprep.subr.bf16.mxu0 0
        %2944 = vmatpush1.bf16.msra.mxu0 0
        %2945 = vmatprep.subr.bf16.mxu0 0
        %2946 = vmatpush1.bf16.msra.mxu0 0
        %2947 = vmatprep.subr.bf16.mxu0 0
        %2948 = vmatpush1.bf16.msra.mxu0 0
        %2949 = vmatprep.subr.bf16.mxu0 0
        %2950 = vmatpush1.bf16.msra.mxu0 0
        %2951 = vmatprep.subr.bf16.mxu0 0
        %2952 = vmatpush1.bf16.msra.mxu0 0
        %2953 = vmatprep.subr.bf16.mxu0 0
        %2954 = vmatpush1.bf16.msra.mxu0 0
        %2955 = vmatprep.subr.bf16.mxu0 0
        %2956 = vmatpush1.bf16.msra.mxu0 0
        %2957 = vmatprep.subr.bf16.mxu0 0
        %2958 = vmatpush1.bf16.msra.mxu0 0
        %2959 = vmatprep.subr.bf16.mxu0 0
        %2960 = vmatpush1.bf16.msra.mxu0 0
        %2961 = vmatprep.subr.bf16.mxu0 0
        %2962 = vmatpush1.bf16.msra.mxu0 0
        %2963 = vmatprep.subr.bf16.mxu0 0
        %2964 = vmatpush1.bf16.msra.mxu0 0
        %2965 = vmatprep.subr.bf16.mxu0 0
        %2966 = vmatpush1.bf16.msra.mxu0 0
        %2967 = vmatprep.subr.bf16.mxu0 0
        %2968 = vmatpush1.bf16.msra.mxu0 0
        %2969 = vmatprep.mubr.bf16.mxu0 0
        %2970 = vmatmul.mubr.bf16.gmra.mrb[0].mxu0 %v2932
        %v2971 = vpop.f32.mrb[0].mxu0
        %v2972 = vadd.f32 0.0, %v2971
        %v2973 = vpop.f32.mrb[0].mxu0
        %v2974 = vpop.f32.mrb[0].mxu0
        %v2975 = vpop.f32.mrb[0].mxu0
        %2976 = vdwg.mxu0
        %2978 = vrot.lane.b32.xlu0 %v2880, 8
        %v2979 = vpop.permute.xlu0 %2978
        %2982 = vrot.lane.b32.xlu0 %v2926, 16
        %v2983 = vpop.permute.xlu0 %2982
        %2986 = vrot.lane.b32.xlu0 %v2972, 24
        %v2987 = vpop.permute.xlu0 %2986
        %v2989 = vsel %vm1621, %v2834, %v2979
        %v2990 = vsel %vm2056, %v2989, %v2983
        %v2991 = vsel %vm2058, %v2990, %v2987
        %v2992 = vpack.c.bf16 %v2991, %v2991
        %v2994 = vlaneseq
        %v2995 = vshrl.u32 %v2994, 7
        %v2996 = vsub.s32 0, %v2995
        %v2997 = vrot.slane %v2331, %v2996
        %v3003 = vunpack.c.l.b16 %v2326
        %v3004 = vunpack.c.l.b16 %v2327
        %v3005 = vunpack.c.l.b16 %v2328
        %v3006 = vunpack.c.l.b16 %v2329
        %v3007 = vpack.c.b16 %v3004, %v3003
        %v3008 = vpack.c.b16 %v3006, %v3005
        %v3012 = vsel %vm1440, %v2992, 0
        %3014 = vmatprep.subr.bf16.mxu0 0
        %3015 = vmatpush1.bf16.msra.mxu0 %v3007
        %3016 = vmatprep.subr.bf16.mxu0 0
        %3017 = vmatpush1.bf16.msra.mxu0 %v3008
        %3018 = vmatprep.subr.bf16.mxu0 0
        %3019 = vmatpush1.bf16.msra.mxu0 0
        %3020 = vmatprep.subr.bf16.mxu0 0
        %3021 = vmatpush1.bf16.msra.mxu0 0
        %3022 = vmatprep.subr.bf16.mxu0 0
        %3023 = vmatpush1.bf16.msra.mxu0 0
        %3024 = vmatprep.subr.bf16.mxu0 0
        %3025 = vmatpush1.bf16.msra.mxu0 0
        %3026 = vmatprep.subr.bf16.mxu0 0
        %3027 = vmatpush1.bf16.msra.mxu0 0
        %3028 = vmatprep.subr.bf16.mxu0 0
        %3029 = vmatpush1.bf16.msra.mxu0 0
        %3030 = vmatprep.subr.bf16.mxu0 0
        %3031 = vmatpush1.bf16.msra.mxu0 0
        %3032 = vmatprep.subr.bf16.mxu0 0
        %3033 = vmatpush1.bf16.msra.mxu0 0
        %3034 = vmatprep.subr.bf16.mxu0 0
        %3035 = vmatpush1.bf16.msra.mxu0 0
        %3036 = vmatprep.subr.bf16.mxu0 0
        %3037 = vmatpush1.bf16.msra.mxu0 0
        %3038 = vmatprep.subr.bf16.mxu0 0
        %3039 = vmatpush1.bf16.msra.mxu0 0
        %3040 = vmatprep.subr.bf16.mxu0 0
        %3041 = vmatpush1.bf16.msra.mxu0 0
        %3042 = vmatprep.subr.bf16.mxu0 0
        %3043 = vmatpush1.bf16.msra.mxu0 0
        %3044 = vmatprep.subr.bf16.mxu0 0
        %3045 = vmatpush1.bf16.msra.mxu0 0
        %3046 = vmatprep.mubr.bf16.mxu0 0
        %3047 = vmatmul.mubr.bf16.gmra.mrb[0].mxu0 %v3012
        %v3048 = vpop.f32.mrb[0].mxu0
        %v3049 = vadd.f32 %v2997, %v3048
        %v3050 = vpop.f32.mrb[0].mxu0
        %v3051 = vpop.f32.mrb[0].mxu0
        %v3052 = vpop.f32.mrb[0].mxu0
        %3053 = vdwg.mxu0
        %v3054 = vadd.f32 %v2317, %v3049
        %v3055 = vsel %vm1440, %v3054, 0.0
        %3056 = vadd.xlane.f32.xlu0 %v3055
        %v3057 = vpop.xlane.xlu0 %3056
        %v3058 = vmul.f32 %v3057, %v2126
        %v3059 = vsub.f32 %v3054, %v3058
        %v3060 = vmul.f32 %v3059, %v3059
        %v3061 = vsel %vm1440, %v3060, 0.0
        %3062 = vadd.xlane.f32.xlu0 %v3061
        %v3063 = vpop.xlane.xlu0 %3062
        %v3064 = vmul.f32 %v3063, %v2126
        %v3065 = vadd.f32 %v3064, 1e-05
        %v3066 = vrsqrt.pop %v3065
        %v3067 = vmul.f32 %v3059, %v3066
        %v3069 = vlaneseq
        %v3070 = vshrl.u32 %v3069, 7
        %v3071 = vsub.s32 0, %v3070
        %v3072 = vrot.slane %v2351, %v3071
        %v3074 = vmul.f32 %v3067, %v3072
        %v3076 = vlaneseq
        %v3077 = vshrl.u32 %v3076, 7
        %v3078 = vsub.s32 0, %v3077
        %v3079 = vrot.slane %v2353, %v3078
        %v3081 = vadd.f32 %v3074, %v3079
        %v3082 = vpack.c.bf16 %v3081, %v3081
        %v3084 = vlaneseq
        %v3085 = vshrl.u32 %v3084, 7
        %v3086 = vsub.s32 0, %v3085
        %v3087 = vrot.slane %v2338, %v3086
        %v3093 = vunpack.c.l.b16 %v2333
        %v3094 = vunpack.c.l.b16 %v2334
        %v3095 = vunpack.c.l.b16 %v2335
        %v3096 = vunpack.c.l.b16 %v2336
        %v3097 = vpack.c.b16 %v3094, %v3093
        %v3098 = vpack.c.b16 %v3096, %v3095
        %v3102 = vsel %vm1440, %v3082, 0
        %3104 = vmatprep.subr.bf16.mxu0 0
        %3105 = vmatpush1.bf16.msra.mxu0 %v3097
        %3106 = vmatprep.subr.bf16.mxu0 0
        %3107 = vmatpush1.bf16.msra.mxu0 %v3098
        %3108 = vmatprep.subr.bf16.mxu0 0
        %3109 = vmatpush1.bf16.msra.mxu0 0
        %3110 = vmatprep.subr.bf16.mxu0 0
        %3111 = vmatpush1.bf16.msra.mxu0 0
        %3112 = vmatprep.subr.bf16.mxu0 0
        %3113 = vmatpush1.bf16.msra.mxu0 0
        %3114 = vmatprep.subr.bf16.mxu0 0
        %3115 = vmatpush1.bf16.msra.mxu0 0
        %3116 = vmatprep.subr.bf16.mxu0 0
        %3117 = vmatpush1.bf16.msra.mxu0 0
        %3118 = vmatprep.subr.bf16.mxu0 0
        %3119 = vmatpush1.bf16.msra.mxu0 0
        %3120 = vmatprep.subr.bf16.mxu0 0
        %3121 = vmatpush1.bf16.msra.mxu0 0
        %3122 = vmatprep.subr.bf16.mxu0 0
        %3123 = vmatpush1.bf16.msra.mxu0 0
        %3124 = vmatprep.subr.bf16.mxu0 0
        %3125 = vmatpush1.bf16.msra.mxu0 0
        %3126 = vmatprep.subr.bf16.mxu0 0
        %3127 = vmatpush1.bf16.msra.mxu0 0
        %3128 = vmatprep.subr.bf16.mxu0 0
        %3129 = vmatpush1.bf16.msra.mxu0 0
        %3130 = vmatprep.subr.bf16.mxu0 0
        %3131 = vmatpush1.bf16.msra.mxu0 0
        %3132 = vmatprep.subr.bf16.mxu0 0
        %3133 = vmatpush1.bf16.msra.mxu0 0
        %3134 = vmatprep.subr.bf16.mxu0 0
        %3135 = vmatpush1.bf16.msra.mxu0 0
        %3136 = vmatprep.mubr.bf16.mxu0 0
        %3137 = vmatmul.mubr.bf16.gmra.mrb[0].mxu0 %v3102
        %v3138 = vpop.f32.mrb[0].mxu0
        %v3139 = vadd.f32 %v3087, %v3138
        %v3140 = vpop.f32.mrb[0].mxu0
        %v3141 = vpop.f32.mrb[0].mxu0
        %v3142 = vpop.f32.mrb[0].mxu0
        %3143 = vdwg.mxu0
        %v3144 = vmax.f32 %v3139, 0.0
        %v3145 = vpack.c.bf16 %v3144, %v3144
        %v3154 = vunpack.c.l.b16 %v2340
        %v3155 = vunpack.c.l.b16 %v2341
        %v3156 = vunpack.c.l.b16 %v2342
        %v3157 = vunpack.c.l.b16 %v2343
        %v3158 = vunpack.c.l.b16 %v2344
        %v3159 = vunpack.c.l.b16 %v2345
        %v3160 = vunpack.c.l.b16 %v2346
        %v3161 = vunpack.c.l.b16 %v2347
        %v3162 = vpack.c.b16 %v3155, %v3154
        %v3163 = vpack.c.b16 %v3157, %v3156
        %v3164 = vpack.c.b16 %v3159, %v3158
        %v3165 = vpack.c.b16 %v3161, %v3160
        %v3171 = vsel %vm2239, %v3145, 0
        %3173 = vmatprep.subr.bf16.mxu0 0
        %3174 = vmatpush1.bf16.msra.mxu0 %v3162
        %3175 = vmatprep.subr.bf16.mxu0 0
        %3176 = vmatpush1.bf16.msra.mxu0 %v3163
        %3177 = vmatprep.subr.bf16.mxu0 0
        %3178 = vmatpush1.bf16.msra.mxu0 %v3164
        %3179 = vmatprep.subr.bf16.mxu0 0
        %3180 = vmatpush1.bf16.msra.mxu0 %v3165
        %3181 = vmatprep.subr.bf16.mxu0 0
        %3182 = vmatpush1.bf16.msra.mxu0 0
        %3183 = vmatprep.subr.bf16.mxu0 0
        %3184 = vmatpush1.bf16.msra.mxu0 0
        %3185 = vmatprep.subr.bf16.mxu0 0
        %3186 = vmatpush1.bf16.msra.mxu0 0
        %3187 = vmatprep.subr.bf16.mxu0 0
        %3188 = vmatpush1.bf16.msra.mxu0 0
        %3189 = vmatprep.subr.bf16.mxu0 0
        %3190 = vmatpush1.bf16.msra.mxu0 0
        %3191 = vmatprep.subr.bf16.mxu0 0
        %3192 = vmatpush1.bf16.msra.mxu0 0
        %3193 = vmatprep.subr.bf16.mxu0 0
        %3194 = vmatpush1.bf16.msra.mxu0 0
        %3195 = vmatprep.subr.bf16.mxu0 0
        %3196 = vmatpush1.bf16.msra.mxu0 0
        %3197 = vmatprep.subr.bf16.mxu0 0
        %3198 = vmatpush1.bf16.msra.mxu0 0
        %3199 = vmatprep.subr.bf16.mxu0 0
        %3200 = vmatpush1.bf16.msra.mxu0 0
        %3201 = vmatprep.subr.bf16.mxu0 0
        %3202 = vmatpush1.bf16.msra.mxu0 0
        %3203 = vmatprep.subr.bf16.mxu0 0
        %3204 = vmatpush1.bf16.msra.mxu0 0
        %3205 = vmatprep.mubr.bf16.mxu0 0
        %3206 = vmatmul.mubr.bf16.gmra.mrb[0].mxu0 %v3171
        %v3207 = vpop.f32.mrb[0].mxu0
        %v3208 = vadd.f32 0.0, %v3207
        %v3209 = vpop.f32.mrb[0].mxu0
        %v3210 = vpop.f32.mrb[0].mxu0
        %v3211 = vpop.f32.mrb[0].mxu0
        %3212 = vdwg.mxu0
        %v3213 = vadd.f32 %v3081, %v3208
        %v3215 = vlaneseq
        %v3216 = vshrl.u32 %v3215, 7
        %v3217 = vsub.s32 0, %v3216
        %v3218 = vrot.slane %v2349, %v3217
        %v3220 = vadd.f32 %v3213, %v3218
        %v3221 = vsel %vm1440, %v3220, 0.0
        %3222 = vadd.xlane.f32.xlu0 %v3221
        %v3223 = vpop.xlane.xlu0 %3222
        %v3224 = vmul.f32 %v3223, %v2126
        %v3225 = vsub.f32 %v3220, %v3224
        %v3226 = vmul.f32 %v3225, %v3225
        %v3227 = vsel %vm1440, %v3226, 0.0
        %3228 = vadd.xlane.f32.xlu0 %v3227
        %v3229 = vpop.xlane.xlu0 %3228
        %v3230 = vmul.f32 %v3229, %v2126
        %v3231 = vadd.f32 %v3230, 1e-05
        %v3232 = vrsqrt.pop %v3231
        %v3233 = vmul.f32 %v3225, %v3232
        %v3235 = vlaneseq
        %v3236 = vshrl.u32 %v3235, 7
        %v3237 = vsub.s32 0, %v3236
        %v3238 = vrot.slane %v2355, %v3237
        %v3240 = vmul.f32 %v3233, %v3238
        %v3242 = vlaneseq
        %v3243 = vshrl.u32 %v3242, 7
        %v3244 = vsub.s32 0, %v3243
        %v3245 = vrot.slane %v2357, %v3244
        %v3247 = vadd.f32 %v3240, %v3245
        %v3248 = vld [vmem:[#allocation19] sm:$0x1]
        %v3249 = vld [vmem:[#allocation20] sm:$0x1]
        %v3250 = vsel %vm1440, %v3247, 0.0
        %3251 = vadd.xlane.f32.xlu0 %v3250
        %v3252 = vpop.xlane.xlu0 %3251
        %v3253 = vmul.f32 %v3252, %v2126
        %v3254 = vsub.f32 %v3247, %v3253
        %v3255 = vmul.f32 %v3254, %v3254
        %v3256 = vsel %vm1440, %v3255, 0.0
        %3257 = vadd.xlane.f32.xlu0 %v3256
        %v3258 = vpop.xlane.xlu0 %3257
        %v3259 = vmul.f32 %v3258, %v2126
        %v3260 = vadd.f32 %v3259, 1e-05
        %v3261 = vrsqrt.pop %v3260
        %v3262 = vmul.f32 %v3254, %v3261
        %v3264 = vlaneseq
        %v3265 = vshrl.u32 %v3264, 7
        %v3266 = vsub.s32 0, %v3265
        %v3267 = vrot.slane %v3248, %v3266
        %v3269 = vmul.f32 %v3262, %v3267
        %v3271 = vlaneseq
        %v3272 = vshrl.u32 %v3271, 7
        %v3273 = vsub.s32 0, %v3272
        %v3274 = vrot.slane %v3249, %v3273
        %v3276 = vadd.f32 %v3269, %v3274
        %v3277 = vlaneseq
        %v3278 = vshrl.u32 %v3277, 7
        %v3279 = vlaneseq
        %v3280 = vand.u32 %v3279, 127
        %vm3281 = vcmp.ge.s32.totalorder %v3278, %v3280
        %v3282 = vsel %vm3281, 0.0, -1e+30
        %v3283 = vld [vmem:[%s1241] sm:$0xff]
        %v3284 = vld [vmem:[%s33] sm:$0xf]
        %v3285 = vld [vmem:[%s33 + $0x4] sm:$0xf]
        %v3286 = vld [vmem:[%s33 + $0x8] sm:$0xf]
        %v3287 = vld [vmem:[%s33 + $0xc] sm:$0xf]
        %v3288 = vld [vmem:[#allocation22] sm:$0x1]
        %v3289 = vld [vmem:[%s37] sm:$0xf]
        %v3290 = vld [vmem:[%s37 + $0x4] sm:$0xf]
        %v3291 = vld [vmem:[%s37 + $0x8] sm:$0xf]
        %v3292 = vld [vmem:[%s37 + $0xc] sm:$0xf]
        %v3293 = vld [vmem:[%s39] sm:$0x1]
        %v3294 = vld [vmem:[%s41] sm:$0xf]
        %v3295 = vld [vmem:[%s41 + $0x4] sm:$0xf]
        %v3296 = vld [vmem:[%s41 + $0x8] sm:$0xf]
        %v3297 = vld [vmem:[%s41 + $0xc] sm:$0xf]
        %v3298 = vld [vmem:[#allocation23] sm:$0x1]
        %v3299 = vld [vmem:[%s45] sm:$0xf]
        %v3300 = vld [vmem:[%s45 + $0x4] sm:$0xf]
        %v3301 = vld [vmem:[%s45 + $0x8] sm:$0xf]
        %v3302 = vld [vmem:[%s45 + $0xc] sm:$0xf]
        %v3303 = vld [vmem:[%s47] sm:$0x1]
        %v3304 = vld [vmem:[#allocation25] sm:$0xf]
        %v3305 = vld [vmem:[#allocation25 + $0x4] sm:$0xf]
        %v3306 = vld [vmem:[#allocation25 + $0x8] sm:$0xf]
        %v3307 = vld [vmem:[#allocation25 + $0xc] sm:$0xf]
        %v3308 = vld [vmem:[%s51] sm:$0x1]
        %v3309 = vld [vmem:[%s53] sm:$0xf]
        %v3310 = vld [vmem:[%s53 + $0x4] sm:$0xf]
        %v3311 = vld [vmem:[%s53 + $0x8] sm:$0xf]
        %v3312 = vld [vmem:[%s53 + $0xc] sm:$0xf]
        %v3313 = vld [vmem:[%s53 + $0x10] sm:$0xf]
        %v3314 = vld [vmem:[%s53 + $0x14] sm:$0xf]
        %v3315 = vld [vmem:[%s53 + $0x18] sm:$0xf]
        %v3316 = vld [vmem:[%s53 + $0x1c] sm:$0xf]
        %v3317 = vld [vmem:[%s55] sm:$0x1]
        %v3318 = vld [vmem:[%s57] sm:$0x1]
        %v3319 = vld [vmem:[%s59] sm:$0x1]
        %v3320 = vld [vmem:[%s61] sm:$0x1]
        %v3321 = vld [vmem:[%s63] sm:$0x1]
        %v3322 = vld [vmem:[%s65] sm:$0x1]
        %v3323 = vld [vmem:[%s67] sm:$0x1]
        %v3324 = vpack.c.bf16 %v3283, %v3283
        %v3326 = vlaneseq
        %v3327 = vshrl.u32 %v3326, 7
        %v3328 = vsub.s32 0, %v3327
        %v3329 = vrot.slane %v3288, %v3328
        %v3335 = vunpack.c.l.b16 %v3284
        %v3336 = vunpack.c.l.b16 %v3285
        %v3337 = vunpack.c.l.b16 %v3286
        %v3338 = vunpack.c.l.b16 %v3287
        %v3339 = vpack.c.b16 %v3336, %v3335
        %v3340 = vpack.c.b16 %v3338, %v3337
        %v3344 = vsel %vm1440, %v3324, 0
        %3346 = vmatprep.subr.bf16.mxu0 0
        %3347 = vmatpush1.bf16.msra.mxu0 %v3339
        %3348 = vmatprep.subr.bf16.mxu0 0
        %3349 = vmatpush1.bf16.msra.mxu0 %v3340
        %3350 = vmatprep.subr.bf16.mxu0 0
        %3351 = vmatpush1.bf16.msra.mxu0 0
        %3352 = vmatprep.subr.bf16.mxu0 0
        %3353 = vmatpush1.bf16.msra.mxu0 0
        %3354 = vmatprep.subr.bf16.mxu0 0
        %3355 = vmatpush1.bf16.msra.mxu0 0
        %3356 = vmatprep.subr.bf16.mxu0 0
        %3357 = vmatpush1.bf16.msra.mxu0 0
        %3358 = vmatprep.subr.bf16.mxu0 0
        %3359 = vmatpush1.bf16.msra.mxu0 0
        %3360 = vmatprep.subr.bf16.mxu0 0
        %3361 = vmatpush1.bf16.msra.mxu0 0
        %3362 = vmatprep.subr.bf16.mxu0 0
        %3363 = vmatpush1.bf16.msra.mxu0 0
        %3364 = vmatprep.subr.bf16.mxu0 0
        %3365 = vmatpush1.bf16.msra.mxu0 0
        %3366 = vmatprep.subr.bf16.mxu0 0
        %3367 = vmatpush1.bf16.msra.mxu0 0
        %3368 = vmatprep.subr.bf16.mxu0 0
        %3369 = vmatpush1.bf16.msra.mxu0 0
        %3370 = vmatprep.subr.bf16.mxu0 0
        %3371 = vmatpush1.bf16.msra.mxu0 0
        %3372 = vmatprep.subr.bf16.mxu0 0
        %3373 = vmatpush1.bf16.msra.mxu0 0
        %3374 = vmatprep.subr.bf16.mxu0 0
        %3375 = vmatpush1.bf16.msra.mxu0 0
        %3376 = vmatprep.subr.bf16.mxu0 0
        %3377 = vmatpush1.bf16.msra.mxu0 0
        %3378 = vmatprep.mubr.bf16.mxu0 0
        %3379 = vmatmul.mubr.bf16.gmra.mrb[0].mxu0 %v3344
        %v3380 = vpop.f32.mrb[0].mxu0
        %v3381 = vadd.f32 %v3329, %v3380
        %v3382 = vpop.f32.mrb[0].mxu0
        %v3383 = vpop.f32.mrb[0].mxu0
        %v3384 = vpop.f32.mrb[0].mxu0
        %3385 = vdwg.mxu0
        %3386 = vrot.lane.b32.xlu0 %v3339, 96
        %v3387 = vpop.permute.xlu0 %3386
        %3388 = vrot.lane.b32.xlu0 %v3340, 96
        %v3389 = vpop.permute.xlu0 %3388
        %3392 = vrot.lane.b32.xlu0 %v3329, 96
        %v3393 = vpop.permute.xlu0 %3392
        %3395 = vmatprep.subr.bf16.mxu0 0
        %3396 = vmatpush1.bf16.msra.mxu0 %v3387
        %3397 = vmatprep.subr.bf16.mxu0 0
        %3398 = vmatpush1.bf16.msra.mxu0 %v3389
        %3399 = vmatprep.subr.bf16.mxu0 0
        %3400 = vmatpush1.bf16.msra.mxu0 0
        %3401 = vmatprep.subr.bf16.mxu0 0
        %3402 = vmatpush1.bf16.msra.mxu0 0
        %3403 = vmatprep.subr.bf16.mxu0 0
        %3404 = vmatpush1.bf16.msra.mxu0 0
        %3405 = vmatprep.subr.bf16.mxu0 0
        %3406 = vmatpush1.bf16.msra.mxu0 0
        %3407 = vmatprep.subr.bf16.mxu0 0
        %3408 = vmatpush1.bf16.msra.mxu0 0
        %3409 = vmatprep.subr.bf16.mxu0 0
        %3410 = vmatpush1.bf16.msra.mxu0 0
        %3411 = vmatprep.subr.bf16.mxu0 0
        %3412 = vmatpush1.bf16.msra.mxu0 0
        %3413 = vmatprep.subr.bf16.mxu0 0
        %3414 = vmatpush1.bf16.msra.mxu0 0
        %3415 = vmatprep.subr.bf16.mxu0 0
        %3416 = vmatpush1.bf16.msra.mxu0 0
        %3417 = vmatprep.subr.bf16.mxu0 0
        %3418 = vmatpush1.bf16.msra.mxu0 0
        %3419 = vmatprep.subr.bf16.mxu0 0
        %3420 = vmatpush1.bf16.msra.mxu0 0
        %3421 = vmatprep.subr.bf16.mxu0 0
        %3422 = vmatpush1.bf16.msra.mxu0 0
        %3423 = vmatprep.subr.bf16.mxu0 0
        %3424 = vmatpush1.bf16.msra.mxu0 0
        %3425 = vmatprep.subr.bf16.mxu0 0
        %3426 = vmatpush1.bf16.msra.mxu0 0
        %3427 = vmatprep.mubr.bf16.mxu0 0
        %3428 = vmatmul.mubr.bf16.gmra.mrb[0].mxu0 %v3344
        %v3429 = vpop.f32.mrb[0].mxu0
        %v3430 = vadd.f32 %v3393, %v3429
        %v3431 = vpop.f32.mrb[0].mxu0
        %v3432 = vpop.f32.mrb[0].mxu0
        %v3433 = vpop.f32.mrb[0].mxu0
        %3434 = vdwg.mxu0
        %3435 = vrot.lane.b32.xlu0 %v3339, 64
        %v3436 = vpop.permute.xlu0 %3435
        %3437 = vrot.lane.b32.xlu0 %v3340, 64
        %v3438 = vpop.permute.xlu0 %3437
        %3441 = vrot.lane.b32.xlu0 %v3329, 64
        %v3442 = vpop.permute.xlu0 %3441
        %3444 = vmatprep.subr.bf16.mxu0 0
        %3445 = vmatpush1.bf16.msra.mxu0 %v3436
        %3446 = vmatprep.subr.bf16.mxu0 0
        %3447 = vmatpush1.bf16.msra.mxu0 %v3438
        %3448 = vmatprep.subr.bf16.mxu0 0
        %3449 = vmatpush1.bf16.msra.mxu0 0
        %3450 = vmatprep.subr.bf16.mxu0 0
        %3451 = vmatpush1.bf16.msra.mxu0 0
        %3452 = vmatprep.subr.bf16.mxu0 0
        %3453 = vmatpush1.bf16.msra.mxu0 0
        %3454 = vmatprep.subr.bf16.mxu0 0
        %3455 = vmatpush1.bf16.msra.mxu0 0
        %3456 = vmatprep.subr.bf16.mxu0 0
        %3457 = vmatpush1.bf16.msra.mxu0 0
        %3458 = vmatprep.subr.bf16.mxu0 0
        %3459 = vmatpush1.bf16.msra.mxu0 0
        %3460 = vmatprep.subr.bf16.mxu0 0
        %3461 = vmatpush1.bf16.msra.mxu0 0
        %3462 = vmatprep.subr.bf16.mxu0 0
        %3463 = vmatpush1.bf16.msra.mxu0 0
        %3464 = vmatprep.subr.bf16.mxu0 0
        %3465 = vmatpush1.bf16.msra.mxu0 0
        %3466 = vmatprep.subr.bf16.mxu0 0
        %3467 = vmatpush1.bf16.msra.mxu0 0
        %3468 = vmatprep.subr.bf16.mxu0 0
        %3469 = vmatpush1.bf16.msra.mxu0 0
        %3470 = vmatprep.subr.bf16.mxu0 0
        %3471 = vmatpush1.bf16.msra.mxu0 0
        %3472 = vmatprep.subr.bf16.mxu0 0
        %3473 = vmatpush1.bf16.msra.mxu0 0
        %3474 = vmatprep.subr.bf16.mxu0 0
        %3475 = vmatpush1.bf16.msra.mxu0 0
        %3476 = vmatprep.mubr.bf16.mxu0 0
        %3477 = vmatmul.mubr.bf16.gmra.mrb[0].mxu0 %v3344
        %v3478 = vpop.f32.mrb[0].mxu0
        %v3479 = vadd.f32 %v3442, %v3478
        %v3480 = vpop.f32.mrb[0].mxu0
        %v3481 = vpop.f32.mrb[0].mxu0
        %v3482 = vpop.f32.mrb[0].mxu0
        %3483 = vdwg.mxu0
        %v3484 = vmul.f32 %v3381, 0.35355338
        %3486 = vrot.lane.b32.xlu0 %v3484, 120
        %v3487 = vpop.permute.xlu0 %3486
        %3489 = vrot.lane.b32.xlu0 %v3484, 112
        %v3490 = vpop.permute.xlu0 %3489
        %3492 = vrot.lane.b32.xlu0 %v3484, 104
        %v3493 = vpop.permute.xlu0 %3492
        %3496 = vrot.lane.b32.xlu0 %v3430, 120
        %v3497 = vpop.permute.xlu0 %3496
        %3499 = vrot.lane.b32.xlu0 %v3430, 112
        %v3500 = vpop.permute.xlu0 %3499
        %3502 = vrot.lane.b32.xlu0 %v3430, 104
        %v3503 = vpop.permute.xlu0 %3502
        %3506 = vrot.lane.b32.xlu0 %v3479, 120
        %v3507 = vpop.permute.xlu0 %3506
        %3509 = vrot.lane.b32.xlu0 %v3479, 112
        %v3510 = vpop.permute.xlu0 %3509
        %3512 = vrot.lane.b32.xlu0 %v3479, 104
        %v3513 = vpop.permute.xlu0 %3512
        %v3515 = vpack.c.bf16 %v3484, %v3484
        %v3516 = vpack.c.bf16 %v3487, %v3487
        %v3517 = vpack.c.bf16 %v3490, %v3490
        %v3518 = vpack.c.bf16 %v3493, %v3493
        %v3519 = vpack.c.bf16 %v3430, %v3430
        %v3520 = vpack.c.bf16 %v3497, %v3497
        %v3521 = vpack.c.bf16 %v3500, %v3500
        %v3522 = vpack.c.bf16 %v3503, %v3503
        %v3524 = vsel %vm1621, %v3515, 0
        %v3527 = vsel %vm1621, %v3519, 0
        %3529 = vmatprep.subr.bf16.mxu0 0
        %3530 = vmatpush1.bf16.xpose.msra.mxu0 %v3527
        %3531 = vmatprep.subr.bf16.mxu0 0
        %3532 = vmatpush1.bf16.xpose.msra.mxu0 0
        %3533 = vmatprep.subr.bf16.mxu0 0
        %3534 = vmatpush1.bf16.xpose.msra.mxu0 0
        %3535 = vmatprep.subr.bf16.mxu0 0
        %3536 = vmatpush1.bf16.xpose.msra.mxu0 0
        %3537 = vmatprep.subr.bf16.mxu0 0
        %3538 = vmatpush1.bf16.xpose.msra.mxu0 0
        %3539 = vmatprep.subr.bf16.mxu0 0
        %3540 = vmatpush1.bf16.xpose.msra.mxu0 0
        %3541 = vmatprep.subr.bf16.mxu0 0
        %3542 = vmatpush1.bf16.xpose.msra.mxu0 0
        %3543 = vmatprep.subr.bf16.mxu0 0
        %3544 = vmatpush1.bf16.xpose.msra.mxu0 0
        %3545 = vmatprep.subr.bf16.mxu0 0
        %3546 = vmatpush1.bf16.xpose.msra.mxu0 0
        %3547 = vmatprep.subr.bf16.mxu0 0
        %3548 = vmatpush1.bf16.xpose.msra.mxu0 0
        %3549 = vmatprep.subr.bf16.mxu0 0
        %3550 = vmatpush1.bf16.xpose.msra.mxu0 0
        %3551 = vmatprep.subr.bf16.mxu0 0
        %3552 = vmatpush1.bf16.xpose.msra.mxu0 0
        %3553 = vmatprep.subr.bf16.mxu0 0
        %3554 = vmatpush1.bf16.xpose.msra.mxu0 0
        %3555 = vmatprep.subr.bf16.mxu0 0
        %3556 = vmatpush1.bf16.xpose.msra.mxu0 0
        %3557 = vmatprep.subr.bf16.mxu0 0
        %3558 = vmatpush1.bf16.xpose.msra.mxu0 0
        %3559 = vmatprep.subr.bf16.mxu0 0
        %3560 = vmatpush1.bf16.xpose.msra.mxu0 0
        %3561 = vmatprep.mubr.bf16.mxu0 0
        %3562 = vmatmul.mubr.bf16.gmra.mrb[0].mxu0 %v3524
        %v3563 = vpop.f32.mrb[0].mxu0
        %v3564 = vadd.f32 %v3282, %v3563
        %v3565 = vpop.f32.mrb[0].mxu0
        %v3566 = vpop.f32.mrb[0].mxu0
        %v3567 = vpop.f32.mrb[0].mxu0
        %3568 = vdwg.mxu0
        %v3570 = vsel %vm1621, %v3516, 0
        %v3573 = vsel %vm1621, %v3520, 0
        %3575 = vmatprep.subr.bf16.mxu0 0
        %3576 = vmatpush1.bf16.xpose.msra.mxu0 %v3573
        %3577 = vmatprep.subr.bf16.mxu0 0
        %3578 = vmatpush1.bf16.xpose.msra.mxu0 0
        %3579 = vmatprep.subr.bf16.mxu0 0
        %3580 = vmatpush1.bf16.xpose.msra.mxu0 0
        %3581 = vmatprep.subr.bf16.mxu0 0
        %3582 = vmatpush1.bf16.xpose.msra.mxu0 0
        %3583 = vmatprep.subr.bf16.mxu0 0
        %3584 = vmatpush1.bf16.xpose.msra.mxu0 0
        %3585 = vmatprep.subr.bf16.mxu0 0
        %3586 = vmatpush1.bf16.xpose.msra.mxu0 0
        %3587 = vmatprep.subr.bf16.mxu0 0
        %3588 = vmatpush1.bf16.xpose.msra.mxu0 0
        %3589 = vmatprep.subr.bf16.mxu0 0
        %3590 = vmatpush1.bf16.xpose.msra.mxu0 0
        %3591 = vmatprep.subr.bf16.mxu0 0
        %3592 = vmatpush1.bf16.xpose.msra.mxu0 0
        %3593 = vmatprep.subr.bf16.mxu0 0
        %3594 = vmatpush1.bf16.xpose.msra.mxu0 0
        %3595 = vmatprep.subr.bf16.mxu0 0
        %3596 = vmatpush1.bf16.xpose.msra.mxu0 0
        %3597 = vmatprep.subr.bf16.mxu0 0
        %3598 = vmatpush1.bf16.xpose.msra.mxu0 0
        %3599 = vmatprep.subr.bf16.mxu0 0
        %3600 = vmatpush1.bf16.xpose.msra.mxu0 0
        %3601 = vmatprep.subr.bf16.mxu0 0
        %3602 = vmatpush1.bf16.xpose.msra.mxu0 0
        %3603 = vmatprep.subr.bf16.mxu0 0
        %3604 = vmatpush1.bf16.xpose.msra.mxu0 0
        %3605 = vmatprep.subr.bf16.mxu0 0
        %3606 = vmatpush1.bf16.xpose.msra.mxu0 0
        %3607 = vmatprep.mubr.bf16.mxu0 0
        %3608 = vmatmul.mubr.bf16.gmra.mrb[0].mxu0 %v3570
        %v3609 = vpop.f32.mrb[0].mxu0
        %v3610 = vadd.f32 %v3282, %v3609
        %v3611 = vpop.f32.mrb[0].mxu0
        %v3612 = vpop.f32.mrb[0].mxu0
        %v3613 = vpop.f32.mrb[0].mxu0
        %3614 = vdwg.mxu0
        %v3616 = vsel %vm1621, %v3517, 0
        %v3619 = vsel %vm1621, %v3521, 0
        %3621 = vmatprep.subr.bf16.mxu0 0
        %3622 = vmatpush1.bf16.xpose.msra.mxu0 %v3619
        %3623 = vmatprep.subr.bf16.mxu0 0
        %3624 = vmatpush1.bf16.xpose.msra.mxu0 0
        %3625 = vmatprep.subr.bf16.mxu0 0
        %3626 = vmatpush1.bf16.xpose.msra.mxu0 0
        %3627 = vmatprep.subr.bf16.mxu0 0
        %3628 = vmatpush1.bf16.xpose.msra.mxu0 0
        %3629 = vmatprep.subr.bf16.mxu0 0
        %3630 = vmatpush1.bf16.xpose.msra.mxu0 0
        %3631 = vmatprep.subr.bf16.mxu0 0
        %3632 = vmatpush1.bf16.xpose.msra.mxu0 0
        %3633 = vmatprep.subr.bf16.mxu0 0
        %3634 = vmatpush1.bf16.xpose.msra.mxu0 0
        %3635 = vmatprep.subr.bf16.mxu0 0
        %3636 = vmatpush1.bf16.xpose.msra.mxu0 0
        %3637 = vmatprep.subr.bf16.mxu0 0
        %3638 = vmatpush1.bf16.xpose.msra.mxu0 0
        %3639 = vmatprep.subr.bf16.mxu0 0
        %3640 = vmatpush1.bf16.xpose.msra.mxu0 0
        %3641 = vmatprep.subr.bf16.mxu0 0
        %3642 = vmatpush1.bf16.xpose.msra.mxu0 0
        %3643 = vmatprep.subr.bf16.mxu0 0
        %3644 = vmatpush1.bf16.xpose.msra.mxu0 0
        %3645 = vmatprep.subr.bf16.mxu0 0
        %3646 = vmatpush1.bf16.xpose.msra.mxu0 0
        %3647 = vmatprep.subr.bf16.mxu0 0
        %3648 = vmatpush1.bf16.xpose.msra.mxu0 0
        %3649 = vmatprep.subr.bf16.mxu0 0
        %3650 = vmatpush1.bf16.xpose.msra.mxu0 0
        %3651 = vmatprep.subr.bf16.mxu0 0
        %3652 = vmatpush1.bf16.xpose.msra.mxu0 0
        %3653 = vmatprep.mubr.bf16.mxu0 0
        %3654 = vmatmul.mubr.bf16.gmra.mrb[0].mxu0 %v3616
        %v3655 = vpop.f32.mrb[0].mxu0
        %v3656 = vadd.f32 %v3282, %v3655
        %v3657 = vpop.f32.mrb[0].mxu0
        %v3658 = vpop.f32.mrb[0].mxu0
        %v3659 = vpop.f32.mrb[0].mxu0
        %3660 = vdwg.mxu0
        %v3662 = vsel %vm1621, %v3518, 0
        %v3665 = vsel %vm1621, %v3522, 0
        %3667 = vmatprep.subr.bf16.mxu0 0
        %3668 = vmatpush1.bf16.xpose.msra.mxu0 %v3665
        %3669 = vmatprep.subr.bf16.mxu0 0
        %3670 = vmatpush1.bf16.xpose.msra.mxu0 0
        %3671 = vmatprep.subr.bf16.mxu0 0
        %3672 = vmatpush1.bf16.xpose.msra.mxu0 0
        %3673 = vmatprep.subr.bf16.mxu0 0
        %3674 = vmatpush1.bf16.xpose.msra.mxu0 0
        %3675 = vmatprep.subr.bf16.mxu0 0
        %3676 = vmatpush1.bf16.xpose.msra.mxu0 0
        %3677 = vmatprep.subr.bf16.mxu0 0
        %3678 = vmatpush1.bf16.xpose.msra.mxu0 0
        %3679 = vmatprep.subr.bf16.mxu0 0
        %3680 = vmatpush1.bf16.xpose.msra.mxu0 0
        %3681 = vmatprep.subr.bf16.mxu0 0
        %3682 = vmatpush1.bf16.xpose.msra.mxu0 0
        %3683 = vmatprep.subr.bf16.mxu0 0
        %3684 = vmatpush1.bf16.xpose.msra.mxu0 0
        %3685 = vmatprep.subr.bf16.mxu0 0
        %3686 = vmatpush1.bf16.xpose.msra.mxu0 0
        %3687 = vmatprep.subr.bf16.mxu0 0
        %3688 = vmatpush1.bf16.xpose.msra.mxu0 0
        %3689 = vmatprep.subr.bf16.mxu0 0
        %3690 = vmatpush1.bf16.xpose.msra.mxu0 0
        %3691 = vmatprep.subr.bf16.mxu0 0
        %3692 = vmatpush1.bf16.xpose.msra.mxu0 0
        %3693 = vmatprep.subr.bf16.mxu0 0
        %3694 = vmatpush1.bf16.xpose.msra.mxu0 0
        %3695 = vmatprep.subr.bf16.mxu0 0
        %3696 = vmatpush1.bf16.xpose.msra.mxu0 0
        %3697 = vmatprep.subr.bf16.mxu0 0
        %3698 = vmatpush1.bf16.xpose.msra.mxu0 0
        %3699 = vmatprep.mubr.bf16.mxu0 0
        %3700 = vmatmul.mubr.bf16.gmra.mrb[0].mxu0 %v3662
        %v3701 = vpop.f32.mrb[0].mxu0
        %v3702 = vadd.f32 %v3282, %v3701
        %v3703 = vpop.f32.mrb[0].mxu0
        %v3704 = vpop.f32.mrb[0].mxu0
        %v3705 = vpop.f32.mrb[0].mxu0
        %3706 = vdwg.mxu0
        %v3707 = vsel %vm1621, %v3564, -inf
        %3708 = vmax.xlane.f32.xlu0 %v3707
        %v3709 = vpop.xlane.xlu0 %3708
        %v3710 = vsel %vm1621, %v3610, -inf
        %3711 = vmax.xlane.f32.xlu0 %v3710
        %v3712 = vpop.xlane.xlu0 %3711
        %v3713 = vsel %vm1621, %v3656, -inf
        %3714 = vmax.xlane.f32.xlu0 %v3713
        %v3715 = vpop.xlane.xlu0 %3714
        %v3716 = vsel %vm1621, %v3702, -inf
        %3717 = vmax.xlane.f32.xlu0 %v3716
        %v3718 = vpop.xlane.xlu0 %3717
        %v3719 = vsub.f32 %v3564, %v3709
        %v3720 = vsub.f32 %v3610, %v3712
        %v3721 = vsub.f32 %v3656, %v3715
        %v3722 = vsub.f32 %v3702, %v3718
        %v3723 = vmul.f32 %v3719, 1.442695
        %v3724 = vpow.pop %v3723
        %v3725 = vmul.f32 %v3720, 1.442695
        %v3726 = vpow.pop %v3725
        %v3727 = vmul.f32 %v3721, 1.442695
        %v3728 = vpow.pop %v3727
        %v3729 = vmul.f32 %v3722, 1.442695
        %v3730 = vpow.pop %v3729
        %v3731 = vsel %vm1621, %v3724, 0.0
        %3732 = vadd.xlane.f32.xlu0 %v3731
        %v3733 = vpop.xlane.xlu0 %3732
        %v3734 = vsel %vm1621, %v3726, 0.0
        %3735 = vadd.xlane.f32.xlu0 %v3734
        %v3736 = vpop.xlane.xlu0 %3735
        %v3737 = vsel %vm1621, %v3728, 0.0
        %3738 = vadd.xlane.f32.xlu0 %v3737
        %v3739 = vpop.xlane.xlu0 %3738
        %v3740 = vsel %vm1621, %v3730, 0.0
        %3741 = vadd.xlane.f32.xlu0 %v3740
        %v3742 = vpop.xlane.xlu0 %3741
        %v3743 = vrcp.pop %v3733
        %v3744 = vrcp.pop %v3736
        %v3745 = vrcp.pop %v3739
        %v3746 = vrcp.pop %v3742
        %v3747 = vmul.f32 %v3724, %v3743
        %v3748 = vmul.f32 %v3726, %v3744
        %v3749 = vmul.f32 %v3728, %v3745
        %v3750 = vmul.f32 %v3730, %v3746
        %v3751 = vpack.c.bf16 %v3747, %v3747
        %v3752 = vpack.c.bf16 %v3748, %v3748
        %v3753 = vpack.c.bf16 %v3749, %v3749
        %v3754 = vpack.c.bf16 %v3750, %v3750
        %v3755 = vpack.c.bf16 %v3479, %v3479
        %v3756 = vpack.c.bf16 %v3507, %v3507
        %v3757 = vpack.c.bf16 %v3510, %v3510
        %v3758 = vpack.c.bf16 %v3513, %v3513
        %v3760 = vsel %vm1621, %v3751, 0
        %v3763 = vsel %vm1861, %v3755, 0
        %3765 = vmatprep.subr.bf16.mxu0 0
        %3766 = vmatpush1.bf16.msra.mxu0 %v3763
        %3767 = vmatprep.subr.bf16.mxu0 0
        %3768 = vmatpush1.bf16.msra.mxu0 0
        %3769 = vmatprep.subr.bf16.mxu0 0
        %3770 = vmatpush1.bf16.msra.mxu0 0
        %3771 = vmatprep.subr.bf16.mxu0 0
        %3772 = vmatpush1.bf16.msra.mxu0 0
        %3773 = vmatprep.subr.bf16.mxu0 0
        %3774 = vmatpush1.bf16.msra.mxu0 0
        %3775 = vmatprep.subr.bf16.mxu0 0
        %3776 = vmatpush1.bf16.msra.mxu0 0
        %3777 = vmatprep.subr.bf16.mxu0 0
        %3778 = vmatpush1.bf16.msra.mxu0 0
        %3779 = vmatprep.subr.bf16.mxu0 0
        %3780 = vmatpush1.bf16.msra.mxu0 0
        %3781 = vmatprep.subr.bf16.mxu0 0
        %3782 = vmatpush1.bf16.msra.mxu0 0
        %3783 = vmatprep.subr.bf16.mxu0 0
        %3784 = vmatpush1.bf16.msra.mxu0 0
        %3785 = vmatprep.subr.bf16.mxu0 0
        %3786 = vmatpush1.bf16.msra.mxu0 0
        %3787 = vmatprep.subr.bf16.mxu0 0
        %3788 = vmatpush1.bf16.msra.mxu0 0
        %3789 = vmatprep.subr.bf16.mxu0 0
        %3790 = vmatpush1.bf16.msra.mxu0 0
        %3791 = vmatprep.subr.bf16.mxu0 0
        %3792 = vmatpush1.bf16.msra.mxu0 0
        %3793 = vmatprep.subr.bf16.mxu0 0
        %3794 = vmatpush1.bf16.msra.mxu0 0
        %3795 = vmatprep.subr.bf16.mxu0 0
        %3796 = vmatpush1.bf16.msra.mxu0 0
        %3797 = vmatprep.mubr.bf16.mxu0 0
        %3798 = vmatmul.mubr.bf16.gmra.mrb[0].mxu0 %v3760
        %v3799 = vpop.f32.mrb[0].mxu0
        %v3800 = vadd.f32 0.0, %v3799
        %v3801 = vpop.f32.mrb[0].mxu0
        %v3802 = vpop.f32.mrb[0].mxu0
        %v3803 = vpop.f32.mrb[0].mxu0
        %3804 = vdwg.mxu0
        %v3806 = vsel %vm1621, %v3752, 0
        %v3809 = vsel %vm1861, %v3756, 0
        %3811 = vmatprep.subr.bf16.mxu0 0
        %3812 = vmatpush1.bf16.msra.mxu0 %v3809
        %3813 = vmatprep.subr.bf16.mxu0 0
        %3814 = vmatpush1.bf16.msra.mxu0 0
        %3815 = vmatprep.subr.bf16.mxu0 0
        %3816 = vmatpush1.bf16.msra.mxu0 0
        %3817 = vmatprep.subr.bf16.mxu0 0
        %3818 = vmatpush1.bf16.msra.mxu0 0
        %3819 = vmatprep.subr.bf16.mxu0 0
        %3820 = vmatpush1.bf16.msra.mxu0 0
        %3821 = vmatprep.subr.bf16.mxu0 0
        %3822 = vmatpush1.bf16.msra.mxu0 0
        %3823 = vmatprep.subr.bf16.mxu0 0
        %3824 = vmatpush1.bf16.msra.mxu0 0
        %3825 = vmatprep.subr.bf16.mxu0 0
        %3826 = vmatpush1.bf16.msra.mxu0 0
        %3827 = vmatprep.subr.bf16.mxu0 0
        %3828 = vmatpush1.bf16.msra.mxu0 0
        %3829 = vmatprep.subr.bf16.mxu0 0
        %3830 = vmatpush1.bf16.msra.mxu0 0
        %3831 = vmatprep.subr.bf16.mxu0 0
        %3832 = vmatpush1.bf16.msra.mxu0 0
        %3833 = vmatprep.subr.bf16.mxu0 0
        %3834 = vmatpush1.bf16.msra.mxu0 0
        %3835 = vmatprep.subr.bf16.mxu0 0
        %3836 = vmatpush1.bf16.msra.mxu0 0
        %3837 = vmatprep.subr.bf16.mxu0 0
        %3838 = vmatpush1.bf16.msra.mxu0 0
        %3839 = vmatprep.subr.bf16.mxu0 0
        %3840 = vmatpush1.bf16.msra.mxu0 0
        %3841 = vmatprep.subr.bf16.mxu0 0
        %3842 = vmatpush1.bf16.msra.mxu0 0
        %3843 = vmatprep.mubr.bf16.mxu0 0
        %3844 = vmatmul.mubr.bf16.gmra.mrb[0].mxu0 %v3806
        %v3845 = vpop.f32.mrb[0].mxu0
        %v3846 = vadd.f32 0.0, %v3845
        %v3847 = vpop.f32.mrb[0].mxu0
        %v3848 = vpop.f32.mrb[0].mxu0
        %v3849 = vpop.f32.mrb[0].mxu0
        %3850 = vdwg.mxu0
        %v3852 = vsel %vm1621, %v3753, 0
        %v3855 = vsel %vm1861, %v3757, 0
        %3857 = vmatprep.subr.bf16.mxu0 0
        %3858 = vmatpush1.bf16.msra.mxu0 %v3855
        %3859 = vmatprep.subr.bf16.mxu0 0
        %3860 = vmatpush1.bf16.msra.mxu0 0
        %3861 = vmatprep.subr.bf16.mxu0 0
        %3862 = vmatpush1.bf16.msra.mxu0 0
        %3863 = vmatprep.subr.bf16.mxu0 0
        %3864 = vmatpush1.bf16.msra.mxu0 0
        %3865 = vmatprep.subr.bf16.mxu0 0
        %3866 = vmatpush1.bf16.msra.mxu0 0
        %3867 = vmatprep.subr.bf16.mxu0 0
        %3868 = vmatpush1.bf16.msra.mxu0 0
        %3869 = vmatprep.subr.bf16.mxu0 0
        %3870 = vmatpush1.bf16.msra.mxu0 0
        %3871 = vmatprep.subr.bf16.mxu0 0
        %3872 = vmatpush1.bf16.msra.mxu0 0
        %3873 = vmatprep.subr.bf16.mxu0 0
        %3874 = vmatpush1.bf16.msra.mxu0 0
        %3875 = vmatprep.subr.bf16.mxu0 0
        %3876 = vmatpush1.bf16.msra.mxu0 0
        %3877 = vmatprep.subr.bf16.mxu0 0
        %3878 = vmatpush1.bf16.msra.mxu0 0
        %3879 = vmatprep.subr.bf16.mxu0 0
        %3880 = vmatpush1.bf16.msra.mxu0 0
        %3881 = vmatprep.subr.bf16.mxu0 0
        %3882 = vmatpush1.bf16.msra.mxu0 0
        %3883 = vmatprep.subr.bf16.mxu0 0
        %3884 = vmatpush1.bf16.msra.mxu0 0
        %3885 = vmatprep.subr.bf16.mxu0 0
        %3886 = vmatpush1.bf16.msra.mxu0 0
        %3887 = vmatprep.subr.bf16.mxu0 0
        %3888 = vmatpush1.bf16.msra.mxu0 0
        %3889 = vmatprep.mubr.bf16.mxu0 0
        %3890 = vmatmul.mubr.bf16.gmra.mrb[0].mxu0 %v3852
        %v3891 = vpop.f32.mrb[0].mxu0
        %v3892 = vadd.f32 0.0, %v3891
        %v3893 = vpop.f32.mrb[0].mxu0
        %v3894 = vpop.f32.mrb[0].mxu0
        %v3895 = vpop.f32.mrb[0].mxu0
        %3896 = vdwg.mxu0
        %v3898 = vsel %vm1621, %v3754, 0
        %v3901 = vsel %vm1861, %v3758, 0
        %3903 = vmatprep.subr.bf16.mxu0 0
        %3904 = vmatpush1.bf16.msra.mxu0 %v3901
        %3905 = vmatprep.subr.bf16.mxu0 0
        %3906 = vmatpush1.bf16.msra.mxu0 0
        %3907 = vmatprep.subr.bf16.mxu0 0
        %3908 = vmatpush1.bf16.msra.mxu0 0
        %3909 = vmatprep.subr.bf16.mxu0 0
        %3910 = vmatpush1.bf16.msra.mxu0 0
        %3911 = vmatprep.subr.bf16.mxu0 0
        %3912 = vmatpush1.bf16.msra.mxu0 0
        %3913 = vmatprep.subr.bf16.mxu0 0
        %3914 = vmatpush1.bf16.msra.mxu0 0
        %3915 = vmatprep.subr.bf16.mxu0 0
        %3916 = vmatpush1.bf16.msra.mxu0 0
        %3917 = vmatprep.subr.bf16.mxu0 0
        %3918 = vmatpush1.bf16.msra.mxu0 0
        %3919 = vmatprep.subr.bf16.mxu0 0
        %3920 = vmatpush1.bf16.msra.mxu0 0
        %3921 = vmatprep.subr.bf16.mxu0 0
        %3922 = vmatpush1.bf16.msra.mxu0 0
        %3923 = vmatprep.subr.bf16.mxu0 0
        %3924 = vmatpush1.bf16.msra.mxu0 0
        %3925 = vmatprep.subr.bf16.mxu0 0
        %3926 = vmatpush1.bf16.msra.mxu0 0
        %3927 = vmatprep.subr.bf16.mxu0 0
        %3928 = vmatpush1.bf16.msra.mxu0 0
        %3929 = vmatprep.subr.bf16.mxu0 0
        %3930 = vmatpush1.bf16.msra.mxu0 0
        %3931 = vmatprep.subr.bf16.mxu0 0
        %3932 = vmatpush1.bf16.msra.mxu0 0
        %3933 = vmatprep.subr.bf16.mxu0 0
        %3934 = vmatpush1.bf16.msra.mxu0 0
        %3935 = vmatprep.mubr.bf16.mxu0 0
        %3936 = vmatmul.mubr.bf16.gmra.mrb[0].mxu0 %v3898
        %v3937 = vpop.f32.mrb[0].mxu0
        %v3938 = vadd.f32 0.0, %v3937
        %v3939 = vpop.f32.mrb[0].mxu0
        %v3940 = vpop.f32.mrb[0].mxu0
        %v3941 = vpop.f32.mrb[0].mxu0
        %3942 = vdwg.mxu0
        %3944 = vrot.lane.b32.xlu0 %v3846, 8
        %v3945 = vpop.permute.xlu0 %3944
        %3948 = vrot.lane.b32.xlu0 %v3892, 16
        %v3949 = vpop.permute.xlu0 %3948
        %3952 = vrot.lane.b32.xlu0 %v3938, 24
        %v3953 = vpop.permute.xlu0 %3952
        %v3955 = vsel %vm1621, %v3800, %v3945
        %v3956 = vsel %vm2056, %v3955, %v3949
        %v3957 = vsel %vm2058, %v3956, %v3953
        %v3958 = vpack.c.bf16 %v3957, %v3957
        %v3960 = vlaneseq
        %v3961 = vshrl.u32 %v3960, 7
        %v3962 = vsub.s32 0, %v3961
        %v3963 = vrot.slane %v3293, %v3962
        %v3969 = vunpack.c.l.b16 %v3289
        %v3970 = vunpack.c.l.b16 %v3290
        %v3971 = vunpack.c.l.b16 %v3291
        %v3972 = vunpack.c.l.b16 %v3292
        %v3973 = vpack.c.b16 %v3970, %v3969
        %v3974 = vpack.c.b16 %v3972, %v3971
        %v3978 = vsel %vm1440, %v3958, 0
        %3980 = vmatprep.subr.bf16.mxu0 0
        %3981 = vmatpush1.bf16.msra.mxu0 %v3973
        %3982 = vmatprep.subr.bf16.mxu0 0
        %3983 = vmatpush1.bf16.msra.mxu0 %v3974
        %3984 = vmatprep.subr.bf16.mxu0 0
        %3985 = vmatpush1.bf16.msra.mxu0 0
        %3986 = vmatprep.subr.bf16.mxu0 0
        %3987 = vmatpush1.bf16.msra.mxu0 0
        %3988 = vmatprep.subr.bf16.mxu0 0
        %3989 = vmatpush1.bf16.msra.mxu0 0
        %3990 = vmatprep.subr.bf16.mxu0 0
        %3991 = vmatpush1.bf16.msra.mxu0 0
        %3992 = vmatprep.subr.bf16.mxu0 0
        %3993 = vmatpush1.bf16.msra.mxu0 0
        %3994 = vmatprep.subr.bf16.mxu0 0
        %3995 = vmatpush1.bf16.msra.mxu0 0
        %3996 = vmatprep.subr.bf16.mxu0 0
        %3997 = vmatpush1.bf16.msra.mxu0 0
        %3998 = vmatprep.subr.bf16.mxu0 0
        %3999 = vmatpush1.bf16.msra.mxu0 0
        %4000 = vmatprep.subr.bf16.mxu0 0
        %4001 = vmatpush1.bf16.msra.mxu0 0
        %4002 = vmatprep.subr.bf16.mxu0 0
        %4003 = vmatpush1.bf16.msra.mxu0 0
        %4004 = vmatprep.subr.bf16.mxu0 0
        %4005 = vmatpush1.bf16.msra.mxu0 0
        %4006 = vmatprep.subr.bf16.mxu0 0
        %4007 = vmatpush1.bf16.msra.mxu0 0
        %4008 = vmatprep.subr.bf16.mxu0 0
        %4009 = vmatpush1.bf16.msra.mxu0 0
        %4010 = vmatprep.subr.bf16.mxu0 0
        %4011 = vmatpush1.bf16.msra.mxu0 0
        %4012 = vmatprep.mubr.bf16.mxu0 0
        %4013 = vmatmul.mubr.bf16.gmra.mrb[0].mxu0 %v3978
        %v4014 = vpop.f32.mrb[0].mxu0
        %v4015 = vadd.f32 %v3963, %v4014
        %v4016 = vpop.f32.mrb[0].mxu0
        %v4017 = vpop.f32.mrb[0].mxu0
        %v4018 = vpop.f32.mrb[0].mxu0
        %4019 = vdwg.mxu0
        %v4020 = vadd.f32 %v3283, %v4015
        %v4021 = vsel %vm1440, %v4020, 0.0
        %4022 = vadd.xlane.f32.xlu0 %v4021
        %v4023 = vpop.xlane.xlu0 %4022
        %v4024 = vmul.f32 %v4023, %v2126
        %v4025 = vsub.f32 %v4020, %v4024
        %v4026 = vmul.f32 %v4025, %v4025
        %v4027 = vsel %vm1440, %v4026, 0.0
        %4028 = vadd.xlane.f32.xlu0 %v4027
        %v4029 = vpop.xlane.xlu0 %4028
        %v4030 = vmul.f32 %v4029, %v2126
        %v4031 = vadd.f32 %v4030, 1e-05
        %v4032 = vrsqrt.pop %v4031
        %v4033 = vmul.f32 %v4025, %v4032
        %v4035 = vlaneseq
        %v4036 = vshrl.u32 %v4035, 7
        %v4037 = vsub.s32 0, %v4036
        %v4038 = vrot.slane %v3318, %v4037
        %v4040 = vmul.f32 %v4033, %v4038
        %v4042 = vlaneseq
        %v4043 = vshrl.u32 %v4042, 7
        %v4044 = vsub.s32 0, %v4043
        %v4045 = vrot.slane %v3319, %v4044
        %v4047 = vadd.f32 %v4040, %v4045
        %v4048 = vpack.c.bf16 %v4047, %v4047
        %v4050 = vlaneseq
        %v4051 = vshrl.u32 %v4050, 7
        %v4052 = vsub.s32 0, %v4051
        %v4053 = vrot.slane %v3298, %v4052
        %v4059 = vunpack.c.l.b16 %v3294
        %v4060 = vunpack.c.l.b16 %v3295
        %v4061 = vunpack.c.l.b16 %v3296
        %v4062 = vunpack.c.l.b16 %v3297
        %v4063 = vpack.c.b16 %v4060, %v4059
        %v4064 = vpack.c.b16 %v4062, %v4061
        %v4068 = vsel %vm1440, %v4048, 0
        %4070 = vmatprep.subr.bf16.mxu0 0
        %4071 = vmatpush1.bf16.msra.mxu0 %v4063
        %4072 = vmatprep.subr.bf16.mxu0 0
        %4073 = vmatpush1.bf16.msra.mxu0 %v4064
        %4074 = vmatprep.subr.bf16.mxu0 0
        %4075 = vmatpush1.bf16.msra.mxu0 0
        %4076 = vmatprep.subr.bf16.mxu0 0
        %4077 = vmatpush1.bf16.msra.mxu0 0
        %4078 = vmatprep.subr.bf16.mxu0 0
        %4079 = vmatpush1.bf16.msra.mxu0 0
        %4080 = vmatprep.subr.bf16.mxu0 0
        %4081 = vmatpush1.bf16.msra.mxu0 0
        %4082 = vmatprep.subr.bf16.mxu0 0
        %4083 = vmatpush1.bf16.msra.mxu0 0
        %4084 = vmatprep.subr.bf16.mxu0 0
        %4085 = vmatpush1.bf16.msra.mxu0 0
        %4086 = vmatprep.subr.bf16.mxu0 0
        %4087 = vmatpush1.bf16.msra.mxu0 0
        %4088 = vmatprep.subr.bf16.mxu0 0
        %4089 = vmatpush1.bf16.msra.mxu0 0
        %4090 = vmatprep.subr.bf16.mxu0 0
        %4091 = vmatpush1.bf16.msra.mxu0 0
        %4092 = vmatprep.subr.bf16.mxu0 0
        %4093 = vmatpush1.bf16.msra.mxu0 0
        %4094 = vmatprep.subr.bf16.mxu0 0
        %4095 = vmatpush1.bf16.msra.mxu0 0
        %4096 = vmatprep.subr.bf16.mxu0 0
        %4097 = vmatpush1.bf16.msra.mxu0 0
        %4098 = vmatprep.subr.bf16.mxu0 0
        %4099 = vmatpush1.bf16.msra.mxu0 0
        %4100 = vmatprep.subr.bf16.mxu0 0
        %4101 = vmatpush1.bf16.msra.mxu0 0
        %4102 = vmatprep.mubr.bf16.mxu0 0
        %4103 = vmatmul.mubr.bf16.gmra.mrb[0].mxu0 %v4068
        %v4104 = vpop.f32.mrb[0].mxu0
        %v4105 = vadd.f32 %v4053, %v4104
        %v4106 = vpop.f32.mrb[0].mxu0
        %v4107 = vpop.f32.mrb[0].mxu0
        %v4108 = vpop.f32.mrb[0].mxu0
        %4109 = vdwg.mxu0
        %v4110 = vpack.c.bf16 %v3276, %v3276
        %4111 = vrot.lane.b32.xlu0 %v4063, 96
        %v4112 = vpop.permute.xlu0 %4111
        %4113 = vrot.lane.b32.xlu0 %v4064, 96
        %v4114 = vpop.permute.xlu0 %4113
        %4117 = vrot.lane.b32.xlu0 %v4053, 96
        %v4118 = vpop.permute.xlu0 %4117
        %v4121 = vsel %vm1440, %v4110, 0
        %4123 = vmatprep.subr.bf16.mxu0 0
        %4124 = vmatpush1.bf16.msra.mxu0 %v4112
        %4125 = vmatprep.subr.bf16.mxu0 0
        %4126 = vmatpush1.bf16.msra.mxu0 %v4114
        %4127 = vmatprep.subr.bf16.mxu0 0
        %4128 = vmatpush1.bf16.msra.mxu0 0
        %4129 = vmatprep.subr.bf16.mxu0 0
        %4130 = vmatpush1.bf16.msra.mxu0 0
        %4131 = vmatprep.subr.bf16.mxu0 0
        %4132 = vmatpush1.bf16.msra.mxu0 0
        %4133 = vmatprep.subr.bf16.mxu0 0
        %4134 = vmatpush1.bf16.msra.mxu0 0
        %4135 = vmatprep.subr.bf16.mxu0 0
        %4136 = vmatpush1.bf16.msra.mxu0 0
        %4137 = vmatprep.subr.bf16.mxu0 0
        %4138 = vmatpush1.bf16.msra.mxu0 0
        %4139 = vmatprep.subr.bf16.mxu0 0
        %4140 = vmatpush1.bf16.msra.mxu0 0
        %4141 = vmatprep.subr.bf16.mxu0 0
        %4142 = vmatpush1.bf16.msra.mxu0 0
        %4143 = vmatprep.subr.bf16.mxu0 0
        %4144 = vmatpush1.bf16.msra.mxu0 0
        %4145 = vmatprep.subr.bf16.mxu0 0
        %4146 = vmatpush1.bf16.msra.mxu0 0
        %4147 = vmatprep.subr.bf16.mxu0 0
        %4148 = vmatpush1.bf16.msra.mxu0 0
        %4149 = vmatprep.subr.bf16.mxu0 0
        %4150 = vmatpush1.bf16.msra.mxu0 0
        %4151 = vmatprep.subr.bf16.mxu0 0
        %4152 = vmatpush1.bf16.msra.mxu0 0
        %4153 = vmatprep.subr.bf16.mxu0 0
        %4154 = vmatpush1.bf16.msra.mxu0 0
        %4155 = vmatprep.mubr.bf16.mxu0 0
        %4156 = vmatmul.mubr.bf16.gmra.mrb[0].mxu0 %v4121
        %v4157 = vpop.f32.mrb[0].mxu0
        %v4158 = vadd.f32 %v4118, %v4157
        %v4159 = vpop.f32.mrb[0].mxu0
        %v4160 = vpop.f32.mrb[0].mxu0
        %v4161 = vpop.f32.mrb[0].mxu0
        %4162 = vdwg.mxu0
        %4163 = vrot.lane.b32.xlu0 %v4063, 64
        %v4164 = vpop.permute.xlu0 %4163
        %4165 = vrot.lane.b32.xlu0 %v4064, 64
        %v4166 = vpop.permute.xlu0 %4165
        %4169 = vrot.lane.b32.xlu0 %v4053, 64
        %v4170 = vpop.permute.xlu0 %4169
        %4172 = vmatprep.subr.bf16.mxu0 0
        %4173 = vmatpush1.bf16.msra.mxu0 %v4164
        %4174 = vmatprep.subr.bf16.mxu0 0
        %4175 = vmatpush1.bf16.msra.mxu0 %v4166
        %4176 = vmatprep.subr.bf16.mxu0 0
        %4177 = vmatpush1.bf16.msra.mxu0 0
        %4178 = vmatprep.subr.bf16.mxu0 0
        %4179 = vmatpush1.bf16.msra.mxu0 0
        %4180 = vmatprep.subr.bf16.mxu0 0
        %4181 = vmatpush1.bf16.msra.mxu0 0
        %4182 = vmatprep.subr.bf16.mxu0 0
        %4183 = vmatpush1.bf16.msra.mxu0 0
        %4184 = vmatprep.subr.bf16.mxu0 0
        %4185 = vmatpush1.bf16.msra.mxu0 0
        %4186 = vmatprep.subr.bf16.mxu0 0
        %4187 = vmatpush1.bf16.msra.mxu0 0
        %4188 = vmatprep.subr.bf16.mxu0 0
        %4189 = vmatpush1.bf16.msra.mxu0 0
        %4190 = vmatprep.subr.bf16.mxu0 0
        %4191 = vmatpush1.bf16.msra.mxu0 0
        %4192 = vmatprep.subr.bf16.mxu0 0
        %4193 = vmatpush1.bf16.msra.mxu0 0
        %4194 = vmatprep.subr.bf16.mxu0 0
        %4195 = vmatpush1.bf16.msra.mxu0 0
        %4196 = vmatprep.subr.bf16.mxu0 0
        %4197 = vmatpush1.bf16.msra.mxu0 0
        %4198 = vmatprep.subr.bf16.mxu0 0
        %4199 = vmatpush1.bf16.msra.mxu0 0
        %4200 = vmatprep.subr.bf16.mxu0 0
        %4201 = vmatpush1.bf16.msra.mxu0 0
        %4202 = vmatprep.subr.bf16.mxu0 0
        %4203 = vmatpush1.bf16.msra.mxu0 0
        %4204 = vmatprep.mubr.bf16.mxu0 0
        %4205 = vmatmul.mubr.bf16.gmra.mrb[0].mxu0 %v4121
        %v4206 = vpop.f32.mrb[0].mxu0
        %v4207 = vadd.f32 %v4170, %v4206
        %v4208 = vpop.f32.mrb[0].mxu0
        %v4209 = vpop.f32.mrb[0].mxu0
        %v4210 = vpop.f32.mrb[0].mxu0
        %4211 = vdwg.mxu0
        %v4212 = vmul.f32 %v4105, 0.35355338
        %4214 = vrot.lane.b32.xlu0 %v4212, 120
        %v4215 = vpop.permute.xlu0 %4214
        %4217 = vrot.lane.b32.xlu0 %v4212, 112
        %v4218 = vpop.permute.xlu0 %4217
        %4220 = vrot.lane.b32.xlu0 %v4212, 104
        %v4221 = vpop.permute.xlu0 %4220
        %4224 = vrot.lane.b32.xlu0 %v4158, 120
        %v4225 = vpop.permute.xlu0 %4224
        %4227 = vrot.lane.b32.xlu0 %v4158, 112
        %v4228 = vpop.permute.xlu0 %4227
        %4230 = vrot.lane.b32.xlu0 %v4158, 104
        %v4231 = vpop.permute.xlu0 %4230
        %4234 = vrot.lane.b32.xlu0 %v4207, 120
        %v4235 = vpop.permute.xlu0 %4234
        %4237 = vrot.lane.b32.xlu0 %v4207, 112
        %v4238 = vpop.permute.xlu0 %4237
        %4240 = vrot.lane.b32.xlu0 %v4207, 104
        %v4241 = vpop.permute.xlu0 %4240
        %v4243 = vpack.c.bf16 %v4212, %v4212
        %v4244 = vpack.c.bf16 %v4215, %v4215
        %v4245 = vpack.c.bf16 %v4218, %v4218
        %v4246 = vpack.c.bf16 %v4221, %v4221
        %v4247 = vpack.c.bf16 %v4158, %v4158
        %v4248 = vpack.c.bf16 %v4225, %v4225
        %v4249 = vpack.c.bf16 %v4228, %v4228
        %v4250 = vpack.c.bf16 %v4231, %v4231
        %v4252 = vsel %vm1621, %v4243, 0
        %v4255 = vsel %vm1621, %v4247, 0
        %4257 = vmatprep.subr.bf16.mxu0 0
        %4258 = vmatpush1.bf16.xpose.msra.mxu0 %v4255
        %4259 = vmatprep.subr.bf16.mxu0 0
        %4260 = vmatpush1.bf16.xpose.msra.mxu0 0
        %4261 = vmatprep.subr.bf16.mxu0 0
        %4262 = vmatpush1.bf16.xpose.msra.mxu0 0
        %4263 = vmatprep.subr.bf16.mxu0 0
        %4264 = vmatpush1.bf16.xpose.msra.mxu0 0
        %4265 = vmatprep.subr.bf16.mxu0 0
        %4266 = vmatpush1.bf16.xpose.msra.mxu0 0
        %4267 = vmatprep.subr.bf16.mxu0 0
        %4268 = vmatpush1.bf16.xpose.msra.mxu0 0
        %4269 = vmatprep.subr.bf16.mxu0 0
        %4270 = vmatpush1.bf16.xpose.msra.mxu0 0
        %4271 = vmatprep.subr.bf16.mxu0 0
        %4272 = vmatpush1.bf16.xpose.msra.mxu0 0
        %4273 = vmatprep.subr.bf16.mxu0 0
        %4274 = vmatpush1.bf16.xpose.msra.mxu0 0
        %4275 = vmatprep.subr.bf16.mxu0 0
        %4276 = vmatpush1.bf16.xpose.msra.mxu0 0
        %4277 = vmatprep.subr.bf16.mxu0 0
        %4278 = vmatpush1.bf16.xpose.msra.mxu0 0
        %4279 = vmatprep.subr.bf16.mxu0 0
        %4280 = vmatpush1.bf16.xpose.msra.mxu0 0
        %4281 = vmatprep.subr.bf16.mxu0 0
        %4282 = vmatpush1.bf16.xpose.msra.mxu0 0
        %4283 = vmatprep.subr.bf16.mxu0 0
        %4284 = vmatpush1.bf16.xpose.msra.mxu0 0
        %4285 = vmatprep.subr.bf16.mxu0 0
        %4286 = vmatpush1.bf16.xpose.msra.mxu0 0
        %4287 = vmatprep.subr.bf16.mxu0 0
        %4288 = vmatpush1.bf16.xpose.msra.mxu0 0
        %4289 = vmatprep.mubr.bf16.mxu0 0
        %4290 = vmatmul.mubr.bf16.gmra.mrb[0].mxu0 %v4252
        %v4291 = vpop.f32.mrb[0].mxu0
        %v4292 = vadd.f32 0.0, %v4291
        %v4293 = vpop.f32.mrb[0].mxu0
        %v4294 = vpop.f32.mrb[0].mxu0
        %v4295 = vpop.f32.mrb[0].mxu0
        %4296 = vdwg.mxu0
        %v4298 = vsel %vm1621, %v4244, 0
        %v4301 = vsel %vm1621, %v4248, 0
        %4303 = vmatprep.subr.bf16.mxu0 0
        %4304 = vmatpush1.bf16.xpose.msra.mxu0 %v4301
        %4305 = vmatprep.subr.bf16.mxu0 0
        %4306 = vmatpush1.bf16.xpose.msra.mxu0 0
        %4307 = vmatprep.subr.bf16.mxu0 0
        %4308 = vmatpush1.bf16.xpose.msra.mxu0 0
        %4309 = vmatprep.subr.bf16.mxu0 0
        %4310 = vmatpush1.bf16.xpose.msra.mxu0 0
        %4311 = vmatprep.subr.bf16.mxu0 0
        %4312 = vmatpush1.bf16.xpose.msra.mxu0 0
        %4313 = vmatprep.subr.bf16.mxu0 0
        %4314 = vmatpush1.bf16.xpose.msra.mxu0 0
        %4315 = vmatprep.subr.bf16.mxu0 0
        %4316 = vmatpush1.bf16.xpose.msra.mxu0 0
        %4317 = vmatprep.subr.bf16.mxu0 0
        %4318 = vmatpush1.bf16.xpose.msra.mxu0 0
        %4319 = vmatprep.subr.bf16.mxu0 0
        %4320 = vmatpush1.bf16.xpose.msra.mxu0 0
        %4321 = vmatprep.subr.bf16.mxu0 0
        %4322 = vmatpush1.bf16.xpose.msra.mxu0 0
        %4323 = vmatprep.subr.bf16.mxu0 0
        %4324 = vmatpush1.bf16.xpose.msra.mxu0 0
        %4325 = vmatprep.subr.bf16.mxu0 0
        %4326 = vmatpush1.bf16.xpose.msra.mxu0 0
        %4327 = vmatprep.subr.bf16.mxu0 0
        %4328 = vmatpush1.bf16.xpose.msra.mxu0 0
        %4329 = vmatprep.subr.bf16.mxu0 0
        %4330 = vmatpush1.bf16.xpose.msra.mxu0 0
        %4331 = vmatprep.subr.bf16.mxu0 0
        %4332 = vmatpush1.bf16.xpose.msra.mxu0 0
        %4333 = vmatprep.subr.bf16.mxu0 0
        %4334 = vmatpush1.bf16.xpose.msra.mxu0 0
        %4335 = vmatprep.mubr.bf16.mxu0 0
        %4336 = vmatmul.mubr.bf16.gmra.mrb[0].mxu0 %v4298
        %v4337 = vpop.f32.mrb[0].mxu0
        %v4338 = vadd.f32 0.0, %v4337
        %v4339 = vpop.f32.mrb[0].mxu0
        %v4340 = vpop.f32.mrb[0].mxu0
        %v4341 = vpop.f32.mrb[0].mxu0
        %4342 = vdwg.mxu0
        %v4344 = vsel %vm1621, %v4245, 0
        %v4347 = vsel %vm1621, %v4249, 0
        %4349 = vmatprep.subr.bf16.mxu0 0
        %4350 = vmatpush1.bf16.xpose.msra.mxu0 %v4347
        %4351 = vmatprep.subr.bf16.mxu0 0
        %4352 = vmatpush1.bf16.xpose.msra.mxu0 0
        %4353 = vmatprep.subr.bf16.mxu0 0
        %4354 = vmatpush1.bf16.xpose.msra.mxu0 0
        %4355 = vmatprep.subr.bf16.mxu0 0
        %4356 = vmatpush1.bf16.xpose.msra.mxu0 0
        %4357 = vmatprep.subr.bf16.mxu0 0
        %4358 = vmatpush1.bf16.xpose.msra.mxu0 0
        %4359 = vmatprep.subr.bf16.mxu0 0
        %4360 = vmatpush1.bf16.xpose.msra.mxu0 0
        %4361 = vmatprep.subr.bf16.mxu0 0
        %4362 = vmatpush1.bf16.xpose.msra.mxu0 0
        %4363 = vmatprep.subr.bf16.mxu0 0
        %4364 = vmatpush1.bf16.xpose.msra.mxu0 0
        %4365 = vmatprep.subr.bf16.mxu0 0
        %4366 = vmatpush1.bf16.xpose.msra.mxu0 0
        %4367 = vmatprep.subr.bf16.mxu0 0
        %4368 = vmatpush1.bf16.xpose.msra.mxu0 0
        %4369 = vmatprep.subr.bf16.mxu0 0
        %4370 = vmatpush1.bf16.xpose.msra.mxu0 0
        %4371 = vmatprep.subr.bf16.mxu0 0
        %4372 = vmatpush1.bf16.xpose.msra.mxu0 0
        %4373 = vmatprep.subr.bf16.mxu0 0
        %4374 = vmatpush1.bf16.xpose.msra.mxu0 0
        %4375 = vmatprep.subr.bf16.mxu0 0
        %4376 = vmatpush1.bf16.xpose.msra.mxu0 0
        %4377 = vmatprep.subr.bf16.mxu0 0
        %4378 = vmatpush1.bf16.xpose.msra.mxu0 0
        %4379 = vmatprep.subr.bf16.mxu0 0
        %4380 = vmatpush1.bf16.xpose.msra.mxu0 0
        %4381 = vmatprep.mubr.bf16.mxu0 0
        %4382 = vmatmul.mubr.bf16.gmra.mrb[0].mxu0 %v4344
        %v4383 = vpop.f32.mrb[0].mxu0
        %v4384 = vadd.f32 0.0, %v4383
        %v4385 = vpop.f32.mrb[0].mxu0
        %v4386 = vpop.f32.mrb[0].mxu0
        %v4387 = vpop.f32.mrb[0].mxu0
        %4388 = vdwg.mxu0
        %v4390 = vsel %vm1621, %v4246, 0
        %v4393 = vsel %vm1621, %v4250, 0
        %4395 = vmatprep.subr.bf16.mxu0 0
        %4396 = vmatpush1.bf16.xpose.msra.mxu0 %v4393
        %4397 = vmatprep.subr.bf16.mxu0 0
        %4398 = vmatpush1.bf16.xpose.msra.mxu0 0
        %4399 = vmatprep.subr.bf16.mxu0 0
        %4400 = vmatpush1.bf16.xpose.msra.mxu0 0
        %4401 = vmatprep.subr.bf16.mxu0 0
        %4402 = vmatpush1.bf16.xpose.msra.mxu0 0
        %4403 = vmatprep.subr.bf16.mxu0 0
        %4404 = vmatpush1.bf16.xpose.msra.mxu0 0
        %4405 = vmatprep.subr.bf16.mxu0 0
        %4406 = vmatpush1.bf16.xpose.msra.mxu0 0
        %4407 = vmatprep.subr.bf16.mxu0 0
        %4408 = vmatpush1.bf16.xpose.msra.mxu0 0
        %4409 = vmatprep.subr.bf16.mxu0 0
        %4410 = vmatpush1.bf16.xpose.msra.mxu0 0
        %4411 = vmatprep.subr.bf16.mxu0 0
        %4412 = vmatpush1.bf16.xpose.msra.mxu0 0
        %4413 = vmatprep.subr.bf16.mxu0 0
        %4414 = vmatpush1.bf16.xpose.msra.mxu0 0
        %4415 = vmatprep.subr.bf16.mxu0 0
        %4416 = vmatpush1.bf16.xpose.msra.mxu0 0
        %4417 = vmatprep.subr.bf16.mxu0 0
        %4418 = vmatpush1.bf16.xpose.msra.mxu0 0
        %4419 = vmatprep.subr.bf16.mxu0 0
        %4420 = vmatpush1.bf16.xpose.msra.mxu0 0
        %4421 = vmatprep.subr.bf16.mxu0 0
        %4422 = vmatpush1.bf16.xpose.msra.mxu0 0
        %4423 = vmatprep.subr.bf16.mxu0 0
        %4424 = vmatpush1.bf16.xpose.msra.mxu0 0
        %4425 = vmatprep.subr.bf16.mxu0 0
        %4426 = vmatpush1.bf16.xpose.msra.mxu0 0
        %4427 = vmatprep.mubr.bf16.mxu0 0
        %4428 = vmatmul.mubr.bf16.gmra.mrb[0].mxu0 %v4390
        %v4429 = vpop.f32.mrb[0].mxu0
        %v4430 = vadd.f32 0.0, %v4429
        %v4431 = vpop.f32.mrb[0].mxu0
        %v4432 = vpop.f32.mrb[0].mxu0
        %v4433 = vpop.f32.mrb[0].mxu0
        %4434 = vdwg.mxu0
        %v4435 = vsel %vm1621, %v4292, -inf
        %4436 = vmax.xlane.f32.xlu0 %v4435
        %v4437 = vpop.xlane.xlu0 %4436
        %v4438 = vsel %vm1621, %v4338, -inf
        %4439 = vmax.xlane.f32.xlu0 %v4438
        %v4440 = vpop.xlane.xlu0 %4439
        %v4441 = vsel %vm1621, %v4384, -inf
        %4442 = vmax.xlane.f32.xlu0 %v4441
        %v4443 = vpop.xlane.xlu0 %4442
        %v4444 = vsel %vm1621, %v4430, -inf
        %4445 = vmax.xlane.f32.xlu0 %v4444
        %v4446 = vpop.xlane.xlu0 %4445
        %v4447 = vsub.f32 %v4292, %v4437
        %v4448 = vsub.f32 %v4338, %v4440
        %v4449 = vsub.f32 %v4384, %v4443
        %v4450 = vsub.f32 %v4430, %v4446
        %v4451 = vmul.f32 %v4447, 1.442695
        %v4452 = vpow.pop %v4451
        %v4453 = vmul.f32 %v4448, 1.442695
        %v4454 = vpow.pop %v4453
        %v4455 = vmul.f32 %v4449, 1.442695
        %v4456 = vpow.pop %v4455
        %v4457 = vmul.f32 %v4450, 1.442695
        %v4458 = vpow.pop %v4457
        %v4459 = vsel %vm1621, %v4452, 0.0
        %4460 = vadd.xlane.f32.xlu0 %v4459
        %v4461 = vpop.xlane.xlu0 %4460
        %v4462 = vsel %vm1621, %v4454, 0.0
        %4463 = vadd.xlane.f32.xlu0 %v4462
        %v4464 = vpop.xlane.xlu0 %4463
        %v4465 = vsel %vm1621, %v4456, 0.0
        %4466 = vadd.xlane.f32.xlu0 %v4465
        %v4467 = vpop.xlane.xlu0 %4466
        %v4468 = vsel %vm1621, %v4458, 0.0
        %4469 = vadd.xlane.f32.xlu0 %v4468
        %v4470 = vpop.xlane.xlu0 %4469
        %v4471 = vrcp.pop %v4461
        %v4472 = vrcp.pop %v4464
        %v4473 = vrcp.pop %v4467
        %v4474 = vrcp.pop %v4470
        %v4475 = vmul.f32 %v4452, %v4471
        %v4476 = vmul.f32 %v4454, %v4472
        %v4477 = vmul.f32 %v4456, %v4473
        %v4478 = vmul.f32 %v4458, %v4474
        %v4479 = vpack.c.bf16 %v4475, %v4475
        %v4480 = vpack.c.bf16 %v4476, %v4476
        %v4481 = vpack.c.bf16 %v4477, %v4477
        %v4482 = vpack.c.bf16 %v4478, %v4478
        %v4483 = vpack.c.bf16 %v4207, %v4207
        %v4484 = vpack.c.bf16 %v4235, %v4235
        %v4485 = vpack.c.bf16 %v4238, %v4238
        %v4486 = vpack.c.bf16 %v4241, %v4241
        %v4488 = vsel %vm1621, %v4479, 0
        %v4491 = vsel %vm1861, %v4483, 0
        %4493 = vmatprep.subr.bf16.mxu0 0
        %4494 = vmatpush1.bf16.msra.mxu0 %v4491
        %4495 = vmatprep.subr.bf16.mxu0 0
        %4496 = vmatpush1.bf16.msra.mxu0 0
        %4497 = vmatprep.subr.bf16.mxu0 0
        %4498 = vmatpush1.bf16.msra.mxu0 0
        %4499 = vmatprep.subr.bf16.mxu0 0
        %4500 = vmatpush1.bf16.msra.mxu0 0
        %4501 = vmatprep.subr.bf16.mxu0 0
        %4502 = vmatpush1.bf16.msra.mxu0 0
        %4503 = vmatprep.subr.bf16.mxu0 0
        %4504 = vmatpush1.bf16.msra.mxu0 0
        %4505 = vmatprep.subr.bf16.mxu0 0
        %4506 = vmatpush1.bf16.msra.mxu0 0
        %4507 = vmatprep.subr.bf16.mxu0 0
        %4508 = vmatpush1.bf16.msra.mxu0 0
        %4509 = vmatprep.subr.bf16.mxu0 0
        %4510 = vmatpush1.bf16.msra.mxu0 0
        %4511 = vmatprep.subr.bf16.mxu0 0
        %4512 = vmatpush1.bf16.msra.mxu0 0
        %4513 = vmatprep.subr.bf16.mxu0 0
        %4514 = vmatpush1.bf16.msra.mxu0 0
        %4515 = vmatprep.subr.bf16.mxu0 0
        %4516 = vmatpush1.bf16.msra.mxu0 0
        %4517 = vmatprep.subr.bf16.mxu0 0
        %4518 = vmatpush1.bf16.msra.mxu0 0
        %4519 = vmatprep.subr.bf16.mxu0 0
        %4520 = vmatpush1.bf16.msra.mxu0 0
        %4521 = vmatprep.subr.bf16.mxu0 0
        %4522 = vmatpush1.bf16.msra.mxu0 0
        %4523 = vmatprep.subr.bf16.mxu0 0
        %4524 = vmatpush1.bf16.msra.mxu0 0
        %4525 = vmatprep.mubr.bf16.mxu0 0
        %4526 = vmatmul.mubr.bf16.gmra.mrb[0].mxu0 %v4488
        %v4527 = vpop.f32.mrb[0].mxu0
        %v4528 = vadd.f32 0.0, %v4527
        %v4529 = vpop.f32.mrb[0].mxu0
        %v4530 = vpop.f32.mrb[0].mxu0
        %v4531 = vpop.f32.mrb[0].mxu0
        %4532 = vdwg.mxu0
        %v4534 = vsel %vm1621, %v4480, 0
        %v4537 = vsel %vm1861, %v4484, 0
        %4539 = vmatprep.subr.bf16.mxu0 0
        %4540 = vmatpush1.bf16.msra.mxu0 %v4537
        %4541 = vmatprep.subr.bf16.mxu0 0
        %4542 = vmatpush1.bf16.msra.mxu0 0
        %4543 = vmatprep.subr.bf16.mxu0 0
        %4544 = vmatpush1.bf16.msra.mxu0 0
        %4545 = vmatprep.subr.bf16.mxu0 0
        %4546 = vmatpush1.bf16.msra.mxu0 0
        %4547 = vmatprep.subr.bf16.mxu0 0
        %4548 = vmatpush1.bf16.msra.mxu0 0
        %4549 = vmatprep.subr.bf16.mxu0 0
        %4550 = vmatpush1.bf16.msra.mxu0 0
        %4551 = vmatprep.subr.bf16.mxu0 0
        %4552 = vmatpush1.bf16.msra.mxu0 0
        %4553 = vmatprep.subr.bf16.mxu0 0
        %4554 = vmatpush1.bf16.msra.mxu0 0
        %4555 = vmatprep.subr.bf16.mxu0 0
        %4556 = vmatpush1.bf16.msra.mxu0 0
        %4557 = vmatprep.subr.bf16.mxu0 0
        %4558 = vmatpush1.bf16.msra.mxu0 0
        %4559 = vmatprep.subr.bf16.mxu0 0
        %4560 = vmatpush1.bf16.msra.mxu0 0
        %4561 = vmatprep.subr.bf16.mxu0 0
        %4562 = vmatpush1.bf16.msra.mxu0 0
        %4563 = vmatprep.subr.bf16.mxu0 0
        %4564 = vmatpush1.bf16.msra.mxu0 0
        %4565 = vmatprep.subr.bf16.mxu0 0
        %4566 = vmatpush1.bf16.msra.mxu0 0
        %4567 = vmatprep.subr.bf16.mxu0 0
        %4568 = vmatpush1.bf16.msra.mxu0 0
        %4569 = vmatprep.subr.bf16.mxu0 0
        %4570 = vmatpush1.bf16.msra.mxu0 0
        %4571 = vmatprep.mubr.bf16.mxu0 0
        %4572 = vmatmul.mubr.bf16.gmra.mrb[0].mxu0 %v4534
        %v4573 = vpop.f32.mrb[0].mxu0
        %v4574 = vadd.f32 0.0, %v4573
        %v4575 = vpop.f32.mrb[0].mxu0
        %v4576 = vpop.f32.mrb[0].mxu0
        %v4577 = vpop.f32.mrb[0].mxu0
        %4578 = vdwg.mxu0
        %v4580 = vsel %vm1621, %v4481, 0
        %v4583 = vsel %vm1861, %v4485, 0
        %4585 = vmatprep.subr.bf16.mxu0 0
        %4586 = vmatpush1.bf16.msra.mxu0 %v4583
        %4587 = vmatprep.subr.bf16.mxu0 0
        %4588 = vmatpush1.bf16.msra.mxu0 0
        %4589 = vmatprep.subr.bf16.mxu0 0
        %4590 = vmatpush1.bf16.msra.mxu0 0
        %4591 = vmatprep.subr.bf16.mxu0 0
        %4592 = vmatpush1.bf16.msra.mxu0 0
        %4593 = vmatprep.subr.bf16.mxu0 0
        %4594 = vmatpush1.bf16.msra.mxu0 0
        %4595 = vmatprep.subr.bf16.mxu0 0
        %4596 = vmatpush1.bf16.msra.mxu0 0
        %4597 = vmatprep.subr.bf16.mxu0 0
        %4598 = vmatpush1.bf16.msra.mxu0 0
        %4599 = vmatprep.subr.bf16.mxu0 0
        %4600 = vmatpush1.bf16.msra.mxu0 0
        %4601 = vmatprep.subr.bf16.mxu0 0
        %4602 = vmatpush1.bf16.msra.mxu0 0
        %4603 = vmatprep.subr.bf16.mxu0 0
        %4604 = vmatpush1.bf16.msra.mxu0 0
        %4605 = vmatprep.subr.bf16.mxu0 0
        %4606 = vmatpush1.bf16.msra.mxu0 0
        %4607 = vmatprep.subr.bf16.mxu0 0
        %4608 = vmatpush1.bf16.msra.mxu0 0
        %4609 = vmatprep.subr.bf16.mxu0 0
        %4610 = vmatpush1.bf16.msra.mxu0 0
        %4611 = vmatprep.subr.bf16.mxu0 0
        %4612 = vmatpush1.bf16.msra.mxu0 0
        %4613 = vmatprep.subr.bf16.mxu0 0
        %4614 = vmatpush1.bf16.msra.mxu0 0
        %4615 = vmatprep.subr.bf16.mxu0 0
        %4616 = vmatpush1.bf16.msra.mxu0 0
        %4617 = vmatprep.mubr.bf16.mxu0 0
        %4618 = vmatmul.mubr.bf16.gmra.mrb[0].mxu0 %v4580
        %v4619 = vpop.f32.mrb[0].mxu0
        %v4620 = vadd.f32 0.0, %v4619
        %v4621 = vpop.f32.mrb[0].mxu0
        %v4622 = vpop.f32.mrb[0].mxu0
        %v4623 = vpop.f32.mrb[0].mxu0
        %4624 = vdwg.mxu0
        %v4626 = vsel %vm1621, %v4482, 0
        %v4629 = vsel %vm1861, %v4486, 0
        %4631 = vmatprep.subr.bf16.mxu0 0
        %4632 = vmatpush1.bf16.msra.mxu0 %v4629
        %4633 = vmatprep.subr.bf16.mxu0 0
        %4634 = vmatpush1.bf16.msra.mxu0 0
        %4635 = vmatprep.subr.bf16.mxu0 0
        %4636 = vmatpush1.bf16.msra.mxu0 0
        %4637 = vmatprep.subr.bf16.mxu0 0
        %4638 = vmatpush1.bf16.msra.mxu0 0
        %4639 = vmatprep.subr.bf16.mxu0 0
        %4640 = vmatpush1.bf16.msra.mxu0 0
        %4641 = vmatprep.subr.bf16.mxu0 0
        %4642 = vmatpush1.bf16.msra.mxu0 0
        %4643 = vmatprep.subr.bf16.mxu0 0
        %4644 = vmatpush1.bf16.msra.mxu0 0
        %4645 = vmatprep.subr.bf16.mxu0 0
        %4646 = vmatpush1.bf16.msra.mxu0 0
        %4647 = vmatprep.subr.bf16.mxu0 0
        %4648 = vmatpush1.bf16.msra.mxu0 0
        %4649 = vmatprep.subr.bf16.mxu0 0
        %4650 = vmatpush1.bf16.msra.mxu0 0
        %4651 = vmatprep.subr.bf16.mxu0 0
        %4652 = vmatpush1.bf16.msra.mxu0 0
        %4653 = vmatprep.subr.bf16.mxu0 0
        %4654 = vmatpush1.bf16.msra.mxu0 0
        %4655 = vmatprep.subr.bf16.mxu0 0
        %4656 = vmatpush1.bf16.msra.mxu0 0
        %4657 = vmatprep.subr.bf16.mxu0 0
        %4658 = vmatpush1.bf16.msra.mxu0 0
        %4659 = vmatprep.subr.bf16.mxu0 0
        %4660 = vmatpush1.bf16.msra.mxu0 0
        %4661 = vmatprep.subr.bf16.mxu0 0
        %4662 = vmatpush1.bf16.msra.mxu0 0
        %4663 = vmatprep.mubr.bf16.mxu0 0
        %4664 = vmatmul.mubr.bf16.gmra.mrb[0].mxu0 %v4626
        %v4665 = vpop.f32.mrb[0].mxu0
        %v4666 = vadd.f32 0.0, %v4665
        %v4667 = vpop.f32.mrb[0].mxu0
        %v4668 = vpop.f32.mrb[0].mxu0
        %v4669 = vpop.f32.mrb[0].mxu0
        %4670 = vdwg.mxu0
        %4672 = vrot.lane.b32.xlu0 %v4574, 8
        %v4673 = vpop.permute.xlu0 %4672
        %4676 = vrot.lane.b32.xlu0 %v4620, 16
        %v4677 = vpop.permute.xlu0 %4676
        %4680 = vrot.lane.b32.xlu0 %v4666, 24
        %v4681 = vpop.permute.xlu0 %4680
        %v4683 = vsel %vm1621, %v4528, %v4673
        %v4684 = vsel %vm2056, %v4683, %v4677
        %v4685 = vsel %vm2058, %v4684, %v4681
        %v4686 = vpack.c.bf16 %v4685, %v4685
        %v4688 = vlaneseq
        %v4689 = vshrl.u32 %v4688, 7
        %v4690 = vsub.s32 0, %v4689
        %v4691 = vrot.slane %v3303, %v4690
        %v4697 = vunpack.c.l.b16 %v3299
        %v4698 = vunpack.c.l.b16 %v3300
        %v4699 = vunpack.c.l.b16 %v3301
        %v4700 = vunpack.c.l.b16 %v3302
        %v4701 = vpack.c.b16 %v4698, %v4697
        %v4702 = vpack.c.b16 %v4700, %v4699
        %v4706 = vsel %vm1440, %v4686, 0
        %4708 = vmatprep.subr.bf16.mxu0 0
        %4709 = vmatpush1.bf16.msra.mxu0 %v4701
        %4710 = vmatprep.subr.bf16.mxu0 0
        %4711 = vmatpush1.bf16.msra.mxu0 %v4702
        %4712 = vmatprep.subr.bf16.mxu0 0
        %4713 = vmatpush1.bf16.msra.mxu0 0
        %4714 = vmatprep.subr.bf16.mxu0 0
        %4715 = vmatpush1.bf16.msra.mxu0 0
        %4716 = vmatprep.subr.bf16.mxu0 0
        %4717 = vmatpush1.bf16.msra.mxu0 0
        %4718 = vmatprep.subr.bf16.mxu0 0
        %4719 = vmatpush1.bf16.msra.mxu0 0
        %4720 = vmatprep.subr.bf16.mxu0 0
        %4721 = vmatpush1.bf16.msra.mxu0 0
        %4722 = vmatprep.subr.bf16.mxu0 0
        %4723 = vmatpush1.bf16.msra.mxu0 0
        %4724 = vmatprep.subr.bf16.mxu0 0
        %4725 = vmatpush1.bf16.msra.mxu0 0
        %4726 = vmatprep.subr.bf16.mxu0 0
        %4727 = vmatpush1.bf16.msra.mxu0 0
        %4728 = vmatprep.subr.bf16.mxu0 0
        %4729 = vmatpush1.bf16.msra.mxu0 0
        %4730 = vmatprep.subr.bf16.mxu0 0
        %4731 = vmatpush1.bf16.msra.mxu0 0
        %4732 = vmatprep.subr.bf16.mxu0 0
        %4733 = vmatpush1.bf16.msra.mxu0 0
        %4734 = vmatprep.subr.bf16.mxu0 0
        %4735 = vmatpush1.bf16.msra.mxu0 0
        %4736 = vmatprep.subr.bf16.mxu0 0
        %4737 = vmatpush1.bf16.msra.mxu0 0
        %4738 = vmatprep.subr.bf16.mxu0 0
        %4739 = vmatpush1.bf16.msra.mxu0 0
        %4740 = vmatprep.mubr.bf16.mxu0 0
        %4741 = vmatmul.mubr.bf16.gmra.mrb[0].mxu0 %v4706
        %v4742 = vpop.f32.mrb[0].mxu0
        %v4743 = vadd.f32 %v4691, %v4742
        %v4744 = vpop.f32.mrb[0].mxu0
        %v4745 = vpop.f32.mrb[0].mxu0
        %v4746 = vpop.f32.mrb[0].mxu0
        %4747 = vdwg.mxu0
        %v4748 = vadd.f32 %v4047, %v4743
        %v4749 = vsel %vm1440, %v4748, 0.0
        %4750 = vadd.xlane.f32.xlu0 %v4749
        %v4751 = vpop.xlane.xlu0 %4750
        %v4752 = vmul.f32 %v4751, %v2126
        %v4753 = vsub.f32 %v4748, %v4752
        %v4754 = vmul.f32 %v4753, %v4753
        %v4755 = vsel %vm1440, %v4754, 0.0
        %4756 = vadd.xlane.f32.xlu0 %v4755
        %v4757 = vpop.xlane.xlu0 %4756
        %v4758 = vmul.f32 %v4757, %v2126
        %v4759 = vadd.f32 %v4758, 1e-05
        %v4760 = vrsqrt.pop %v4759
        %v4761 = vmul.f32 %v4753, %v4760
        %v4763 = vlaneseq
        %v4764 = vshrl.u32 %v4763, 7
        %v4765 = vsub.s32 0, %v4764
        %v4766 = vrot.slane %v3320, %v4765
        %v4768 = vmul.f32 %v4761, %v4766
        %v4770 = vlaneseq
        %v4771 = vshrl.u32 %v4770, 7
        %v4772 = vsub.s32 0, %v4771
        %v4773 = vrot.slane %v3321, %v4772
        %v4775 = vadd.f32 %v4768, %v4773
        %v4776 = vpack.c.bf16 %v4775, %v4775
        %v4778 = vlaneseq
        %v4779 = vshrl.u32 %v4778, 7
        %v4780 = vsub.s32 0, %v4779
        %v4781 = vrot.slane %v3308, %v4780
        %v4787 = vunpack.c.l.b16 %v3304
        %v4788 = vunpack.c.l.b16 %v3305
        %v4789 = vunpack.c.l.b16 %v3306
        %v4790 = vunpack.c.l.b16 %v3307
        %v4791 = vpack.c.b16 %v4788, %v4787
        %v4792 = vpack.c.b16 %v4790, %v4789
        %v4796 = vsel %vm1440, %v4776, 0
        %4798 = vmatprep.subr.bf16.mxu0 0
        %4799 = vmatpush1.bf16.msra.mxu0 %v4791
        %4800 = vmatprep.subr.bf16.mxu0 0
        %4801 = vmatpush1.bf16.msra.mxu0 %v4792
        %4802 = vmatprep.subr.bf16.mxu0 0
        %4803 = vmatpush1.bf16.msra.mxu0 0
        %4804 = vmatprep.subr.bf16.mxu0 0
        %4805 = vmatpush1.bf16.msra.mxu0 0
        %4806 = vmatprep.subr.bf16.mxu0 0
        %4807 = vmatpush1.bf16.msra.mxu0 0
        %4808 = vmatprep.subr.bf16.mxu0 0
        %4809 = vmatpush1.bf16.msra.mxu0 0
        %4810 = vmatprep.subr.bf16.mxu0 0
        %4811 = vmatpush1.bf16.msra.mxu0 0
        %4812 = vmatprep.subr.bf16.mxu0 0
        %4813 = vmatpush1.bf16.msra.mxu0 0
        %4814 = vmatprep.subr.bf16.mxu0 0
        %4815 = vmatpush1.bf16.msra.mxu0 0
        %4816 = vmatprep.subr.bf16.mxu0 0
        %4817 = vmatpush1.bf16.msra.mxu0 0
        %4818 = vmatprep.subr.bf16.mxu0 0
        %4819 = vmatpush1.bf16.msra.mxu0 0
        %4820 = vmatprep.subr.bf16.mxu0 0
        %4821 = vmatpush1.bf16.msra.mxu0 0
        %4822 = vmatprep.subr.bf16.mxu0 0
        %4823 = vmatpush1.bf16.msra.mxu0 0
        %4824 = vmatprep.subr.bf16.mxu0 0
        %4825 = vmatpush1.bf16.msra.mxu0 0
        %4826 = vmatprep.subr.bf16.mxu0 0
        %4827 = vmatpush1.bf16.msra.mxu0 0
        %4828 = vmatprep.subr.bf16.mxu0 0
        %4829 = vmatpush1.bf16.msra.mxu0 0
        %4830 = vmatprep.mubr.bf16.mxu0 0
        %4831 = vmatmul.mubr.bf16.gmra.mrb[0].mxu0 %v4796
        %v4832 = vpop.f32.mrb[0].mxu0
        %v4833 = vadd.f32 %v4781, %v4832
        %v4834 = vpop.f32.mrb[0].mxu0
        %v4835 = vpop.f32.mrb[0].mxu0
        %v4836 = vpop.f32.mrb[0].mxu0
        %4837 = vdwg.mxu0
        %v4838 = vmax.f32 %v4833, 0.0
        %v4839 = vpack.c.bf16 %v4838, %v4838
        %v4848 = vunpack.c.l.b16 %v3309
        %v4849 = vunpack.c.l.b16 %v3310
        %v4850 = vunpack.c.l.b16 %v3311
        %v4851 = vunpack.c.l.b16 %v3312
        %v4852 = vunpack.c.l.b16 %v3313
        %v4853 = vunpack.c.l.b16 %v3314
        %v4854 = vunpack.c.l.b16 %v3315
        %v4855 = vunpack.c.l.b16 %v3316
        %v4856 = vpack.c.b16 %v4849, %v4848
        %v4857 = vpack.c.b16 %v4851, %v4850
        %v4858 = vpack.c.b16 %v4853, %v4852
        %v4859 = vpack.c.b16 %v4855, %v4854
        %v4865 = vsel %vm2239, %v4839, 0
        %4867 = vmatprep.subr.bf16.mxu0 0
        %4868 = vmatpush1.bf16.msra.mxu0 %v4856
        %4869 = vmatprep.subr.bf16.mxu0 0
        %4870 = vmatpush1.bf16.msra.mxu0 %v4857
        %4871 = vmatprep.subr.bf16.mxu0 0
        %4872 = vmatpush1.bf16.msra.mxu0 %v4858
        %4873 = vmatprep.subr.bf16.mxu0 0
        %4874 = vmatpush1.bf16.msra.mxu0 %v4859
        %4875 = vmatprep.subr.bf16.mxu0 0
        %4876 = vmatpush1.bf16.msra.mxu0 0
        %4877 = vmatprep.subr.bf16.mxu0 0
        %4878 = vmatpush1.bf16.msra.mxu0 0
        %4879 = vmatprep.subr.bf16.mxu0 0
        %4880 = vmatpush1.bf16.msra.mxu0 0
        %4881 = vmatprep.subr.bf16.mxu0 0
        %4882 = vmatpush1.bf16.msra.mxu0 0
        %4883 = vmatprep.subr.bf16.mxu0 0
        %4884 = vmatpush1.bf16.msra.mxu0 0
        %4885 = vmatprep.subr.bf16.mxu0 0
        %4886 = vmatpush1.bf16.msra.mxu0 0
        %4887 = vmatprep.subr.bf16.mxu0 0
        %4888 = vmatpush1.bf16.msra.mxu0 0
        %4889 = vmatprep.subr.bf16.mxu0 0
        %4890 = vmatpush1.bf16.msra.mxu0 0
        %4891 = vmatprep.subr.bf16.mxu0 0
        %4892 = vmatpush1.bf16.msra.mxu0 0
        %4893 = vmatprep.subr.bf16.mxu0 0
        %4894 = vmatpush1.bf16.msra.mxu0 0
        %4895 = vmatprep.subr.bf16.mxu0 0
        %4896 = vmatpush1.bf16.msra.mxu0 0
        %4897 = vmatprep.subr.bf16.mxu0 0
        %4898 = vmatpush1.bf16.msra.mxu0 0
        %4899 = vmatprep.mubr.bf16.mxu0 0
        %4900 = vmatmul.mubr.bf16.gmra.mrb[0].mxu0 %v4865
        %v4901 = vpop.f32.mrb[0].mxu0
        %v4902 = vadd.f32 0.0, %v4901
        %v4903 = vpop.f32.mrb[0].mxu0
        %v4904 = vpop.f32.mrb[0].mxu0
        %v4905 = vpop.f32.mrb[0].mxu0
        %4906 = vdwg.mxu0
        %v4907 = vadd.f32 %v4775, %v4902
        %v4909 = vlaneseq
        %v4910 = vshrl.u32 %v4909, 7
        %v4911 = vsub.s32 0, %v4910
        %v4912 = vrot.slane %v3317, %v4911
        %v4914 = vadd.f32 %v4907, %v4912
        %v4915 = vsel %vm1440, %v4914, 0.0
        %4916 = vadd.xlane.f32.xlu0 %v4915
        %v4917 = vpop.xlane.xlu0 %4916
        %v4918 = vmul.f32 %v4917, %v2126
        %v4919 = vsub.f32 %v4914, %v4918
        %v4920 = vmul.f32 %v4919, %v4919
        %v4921 = vsel %vm1440, %v4920, 0.0
        %4922 = vadd.xlane.f32.xlu0 %v4921
        %v4923 = vpop.xlane.xlu0 %4922
        %v4924 = vmul.f32 %v4923, %v2126
        %v4925 = vadd.f32 %v4924, 1e-05
        %v4926 = vrsqrt.pop %v4925
        %v4927 = vmul.f32 %v4919, %v4926
        %v4929 = vlaneseq
        %v4930 = vshrl.u32 %v4929, 7
        %v4931 = vsub.s32 0, %v4930
        %v4932 = vrot.slane %v3322, %v4931
        %v4934 = vmul.f32 %v4927, %v4932
        %v4936 = vlaneseq
        %v4937 = vshrl.u32 %v4936, 7
        %v4938 = vsub.s32 0, %v4937
        %v4939 = vrot.slane %v3323, %v4938
        %v4941 = vadd.f32 %v4934, %v4939
        %s4942 = scalar_lea.vmem %s33, 16
        %v4943 = vld [vmem:[%s4942] sm:$0xf]
        %v4944 = vld [vmem:[%s4942 + $0x4] sm:$0xf]
        %v4945 = vld [vmem:[%s4942 + $0x8] sm:$0xf]
        %v4946 = vld [vmem:[%s4942 + $0xc] sm:$0xf]
        %s4947 = scalar_lea.vmem [#allocation22], 1
        %v4948 = vld [vmem:[%s4947] sm:$0x1]
        %s4949 = scalar_lea.vmem %s37, 16
        %v4950 = vld [vmem:[%s4949] sm:$0xf]
        %v4951 = vld [vmem:[%s4949 + $0x4] sm:$0xf]
        %v4952 = vld [vmem:[%s4949 + $0x8] sm:$0xf]
        %v4953 = vld [vmem:[%s4949 + $0xc] sm:$0xf]
        %s4954 = scalar_lea.vmem %s39, 1
        %v4955 = vld [vmem:[%s4954] sm:$0x1]
        %s4956 = scalar_lea.vmem %s41, 16
        %v4957 = vld [vmem:[%s4956] sm:$0xf]
        %v4958 = vld [vmem:[%s4956 + $0x4] sm:$0xf]
        %v4959 = vld [vmem:[%s4956 + $0x8] sm:$0xf]
        %v4960 = vld [vmem:[%s4956 + $0xc] sm:$0xf]
        %s4961 = scalar_lea.vmem [#allocation23], 1
        %v4962 = vld [vmem:[%s4961] sm:$0x1]
        %s4963 = scalar_lea.vmem %s45, 16
        %v4964 = vld [vmem:[%s4963] sm:$0xf]
        %v4965 = vld [vmem:[%s4963 + $0x4] sm:$0xf]
        %v4966 = vld [vmem:[%s4963 + $0x8] sm:$0xf]
        %v4967 = vld [vmem:[%s4963 + $0xc] sm:$0xf]
        %s4968 = scalar_lea.vmem %s47, 1
        %v4969 = vld [vmem:[%s4968] sm:$0x1]
        %s4970 = scalar_lea.vmem [#allocation25], 16
        %v4971 = vld [vmem:[%s4970] sm:$0xf]
        %v4972 = vld [vmem:[%s4970 + $0x4] sm:$0xf]
        %v4973 = vld [vmem:[%s4970 + $0x8] sm:$0xf]
        %v4974 = vld [vmem:[%s4970 + $0xc] sm:$0xf]
        %s4975 = scalar_lea.vmem %s51, 1
        %v4976 = vld [vmem:[%s4975] sm:$0x1]
        %s4977 = scalar_lea.vmem %s53, 32
        %v4978 = vld [vmem:[%s4977] sm:$0xf]
        %v4979 = vld [vmem:[%s4977 + $0x4] sm:$0xf]
        %v4980 = vld [vmem:[%s4977 + $0x8] sm:$0xf]
        %v4981 = vld [vmem:[%s4977 + $0xc] sm:$0xf]
        %v4982 = vld [vmem:[%s4977 + $0x10] sm:$0xf]
        %v4983 = vld [vmem:[%s4977 + $0x14] sm:$0xf]
        %v4984 = vld [vmem:[%s4977 + $0x18] sm:$0xf]
        %v4985 = vld [vmem:[%s4977 + $0x1c] sm:$0xf]
        %s4986 = scalar_lea.vmem %s55, 1
        %v4987 = vld [vmem:[%s4986] sm:$0x1]
        %s4988 = scalar_lea.vmem %s57, 1
        %v4989 = vld [vmem:[%s4988] sm:$0x1]
        %s4990 = scalar_lea.vmem %s59, 1
        %v4991 = vld [vmem:[%s4990] sm:$0x1]
        %s4992 = scalar_lea.vmem %s61, 1
        %v4993 = vld [vmem:[%s4992] sm:$0x1]
        %s4994 = scalar_lea.vmem %s63, 1
        %v4995 = vld [vmem:[%s4994] sm:$0x1]
        %s4996 = scalar_lea.vmem %s65, 1
        %v4997 = vld [vmem:[%s4996] sm:$0x1]
        %s4998 = scalar_lea.vmem %s67, 1
        %v4999 = vld [vmem:[%s4998] sm:$0x1]
        %v5000 = vpack.c.bf16 %v4941, %v4941
        %v5002 = vlaneseq
        %v5003 = vshrl.u32 %v5002, 7
        %v5004 = vsub.s32 0, %v5003
        %v5005 = vrot.slane %v4948, %v5004
        %v5011 = vunpack.c.l.b16 %v4943
        %v5012 = vunpack.c.l.b16 %v4944
        %v5013 = vunpack.c.l.b16 %v4945
        %v5014 = vunpack.c.l.b16 %v4946
        %v5015 = vpack.c.b16 %v5012, %v5011
        %v5016 = vpack.c.b16 %v5014, %v5013
        %v5020 = vsel %vm1440, %v5000, 0
        %5022 = vmatprep.subr.bf16.mxu0 0
        %5023 = vmatpush1.bf16.msra.mxu0 %v5015
        %5024 = vmatprep.subr.bf16.mxu0 0
        %5025 = vmatpush1.bf16.msra.mxu0 %v5016
        %5026 = vmatprep.subr.bf16.mxu0 0
        %5027 = vmatpush1.bf16.msra.mxu0 0
        %5028 = vmatprep.subr.bf16.mxu0 0
        %5029 = vmatpush1.bf16.msra.mxu0 0
        %5030 = vmatprep.subr.bf16.mxu0 0
        %5031 = vmatpush1.bf16.msra.mxu0 0
        %5032 = vmatprep.subr.bf16.mxu0 0
        %5033 = vmatpush1.bf16.msra.mxu0 0
        %5034 = vmatprep.subr.bf16.mxu0 0
        %5035 = vmatpush1.bf16.msra.mxu0 0
        %5036 = vmatprep.subr.bf16.mxu0 0
        %5037 = vmatpush1.bf16.msra.mxu0 0
        %5038 = vmatprep.subr.bf16.mxu0 0
        %5039 = vmatpush1.bf16.msra.mxu0 0
        %5040 = vmatprep.subr.bf16.mxu0 0
        %5041 = vmatpush1.bf16.msra.mxu0 0
        %5042 = vmatprep.subr.bf16.mxu0 0
        %5043 = vmatpush1.bf16.msra.mxu0 0
        %5044 = vmatprep.subr.bf16.mxu0 0
        %5045 = vmatpush1.bf16.msra.mxu0 0
        %5046 = vmatprep.subr.bf16.mxu0 0
        %5047 = vmatpush1.bf16.msra.mxu0 0
        %5048 = vmatprep.subr.bf16.mxu0 0
        %5049 = vmatpush1.bf16.msra.mxu0 0
        %5050 = vmatprep.subr.bf16.mxu0 0
        %5051 = vmatpush1.bf16.msra.mxu0 0
        %5052 = vmatprep.subr.bf16.mxu0 0
        %5053 = vmatpush1.bf16.msra.mxu0 0
        %5054 = vmatprep.mubr.bf16.mxu0 0
        %5055 = vmatmul.mubr.bf16.gmra.mrb[0].mxu0 %v5020
        %v5056 = vpop.f32.mrb[0].mxu0
        %v5057 = vadd.f32 %v5005, %v5056
        %v5058 = vpop.f32.mrb[0].mxu0
        %v5059 = vpop.f32.mrb[0].mxu0
        %v5060 = vpop.f32.mrb[0].mxu0
        %5061 = vdwg.mxu0
        %5062 = vrot.lane.b32.xlu0 %v5015, 96
        %v5063 = vpop.permute.xlu0 %5062
        %5064 = vrot.lane.b32.xlu0 %v5016, 96
        %v5065 = vpop.permute.xlu0 %5064
        %5068 = vrot.lane.b32.xlu0 %v5005, 96
        %v5069 = vpop.permute.xlu0 %5068
        %5071 = vmatprep.subr.bf16.mxu0 0
        %5072 = vmatpush1.bf16.msra.mxu0 %v5063
        %5073 = vmatprep.subr.bf16.mxu0 0
        %5074 = vmatpush1.bf16.msra.mxu0 %v5065
        %5075 = vmatprep.subr.bf16.mxu0 0
        %5076 = vmatpush1.bf16.msra.mxu0 0
        %5077 = vmatprep.subr.bf16.mxu0 0
        %5078 = vmatpush1.bf16.msra.mxu0 0
        %5079 = vmatprep.subr.bf16.mxu0 0
        %5080 = vmatpush1.bf16.msra.mxu0 0
        %5081 = vmatprep.subr.bf16.mxu0 0
        %5082 = vmatpush1.bf16.msra.mxu0 0
        %5083 = vmatprep.subr.bf16.mxu0 0
        %5084 = vmatpush1.bf16.msra.mxu0 0
        %5085 = vmatprep.subr.bf16.mxu0 0
        %5086 = vmatpush1.bf16.msra.mxu0 0
        %5087 = vmatprep.subr.bf16.mxu0 0
        %5088 = vmatpush1.bf16.msra.mxu0 0
        %5089 = vmatprep.subr.bf16.mxu0 0
        %5090 = vmatpush1.bf16.msra.mxu0 0
        %5091 = vmatprep.subr.bf16.mxu0 0
        %5092 = vmatpush1.bf16.msra.mxu0 0
        %5093 = vmatprep.subr.bf16.mxu0 0
        %5094 = vmatpush1.bf16.msra.mxu0 0
        %5095 = vmatprep.subr.bf16.mxu0 0
        %5096 = vmatpush1.bf16.msra.mxu0 0
        %5097 = vmatprep.subr.bf16.mxu0 0
        %5098 = vmatpush1.bf16.msra.mxu0 0
        %5099 = vmatprep.subr.bf16.mxu0 0
        %5100 = vmatpush1.bf16.msra.mxu0 0
        %5101 = vmatprep.subr.bf16.mxu0 0
        %5102 = vmatpush1.bf16.msra.mxu0 0
        %5103 = vmatprep.mubr.bf16.mxu0 0
        %5104 = vmatmul.mubr.bf16.gmra.mrb[0].mxu0 %v5020
        %v5105 = vpop.f32.mrb[0].mxu0
        %v5106 = vadd.f32 %v5069, %v5105
        %v5107 = vpop.f32.mrb[0].mxu0
        %v5108 = vpop.f32.mrb[0].mxu0
        %v5109 = vpop.f32.mrb[0].mxu0
        %5110 = vdwg.mxu0
        %5111 = vrot.lane.b32.xlu0 %v5015, 64
        %v5112 = vpop.permute.xlu0 %5111
        %5113 = vrot.lane.b32.xlu0 %v5016, 64
        %v5114 = vpop.permute.xlu0 %5113
        %5117 = vrot.lane.b32.xlu0 %v5005, 64
        %v5118 = vpop.permute.xlu0 %5117
        %5120 = vmatprep.subr.bf16.mxu0 0
        %5121 = vmatpush1.bf16.msra.mxu0 %v5112
        %5122 = vmatprep.subr.bf16.mxu0 0
        %5123 = vmatpush1.bf16.msra.mxu0 %v5114
        %5124 = vmatprep.subr.bf16.mxu0 0
        %5125 = vmatpush1.bf16.msra.mxu0 0
        %5126 = vmatprep.subr.bf16.mxu0 0
        %5127 = vmatpush1.bf16.msra.mxu0 0
        %5128 = vmatprep.subr.bf16.mxu0 0
        %5129 = vmatpush1.bf16.msra.mxu0 0
        %5130 = vmatprep.subr.bf16.mxu0 0
        %5131 = vmatpush1.bf16.msra.mxu0 0
        %5132 = vmatprep.subr.bf16.mxu0 0
        %5133 = vmatpush1.bf16.msra.mxu0 0
        %5134 = vmatprep.subr.bf16.mxu0 0
        %5135 = vmatpush1.bf16.msra.mxu0 0
        %5136 = vmatprep.subr.bf16.mxu0 0
        %5137 = vmatpush1.bf16.msra.mxu0 0
        %5138 = vmatprep.subr.bf16.mxu0 0
        %5139 = vmatpush1.bf16.msra.mxu0 0
        %5140 = vmatprep.subr.bf16.mxu0 0
        %5141 = vmatpush1.bf16.msra.mxu0 0
        %5142 = vmatprep.subr.bf16.mxu0 0
        %5143 = vmatpush1.bf16.msra.mxu0 0
        %5144 = vmatprep.subr.bf16.mxu0 0
        %5145 = vmatpush1.bf16.msra.mxu0 0
        %5146 = vmatprep.subr.bf16.mxu0 0
        %5147 = vmatpush1.bf16.msra.mxu0 0
        %5148 = vmatprep.subr.bf16.mxu0 0
        %5149 = vmatpush1.bf16.msra.mxu0 0
        %5150 = vmatprep.subr.bf16.mxu0 0
        %5151 = vmatpush1.bf16.msra.mxu0 0
        %5152 = vmatprep.mubr.bf16.mxu0 0
        %5153 = vmatmul.mubr.bf16.gmra.mrb[0].mxu0 %v5020
        %v5154 = vpop.f32.mrb[0].mxu0
        %v5155 = vadd.f32 %v5118, %v5154
        %v5156 = vpop.f32.mrb[0].mxu0
        %v5157 = vpop.f32.mrb[0].mxu0
        %v5158 = vpop.f32.mrb[0].mxu0
        %5159 = vdwg.mxu0
        %v5160 = vmul.f32 %v5057, 0.35355338
        %5162 = vrot.lane.b32.xlu0 %v5160, 120
        %v5163 = vpop.permute.xlu0 %5162
        %5165 = vrot.lane.b32.xlu0 %v5160, 112
        %v5166 = vpop.permute.xlu0 %5165
        %5168 = vrot.lane.b32.xlu0 %v5160, 104
        %v5169 = vpop.permute.xlu0 %5168
        %5172 = vrot.lane.b32.xlu0 %v5106, 120
        %v5173 = vpop.permute.xlu0 %5172
        %5175 = vrot.lane.b32.xlu0 %v5106, 112
        %v5176 = vpop.permute.xlu0 %5175
        %5178 = vrot.lane.b32.xlu0 %v5106, 104
        %v5179 = vpop.permute.xlu0 %5178
        %5182 = vrot.lane.b32.xlu0 %v5155, 120
        %v5183 = vpop.permute.xlu0 %5182
        %5185 = vrot.lane.b32.xlu0 %v5155, 112
        %v5186 = vpop.permute.xlu0 %5185
        %5188 = vrot.lane.b32.xlu0 %v5155, 104
        %v5189 = vpop.permute.xlu0 %5188
        %v5191 = vpack.c.bf16 %v5160, %v5160
        %v5192 = vpack.c.bf16 %v5163, %v5163
        %v5193 = vpack.c.bf16 %v5166, %v5166
        %v5194 = vpack.c.bf16 %v5169, %v5169
        %v5195 = vpack.c.bf16 %v5106, %v5106
        %v5196 = vpack.c.bf16 %v5173, %v5173
        %v5197 = vpack.c.bf16 %v5176, %v5176
        %v5198 = vpack.c.bf16 %v5179, %v5179
        %v5200 = vsel %vm1621, %v5191, 0
        %v5203 = vsel %vm1621, %v5195, 0
        %5205 = vmatprep.subr.bf16.mxu0 0
        %5206 = vmatpush1.bf16.xpose.msra.mxu0 %v5203
        %5207 = vmatprep.subr.bf16.mxu0 0
        %5208 = vmatpush1.bf16.xpose.msra.mxu0 0
        %5209 = vmatprep.subr.bf16.mxu0 0
        %5210 = vmatpush1.bf16.xpose.msra.mxu0 0
        %5211 = vmatprep.subr.bf16.mxu0 0
        %5212 = vmatpush1.bf16.xpose.msra.mxu0 0
        %5213 = vmatprep.subr.bf16.mxu0 0
        %5214 = vmatpush1.bf16.xpose.msra.mxu0 0
        %5215 = vmatprep.subr.bf16.mxu0 0
        %5216 = vmatpush1.bf16.xpose.msra.mxu0 0
        %5217 = vmatprep.subr.bf16.mxu0 0
        %5218 = vmatpush1.bf16.xpose.msra.mxu0 0
        %5219 = vmatprep.subr.bf16.mxu0 0
        %5220 = vmatpush1.bf16.xpose.msra.mxu0 0
        %5221 = vmatprep.subr.bf16.mxu0 0
        %5222 = vmatpush1.bf16.xpose.msra.mxu0 0
        %5223 = vmatprep.subr.bf16.mxu0 0
        %5224 = vmatpush1.bf16.xpose.msra.mxu0 0
        %5225 = vmatprep.subr.bf16.mxu0 0
        %5226 = vmatpush1.bf16.xpose.msra.mxu0 0
        %5227 = vmatprep.subr.bf16.mxu0 0
        %5228 = vmatpush1.bf16.xpose.msra.mxu0 0
        %5229 = vmatprep.subr.bf16.mxu0 0
        %5230 = vmatpush1.bf16.xpose.msra.mxu0 0
        %5231 = vmatprep.subr.bf16.mxu0 0
        %5232 = vmatpush1.bf16.xpose.msra.mxu0 0
        %5233 = vmatprep.subr.bf16.mxu0 0
        %5234 = vmatpush1.bf16.xpose.msra.mxu0 0
        %5235 = vmatprep.subr.bf16.mxu0 0
        %5236 = vmatpush1.bf16.xpose.msra.mxu0 0
        %5237 = vmatprep.mubr.bf16.mxu0 0
        %5238 = vmatmul.mubr.bf16.gmra.mrb[0].mxu0 %v5200
        %v5239 = vpop.f32.mrb[0].mxu0
        %v5240 = vadd.f32 %v3282, %v5239
        %v5241 = vpop.f32.mrb[0].mxu0
        %v5242 = vpop.f32.mrb[0].mxu0
        %v5243 = vpop.f32.mrb[0].mxu0
        %5244 = vdwg.mxu0
        %v5246 = vsel %vm1621, %v5192, 0
        %v5249 = vsel %vm1621, %v5196, 0
        %5251 = vmatprep.subr.bf16.mxu0 0
        %5252 = vmatpush1.bf16.xpose.msra.mxu0 %v5249
        %5253 = vmatprep.subr.bf16.mxu0 0
        %5254 = vmatpush1.bf16.xpose.msra.mxu0 0
        %5255 = vmatprep.subr.bf16.mxu0 0
        %5256 = vmatpush1.bf16.xpose.msra.mxu0 0
        %5257 = vmatprep.subr.bf16.mxu0 0
        %5258 = vmatpush1.bf16.xpose.msra.mxu0 0
        %5259 = vmatprep.subr.bf16.mxu0 0
        %5260 = vmatpush1.bf16.xpose.msra.mxu0 0
        %5261 = vmatprep.subr.bf16.mxu0 0
        %5262 = vmatpush1.bf16.xpose.msra.mxu0 0
        %5263 = vmatprep.subr.bf16.mxu0 0
        %5264 = vmatpush1.bf16.xpose.msra.mxu0 0
        %5265 = vmatprep.subr.bf16.mxu0 0
        %5266 = vmatpush1.bf16.xpose.msra.mxu0 0
        %5267 = vmatprep.subr.bf16.mxu0 0
        %5268 = vmatpush1.bf16.xpose.msra.mxu0 0
        %5269 = vmatprep.subr.bf16.mxu0 0
        %5270 = vmatpush1.bf16.xpose.msra.mxu0 0
        %5271 = vmatprep.subr.bf16.mxu0 0
        %5272 = vmatpush1.bf16.xpose.msra.mxu0 0
        %5273 = vmatprep.subr.bf16.mxu0 0
        %5274 = vmatpush1.bf16.xpose.msra.mxu0 0
        %5275 = vmatprep.subr.bf16.mxu0 0
        %5276 = vmatpush1.bf16.xpose.msra.mxu0 0
        %5277 = vmatprep.subr.bf16.mxu0 0
        %5278 = vmatpush1.bf16.xpose.msra.mxu0 0
        %5279 = vmatprep.subr.bf16.mxu0 0
        %5280 = vmatpush1.bf16.xpose.msra.mxu0 0
        %5281 = vmatprep.subr.bf16.mxu0 0
        %5282 = vmatpush1.bf16.xpose.msra.mxu0 0
        %5283 = vmatprep.mubr.bf16.mxu0 0
        %5284 = vmatmul.mubr.bf16.gmra.mrb[0].mxu0 %v5246
        %v5285 = vpop.f32.mrb[0].mxu0
        %v5286 = vadd.f32 %v3282, %v5285
        %v5287 = vpop.f32.mrb[0].mxu0
        %v5288 = vpop.f32.mrb[0].mxu0
        %v5289 = vpop.f32.mrb[0].mxu0
        %5290 = vdwg.mxu0
        %v5292 = vsel %vm1621, %v5193, 0
        %v5295 = vsel %vm1621, %v5197, 0
        %5297 = vmatprep.subr.bf16.mxu0 0
        %5298 = vmatpush1.bf16.xpose.msra.mxu0 %v5295
        %5299 = vmatprep.subr.bf16.mxu0 0
        %5300 = vmatpush1.bf16.xpose.msra.mxu0 0
        %5301 = vmatprep.subr.bf16.mxu0 0
        %5302 = vmatpush1.bf16.xpose.msra.mxu0 0
        %5303 = vmatprep.subr.bf16.mxu0 0
        %5304 = vmatpush1.bf16.xpose.msra.mxu0 0
        %5305 = vmatprep.subr.bf16.mxu0 0
        %5306 = vmatpush1.bf16.xpose.msra.mxu0 0
        %5307 = vmatprep.subr.bf16.mxu0 0
        %5308 = vmatpush1.bf16.xpose.msra.mxu0 0
        %5309 = vmatprep.subr.bf16.mxu0 0
        %5310 = vmatpush1.bf16.xpose.msra.mxu0 0
        %5311 = vmatprep.subr.bf16.mxu0 0
        %5312 = vmatpush1.bf16.xpose.msra.mxu0 0
        %5313 = vmatprep.subr.bf16.mxu0 0
        %5314 = vmatpush1.bf16.xpose.msra.mxu0 0
        %5315 = vmatprep.subr.bf16.mxu0 0
        %5316 = vmatpush1.bf16.xpose.msra.mxu0 0
        %5317 = vmatprep.subr.bf16.mxu0 0
        %5318 = vmatpush1.bf16.xpose.msra.mxu0 0
        %5319 = vmatprep.subr.bf16.mxu0 0
        %5320 = vmatpush1.bf16.xpose.msra.mxu0 0
        %5321 = vmatprep.subr.bf16.mxu0 0
        %5322 = vmatpush1.bf16.xpose.msra.mxu0 0
        %5323 = vmatprep.subr.bf16.mxu0 0
        %5324 = vmatpush1.bf16.xpose.msra.mxu0 0
        %5325 = vmatprep.subr.bf16.mxu0 0
        %5326 = vmatpush1.bf16.xpose.msra.mxu0 0
        %5327 = vmatprep.subr.bf16.mxu0 0
        %5328 = vmatpush1.bf16.xpose.msra.mxu0 0
        %5329 = vmatprep.mubr.bf16.mxu0 0
        %5330 = vmatmul.mubr.bf16.gmra.mrb[0].mxu0 %v5292
        %v5331 = vpop.f32.mrb[0].mxu0
        %v5332 = vadd.f32 %v3282, %v5331
        %v5333 = vpop.f32.mrb[0].mxu0
        %v5334 = vpop.f32.mrb[0].mxu0
        %v5335 = vpop.f32.mrb[0].mxu0
        %5336 = vdwg.mxu0
        %v5338 = vsel %vm1621, %v5194, 0
        %v5341 = vsel %vm1621, %v5198, 0
        %5343 = vmatprep.subr.bf16.mxu0 0
        %5344 = vmatpush1.bf16.xpose.msra.mxu0 %v5341
        %5345 = vmatprep.subr.bf16.mxu0 0
        %5346 = vmatpush1.bf16.xpose.msra.mxu0 0
        %5347 = vmatprep.subr.bf16.mxu0 0
        %5348 = vmatpush1.bf16.xpose.msra.mxu0 0
        %5349 = vmatprep.subr.bf16.mxu0 0
        %5350 = vmatpush1.bf16.xpose.msra.mxu0 0
        %5351 = vmatprep.subr.bf16.mxu0 0
        %5352 = vmatpush1.bf16.xpose.msra.mxu0 0
        %5353 = vmatprep.subr.bf16.mxu0 0
        %5354 = vmatpush1.bf16.xpose.msra.mxu0 0
        %5355 = vmatprep.subr.bf16.mxu0 0
        %5356 = vmatpush1.bf16.xpose.msra.mxu0 0
        %5357 = vmatprep.subr.bf16.mxu0 0
        %5358 = vmatpush1.bf16.xpose.msra.mxu0 0
        %5359 = vmatprep.subr.bf16.mxu0 0
        %5360 = vmatpush1.bf16.xpose.msra.mxu0 0
        %5361 = vmatprep.subr.bf16.mxu0 0
        %5362 = vmatpush1.bf16.xpose.msra.mxu0 0
        %5363 = vmatprep.subr.bf16.mxu0 0
        %5364 = vmatpush1.bf16.xpose.msra.mxu0 0
        %5365 = vmatprep.subr.bf16.mxu0 0
        %5366 = vmatpush1.bf16.xpose.msra.mxu0 0
        %5367 = vmatprep.subr.bf16.mxu0 0
        %5368 = vmatpush1.bf16.xpose.msra.mxu0 0
        %5369 = vmatprep.subr.bf16.mxu0 0
        %5370 = vmatpush1.bf16.xpose.msra.mxu0 0
        %5371 = vmatprep.subr.bf16.mxu0 0
        %5372 = vmatpush1.bf16.xpose.msra.mxu0 0
        %5373 = vmatprep.subr.bf16.mxu0 0
        %5374 = vmatpush1.bf16.xpose.msra.mxu0 0
        %5375 = vmatprep.mubr.bf16.mxu0 0
        %5376 = vmatmul.mubr.bf16.gmra.mrb[0].mxu0 %v5338
        %v5377 = vpop.f32.mrb[0].mxu0
        %v5378 = vadd.f32 %v3282, %v5377
        %v5379 = vpop.f32.mrb[0].mxu0
        %v5380 = vpop.f32.mrb[0].mxu0
        %v5381 = vpop.f32.mrb[0].mxu0
        %5382 = vdwg.mxu0
        %v5383 = vsel %vm1621, %v5240, -inf
        %5384 = vmax.xlane.f32.xlu0 %v5383
        %v5385 = vpop.xlane.xlu0 %5384
        %v5386 = vsel %vm1621, %v5286, -inf
        %5387 = vmax.xlane.f32.xlu0 %v5386
        %v5388 = vpop.xlane.xlu0 %5387
        %v5389 = vsel %vm1621, %v5332, -inf
        %5390 = vmax.xlane.f32.xlu0 %v5389
        %v5391 = vpop.xlane.xlu0 %5390
        %v5392 = vsel %vm1621, %v5378, -inf
        %5393 = vmax.xlane.f32.xlu0 %v5392
        %v5394 = vpop.xlane.xlu0 %5393
        %v5395 = vsub.f32 %v5240, %v5385
        %v5396 = vsub.f32 %v5286, %v5388
        %v5397 = vsub.f32 %v5332, %v5391
        %v5398 = vsub.f32 %v5378, %v5394
        %v5399 = vmul.f32 %v5395, 1.442695
        %v5400 = vpow.pop %v5399
        %v5401 = vmul.f32 %v5396, 1.442695
        %v5402 = vpow.pop %v5401
        %v5403 = vmul.f32 %v5397, 1.442695
        %v5404 = vpow.pop %v5403
        %v5405 = vmul.f32 %v5398, 1.442695
        %v5406 = vpow.pop %v5405
        %v5407 = vsel %vm1621, %v5400, 0.0
        %5408 = vadd.xlane.f32.xlu0 %v5407
        %v5409 = vpop.xlane.xlu0 %5408
        %v5410 = vsel %vm1621, %v5402, 0.0
        %5411 = vadd.xlane.f32.xlu0 %v5410
        %v5412 = vpop.xlane.xlu0 %5411
        %v5413 = vsel %vm1621, %v5404, 0.0
        %5414 = vadd.xlane.f32.xlu0 %v5413
        %v5415 = vpop.xlane.xlu0 %5414
        %v5416 = vsel %vm1621, %v5406, 0.0
        %5417 = vadd.xlane.f32.xlu0 %v5416
        %v5418 = vpop.xlane.xlu0 %5417
        %v5419 = vrcp.pop %v5409
        %v5420 = vrcp.pop %v5412
        %v5421 = vrcp.pop %v5415
        %v5422 = vrcp.pop %v5418
        %v5423 = vmul.f32 %v5400, %v5419
        %v5424 = vmul.f32 %v5402, %v5420
        %v5425 = vmul.f32 %v5404, %v5421
        %v5426 = vmul.f32 %v5406, %v5422
        %v5427 = vpack.c.bf16 %v5423, %v5423
        %v5428 = vpack.c.bf16 %v5424, %v5424
        %v5429 = vpack.c.bf16 %v5425, %v5425
        %v5430 = vpack.c.bf16 %v5426, %v5426
        %v5431 = vpack.c.bf16 %v5155, %v5155
        %v5432 = vpack.c.bf16 %v5183, %v5183
        %v5433 = vpack.c.bf16 %v5186, %v5186
        %v5434 = vpack.c.bf16 %v5189, %v5189
        %v5436 = vsel %vm1621, %v5427, 0
        %v5439 = vsel %vm1861, %v5431, 0
        %5441 = vmatprep.subr.bf16.mxu0 0
        %5442 = vmatpush1.bf16.msra.mxu0 %v5439
        %5443 = vmatprep.subr.bf16.mxu0 0
        %5444 = vmatpush1.bf16.msra.mxu0 0
        %5445 = vmatprep.subr.bf16.mxu0 0
        %5446 = vmatpush1.bf16.msra.mxu0 0
        %5447 = vmatprep.subr.bf16.mxu0 0
        %5448 = vmatpush1.bf16.msra.mxu0 0
        %5449 = vmatprep.subr.bf16.mxu0 0
        %5450 = vmatpush1.bf16.msra.mxu0 0
        %5451 = vmatprep.subr.bf16.mxu0 0
        %5452 = vmatpush1.bf16.msra.mxu0 0
        %5453 = vmatprep.subr.bf16.mxu0 0
        %5454 = vmatpush1.bf16.msra.mxu0 0
        %5455 = vmatprep.subr.bf16.mxu0 0
        %5456 = vmatpush1.bf16.msra.mxu0 0
        %5457 = vmatprep.subr.bf16.mxu0 0
        %5458 = vmatpush1.bf16.msra.mxu0 0
        %5459 = vmatprep.subr.bf16.mxu0 0
        %5460 = vmatpush1.bf16.msra.mxu0 0
        %5461 = vmatprep.subr.bf16.mxu0 0
        %5462 = vmatpush1.bf16.msra.mxu0 0
        %5463 = vmatprep.subr.bf16.mxu0 0
        %5464 = vmatpush1.bf16.msra.mxu0 0
        %5465 = vmatprep.subr.bf16.mxu0 0
        %5466 = vmatpush1.bf16.msra.mxu0 0
        %5467 = vmatprep.subr.bf16.mxu0 0
        %5468 = vmatpush1.bf16.msra.mxu0 0
        %5469 = vmatprep.subr.bf16.mxu0 0
        %5470 = vmatpush1.bf16.msra.mxu0 0
        %5471 = vmatprep.subr.bf16.mxu0 0
        %5472 = vmatpush1.bf16.msra.mxu0 0
        %5473 = vmatprep.mubr.bf16.mxu0 0
        %5474 = vmatmul.mubr.bf16.gmra.mrb[0].mxu0 %v5436
        %v5475 = vpop.f32.mrb[0].mxu0
        %v5476 = vadd.f32 0.0, %v5475
        %v5477 = vpop.f32.mrb[0].mxu0
        %v5478 = vpop.f32.mrb[0].mxu0
        %v5479 = vpop.f32.mrb[0].mxu0
        %5480 = vdwg.mxu0
        %v5482 = vsel %vm1621, %v5428, 0
        %v5485 = vsel %vm1861, %v5432, 0
        %5487 = vmatprep.subr.bf16.mxu0 0
        %5488 = vmatpush1.bf16.msra.mxu0 %v5485
        %5489 = vmatprep.subr.bf16.mxu0 0
        %5490 = vmatpush1.bf16.msra.mxu0 0
        %5491 = vmatprep.subr.bf16.mxu0 0
        %5492 = vmatpush1.bf16.msra.mxu0 0
        %5493 = vmatprep.subr.bf16.mxu0 0
        %5494 = vmatpush1.bf16.msra.mxu0 0
        %5495 = vmatprep.subr.bf16.mxu0 0
        %5496 = vmatpush1.bf16.msra.mxu0 0
        %5497 = vmatprep.subr.bf16.mxu0 0
        %5498 = vmatpush1.bf16.msra.mxu0 0
        %5499 = vmatprep.subr.bf16.mxu0 0
        %5500 = vmatpush1.bf16.msra.mxu0 0
        %5501 = vmatprep.subr.bf16.mxu0 0
        %5502 = vmatpush1.bf16.msra.mxu0 0
        %5503 = vmatprep.subr.bf16.mxu0 0
        %5504 = vmatpush1.bf16.msra.mxu0 0
        %5505 = vmatprep.subr.bf16.mxu0 0
        %5506 = vmatpush1.bf16.msra.mxu0 0
        %5507 = vmatprep.subr.bf16.mxu0 0
        %5508 = vmatpush1.bf16.msra.mxu0 0
        %5509 = vmatprep.subr.bf16.mxu0 0
        %5510 = vmatpush1.bf16.msra.mxu0 0
        %5511 = vmatprep.subr.bf16.mxu0 0
        %5512 = vmatpush1.bf16.msra.mxu0 0
        %5513 = vmatprep.subr.bf16.mxu0 0
        %5514 = vmatpush1.bf16.msra.mxu0 0
        %5515 = vmatprep.subr.bf16.mxu0 0
        %5516 = vmatpush1.bf16.msra.mxu0 0
        %5517 = vmatprep.subr.bf16.mxu0 0
        %5518 = vmatpush1.bf16.msra.mxu0 0
        %5519 = vmatprep.mubr.bf16.mxu0 0
        %5520 = vmatmul.mubr.bf16.gmra.mrb[0].mxu0 %v5482
        %v5521 = vpop.f32.mrb[0].mxu0
        %v5522 = vadd.f32 0.0, %v5521
        %v5523 = vpop.f32.mrb[0].mxu0
        %v5524 = vpop.f32.mrb[0].mxu0
        %v5525 = vpop.f32.mrb[0].mxu0
        %5526 = vdwg.mxu0
        %v5528 = vsel %vm1621, %v5429, 0
        %v5531 = vsel %vm1861, %v5433, 0
        %5533 = vmatprep.subr.bf16.mxu0 0
        %5534 = vmatpush1.bf16.msra.mxu0 %v5531
        %5535 = vmatprep.subr.bf16.mxu0 0
        %5536 = vmatpush1.bf16.msra.mxu0 0
        %5537 = vmatprep.subr.bf16.mxu0 0
        %5538 = vmatpush1.bf16.msra.mxu0 0
        %5539 = vmatprep.subr.bf16.mxu0 0
        %5540 = vmatpush1.bf16.msra.mxu0 0
        %5541 = vmatprep.subr.bf16.mxu0 0
        %5542 = vmatpush1.bf16.msra.mxu0 0
        %5543 = vmatprep.subr.bf16.mxu0 0
        %5544 = vmatpush1.bf16.msra.mxu0 0
        %5545 = vmatprep.subr.bf16.mxu0 0
        %5546 = vmatpush1.bf16.msra.mxu0 0
        %5547 = vmatprep.subr.bf16.mxu0 0
        %5548 = vmatpush1.bf16.msra.mxu0 0
        %5549 = vmatprep.subr.bf16.mxu0 0
        %5550 = vmatpush1.bf16.msra.mxu0 0
        %5551 = vmatprep.subr.bf16.mxu0 0
        %5552 = vmatpush1.bf16.msra.mxu0 0
        %5553 = vmatprep.subr.bf16.mxu0 0
        %5554 = vmatpush1.bf16.msra.mxu0 0
        %5555 = vmatprep.subr.bf16.mxu0 0
        %5556 = vmatpush1.bf16.msra.mxu0 0
        %5557 = vmatprep.subr.bf16.mxu0 0
        %5558 = vmatpush1.bf16.msra.mxu0 0
        %5559 = vmatprep.subr.bf16.mxu0 0
        %5560 = vmatpush1.bf16.msra.mxu0 0
        %5561 = vmatprep.subr.bf16.mxu0 0
        %5562 = vmatpush1.bf16.msra.mxu0 0
        %5563 = vmatprep.subr.bf16.mxu0 0
        %5564 = vmatpush1.bf16.msra.mxu0 0
        %5565 = vmatprep.mubr.bf16.mxu0 0
        %5566 = vmatmul.mubr.bf16.gmra.mrb[0].mxu0 %v5528
        %v5567 = vpop.f32.mrb[0].mxu0
        %v5568 = vadd.f32 0.0, %v5567
        %v5569 = vpop.f32.mrb[0].mxu0
        %v5570 = vpop.f32.mrb[0].mxu0
        %v5571 = vpop.f32.mrb[0].mxu0
        %5572 = vdwg.mxu0
        %v5574 = vsel %vm1621, %v5430, 0
        %v5577 = vsel %vm1861, %v5434, 0
        %5579 = vmatprep.subr.bf16.mxu0 0
        %5580 = vmatpush1.bf16.msra.mxu0 %v5577
        %5581 = vmatprep.subr.bf16.mxu0 0
        %5582 = vmatpush1.bf16.msra.mxu0 0
        %5583 = vmatprep.subr.bf16.mxu0 0
        %5584 = vmatpush1.bf16.msra.mxu0 0
        %5585 = vmatprep.subr.bf16.mxu0 0
        %5586 = vmatpush1.bf16.msra.mxu0 0
        %5587 = vmatprep.subr.bf16.mxu0 0
        %5588 = vmatpush1.bf16.msra.mxu0 0
        %5589 = vmatprep.subr.bf16.mxu0 0
        %5590 = vmatpush1.bf16.msra.mxu0 0
        %5591 = vmatprep.subr.bf16.mxu0 0
        %5592 = vmatpush1.bf16.msra.mxu0 0
        %5593 = vmatprep.subr.bf16.mxu0 0
        %5594 = vmatpush1.bf16.msra.mxu0 0
        %5595 = vmatprep.subr.bf16.mxu0 0
        %5596 = vmatpush1.bf16.msra.mxu0 0
        %5597 = vmatprep.subr.bf16.mxu0 0
        %5598 = vmatpush1.bf16.msra.mxu0 0
        %5599 = vmatprep.subr.bf16.mxu0 0
        %5600 = vmatpush1.bf16.msra.mxu0 0
        %5601 = vmatprep.subr.bf16.mxu0 0
        %5602 = vmatpush1.bf16.msra.mxu0 0
        %5603 = vmatprep.subr.bf16.mxu0 0
        %5604 = vmatpush1.bf16.msra.mxu0 0
        %5605 = vmatprep.subr.bf16.mxu0 0
        %5606 = vmatpush1.bf16.msra.mxu0 0
        %5607 = vmatprep.subr.bf16.mxu0 0
        %5608 = vmatpush1.bf16.msra.mxu0 0
        %5609 = vmatprep.subr.bf16.mxu0 0
        %5610 = vmatpush1.bf16.msra.mxu0 0
        %5611 = vmatprep.mubr.bf16.mxu0 0
        %5612 = vmatmul.mubr.bf16.gmra.mrb[0].mxu0 %v5574
        %v5613 = vpop.f32.mrb[0].mxu0
        %v5614 = vadd.f32 0.0, %v5613
        %v5615 = vpop.f32.mrb[0].mxu0
        %v5616 = vpop.f32.mrb[0].mxu0
        %v5617 = vpop.f32.mrb[0].mxu0
        %5618 = vdwg.mxu0
        %5620 = vrot.lane.b32.xlu0 %v5522, 8
        %v5621 = vpop.permute.xlu0 %5620
        %5624 = vrot.lane.b32.xlu0 %v5568, 16
        %v5625 = vpop.permute.xlu0 %5624
        %5628 = vrot.lane.b32.xlu0 %v5614, 24
        %v5629 = vpop.permute.xlu0 %5628
        %v5631 = vsel %vm1621, %v5476, %v5621
        %v5632 = vsel %vm2056, %v5631, %v5625
        %v5633 = vsel %vm2058, %v5632, %v5629
        %v5634 = vpack.c.bf16 %v5633, %v5633
        %v5636 = vlaneseq
        %v5637 = vshrl.u32 %v5636, 7
        %v5638 = vsub.s32 0, %v5637
        %v5639 = vrot.slane %v4955, %v5638
        %v5645 = vunpack.c.l.b16 %v4950
        %v5646 = vunpack.c.l.b16 %v4951
        %v5647 = vunpack.c.l.b16 %v4952
        %v5648 = vunpack.c.l.b16 %v4953
        %v5649 = vpack.c.b16 %v5646, %v5645
        %v5650 = vpack.c.b16 %v5648, %v5647
        %v5654 = vsel %vm1440, %v5634, 0
        %5656 = vmatprep.subr.bf16.mxu0 0
        %5657 = vmatpush1.bf16.msra.mxu0 %v5649
        %5658 = vmatprep.subr.bf16.mxu0 0
        %5659 = vmatpush1.bf16.msra.mxu0 %v5650
        %5660 = vmatprep.subr.bf16.mxu0 0
        %5661 = vmatpush1.bf16.msra.mxu0 0
        %5662 = vmatprep.subr.bf16.mxu0 0
        %5663 = vmatpush1.bf16.msra.mxu0 0
        %5664 = vmatprep.subr.bf16.mxu0 0
        %5665 = vmatpush1.bf16.msra.mxu0 0
        %5666 = vmatprep.subr.bf16.mxu0 0
        %5667 = vmatpush1.bf16.msra.mxu0 0
        %5668 = vmatprep.subr.bf16.mxu0 0
        %5669 = vmatpush1.bf16.msra.mxu0 0
        %5670 = vmatprep.subr.bf16.mxu0 0
        %5671 = vmatpush1.bf16.msra.mxu0 0
        %5672 = vmatprep.subr.bf16.mxu0 0
        %5673 = vmatpush1.bf16.msra.mxu0 0
        %5674 = vmatprep.subr.bf16.mxu0 0
        %5675 = vmatpush1.bf16.msra.mxu0 0
        %5676 = vmatprep.subr.bf16.mxu0 0
        %5677 = vmatpush1.bf16.msra.mxu0 0
        %5678 = vmatprep.subr.bf16.mxu0 0
        %5679 = vmatpush1.bf16.msra.mxu0 0
        %5680 = vmatprep.subr.bf16.mxu0 0
        %5681 = vmatpush1.bf16.msra.mxu0 0
        %5682 = vmatprep.subr.bf16.mxu0 0
        %5683 = vmatpush1.bf16.msra.mxu0 0
        %5684 = vmatprep.subr.bf16.mxu0 0
        %5685 = vmatpush1.bf16.msra.mxu0 0
        %5686 = vmatprep.subr.bf16.mxu0 0
        %5687 = vmatpush1.bf16.msra.mxu0 0
        %5688 = vmatprep.mubr.bf16.mxu0 0
        %5689 = vmatmul.mubr.bf16.gmra.mrb[0].mxu0 %v5654
        %v5690 = vpop.f32.mrb[0].mxu0
        %v5691 = vadd.f32 %v5639, %v5690
        %v5692 = vpop.f32.mrb[0].mxu0
        %v5693 = vpop.f32.mrb[0].mxu0
        %v5694 = vpop.f32.mrb[0].mxu0
        %5695 = vdwg.mxu0
        %v5696 = vadd.f32 %v4941, %v5691
        %v5697 = vsel %vm1440, %v5696, 0.0
        %5698 = vadd.xlane.f32.xlu0 %v5697
        %v5699 = vpop.xlane.xlu0 %5698
        %v5700 = vmul.f32 %v5699, %v2126
        %v5701 = vsub.f32 %v5696, %v5700
        %v5702 = vmul.f32 %v5701, %v5701
        %v5703 = vsel %vm1440, %v5702, 0.0
        %5704 = vadd.xlane.f32.xlu0 %v5703
        %v5705 = vpop.xlane.xlu0 %5704
        %v5706 = vmul.f32 %v5705, %v2126
        %v5707 = vadd.f32 %v5706, 1e-05
        %v5708 = vrsqrt.pop %v5707
        %v5709 = vmul.f32 %v5701, %v5708
        %v5711 = vlaneseq
        %v5712 = vshrl.u32 %v5711, 7
        %v5713 = vsub.s32 0, %v5712
        %v5714 = vrot.slane %v4989, %v5713
        %v5716 = vmul.f32 %v5709, %v5714
        %v5718 = vlaneseq
        %v5719 = vshrl.u32 %v5718, 7
        %v5720 = vsub.s32 0, %v5719
        %v5721 = vrot.slane %v4991, %v5720
        %v5723 = vadd.f32 %v5716, %v5721
        %v5724 = vpack.c.bf16 %v5723, %v5723
        %v5726 = vlaneseq
        %v5727 = vshrl.u32 %v5726, 7
        %v5728 = vsub.s32 0, %v5727
        %v5729 = vrot.slane %v4962, %v5728
        %v5735 = vunpack.c.l.b16 %v4957
        %v5736 = vunpack.c.l.b16 %v4958
        %v5737 = vunpack.c.l.b16 %v4959
        %v5738 = vunpack.c.l.b16 %v4960
        %v5739 = vpack.c.b16 %v5736, %v5735
        %v5740 = vpack.c.b16 %v5738, %v5737
        %v5744 = vsel %vm1440, %v5724, 0
        %5746 = vmatprep.subr.bf16.mxu0 0
        %5747 = vmatpush1.bf16.msra.mxu0 %v5739
        %5748 = vmatprep.subr.bf16.mxu0 0
        %5749 = vmatpush1.bf16.msra.mxu0 %v5740
        %5750 = vmatprep.subr.bf16.mxu0 0
        %5751 = vmatpush1.bf16.msra.mxu0 0
        %5752 = vmatprep.subr.bf16.mxu0 0
        %5753 = vmatpush1.bf16.msra.mxu0 0
        %5754 = vmatprep.subr.bf16.mxu0 0
        %5755 = vmatpush1.bf16.msra.mxu0 0
        %5756 = vmatprep.subr.bf16.mxu0 0
        %5757 = vmatpush1.bf16.msra.mxu0 0
        %5758 = vmatprep.subr.bf16.mxu0 0
        %5759 = vmatpush1.bf16.msra.mxu0 0
        %5760 = vmatprep.subr.bf16.mxu0 0
        %5761 = vmatpush1.bf16.msra.mxu0 0
        %5762 = vmatprep.subr.bf16.mxu0 0
        %5763 = vmatpush1.bf16.msra.mxu0 0
        %5764 = vmatprep.subr.bf16.mxu0 0
        %5765 = vmatpush1.bf16.msra.mxu0 0
        %5766 = vmatprep.subr.bf16.mxu0 0
        %5767 = vmatpush1.bf16.msra.mxu0 0
        %5768 = vmatprep.subr.bf16.mxu0 0
        %5769 = vmatpush1.bf16.msra.mxu0 0
        %5770 = vmatprep.subr.bf16.mxu0 0
        %5771 = vmatpush1.bf16.msra.mxu0 0
        %5772 = vmatprep.subr.bf16.mxu0 0
        %5773 = vmatpush1.bf16.msra.mxu0 0
        %5774 = vmatprep.subr.bf16.mxu0 0
        %5775 = vmatpush1.bf16.msra.mxu0 0
        %5776 = vmatprep.subr.bf16.mxu0 0
        %5777 = vmatpush1.bf16.msra.mxu0 0
        %5778 = vmatprep.mubr.bf16.mxu0 0
        %5779 = vmatmul.mubr.bf16.gmra.mrb[0].mxu0 %v5744
        %v5780 = vpop.f32.mrb[0].mxu0
        %v5781 = vadd.f32 %v5729, %v5780
        %v5782 = vpop.f32.mrb[0].mxu0
        %v5783 = vpop.f32.mrb[0].mxu0
        %v5784 = vpop.f32.mrb[0].mxu0
        %5785 = vdwg.mxu0
        %5786 = vrot.lane.b32.xlu0 %v5739, 96
        %v5787 = vpop.permute.xlu0 %5786
        %5788 = vrot.lane.b32.xlu0 %v5740, 96
        %v5789 = vpop.permute.xlu0 %5788
        %5792 = vrot.lane.b32.xlu0 %v5729, 96
        %v5793 = vpop.permute.xlu0 %5792
        %5795 = vmatprep.subr.bf16.mxu0 0
        %5796 = vmatpush1.bf16.msra.mxu0 %v5787
        %5797 = vmatprep.subr.bf16.mxu0 0
        %5798 = vmatpush1.bf16.msra.mxu0 %v5789
        %5799 = vmatprep.subr.bf16.mxu0 0
        %5800 = vmatpush1.bf16.msra.mxu0 0
        %5801 = vmatprep.subr.bf16.mxu0 0
        %5802 = vmatpush1.bf16.msra.mxu0 0
        %5803 = vmatprep.subr.bf16.mxu0 0
        %5804 = vmatpush1.bf16.msra.mxu0 0
        %5805 = vmatprep.subr.bf16.mxu0 0
        %5806 = vmatpush1.bf16.msra.mxu0 0
        %5807 = vmatprep.subr.bf16.mxu0 0
        %5808 = vmatpush1.bf16.msra.mxu0 0
        %5809 = vmatprep.subr.bf16.mxu0 0
        %5810 = vmatpush1.bf16.msra.mxu0 0
        %5811 = vmatprep.subr.bf16.mxu0 0
        %5812 = vmatpush1.bf16.msra.mxu0 0
        %5813 = vmatprep.subr.bf16.mxu0 0
        %5814 = vmatpush1.bf16.msra.mxu0 0
        %5815 = vmatprep.subr.bf16.mxu0 0
        %5816 = vmatpush1.bf16.msra.mxu0 0
        %5817 = vmatprep.subr.bf16.mxu0 0
        %5818 = vmatpush1.bf16.msra.mxu0 0
        %5819 = vmatprep.subr.bf16.mxu0 0
        %5820 = vmatpush1.bf16.msra.mxu0 0
        %5821 = vmatprep.subr.bf16.mxu0 0
        %5822 = vmatpush1.bf16.msra.mxu0 0
        %5823 = vmatprep.subr.bf16.mxu0 0
        %5824 = vmatpush1.bf16.msra.mxu0 0
        %5825 = vmatprep.subr.bf16.mxu0 0
        %5826 = vmatpush1.bf16.msra.mxu0 0
        %5827 = vmatprep.mubr.bf16.mxu0 0
        %5828 = vmatmul.mubr.bf16.gmra.mrb[0].mxu0 %v4121
        %v5829 = vpop.f32.mrb[0].mxu0
        %v5830 = vadd.f32 %v5793, %v5829
        %v5831 = vpop.f32.mrb[0].mxu0
        %v5832 = vpop.f32.mrb[0].mxu0
        %v5833 = vpop.f32.mrb[0].mxu0
        %5834 = vdwg.mxu0
        %5835 = vrot.lane.b32.xlu0 %v5739, 64
        %v5836 = vpop.permute.xlu0 %5835
        %5837 = vrot.lane.b32.xlu0 %v5740, 64
        %v5838 = vpop.permute.xlu0 %5837
        %5841 = vrot.lane.b32.xlu0 %v5729, 64
        %v5842 = vpop.permute.xlu0 %5841
        %5844 = vmatprep.subr.bf16.mxu0 0
        %5845 = vmatpush1.bf16.msra.mxu0 %v5836
        %5846 = vmatprep.subr.bf16.mxu0 0
        %5847 = vmatpush1.bf16.msra.mxu0 %v5838
        %5848 = vmatprep.subr.bf16.mxu0 0
        %5849 = vmatpush1.bf16.msra.mxu0 0
        %5850 = vmatprep.subr.bf16.mxu0 0
        %5851 = vmatpush1.bf16.msra.mxu0 0
        %5852 = vmatprep.subr.bf16.mxu0 0
        %5853 = vmatpush1.bf16.msra.mxu0 0
        %5854 = vmatprep.subr.bf16.mxu0 0
        %5855 = vmatpush1.bf16.msra.mxu0 0
        %5856 = vmatprep.subr.bf16.mxu0 0
        %5857 = vmatpush1.bf16.msra.mxu0 0
        %5858 = vmatprep.subr.bf16.mxu0 0
        %5859 = vmatpush1.bf16.msra.mxu0 0
        %5860 = vmatprep.subr.bf16.mxu0 0
        %5861 = vmatpush1.bf16.msra.mxu0 0
        %5862 = vmatprep.subr.bf16.mxu0 0
        %5863 = vmatpush1.bf16.msra.mxu0 0
        %5864 = vmatprep.subr.bf16.mxu0 0
        %5865 = vmatpush1.bf16.msra.mxu0 0
        %5866 = vmatprep.subr.bf16.mxu0 0
        %5867 = vmatpush1.bf16.msra.mxu0 0
        %5868 = vmatprep.subr.bf16.mxu0 0
        %5869 = vmatpush1.bf16.msra.mxu0 0
        %5870 = vmatprep.subr.bf16.mxu0 0
        %5871 = vmatpush1.bf16.msra.mxu0 0
        %5872 = vmatprep.subr.bf16.mxu0 0
        %5873 = vmatpush1.bf16.msra.mxu0 0
        %5874 = vmatprep.subr.bf16.mxu0 0
        %5875 = vmatpush1.bf16.msra.mxu0 0
        %5876 = vmatprep.mubr.bf16.mxu0 0
        %5877 = vmatmul.mubr.bf16.gmra.mrb[0].mxu0 %v4121
        %v5878 = vpop.f32.mrb[0].mxu0
        %v5879 = vadd.f32 %v5842, %v5878
        %v5880 = vpop.f32.mrb[0].mxu0
        %v5881 = vpop.f32.mrb[0].mxu0
        %v5882 = vpop.f32.mrb[0].mxu0
        %5883 = vdwg.mxu0
        %v5884 = vmul.f32 %v5781, 0.35355338
        %5886 = vrot.lane.b32.xlu0 %v5884, 120
        %v5887 = vpop.permute.xlu0 %5886
        %5889 = vrot.lane.b32.xlu0 %v5884, 112
        %v5890 = vpop.permute.xlu0 %5889
        %5892 = vrot.lane.b32.xlu0 %v5884, 104
        %v5893 = vpop.permute.xlu0 %5892
        %5896 = vrot.lane.b32.xlu0 %v5830, 120
        %v5897 = vpop.permute.xlu0 %5896
        %5899 = vrot.lane.b32.xlu0 %v5830, 112
        %v5900 = vpop.permute.xlu0 %5899
        %5902 = vrot.lane.b32.xlu0 %v5830, 104
        %v5903 = vpop.permute.xlu0 %5902
        %5906 = vrot.lane.b32.xlu0 %v5879, 120
        %v5907 = vpop.permute.xlu0 %5906
        %5909 = vrot.lane.b32.xlu0 %v5879, 112
        %v5910 = vpop.permute.xlu0 %5909
        %5912 = vrot.lane.b32.xlu0 %v5879, 104
        %v5913 = vpop.permute.xlu0 %5912
        %v5915 = vpack.c.bf16 %v5884, %v5884
        %v5916 = vpack.c.bf16 %v5887, %v5887
        %v5917 = vpack.c.bf16 %v5890, %v5890
        %v5918 = vpack.c.bf16 %v5893, %v5893
        %v5919 = vpack.c.bf16 %v5830, %v5830
        %v5920 = vpack.c.bf16 %v5897, %v5897
        %v5921 = vpack.c.bf16 %v5900, %v5900
        %v5922 = vpack.c.bf16 %v5903, %v5903
        %v5924 = vsel %vm1621, %v5915, 0
        %v5927 = vsel %vm1621, %v5919, 0
        %5929 = vmatprep.subr.bf16.mxu0 0
        %5930 = vmatpush1.bf16.xpose.msra.mxu0 %v5927
        %5931 = vmatprep.subr.bf16.mxu0 0
        %5932 = vmatpush1.bf16.xpose.msra.mxu0 0
        %5933 = vmatprep.subr.bf16.mxu0 0
        %5934 = vmatpush1.bf16.xpose.msra.mxu0 0
        %5935 = vmatprep.subr.bf16.mxu0 0
        %5936 = vmatpush1.bf16.xpose.msra.mxu0 0
        %5937 = vmatprep.subr.bf16.mxu0 0
        %5938 = vmatpush1.bf16.xpose.msra.mxu0 0
        %5939 = vmatprep.subr.bf16.mxu0 0
        %5940 = vmatpush1.bf16.xpose.msra.mxu0 0
        %5941 = vmatprep.subr.bf16.mxu0 0
        %5942 = vmatpush1.bf16.xpose.msra.mxu0 0
        %5943 = vmatprep.subr.bf16.mxu0 0
        %5944 = vmatpush1.bf16.xpose.msra.mxu0 0
        %5945 = vmatprep.subr.bf16.mxu0 0
        %5946 = vmatpush1.bf16.xpose.msra.mxu0 0
        %5947 = vmatprep.subr.bf16.mxu0 0
        %5948 = vmatpush1.bf16.xpose.msra.mxu0 0
        %5949 = vmatprep.subr.bf16.mxu0 0
        %5950 = vmatpush1.bf16.xpose.msra.mxu0 0
        %5951 = vmatprep.subr.bf16.mxu0 0
        %5952 = vmatpush1.bf16.xpose.msra.mxu0 0
        %5953 = vmatprep.subr.bf16.mxu0 0
        %5954 = vmatpush1.bf16.xpose.msra.mxu0 0
        %5955 = vmatprep.subr.bf16.mxu0 0
        %5956 = vmatpush1.bf16.xpose.msra.mxu0 0
        %5957 = vmatprep.subr.bf16.mxu0 0
        %5958 = vmatpush1.bf16.xpose.msra.mxu0 0
        %5959 = vmatprep.subr.bf16.mxu0 0
        %5960 = vmatpush1.bf16.xpose.msra.mxu0 0
        %5961 = vmatprep.mubr.bf16.mxu0 0
        %5962 = vmatmul.mubr.bf16.gmra.mrb[0].mxu0 %v5924
        %v5963 = vpop.f32.mrb[0].mxu0
        %v5964 = vadd.f32 0.0, %v5963
        %v5965 = vpop.f32.mrb[0].mxu0
        %v5966 = vpop.f32.mrb[0].mxu0
        %v5967 = vpop.f32.mrb[0].mxu0
        %5968 = vdwg.mxu0
        %v5970 = vsel %vm1621, %v5916, 0
        %v5973 = vsel %vm1621, %v5920, 0
        %5975 = vmatprep.subr.bf16.mxu0 0
        %5976 = vmatpush1.bf16.xpose.msra.mxu0 %v5973
        %5977 = vmatprep.subr.bf16.mxu0 0
        %5978 = vmatpush1.bf16.xpose.msra.mxu0 0
        %5979 = vmatprep.subr.bf16.mxu0 0
        %5980 = vmatpush1.bf16.xpose.msra.mxu0 0
        %5981 = vmatprep.subr.bf16.mxu0 0
        %5982 = vmatpush1.bf16.xpose.msra.mxu0 0
        %5983 = vmatprep.subr.bf16.mxu0 0
        %5984 = vmatpush1.bf16.xpose.msra.mxu0 0
        %5985 = vmatprep.subr.bf16.mxu0 0
        %5986 = vmatpush1.bf16.xpose.msra.mxu0 0
        %5987 = vmatprep.subr.bf16.mxu0 0
        %5988 = vmatpush1.bf16.xpose.msra.mxu0 0
        %5989 = vmatprep.subr.bf16.mxu0 0
        %5990 = vmatpush1.bf16.xpose.msra.mxu0 0
        %5991 = vmatprep.subr.bf16.mxu0 0
        %5992 = vmatpush1.bf16.xpose.msra.mxu0 0
        %5993 = vmatprep.subr.bf16.mxu0 0
        %5994 = vmatpush1.bf16.xpose.msra.mxu0 0
        %5995 = vmatprep.subr.bf16.mxu0 0
        %5996 = vmatpush1.bf16.xpose.msra.mxu0 0
        %5997 = vmatprep.subr.bf16.mxu0 0
        %5998 = vmatpush1.bf16.xpose.msra.mxu0 0
        %5999 = vmatprep.subr.bf16.mxu0 0
        %6000 = vmatpush1.bf16.xpose.msra.mxu0 0
        %6001 = vmatprep.subr.bf16.mxu0 0
        %6002 = vmatpush1.bf16.xpose.msra.mxu0 0
        %6003 = vmatprep.subr.bf16.mxu0 0
        %6004 = vmatpush1.bf16.xpose.msra.mxu0 0
        %6005 = vmatprep.subr.bf16.mxu0 0
        %6006 = vmatpush1.bf16.xpose.msra.mxu0 0
        %6007 = vmatprep.mubr.bf16.mxu0 0
        %6008 = vmatmul.mubr.bf16.gmra.mrb[0].mxu0 %v5970
        %v6009 = vpop.f32.mrb[0].mxu0
        %v6010 = vadd.f32 0.0, %v6009
        %v6011 = vpop.f32.mrb[0].mxu0
        %v6012 = vpop.f32.mrb[0].mxu0
        %v6013 = vpop.f32.mrb[0].mxu0
        %6014 = vdwg.mxu0
        %v6016 = vsel %vm1621, %v5917, 0
        %v6019 = vsel %vm1621, %v5921, 0
        %6021 = vmatprep.subr.bf16.mxu0 0
        %6022 = vmatpush1.bf16.xpose.msra.mxu0 %v6019
        %6023 = vmatprep.subr.bf16.mxu0 0
        %6024 = vmatpush1.bf16.xpose.msra.mxu0 0
        %6025 = vmatprep.subr.bf16.mxu0 0
        %6026 = vmatpush1.bf16.xpose.msra.mxu0 0
        %6027 = vmatprep.subr.bf16.mxu0 0
        %6028 = vmatpush1.bf16.xpose.msra.mxu0 0
        %6029 = vmatprep.subr.bf16.mxu0 0
        %6030 = vmatpush1.bf16.xpose.msra.mxu0 0
        %6031 = vmatprep.subr.bf16.mxu0 0
        %6032 = vmatpush1.bf16.xpose.msra.mxu0 0
        %6033 = vmatprep.subr.bf16.mxu0 0
        %6034 = vmatpush1.bf16.xpose.msra.mxu0 0
        %6035 = vmatprep.subr.bf16.mxu0 0
        %6036 = vmatpush1.bf16.xpose.msra.mxu0 0
        %6037 = vmatprep.subr.bf16.mxu0 0
        %6038 = vmatpush1.bf16.xpose.msra.mxu0 0
        %6039 = vmatprep.subr.bf16.mxu0 0
        %6040 = vmatpush1.bf16.xpose.msra.mxu0 0
        %6041 = vmatprep.subr.bf16.mxu0 0
        %6042 = vmatpush1.bf16.xpose.msra.mxu0 0
        %6043 = vmatprep.subr.bf16.mxu0 0
        %6044 = vmatpush1.bf16.xpose.msra.mxu0 0
        %6045 = vmatprep.subr.bf16.mxu0 0
        %6046 = vmatpush1.bf16.xpose.msra.mxu0 0
        %6047 = vmatprep.subr.bf16.mxu0 0
        %6048 = vmatpush1.bf16.xpose.msra.mxu0 0
        %6049 = vmatprep.subr.bf16.mxu0 0
        %6050 = vmatpush1.bf16.xpose.msra.mxu0 0
        %6051 = vmatprep.subr.bf16.mxu0 0
        %6052 = vmatpush1.bf16.xpose.msra.mxu0 0
        %6053 = vmatprep.mubr.bf16.mxu0 0
        %6054 = vmatmul.mubr.bf16.gmra.mrb[0].mxu0 %v6016
        %v6055 = vpop.f32.mrb[0].mxu0
        %v6056 = vadd.f32 0.0, %v6055
        %v6057 = vpop.f32.mrb[0].mxu0
        %v6058 = vpop.f32.mrb[0].mxu0
        %v6059 = vpop.f32.mrb[0].mxu0
        %6060 = vdwg.mxu0
        %v6062 = vsel %vm1621, %v5918, 0
        %v6065 = vsel %vm1621, %v5922, 0
        %6067 = vmatprep.subr.bf16.mxu0 0
        %6068 = vmatpush1.bf16.xpose.msra.mxu0 %v6065
        %6069 = vmatprep.subr.bf16.mxu0 0
        %6070 = vmatpush1.bf16.xpose.msra.mxu0 0
        %6071 = vmatprep.subr.bf16.mxu0 0
        %6072 = vmatpush1.bf16.xpose.msra.mxu0 0
        %6073 = vmatprep.subr.bf16.mxu0 0
        %6074 = vmatpush1.bf16.xpose.msra.mxu0 0
        %6075 = vmatprep.subr.bf16.mxu0 0
        %6076 = vmatpush1.bf16.xpose.msra.mxu0 0
        %6077 = vmatprep.subr.bf16.mxu0 0
        %6078 = vmatpush1.bf16.xpose.msra.mxu0 0
        %6079 = vmatprep.subr.bf16.mxu0 0
        %6080 = vmatpush1.bf16.xpose.msra.mxu0 0
        %6081 = vmatprep.subr.bf16.mxu0 0
        %6082 = vmatpush1.bf16.xpose.msra.mxu0 0
        %6083 = vmatprep.subr.bf16.mxu0 0
        %6084 = vmatpush1.bf16.xpose.msra.mxu0 0
        %6085 = vmatprep.subr.bf16.mxu0 0
        %6086 = vmatpush1.bf16.xpose.msra.mxu0 0
        %6087 = vmatprep.subr.bf16.mxu0 0
        %6088 = vmatpush1.bf16.xpose.msra.mxu0 0
        %6089 = vmatprep.subr.bf16.mxu0 0
        %6090 = vmatpush1.bf16.xpose.msra.mxu0 0
        %6091 = vmatprep.subr.bf16.mxu0 0
        %6092 = vmatpush1.bf16.xpose.msra.mxu0 0
        %6093 = vmatprep.subr.bf16.mxu0 0
        %6094 = vmatpush1.bf16.xpose.msra.mxu0 0
        %6095 = vmatprep.subr.bf16.mxu0 0
        %6096 = vmatpush1.bf16.xpose.msra.mxu0 0
        %6097 = vmatprep.subr.bf16.mxu0 0
        %6098 = vmatpush1.bf16.xpose.msra.mxu0 0
        %6099 = vmatprep.mubr.bf16.mxu0 0
        %6100 = vmatmul.mubr.bf16.gmra.mrb[0].mxu0 %v6062
        %v6101 = vpop.f32.mrb[0].mxu0
        %v6102 = vadd.f32 0.0, %v6101
        %v6103 = vpop.f32.mrb[0].mxu0
        %v6104 = vpop.f32.mrb[0].mxu0
        %v6105 = vpop.f32.mrb[0].mxu0
        %6106 = vdwg.mxu0
        %v6107 = vsel %vm1621, %v5964, -inf
        %6108 = vmax.xlane.f32.xlu0 %v6107
        %v6109 = vpop.xlane.xlu0 %6108
        %v6110 = vsel %vm1621, %v6010, -inf
        %6111 = vmax.xlane.f32.xlu0 %v6110
        %v6112 = vpop.xlane.xlu0 %6111
        %v6113 = vsel %vm1621, %v6056, -inf
        %6114 = vmax.xlane.f32.xlu0 %v6113
        %v6115 = vpop.xlane.xlu0 %6114
        %v6116 = vsel %vm1621, %v6102, -inf
        %6117 = vmax.xlane.f32.xlu0 %v6116
        %v6118 = vpop.xlane.xlu0 %6117
        %v6119 = vsub.f32 %v5964, %v6109
        %v6120 = vsub.f32 %v6010, %v6112
        %v6121 = vsub.f32 %v6056, %v6115
        %v6122 = vsub.f32 %v6102, %v6118
        %v6123 = vmul.f32 %v6119, 1.442695
        %v6124 = vpow.pop %v6123
        %v6125 = vmul.f32 %v6120, 1.442695
        %v6126 = vpow.pop %v6125
        %v6127 = vmul.f32 %v6121, 1.442695
        %v6128 = vpow.pop %v6127
        %v6129 = vmul.f32 %v6122, 1.442695
        %v6130 = vpow.pop %v6129
        %v6131 = vsel %vm1621, %v6124, 0.0
        %6132 = vadd.xlane.f32.xlu0 %v6131
        %v6133 = vpop.xlane.xlu0 %6132
        %v6134 = vsel %vm1621, %v6126, 0.0
        %6135 = vadd.xlane.f32.xlu0 %v6134
        %v6136 = vpop.xlane.xlu0 %6135
        %v6137 = vsel %vm1621, %v6128, 0.0
        %6138 = vadd.xlane.f32.xlu0 %v6137
        %v6139 = vpop.xlane.xlu0 %6138
        %v6140 = vsel %vm1621, %v6130, 0.0
        %6141 = vadd.xlane.f32.xlu0 %v6140
        %v6142 = vpop.xlane.xlu0 %6141
        %v6143 = vrcp.pop %v6133
        %v6144 = vrcp.pop %v6136
        %v6145 = vrcp.pop %v6139
        %v6146 = vrcp.pop %v6142
        %v6147 = vmul.f32 %v6124, %v6143
        %v6148 = vmul.f32 %v6126, %v6144
        %v6149 = vmul.f32 %v6128, %v6145
        %v6150 = vmul.f32 %v6130, %v6146
        %v6151 = vpack.c.bf16 %v6147, %v6147
        %v6152 = vpack.c.bf16 %v6148, %v6148
        %v6153 = vpack.c.bf16 %v6149, %v6149
        %v6154 = vpack.c.bf16 %v6150, %v6150
        %v6155 = vpack.c.bf16 %v5879, %v5879
        %v6156 = vpack.c.bf16 %v5907, %v5907
        %v6157 = vpack.c.bf16 %v5910, %v5910
        %v6158 = vpack.c.bf16 %v5913, %v5913
        %v6160 = vsel %vm1621, %v6151, 0
        %v6163 = vsel %vm1861, %v6155, 0
        %6165 = vmatprep.subr.bf16.mxu0 0
        %6166 = vmatpush1.bf16.msra.mxu0 %v6163
        %6167 = vmatprep.subr.bf16.mxu0 0
        %6168 = vmatpush1.bf16.msra.mxu0 0
        %6169 = vmatprep.subr.bf16.mxu0 0
        %6170 = vmatpush1.bf16.msra.mxu0 0
        %6171 = vmatprep.subr.bf16.mxu0 0
        %6172 = vmatpush1.bf16.msra.mxu0 0
        %6173 = vmatprep.subr.bf16.mxu0 0
        %6174 = vmatpush1.bf16.msra.mxu0 0
        %6175 = vmatprep.subr.bf16.mxu0 0
        %6176 = vmatpush1.bf16.msra.mxu0 0
        %6177 = vmatprep.subr.bf16.mxu0 0
        %6178 = vmatpush1.bf16.msra.mxu0 0
        %6179 = vmatprep.subr.bf16.mxu0 0
        %6180 = vmatpush1.bf16.msra.mxu0 0
        %6181 = vmatprep.subr.bf16.mxu0 0
        %6182 = vmatpush1.bf16.msra.mxu0 0
        %6183 = vmatprep.subr.bf16.mxu0 0
        %6184 = vmatpush1.bf16.msra.mxu0 0
        %6185 = vmatprep.subr.bf16.mxu0 0
        %6186 = vmatpush1.bf16.msra.mxu0 0
        %6187 = vmatprep.subr.bf16.mxu0 0
        %6188 = vmatpush1.bf16.msra.mxu0 0
        %6189 = vmatprep.subr.bf16.mxu0 0
        %6190 = vmatpush1.bf16.msra.mxu0 0
        %6191 = vmatprep.subr.bf16.mxu0 0
        %6192 = vmatpush1.bf16.msra.mxu0 0
        %6193 = vmatprep.subr.bf16.mxu0 0
        %6194 = vmatpush1.bf16.msra.mxu0 0
        %6195 = vmatprep.subr.bf16.mxu0 0
        %6196 = vmatpush1.bf16.msra.mxu0 0
        %6197 = vmatprep.mubr.bf16.mxu0 0
        %6198 = vmatmul.mubr.bf16.gmra.mrb[0].mxu0 %v6160
        %v6199 = vpop.f32.mrb[0].mxu0
        %v6200 = vadd.f32 0.0, %v6199
        %v6201 = vpop.f32.mrb[0].mxu0
        %v6202 = vpop.f32.mrb[0].mxu0
        %v6203 = vpop.f32.mrb[0].mxu0
        %6204 = vdwg.mxu0
        %v6206 = vsel %vm1621, %v6152, 0
        %v6209 = vsel %vm1861, %v6156, 0
        %6211 = vmatprep.subr.bf16.mxu0 0
        %6212 = vmatpush1.bf16.msra.mxu0 %v6209
        %6213 = vmatprep.subr.bf16.mxu0 0
        %6214 = vmatpush1.bf16.msra.mxu0 0
        %6215 = vmatprep.subr.bf16.mxu0 0
        %6216 = vmatpush1.bf16.msra.mxu0 0
        %6217 = vmatprep.subr.bf16.mxu0 0
        %6218 = vmatpush1.bf16.msra.mxu0 0
        %6219 = vmatprep.subr.bf16.mxu0 0
        %6220 = vmatpush1.bf16.msra.mxu0 0
        %6221 = vmatprep.subr.bf16.mxu0 0
        %6222 = vmatpush1.bf16.msra.mxu0 0
        %6223 = vmatprep.subr.bf16.mxu0 0
        %6224 = vmatpush1.bf16.msra.mxu0 0
        %6225 = vmatprep.subr.bf16.mxu0 0
        %6226 = vmatpush1.bf16.msra.mxu0 0
        %6227 = vmatprep.subr.bf16.mxu0 0
        %6228 = vmatpush1.bf16.msra.mxu0 0
        %6229 = vmatprep.subr.bf16.mxu0 0
        %6230 = vmatpush1.bf16.msra.mxu0 0
        %6231 = vmatprep.subr.bf16.mxu0 0
        %6232 = vmatpush1.bf16.msra.mxu0 0
        %6233 = vmatprep.subr.bf16.mxu0 0
        %6234 = vmatpush1.bf16.msra.mxu0 0
        %6235 = vmatprep.subr.bf16.mxu0 0
        %6236 = vmatpush1.bf16.msra.mxu0 0
        %6237 = vmatprep.subr.bf16.mxu0 0
        %6238 = vmatpush1.bf16.msra.mxu0 0
        %6239 = vmatprep.subr.bf16.mxu0 0
        %6240 = vmatpush1.bf16.msra.mxu0 0
        %6241 = vmatprep.subr.bf16.mxu0 0
        %6242 = vmatpush1.bf16.msra.mxu0 0
        %6243 = vmatprep.mubr.bf16.mxu0 0
        %6244 = vmatmul.mubr.bf16.gmra.mrb[0].mxu0 %v6206
        %v6245 = vpop.f32.mrb[0].mxu0
        %v6246 = vadd.f32 0.0, %v6245
        %v6247 = vpop.f32.mrb[0].mxu0
        %v6248 = vpop.f32.mrb[0].mxu0
        %v6249 = vpop.f32.mrb[0].mxu0
        %6250 = vdwg.mxu0
        %v6252 = vsel %vm1621, %v6153, 0
        %v6255 = vsel %vm1861, %v6157, 0
        %6257 = vmatprep.subr.bf16.mxu0 0
        %6258 = vmatpush1.bf16.msra.mxu0 %v6255
        %6259 = vmatprep.subr.bf16.mxu0 0
        %6260 = vmatpush1.bf16.msra.mxu0 0
        %6261 = vmatprep.subr.bf16.mxu0 0
        %6262 = vmatpush1.bf16.msra.mxu0 0
        %6263 = vmatprep.subr.bf16.mxu0 0
        %6264 = vmatpush1.bf16.msra.mxu0 0
        %6265 = vmatprep.subr.bf16.mxu0 0
        %6266 = vmatpush1.bf16.msra.mxu0 0
        %6267 = vmatprep.subr.bf16.mxu0 0
        %6268 = vmatpush1.bf16.msra.mxu0 0
        %6269 = vmatprep.subr.bf16.mxu0 0
        %6270 = vmatpush1.bf16.msra.mxu0 0
        %6271 = vmatprep.subr.bf16.mxu0 0
        %6272 = vmatpush1.bf16.msra.mxu0 0
        %6273 = vmatprep.subr.bf16.mxu0 0
        %6274 = vmatpush1.bf16.msra.mxu0 0
        %6275 = vmatprep.subr.bf16.mxu0 0
        %6276 = vmatpush1.bf16.msra.mxu0 0
        %6277 = vmatprep.subr.bf16.mxu0 0
        %6278 = vmatpush1.bf16.msra.mxu0 0
        %6279 = vmatprep.subr.bf16.mxu0 0
        %6280 = vmatpush1.bf16.msra.mxu0 0
        %6281 = vmatprep.subr.bf16.mxu0 0
        %6282 = vmatpush1.bf16.msra.mxu0 0
        %6283 = vmatprep.subr.bf16.mxu0 0
        %6284 = vmatpush1.bf16.msra.mxu0 0
        %6285 = vmatprep.subr.bf16.mxu0 0
        %6286 = vmatpush1.bf16.msra.mxu0 0
        %6287 = vmatprep.subr.bf16.mxu0 0
        %6288 = vmatpush1.bf16.msra.mxu0 0
        %6289 = vmatprep.mubr.bf16.mxu0 0
        %6290 = vmatmul.mubr.bf16.gmra.mrb[0].mxu0 %v6252
        %v6291 = vpop.f32.mrb[0].mxu0
        %v6292 = vadd.f32 0.0, %v6291
        %v6293 = vpop.f32.mrb[0].mxu0
        %v6294 = vpop.f32.mrb[0].mxu0
        %v6295 = vpop.f32.mrb[0].mxu0
        %6296 = vdwg.mxu0
        %v6298 = vsel %vm1621, %v6154, 0
        %v6301 = vsel %vm1861, %v6158, 0
        %6303 = vmatprep.subr.bf16.mxu0 0
        %6304 = vmatpush1.bf16.msra.mxu0 %v6301
        %6305 = vmatprep.subr.bf16.mxu0 0
        %6306 = vmatpush1.bf16.msra.mxu0 0
        %6307 = vmatprep.subr.bf16.mxu0 0
        %6308 = vmatpush1.bf16.msra.mxu0 0
        %6309 = vmatprep.subr.bf16.mxu0 0
        %6310 = vmatpush1.bf16.msra.mxu0 0
        %6311 = vmatprep.subr.bf16.mxu0 0
        %6312 = vmatpush1.bf16.msra.mxu0 0
        %6313 = vmatprep.subr.bf16.mxu0 0
        %6314 = vmatpush1.bf16.msra.mxu0 0
        %6315 = vmatprep.subr.bf16.mxu0 0
        %6316 = vmatpush1.bf16.msra.mxu0 0
        %6317 = vmatprep.subr.bf16.mxu0 0
        %6318 = vmatpush1.bf16.msra.mxu0 0
        %6319 = vmatprep.subr.bf16.mxu0 0
        %6320 = vmatpush1.bf16.msra.mxu0 0
        %6321 = vmatprep.subr.bf16.mxu0 0
        %6322 = vmatpush1.bf16.msra.mxu0 0
        %6323 = vmatprep.subr.bf16.mxu0 0
        %6324 = vmatpush1.bf16.msra.mxu0 0
        %6325 = vmatprep.subr.bf16.mxu0 0
        %6326 = vmatpush1.bf16.msra.mxu0 0
        %6327 = vmatprep.subr.bf16.mxu0 0
        %6328 = vmatpush1.bf16.msra.mxu0 0
        %6329 = vmatprep.subr.bf16.mxu0 0
        %6330 = vmatpush1.bf16.msra.mxu0 0
        %6331 = vmatprep.subr.bf16.mxu0 0
        %6332 = vmatpush1.bf16.msra.mxu0 0
        %6333 = vmatprep.subr.bf16.mxu0 0
        %6334 = vmatpush1.bf16.msra.mxu0 0
        %6335 = vmatprep.mubr.bf16.mxu0 0
        %6336 = vmatmul.mubr.bf16.gmra.mrb[0].mxu0 %v6298
        %v6337 = vpop.f32.mrb[0].mxu0
        %v6338 = vadd.f32 0.0, %v6337
        %v6339 = vpop.f32.mrb[0].mxu0
        %v6340 = vpop.f32.mrb[0].mxu0
        %v6341 = vpop.f32.mrb[0].mxu0
        %6342 = vdwg.mxu0
        %6344 = vrot.lane.b32.xlu0 %v6246, 8
        %v6345 = vpop.permute.xlu0 %6344
        %6348 = vrot.lane.b32.xlu0 %v6292, 16
        %v6349 = vpop.permute.xlu0 %6348
        %6352 = vrot.lane.b32.xlu0 %v6338, 24
        %v6353 = vpop.permute.xlu0 %6352
        %v6355 = vsel %vm1621, %v6200, %v6345
        %v6356 = vsel %vm2056, %v6355, %v6349
        %v6357 = vsel %vm2058, %v6356, %v6353
        %v6358 = vpack.c.bf16 %v6357, %v6357
        %v6360 = vlaneseq
        %v6361 = vshrl.u32 %v6360, 7
        %v6362 = vsub.s32 0, %v6361
        %v6363 = vrot.slane %v4969, %v6362
        %v6369 = vunpack.c.l.b16 %v4964
        %v6370 = vunpack.c.l.b16 %v4965
        %v6371 = vunpack.c.l.b16 %v4966
        %v6372 = vunpack.c.l.b16 %v4967
        %v6373 = vpack.c.b16 %v6370, %v6369
        %v6374 = vpack.c.b16 %v6372, %v6371
        %v6378 = vsel %vm1440, %v6358, 0
        %6380 = vmatprep.subr.bf16.mxu0 0
        %6381 = vmatpush1.bf16.msra.mxu0 %v6373
        %6382 = vmatprep.subr.bf16.mxu0 0
        %6383 = vmatpush1.bf16.msra.mxu0 %v6374
        %6384 = vmatprep.subr.bf16.mxu0 0
        %6385 = vmatpush1.bf16.msra.mxu0 0
        %6386 = vmatprep.subr.bf16.mxu0 0
        %6387 = vmatpush1.bf16.msra.mxu0 0
        %6388 = vmatprep.subr.bf16.mxu0 0
        %6389 = vmatpush1.bf16.msra.mxu0 0
        %6390 = vmatprep.subr.bf16.mxu0 0
        %6391 = vmatpush1.bf16.msra.mxu0 0
        %6392 = vmatprep.subr.bf16.mxu0 0
        %6393 = vmatpush1.bf16.msra.mxu0 0
        %6394 = vmatprep.subr.bf16.mxu0 0
        %6395 = vmatpush1.bf16.msra.mxu0 0
        %6396 = vmatprep.subr.bf16.mxu0 0
        %6397 = vmatpush1.bf16.msra.mxu0 0
        %6398 = vmatprep.subr.bf16.mxu0 0
        %6399 = vmatpush1.bf16.msra.mxu0 0
        %6400 = vmatprep.subr.bf16.mxu0 0
        %6401 = vmatpush1.bf16.msra.mxu0 0
        %6402 = vmatprep.subr.bf16.mxu0 0
        %6403 = vmatpush1.bf16.msra.mxu0 0
        %6404 = vmatprep.subr.bf16.mxu0 0
        %6405 = vmatpush1.bf16.msra.mxu0 0
        %6406 = vmatprep.subr.bf16.mxu0 0
        %6407 = vmatpush1.bf16.msra.mxu0 0
        %6408 = vmatprep.subr.bf16.mxu0 0
        %6409 = vmatpush1.bf16.msra.mxu0 0
        %6410 = vmatprep.subr.bf16.mxu0 0
        %6411 = vmatpush1.bf16.msra.mxu0 0
        %6412 = vmatprep.mubr.bf16.mxu0 0
        %6413 = vmatmul.mubr.bf16.gmra.mrb[0].mxu0 %v6378
        %v6414 = vpop.f32.mrb[0].mxu0
        %v6415 = vadd.f32 %v6363, %v6414
        %v6416 = vpop.f32.mrb[0].mxu0
        %v6417 = vpop.f32.mrb[0].mxu0
        %v6418 = vpop.f32.mrb[0].mxu0
        %6419 = vdwg.mxu0
        %v6420 = vadd.f32 %v5723, %v6415
        %v6421 = vsel %vm1440, %v6420, 0.0
        %6422 = vadd.xlane.f32.xlu0 %v6421
        %v6423 = vpop.xlane.xlu0 %6422
        %v6424 = vmul.f32 %v6423, %v2126
        %v6425 = vsub.f32 %v6420, %v6424
        %v6426 = vmul.f32 %v6425, %v6425
        %v6427 = vsel %vm1440, %v6426, 0.0
        %6428 = vadd.xlane.f32.xlu0 %v6427
        %v6429 = vpop.xlane.xlu0 %6428
        %v6430 = vmul.f32 %v6429, %v2126
        %v6431 = vadd.f32 %v6430, 1e-05
        %v6432 = vrsqrt.pop %v6431
        %v6433 = vmul.f32 %v6425, %v6432
        %v6435 = vlaneseq
        %v6436 = vshrl.u32 %v6435, 7
        %v6437 = vsub.s32 0, %v6436
        %v6438 = vrot.slane %v4993, %v6437
        %v6440 = vmul.f32 %v6433, %v6438
        %v6442 = vlaneseq
        %v6443 = vshrl.u32 %v6442, 7
        %v6444 = vsub.s32 0, %v6443
        %v6445 = vrot.slane %v4995, %v6444
        %v6447 = vadd.f32 %v6440, %v6445
        %v6448 = vpack.c.bf16 %v6447, %v6447
        %v6450 = vlaneseq
        %v6451 = vshrl.u32 %v6450, 7
        %v6452 = vsub.s32 0, %v6451
        %v6453 = vrot.slane %v4976, %v6452
        %v6459 = vunpack.c.l.b16 %v4971
        %v6460 = vunpack.c.l.b16 %v4972
        %v6461 = vunpack.c.l.b16 %v4973
        %v6462 = vunpack.c.l.b16 %v4974
        %v6463 = vpack.c.b16 %v6460, %v6459
        %v6464 = vpack.c.b16 %v6462, %v6461
        %v6468 = vsel %vm1440, %v6448, 0
        %6470 = vmatprep.subr.bf16.mxu0 0
        %6471 = vmatpush1.bf16.msra.mxu0 %v6463
        %6472 = vmatprep.subr.bf16.mxu0 0
        %6473 = vmatpush1.bf16.msra.mxu0 %v6464
        %6474 = vmatprep.subr.bf16.mxu0 0
        %6475 = vmatpush1.bf16.msra.mxu0 0
        %6476 = vmatprep.subr.bf16.mxu0 0
        %6477 = vmatpush1.bf16.msra.mxu0 0
        %6478 = vmatprep.subr.bf16.mxu0 0
        %6479 = vmatpush1.bf16.msra.mxu0 0
        %6480 = vmatprep.subr.bf16.mxu0 0
        %6481 = vmatpush1.bf16.msra.mxu0 0
        %6482 = vmatprep.subr.bf16.mxu0 0
        %6483 = vmatpush1.bf16.msra.mxu0 0
        %6484 = vmatprep.subr.bf16.mxu0 0
        %6485 = vmatpush1.bf16.msra.mxu0 0
        %6486 = vmatprep.subr.bf16.mxu0 0
        %6487 = vmatpush1.bf16.msra.mxu0 0
        %6488 = vmatprep.subr.bf16.mxu0 0
        %6489 = vmatpush1.bf16.msra.mxu0 0
        %6490 = vmatprep.subr.bf16.mxu0 0
        %6491 = vmatpush1.bf16.msra.mxu0 0
        %6492 = vmatprep.subr.bf16.mxu0 0
        %6493 = vmatpush1.bf16.msra.mxu0 0
        %6494 = vmatprep.subr.bf16.mxu0 0
        %6495 = vmatpush1.bf16.msra.mxu0 0
        %6496 = vmatprep.subr.bf16.mxu0 0
        %6497 = vmatpush1.bf16.msra.mxu0 0
        %6498 = vmatprep.subr.bf16.mxu0 0
        %6499 = vmatpush1.bf16.msra.mxu0 0
        %6500 = vmatprep.subr.bf16.mxu0 0
        %6501 = vmatpush1.bf16.msra.mxu0 0
        %6502 = vmatprep.mubr.bf16.mxu0 0
        %6503 = vmatmul.mubr.bf16.gmra.mrb[0].mxu0 %v6468
        %v6504 = vpop.f32.mrb[0].mxu0
        %v6505 = vadd.f32 %v6453, %v6504
        %v6506 = vpop.f32.mrb[0].mxu0
        %v6507 = vpop.f32.mrb[0].mxu0
        %v6508 = vpop.f32.mrb[0].mxu0
        %6509 = vdwg.mxu0
        %v6510 = vmax.f32 %v6505, 0.0
        %v6511 = vpack.c.bf16 %v6510, %v6510
        %v6520 = vunpack.c.l.b16 %v4978
        %v6521 = vunpack.c.l.b16 %v4979
        %v6522 = vunpack.c.l.b16 %v4980
        %v6523 = vunpack.c.l.b16 %v4981
        %v6524 = vunpack.c.l.b16 %v4982
        %v6525 = vunpack.c.l.b16 %v4983
        %v6526 = vunpack.c.l.b16 %v4984
        %v6527 = vunpack.c.l.b16 %v4985
        %v6528 = vpack.c.b16 %v6521, %v6520
        %v6529 = vpack.c.b16 %v6523, %v6522
        %v6530 = vpack.c.b16 %v6525, %v6524
        %v6531 = vpack.c.b16 %v6527, %v6526
        %v6537 = vsel %vm2239, %v6511, 0
        %6539 = vmatprep.subr.bf16.mxu0 0
        %6540 = vmatpush1.bf16.msra.mxu0 %v6528
        %6541 = vmatprep.subr.bf16.mxu0 0
        %6542 = vmatpush1.bf16.msra.mxu0 %v6529
        %6543 = vmatprep.subr.bf16.mxu0 0
        %6544 = vmatpush1.bf16.msra.mxu0 %v6530
        %6545 = vmatprep.subr.bf16.mxu0 0
        %6546 = vmatpush1.bf16.msra.mxu0 %v6531
        %6547 = vmatprep.subr.bf16.mxu0 0
        %6548 = vmatpush1.bf16.msra.mxu0 0
        %6549 = vmatprep.subr.bf16.mxu0 0
        %6550 = vmatpush1.bf16.msra.mxu0 0
        %6551 = vmatprep.subr.bf16.mxu0 0
        %6552 = vmatpush1.bf16.msra.mxu0 0
        %6553 = vmatprep.subr.bf16.mxu0 0
        %6554 = vmatpush1.bf16.msra.mxu0 0
        %6555 = vmatprep.subr.bf16.mxu0 0
        %6556 = vmatpush1.bf16.msra.mxu0 0
        %6557 = vmatprep.subr.bf16.mxu0 0
        %6558 = vmatpush1.bf16.msra.mxu0 0
        %6559 = vmatprep.subr.bf16.mxu0 0
        %6560 = vmatpush1.bf16.msra.mxu0 0
        %6561 = vmatprep.subr.bf16.mxu0 0
        %6562 = vmatpush1.bf16.msra.mxu0 0
        %6563 = vmatprep.subr.bf16.mxu0 0
        %6564 = vmatpush1.bf16.msra.mxu0 0
        %6565 = vmatprep.subr.bf16.mxu0 0
        %6566 = vmatpush1.bf16.msra.mxu0 0
        %6567 = vmatprep.subr.bf16.mxu0 0
        %6568 = vmatpush1.bf16.msra.mxu0 0
        %6569 = vmatprep.subr.bf16.mxu0 0
        %6570 = vmatpush1.bf16.msra.mxu0 0
        %6571 = vmatprep.mubr.bf16.mxu0 0
        %6572 = vmatmul.mubr.bf16.gmra.mrb[0].mxu0 %v6537
        %v6573 = vpop.f32.mrb[0].mxu0
        %v6574 = vadd.f32 0.0, %v6573
        %v6575 = vpop.f32.mrb[0].mxu0
        %v6576 = vpop.f32.mrb[0].mxu0
        %v6577 = vpop.f32.mrb[0].mxu0
        %6578 = vdwg.mxu0
        %v6579 = vadd.f32 %v6447, %v6574
        %v6581 = vlaneseq
        %v6582 = vshrl.u32 %v6581, 7
        %v6583 = vsub.s32 0, %v6582
        %v6584 = vrot.slane %v4987, %v6583
        %v6586 = vadd.f32 %v6579, %v6584
        %v6587 = vsel %vm1440, %v6586, 0.0
        %6588 = vadd.xlane.f32.xlu0 %v6587
        %v6589 = vpop.xlane.xlu0 %6588
        %v6590 = vmul.f32 %v6589, %v2126
        %v6591 = vsub.f32 %v6586, %v6590
        %v6592 = vmul.f32 %v6591, %v6591
        %v6593 = vsel %vm1440, %v6592, 0.0
        %6594 = vadd.xlane.f32.xlu0 %v6593
        %v6595 = vpop.xlane.xlu0 %6594
        %v6596 = vmul.f32 %v6595, %v2126
        %v6597 = vadd.f32 %v6596, 1e-05
        %v6598 = vrsqrt.pop %v6597
        %v6599 = vmul.f32 %v6591, %v6598
        %v6601 = vlaneseq
        %v6602 = vshrl.u32 %v6601, 7
        %v6603 = vsub.s32 0, %v6602
        %v6604 = vrot.slane %v4997, %v6603
        %v6606 = vmul.f32 %v6599, %v6604
        %v6608 = vlaneseq
        %v6609 = vshrl.u32 %v6608, 7
        %v6610 = vsub.s32 0, %v6609
        %v6611 = vrot.slane %v4999, %v6610
        %v6613 = vadd.f32 %v6606, %v6611
        %v6614 = vld [vmem:[%s69] sm:$0x1]
        %v6615 = vld [vmem:[%s71] sm:$0x1]
        %v6616 = vsel %vm1440, %v6613, 0.0
        %6617 = vadd.xlane.f32.xlu0 %v6616
        %v6618 = vpop.xlane.xlu0 %6617
        %v6619 = vmul.f32 %v6618, %v2126
        %v6620 = vsub.f32 %v6613, %v6619
        %v6621 = vmul.f32 %v6620, %v6620
        %v6622 = vsel %vm1440, %v6621, 0.0
        %6623 = vadd.xlane.f32.xlu0 %v6622
        %v6624 = vpop.xlane.xlu0 %6623
        %v6625 = vmul.f32 %v6624, %v2126
        %v6626 = vadd.f32 %v6625, 1e-05
        %v6627 = vrsqrt.pop %v6626
        %v6628 = vmul.f32 %v6620, %v6627
        %v6630 = vlaneseq
        %v6631 = vshrl.u32 %v6630, 7
        %v6632 = vsub.s32 0, %v6631
        %v6633 = vrot.slane %v6614, %v6632
        %v6635 = vmul.f32 %v6628, %v6633
        %v6637 = vlaneseq
        %v6638 = vshrl.u32 %v6637, 7
        %v6639 = vsub.s32 0, %v6638
        %v6640 = vrot.slane %v6615, %v6639
        %v6642 = vadd.f32 %v6635, %v6640
        %v6643 = vld [vmem:[%s73] sm:$0xf]
        %v6644 = vld [vmem:[%s73 + $0x4] sm:$0xf]
        %v6645 = vld [vmem:[%s73 + $0x8] sm:$0xf]
        %v6646 = vld [vmem:[%s73 + $0xc] sm:$0xf]
        %v6647 = vpack.c.bf16 %v6642, %v6642
        %v6648 = vld [vmem:[%s75] sm:$0x1]
        %v6650 = vlaneseq
        %v6651 = vshrl.u32 %v6650, 7
        %v6652 = vsub.s32 0, %v6651
        %v6653 = vrot.slane %v6648, %v6652
        %v6659 = vunpack.c.l.b16 %v6643
        %v6660 = vunpack.c.l.b16 %v6644
        %v6661 = vunpack.c.l.b16 %v6645
        %v6662 = vunpack.c.l.b16 %v6646
        %v6663 = vpack.c.b16 %v6660, %v6659
        %v6664 = vpack.c.b16 %v6662, %v6661
        %v6668 = vsel %vm1440, %v6647, 0
        %6670 = vmatprep.subr.bf16.mxu0 0
        %6671 = vmatpush1.bf16.msra.mxu0 %v6663
        %6672 = vmatprep.subr.bf16.mxu0 0
        %6673 = vmatpush1.bf16.msra.mxu0 %v6664
        %6674 = vmatprep.subr.bf16.mxu0 0
        %6675 = vmatpush1.bf16.msra.mxu0 0
        %6676 = vmatprep.subr.bf16.mxu0 0
        %6677 = vmatpush1.bf16.msra.mxu0 0
        %6678 = vmatprep.subr.bf16.mxu0 0
        %6679 = vmatpush1.bf16.msra.mxu0 0
        %6680 = vmatprep.subr.bf16.mxu0 0
        %6681 = vmatpush1.bf16.msra.mxu0 0
        %6682 = vmatprep.subr.bf16.mxu0 0
        %6683 = vmatpush1.bf16.msra.mxu0 0
        %6684 = vmatprep.subr.bf16.mxu0 0
        %6685 = vmatpush1.bf16.msra.mxu0 0
        %6686 = vmatprep.subr.bf16.mxu0 0
        %6687 = vmatpush1.bf16.msra.mxu0 0
        %6688 = vmatprep.subr.bf16.mxu0 0
        %6689 = vmatpush1.bf16.msra.mxu0 0
        %6690 = vmatprep.subr.bf16.mxu0 0
        %6691 = vmatpush1.bf16.msra.mxu0 0
        %6692 = vmatprep.subr.bf16.mxu0 0
        %6693 = vmatpush1.bf16.msra.mxu0 0
        %6694 = vmatprep.subr.bf16.mxu0 0
        %6695 = vmatpush1.bf16.msra.mxu0 0
        %6696 = vmatprep.subr.bf16.mxu0 0
        %6697 = vmatpush1.bf16.msra.mxu0 0
        %6698 = vmatprep.subr.bf16.mxu0 0
        %6699 = vmatpush1.bf16.msra.mxu0 0
        %6700 = vmatprep.subr.bf16.mxu0 0
        %6701 = vmatpush1.bf16.msra.mxu0 0
        %6702 = vmatprep.mubr.bf16.mxu0 0
        %6703 = vmatmul.mubr.bf16.gmra.mrb[0].mxu0 %v6668
        %v6704 = vpop.f32.mrb[0].mxu0
        %v6705 = vadd.f32 %v6653, %v6704
        %v6706 = vpop.f32.mrb[0].mxu0
        %v6707 = vpop.f32.mrb[0].mxu0
        %v6708 = vpop.f32.mrb[0].mxu0
        %6709 = vdwg.mxu0
        %6710 = vst [vmem:[%s1390] sm:$0xff] %v6705
        %s6711 = sand.u32 %s919, 1
        %s6712 = scalar_lea.sflag [#allocation4], %s6711
        %s6713 = sand.u32 %s919, 1
        %s6714 = smul.addr %s6713, 8
        %s6715 = scalar_lea.vmem [#allocation26], %s6714
        // Predicated region
        $region233: #{tpu_custom_call.1} parent=171 // pred_check
          %p6716 = pneg %p929
        $region234: #{tpu_custom_call.1} parent=171 // pred_check_branch
          %6718 = sbr.rel (%p6716) target = $region236
        $region235: #{tpu_custom_call.1} parent=171 // pred_region
          %s6720 = ssub.s32 128, 128
          %6721 = vsyncadd %s6712, %s6720
          %s6722 = smul.addr %s103, 128
          %s6723 = scalar_lea.hbm %s77, %s6722
          %s6725 = sshll.u32 %s6715, 4
          %s6726 = int_to_ptr.vmem [resolvable:$true] %s6725
          %6728 = dma.vmem_to_hbm [thread:$0]  %s6726, 128, %s6723, %s6712
        $region236: #{tpu_custom_call.1} parent=171 // pred_fallthru
          _
      $region172: #{tpu_custom_call.1} parent=5 // pred_fallthru
        _
      %p6729 = scmp.le.s32.totalorder 2, %s98
      // Predicated region
      $region237: #{tpu_custom_call.1} parent=5 // pred_check
        %p6730 = pneg %p6729
      $region238: #{tpu_custom_call.1} parent=5 // pred_check_branch
        %6732 = sbr.rel (%p6730) target = $region240
      $region239: #{tpu_custom_call.1} parent=5 // pred_region
        %s6733 = ssub.s32 %s98, 2
        // Predicated region
        $region241: #{tpu_custom_call.1} parent=239 // pred_check
          %p6734 = pneg %p935
        $region242: #{tpu_custom_call.1} parent=239 // pred_check_branch
          %6736 = sbr.rel (%p6734) target = $region244
        $region243: #{tpu_custom_call.1} parent=239 // pred_region
          %s6737 = sand.u32 %s920, 1
          %s6738 = scalar_lea.sflag [#allocation4], %s6737
          %s6739 = sand.u32 %s920, 1
          %s6740 = smul.addr %s6739, 8
          %s6741 = scalar_lea.vmem [#allocation26], %s6740
          %6742 = dma.done %s6738, 128
        $region244: #{tpu_custom_call.1} parent=239 // pred_fallthru
          _
      $region240: #{tpu_custom_call.1} parent=5 // pred_fallthru
        _
    $region6: #{tpu_custom_call.1} parent=1 // loop_footer
      %s102 = sadd.s32 1, %s98
    $region7: #{tpu_custom_call.1} parent=1 // loop_footer_branch
      %97 = sbr.rel target = $region3
    $region8: #{tpu_custom_call.1} parent=1 // loop_exit
      _
    %6743 = vsyncpa [#allocation3], 1
    %s6744 = scalar_lea.sflag [#allocation3], 1
    %6745 = vsyncpa %s6744, 1
    %6746 = vsyncpa [#allocation6], 1
    %s6747 = scalar_lea.sflag [#allocation6], 1
    %6748 = vsyncpa %s6747, 1
    %6749 = vsyncpa [#allocation9], 1
    %6750 = vsyncpa [#allocation12], 1
    %6751 = vsyncpa [#allocation15], 1
    %6752 = vsyncpa [#allocation18], 1
    %6753 = vsyncpa [#allocation21], 1
    %6754 = vsyncpa [#allocation24], 1
    %6755 = vsyncpa [#allocation4], 1
    %s6756 = scalar_lea.sflag [#allocation4], 1
    %6757 = vsyncpa %s6756, 1

</llo_original>
